<compile_context>
chip_gen: v6e
topology: v6e:2x2x1
jax: 0.10.0
libtpu: 0.0.40
codegen_flags: <defaults>
</compile_context>

<pallas_src>
import functools

import jax
import jax.numpy as jnp
from jax.experimental import pallas as pl
from jax.experimental.pallas import tpu as pltpu

CHANNEL = 64
INPUT_CHANNEL = 3
LRELU_SLOPE = 0.2
BN_EPS = 1e-5


# ----------------------------- Pallas kernels -----------------------------

def _direct_conv_kernel(x_ref, w_ref, b_ref, *out_refs, kh, kw, stride, wo, act,
                        want_stats):
    """One grid step (n, r, di): add the di-th kernel-row contribution of output
    row (n, r) into the resident f32 output block; finalize at di == kh-1.

    x_ref : (1, stride, Wq, Cin)   phase-split padded input row h = r*stride + di
    w_ref : (kh, kw, Cin, Cout)    full weights (constant index -> DMA'd once)
    b_ref : (1, Cout)              bias
    out_refs[0] : (1, 1, Wo, Cout) f32 output row (accumulator across di)
    out_refs[1] : (1, 1, 2, Cout)  per-row [sum, sum_sq] partials (BN layers only)
    """
    y_ref = out_refs[0]
    di = pl.program_id(2)

    @pl.when(di == 0)
    def _():
        y_ref[...] = jnp.zeros_like(y_ref)

    acc = jnp.zeros(y_ref.shape[2:], jnp.float32)            # (Wo, Cout)
    for dj in range(kw):                                      # unrolled kw taps
        a = x_ref[0, dj % stride, pl.ds(dj // stride, wo), :]  # (Wo, Cin)
        acc += jnp.dot(a, w_ref[di, dj], preferred_element_type=jnp.float32)
    y_ref[...] += acc[None, None]

    @pl.when(di == kh - 1)
    def _():
        y = y_ref[...] + b_ref[...]
        if act == "lrelu":
            y = jnp.where(y >= 0.0, y, LRELU_SLOPE * y)
        elif act == "sigmoid":
            y = jax.nn.sigmoid(y)
        y_ref[...] = y
        if want_stats:
            s_ref = out_refs[1]
            s_ref[:, :, 0:1, :] = jnp.sum(y, axis=2, keepdims=True)
            s_ref[:, :, 1:2, :] = jnp.sum(y * y, axis=2, keepdims=True)


def _affine_lrelu_kernel(y_ref, scale_ref, shift_ref, o_ref):
    """Per-channel affine (folded BatchNorm) + LeakyReLU(0.2), M-tiled."""
    y = y_ref[...] * scale_ref[...] + shift_ref[...]
    o_ref[...] = jnp.where(y >= 0.0, y, LRELU_SLOPE * y)


# ----------------------------- kernel wrappers -----------------------------

def _direct_conv(x_nhwc, w_hwio, bias, *, stride, pad, act, want_stats):
    N, H, W, Cin = x_nhwc.shape
    kh, kw, _, Cout = w_hwio.shape
    Ho = (H + 2 * pad - kh) // stride + 1
    Wo = (W + 2 * pad - kw) // stride + 1
    Hp, Wp = H + 2 * pad, W + 2 * pad

    # Phase-split padded columns by the stride so every in-kernel tap read is a
    # contiguous (Wo, Cin) slice:
    #   xph[n, h*stride + p, wq, c] == xpad[n, h, wq*stride + p, c]
    Wq = -(-Wp // stride)
    xpad = jnp.pad(x_nhwc, ((0, 0), (pad, pad), (pad, pad + Wq * stride - Wp), (0, 0)))
    if stride == 1:
        xph = xpad
    else:
        xph = (xpad.reshape(N, Hp, Wq, stride, Cin)
                   .transpose(0, 1, 3, 2, 4)
                   .reshape(N, Hp * stride, Wq, Cin))

    # bf16 operands on the MXU (f32 accumulation) for the wide layers; conv1
    # (Cin=6) stays f32 (lane-sparse and tiny anyway).
    cdt = jnp.bfloat16 if Cin >= 64 else jnp.float32
    xph = xph.astype(cdt)
    wk = w_hwio.astype(cdt)
    b2 = bias.reshape(1, Cout).astype(jnp.float32)

    out_shape = [jax.ShapeDtypeStruct((N, Ho, Wo, Cout), jnp.float32)]
    out_specs = [pl.BlockSpec((1, 1, Wo, Cout), lambda n, r, di: (n, r, 0, 0))]
    if want_stats:
        out_shape.append(jax.ShapeDtypeStruct((N, Ho, 2, Cout), jnp.float32))
        out_specs.append(pl.BlockSpec((1, 1, 2, Cout), lambda n, r, di: (n, r, 0, 0)))

    kernel = functools.partial(_direct_conv_kernel, kh=kh, kw=kw, stride=stride,
                               wo=Wo, act=act, want_stats=want_stats)
    flops = 2 * N * Ho * Wo * kh * kw * Cin * Cout
    bytes_accessed = (kh * xph.size * xph.dtype.itemsize
                      + wk.size * wk.dtype.itemsize
                      + 4 * N * Ho * Wo * Cout * (2 if want_stats else 1))
    trans = N * Ho * Wo * Cout if act == "sigmoid" else 0

    outs = pl.pallas_call(
        kernel,
        out_shape=out_shape,
        grid_spec=pltpu.PrefetchScalarGridSpec(
            num_scalar_prefetch=0,
            grid=(N, Ho, kh),
            in_specs=[
                pl.BlockSpec((1, stride, Wq, Cin),
                             lambda n, r, di: (n, r * stride + di, 0, 0)),
                pl.BlockSpec((kh, kw, Cin, Cout), lambda n, r, di: (0, 0, 0, 0)),
                pl.BlockSpec((1, Cout), lambda n, r, di: (0, 0)),
            ],
            out_specs=out_specs,
        ),
        compiler_params=pltpu.CompilerParams(
            dimension_semantics=("parallel", "parallel", "arbitrary")),
        cost_estimate=pl.CostEstimate(flops=flops, transcendentals=trans,
                                      bytes_accessed=bytes_accessed),
    )(xph, wk, b2)
    if want_stats:
        return outs[0], outs[1]
    return outs[0]


def _row_tile(m):
    for t in (512, 256, 128, 64, 32, 16, 8):
        if m % t == 0:
            return t
    return m


def _affine_lrelu(y2d, scale, shift):
    M, C = y2d.shape
    tm = _row_tile(M)
    return pl.pallas_call(
        _affine_lrelu_kernel,
        out_shape=jax.ShapeDtypeStruct((M, C), jnp.float32),
        grid_spec=pltpu.PrefetchScalarGridSpec(
            num_scalar_prefetch=0,
            grid=(M // tm,),
            in_specs=[
                pl.BlockSpec((tm, C), lambda i: (i, 0)),
                pl.BlockSpec((1, C), lambda i: (0, 0)),
                pl.BlockSpec((1, C), lambda i: (0, 0)),
            ],
            out_specs=pl.BlockSpec((tm, C), lambda i: (i, 0)),
        ),
        compiler_params=pltpu.CompilerParams(dimension_semantics=("parallel",)),
        cost_estimate=pl.CostEstimate(flops=3 * M * C, transcendentals=0,
                                      bytes_accessed=8 * M * C),
    )(y2d, scale, shift)


# ----------------------------- layer glue -----------------------------

def conv_act(x_nhwc, w, b, stride, pad, act):
    return _direct_conv(x_nhwc, w, b, stride=stride, pad=pad, act=act,
                        want_stats=False)


def conv_bn_lrelu(x_nhwc, w, b, gamma, beta, stride, pad):
    # Conv + bias with per-row channel sums/sum-of-squares fused in the epilogue.
    y4, stats = _direct_conv(x_nhwc, w, b, stride=stride, pad=pad, act="none",
                             want_stats=True)
    N, Ho, Wo, C = y4.shape
    cnt = N * Ho * Wo
    ssum = stats.sum(axis=(0, 1))                         # tiny (2, C) reduction
    mean = ssum[0] / cnt
    var = jnp.maximum(ssum[1] / cnt - mean * mean, 0.0)    # biased var (PyTorch BN train)
    inv = gamma / jnp.sqrt(var + BN_EPS)
    scale = inv.reshape(1, C)
    shift = (beta - mean * inv).reshape(1, C)
    y = _affine_lrelu(y4.reshape(cnt, C), scale, shift)
    return y.reshape(N, Ho, Wo, C)


# ----------------------------- model -----------------------------

def init_params(key):
    def conv(k, kh, kw, cin, cout):
        kw_, kb = jax.random.split(k)
        return {
            "w": jax.random.normal(kw_, (kh, kw, cin, cout), jnp.float32) * 0.05,
            "b": jax.random.normal(kb, (cout,), jnp.float32) * 0.05,
        }

    def bn(k, c):
        kg, kb = jax.random.split(k)
        return {
            "gamma": 1.0 + 0.1 * jax.random.normal(kg, (c,), jnp.float32),
            "beta": 0.1 * jax.random.normal(kb, (c,), jnp.float32),
        }

    ks = jax.random.split(key, 10)
    C = CHANNEL
    return {
        "c1": conv(ks[0], 4, 4, INPUT_CHANNEL * 2, C),
        "c2a": conv(ks[1], 4, 4, C, C * 2), "bn2a": bn(ks[2], C * 2),
        "c2b": conv(ks[3], 4, 4, C * 2, C * 4), "bn2b": bn(ks[4], C * 4),
        "c3a": conv(ks[5], 3, 3, C * 4, C * 8), "bn3a": bn(ks[6], C * 8),
        "c3b": conv(ks[7], 3, 3, C * 8, C * 8), "bn3b": bn(ks[8], C * 8),
        "c4": conv(ks[9], 3, 3, C * 8, 1),
    }


def discriminator_forward(params, x_nchw, y_nchw):
    p = params
    xy = jnp.concatenate([x_nchw, y_nchw], axis=1)       # torch.cat dim=1
    h = jnp.transpose(xy, (0, 2, 3, 1))                  # NCHW -> NHWC
    # conv1: Conv(6->64, k4 s2 p1) + LeakyReLU(0.2)
    h = conv_act(h, p["c1"]["w"], p["c1"]["b"], 2, 1, "lrelu")
    # conv2: Conv+BN+LReLU (64->128, k4 s2 p1), Conv+BN+LReLU (128->256, k4 s2 p1)
    h = conv_bn_lrelu(h, p["c2a"]["w"], p["c2a"]["b"], p["bn2a"]["gamma"], p["bn2a"]["beta"], 2, 1)
    h = conv_bn_lrelu(h, p["c2b"]["w"], p["c2b"]["b"], p["bn2b"]["gamma"], p["bn2b"]["beta"], 2, 1)
    # conv3: Conv+BN+LReLU (256->512, k3 s1 p1), Conv+BN+LReLU (512->512, k3 s1 p1)
    h = conv_bn_lrelu(h, p["c3a"]["w"], p["c3a"]["b"], p["bn3a"]["gamma"], p["bn3a"]["beta"], 1, 1)
    h = conv_bn_lrelu(h, p["c3b"]["w"], p["c3b"]["b"], p["bn3b"]["gamma"], p["bn3b"]["beta"], 1, 1)
    # conv4: Conv(512->1, k3 s1 p1) + Sigmoid
    h = conv_act(h, p["c4"]["w"], p["c4"]["b"], 1, 1, "sigmoid")
    return jnp.transpose(h, (0, 3, 1, 2))                # back to NCHW


# ----------------------------- pure-JAX reference (sanity check) -----------------------------

def _reference_forward(params, x_nchw, y_nchw):
    p = params

    def conv(x, w, b, stride, pad):
        y = jax.lax.conv_general_dilated(
            x, w, window_strides=(stride, stride),
            padding=[(pad, pad), (pad, pad)],
            dimension_numbers=("NHWC", "HWIO", "NHWC"))
        return y + b

    def bn_lrelu(y, gamma, beta):
        mean = y.mean(axis=(0, 1, 2))
        var = y.var(axis=(0, 1, 2))
        y = (y - mean) / jnp.sqrt(var + BN_EPS) * gamma + beta
        return jnp.where(y >= 0.0, y, LRELU_SLOPE * y)

    h = jnp.transpose(jnp.concatenate([x_nchw, y_nchw], axis=1), (0, 2, 3, 1))
    h = conv(h, p["c1"]["w"], p["c1"]["b"], 2, 1)
    h = jnp.where(h >= 0.0, h, LRELU_SLOPE * h)
    h = bn_lrelu(conv(h, p["c2a"]["w"], p["c2a"]["b"], 2, 1), p["bn2a"]["gamma"], p["bn2a"]["beta"])
    h = bn_lrelu(conv(h, p["c2b"]["w"], p["c2b"]["b"], 2, 1), p["bn2b"]["gamma"], p["bn2b"]["beta"])
    h = bn_lrelu(conv(h, p["c3a"]["w"], p["c3a"]["b"], 1, 1), p["bn3a"]["gamma"], p["bn3a"]["beta"])
    h = bn_lrelu(conv(h, p["c3b"]["w"], p["c3b"]["b"], 1, 1), p["bn3b"]["gamma"], p["bn3b"]["beta"])
    h = jax.nn.sigmoid(conv(h, p["c4"]["w"], p["c4"]["b"], 1, 1))
    return jnp.transpose(h, (0, 3, 1, 2))


if __name__ == "__main__":
    key = jax.random.PRNGKey(0)
    kx, ky, kp = jax.random.split(key, 3)
    x = jax.random.normal(kx, (2, INPUT_CHANNEL, 16, 16), jnp.float32)   # NCHW
    y = jax.random.normal(ky, (2, INPUT_CHANNEL, 16, 16), jnp.float32)   # NCHW
    params = init_params(kp)

    out = jax.block_until_ready(jax.jit(discriminator_forward)(params, x, y))
    assert out.shape == (2, 1, 2, 2), out.shape
    assert bool(jnp.all((out >= 0.0) & (out <= 1.0))), "sigmoid range violated"

    # Loose tolerance: the Pallas path feeds the MXU bf16 (f32 accumulation).
    ref = jax.block_until_ready(jax.jit(_reference_forward)(params, x, y))
    assert bool(jnp.allclose(out, ref, atol=0.1)), float(jnp.max(jnp.abs(out - ref)))
    print("KERNEL_OK")
</pallas_src>

<mosaic_0001>
module attributes {stable_mosaic.version = 11 : i64} {
  func.func @_direct_conv_kernel(%arg0: i32, %arg1: i32, %arg2: i32, %arg3: memref<1x2x9x6xf32, #tpu.memory_space<vmem>>, %arg4: memref<4x4x6x64xf32, #tpu.memory_space<vmem>>, %arg5: memref<1x64xf32, #tpu.memory_space<vmem>>, %arg6: memref<1x1x8x64xf32, #tpu.memory_space<vmem>>) attributes {dimension_semantics = [#tpu.dimension_semantics<parallel>, #tpu.dimension_semantics<parallel>, #tpu.dimension_semantics<arbitrary>], iteration_bounds = array<i64: 2, 8, 4>, scalar_prefetch = 0 : i64, scratch_operands = 0 : i64, tpu.core_type = #tpu.core_type<tc>, window_params = [{transform_indices = @transform_0, window_bounds = array<i64: 1, 2, 9, 6>}, {pipeline_mode = #tpu.pipeline_mode<synchronous>, transform_indices = @transform_1, window_bounds = array<i64: 4, 4, 6, 64>}, {pipeline_mode = #tpu.pipeline_mode<synchronous>, transform_indices = @transform_2, window_bounds = array<i64: 1, 64>}, {transform_indices = @transform_3, window_bounds = array<i64: 1, 1, 8, 64>}]} {
    %c0_i32 = arith.constant 0 : i32
    %0 = arith.cmpi eq, %arg2, %c0_i32 : i32
    %1 = arith.extui %0 : i1 to i32
    %c0_i32_0 = arith.constant 0 : i32
    %2 = arith.cmpi ne, %1, %c0_i32_0 : i32
    scf.if %2 {
      %cst_38 = arith.constant 0.000000e+00 : f32
      %39 = vector.broadcast %cst_38 : f32 to vector<1x1x8x64xf32>
      %c0_39 = arith.constant 0 : index
      %c0_40 = arith.constant 0 : index
      %c0_41 = arith.constant 0 : index
      %c0_42 = arith.constant 0 : index
      %40 = vector.load %arg6[%c0_39, %c0_40, %c0_41, %c0_42] : memref<1x1x8x64xf32, #tpu.memory_space<vmem>>, vector<1x1x8x64xf32>
      tpu.vector_store %arg6[%c0_39, %c0_40, %c0_41, %c0_42], %39 {strides = array<i32>} : memref<1x1x8x64xf32, #tpu.memory_space<vmem>>, vector<1x1x8x64xf32>,
    } else {
    }
    %cst = arith.constant 0.000000e+00 : f32
    %3 = vector.broadcast %cst : f32 to vector<8x64xf32>
    %c0 = arith.constant 0 : index
    %c0_1 = arith.constant 0 : index
    %c0_2 = arith.constant 0 : index
    %c0_3 = arith.constant 0 : index
    %4 = vector.load %arg3[%c0, %c0_1, %c0_2, %c0_3] : memref<1x2x9x6xf32, #tpu.memory_space<vmem>>, vector<1x1x8x6xf32>
    %5 = vector.shape_cast %4 : vector<1x1x8x6xf32> to vector<8x6xf32>
    %6 = arith.index_cast %arg2 : i32 to index
    %c0_4 = arith.constant 0 : index
    %c0_5 = arith.constant 0 : index
    %c0_6 = arith.constant 0 : index
    %7 = vector.load %arg4[%6, %c0_4, %c0_5, %c0_6] : memref<4x4x6x64xf32, #tpu.memory_space<vmem>>, vector<1x1x6x64xf32>
    %8 = vector.shape_cast %7 : vector<1x1x6x64xf32> to vector<6x64xf32>
    %cst_7 = arith.constant dense<0.000000e+00> : vector<8x64xf32>
    %9 = tpu.matmul %5, %8, %cst_7 {dimension_numbers = #tpu.dot_dimension_numbers<[1], [0], [0], [1], [0, 0, 1, 1], [], []>} : vector<8x6xf32>, vector<6x64xf32>, vector<8x64xf32> -> vector<8x64xf32>
    %10 = arith.addf %3, %9 : vector<8x64xf32>
    %c0_8 = arith.constant 0 : index
    %c1 = arith.constant 1 : index
    %c0_9 = arith.constant 0 : index
    %c0_10 = arith.constant 0 : index
    %11 = vector.load %arg3[%c0_8, %c1, %c0_9, %c0_10] : memref<1x2x9x6xf32, #tpu.memory_space<vmem>>, vector<1x1x8x6xf32>
    %12 = vector.shape_cast %11 : vector<1x1x8x6xf32> to vector<8x6xf32>
    %13 = arith.index_cast %arg2 : i32 to index
    %c1_11 = arith.constant 1 : index
    %c0_12 = arith.constant 0 : index
    %c0_13 = arith.constant 0 : index
    %14 = vector.load %arg4[%13, %c1_11, %c0_12, %c0_13] : memref<4x4x6x64xf32, #tpu.memory_space<vmem>>, vector<1x1x6x64xf32>
    %15 = vector.shape_cast %14 : vector<1x1x6x64xf32> to vector<6x64xf32>
    %cst_14 = arith.constant dense<0.000000e+00> : vector<8x64xf32>
    %16 = tpu.matmul %12, %15, %cst_14 {dimension_numbers = #tpu.dot_dimension_numbers<[1], [0], [0], [1], [0, 0, 1, 1], [], []>} : vector<8x6xf32>, vector<6x64xf32>, vector<8x64xf32> -> vector<8x64xf32>
    %17 = arith.addf %10, %16 : vector<8x64xf32>
    %c0_15 = arith.constant 0 : index
    %c0_16 = arith.constant 0 : index
    %c1_17 = arith.constant 1 : index
    %c0_18 = arith.constant 0 : index
    %18 = vector.load %arg3[%c0_15, %c0_16, %c1_17, %c0_18] : memref<1x2x9x6xf32, #tpu.memory_space<vmem>>, vector<1x1x8x6xf32>
    %19 = vector.shape_cast %18 : vector<1x1x8x6xf32> to vector<8x6xf32>
    %20 = arith.index_cast %arg2 : i32 to index
    %c2 = arith.constant 2 : index
    %c0_19 = arith.constant 0 : index
    %c0_20 = arith.constant 0 : index
    %21 = vector.load %arg4[%20, %c2, %c0_19, %c0_20] : memref<4x4x6x64xf32, #tpu.memory_space<vmem>>, vector<1x1x6x64xf32>
    %22 = vector.shape_cast %21 : vector<1x1x6x64xf32> to vector<6x64xf32>
    %cst_21 = arith.constant dense<0.000000e+00> : vector<8x64xf32>
    %23 = tpu.matmul %19, %22, %cst_21 {dimension_numbers = #tpu.dot_dimension_numbers<[1], [0], [0], [1], [0, 0, 1, 1], [], []>} : vector<8x6xf32>, vector<6x64xf32>, vector<8x64xf32> -> vector<8x64xf32>
    %24 = arith.addf %17, %23 : vector<8x64xf32>
    %c0_22 = arith.constant 0 : index
    %c1_23 = arith.constant 1 : index
    %c1_24 = arith.constant 1 : index
    %c0_25 = arith.constant 0 : index
    %25 = vector.load %arg3[%c0_22, %c1_23, %c1_24, %c0_25] : memref<1x2x9x6xf32, #tpu.memory_space<vmem>>, vector<1x1x8x6xf32>
    %26 = vector.shape_cast %25 : vector<1x1x8x6xf32> to vector<8x6xf32>
    %27 = arith.index_cast %arg2 : i32 to index
    %c3 = arith.constant 3 : index
    %c0_26 = arith.constant 0 : index
    %c0_27 = arith.constant 0 : index
    %28 = vector.load %arg4[%27, %c3, %c0_26, %c0_27] : memref<4x4x6x64xf32, #tpu.memory_space<vmem>>, vector<1x1x6x64xf32>
    %29 = vector.shape_cast %28 : vector<1x1x6x64xf32> to vector<6x64xf32>
    %cst_28 = arith.constant dense<0.000000e+00> : vector<8x64xf32>
    %30 = tpu.matmul %26, %29, %cst_28 {dimension_numbers = #tpu.dot_dimension_numbers<[1], [0], [0], [1], [0, 0, 1, 1], [], []>} : vector<8x6xf32>, vector<6x64xf32>, vector<8x64xf32> -> vector<8x64xf32>
    %31 = arith.addf %24, %30 : vector<8x64xf32>
    %c0_29 = arith.constant 0 : index
    %c0_30 = arith.constant 0 : index
    %c0_31 = arith.constant 0 : index
    %c0_32 = arith.constant 0 : index
    %32 = vector.load %arg6[%c0_29, %c0_30, %c0_31, %c0_32] : memref<1x1x8x64xf32, #tpu.memory_space<vmem>>, vector<1x1x8x64xf32>
    %33 = vector.shape_cast %31 : vector<8x64xf32> to vector<1x1x8x64xf32>
    %34 = arith.addf %32, %33 : vector<1x1x8x64xf32>
    %c0_33 = arith.constant 0 : index
    %c0_34 = arith.constant 0 : index
    %c0_35 = arith.constant 0 : index
    %c0_36 = arith.constant 0 : index
    %35 = vector.load %arg6[%c0_33, %c0_34, %c0_35, %c0_36] : memref<1x1x8x64xf32, #tpu.memory_space<vmem>>, vector<1x1x8x64xf32>
    tpu.vector_store %arg6[%c0_33, %c0_34, %c0_35, %c0_36], %34 {strides = array<i32>} : memref<1x1x8x64xf32, #tpu.memory_space<vmem>>, vector<1x1x8x64xf32>,
    %c3_i32 = arith.constant 3 : i32
    %36 = arith.cmpi eq, %arg2, %c3_i32 : i32
    %37 = arith.extui %36 : i1 to i32
    %c0_i32_37 = arith.constant 0 : i32
    %38 = arith.cmpi ne, %37, %c0_i32_37 : i32
    scf.if %38 {
      %c0_38 = arith.constant 0 : index
      %c0_39 = arith.constant 0 : index
      %c0_40 = arith.constant 0 : index
      %c0_41 = arith.constant 0 : index
      %39 = vector.load %arg6[%c0_38, %c0_39, %c0_40, %c0_41] : memref<1x1x8x64xf32, #tpu.memory_space<vmem>>, vector<1x1x8x64xf32>
      %c0_42 = arith.constant 0 : index
      %c0_43 = arith.constant 0 : index
      %40 = vector.load %arg5[%c0_42, %c0_43] : memref<1x64xf32, #tpu.memory_space<vmem>>, vector<1x64xf32>
      %41 = vector.shape_cast %40 : vector<1x64xf32> to vector<1x1x1x64xf32>
      %42 = vector.broadcast %41 : vector<1x1x1x64xf32> to vector<1x1x8x64xf32>
      %43 = arith.addf %39, %42 : vector<1x1x8x64xf32>
      %cst_44 = arith.constant 0.000000e+00 : f32
      %44 = vector.broadcast %cst_44 : f32 to vector<1x1x8x64xf32>
      %45 = arith.cmpf oge, %43, %44 : vector<1x1x8x64xf32>
      %cst_45 = arith.constant 2.000000e-01 : f32
      %46 = vector.broadcast %cst_45 : f32 to vector<1x1x8x64xf32>
      %47 = arith.mulf %46, %43 : vector<1x1x8x64xf32>
      %48 = arith.select %45, %43, %47 : vector<1x1x8x64xi1>, vector<1x1x8x64xf32>
      %c0_46 = arith.constant 0 : index
      %c0_47 = arith.constant 0 : index
      %c0_48 = arith.constant 0 : index
      %c0_49 = arith.constant 0 : index
      %49 = vector.load %arg6[%c0_46, %c0_47, %c0_48, %c0_49] : memref<1x1x8x64xf32, #tpu.memory_space<vmem>>, vector<1x1x8x64xf32>
      tpu.vector_store %arg6[%c0_46, %c0_47, %c0_48, %c0_49], %48 {strides = array<i32>} : memref<1x1x8x64xf32, #tpu.memory_space<vmem>>, vector<1x1x8x64xf32>,
    } else {
    }
    return
  }
  func.func @transform_0(%arg0: i32, %arg1: i32, %arg2: i32) -> (i32, i32, i32, i32) {
    %c2_i32 = arith.constant 2 : i32
    %0 = arith.muli %arg1, %c2_i32 : i32
    %1 = arith.addi %0, %arg2 : i32
    %c0_i32 = arith.constant 0 : i32
    %c0_i32_0 = arith.constant 0 : i32
    %c0_i32_1 = arith.constant 0 : i32
    return %arg0, %1, %c0_i32, %c0_i32_0 : i32, i32, i32, i32
  }
  func.func @transform_1(%arg0: i32, %arg1: i32, %arg2: i32) -> (i32, i32, i32, i32) {
    %c0_i32 = arith.constant 0 : i32
    %c0_i32_0 = arith.constant 0 : i32
    %c0_i32_1 = arith.constant 0 : i32
    %c0_i32_2 = arith.constant 0 : i32
    %c0_i32_3 = arith.constant 0 : i32
    return %c0_i32, %c0_i32_0, %c0_i32_1, %c0_i32_2 : i32, i32, i32, i32
  }
  func.func @transform_2(%arg0: i32, %arg1: i32, %arg2: i32) -> (i32, i32) {
    %c0_i32 = arith.constant 0 : i32
    %c0_i32_0 = arith.constant 0 : i32
    %c0_i32_1 = arith.constant 0 : i32
    return %c0_i32, %c0_i32_0 : i32, i32
  }
  func.func @transform_3(%arg0: i32, %arg1: i32, %arg2: i32) -> (i32, i32, i32, i32) {
    %c0_i32 = arith.constant 0 : i32
    %c0_i32_0 = arith.constant 0 : i32
    %c0_i32_1 = arith.constant 0 : i32
    return %arg0, %arg1, %c0_i32, %c0_i32_0 : i32, i32, i32, i32
  }
}

module attributes {stable_mosaic.version = 11 : i64} {
  func.func @_direct_conv_kernel(%arg0: i32, %arg1: i32, %arg2: i32, %arg3: memref<1x2x5x64xbf16, #tpu.memory_space<vmem>>, %arg4: memref<4x4x64x128xbf16, #tpu.memory_space<vmem>>, %arg5: memref<1x128xf32, #tpu.memory_space<vmem>>, %arg6: memref<1x1x4x128xf32, #tpu.memory_space<vmem>>, %arg7: memref<1x1x2x128xf32, #tpu.memory_space<vmem>>) attributes {dimension_semantics = [#tpu.dimension_semantics<parallel>, #tpu.dimension_semantics<parallel>, #tpu.dimension_semantics<arbitrary>], iteration_bounds = array<i64: 2, 4, 4>, scalar_prefetch = 0 : i64, scratch_operands = 0 : i64, tpu.core_type = #tpu.core_type<tc>, window_params = [{transform_indices = @transform_0, window_bounds = array<i64: 1, 2, 5, 64>}, {pipeline_mode = #tpu.pipeline_mode<synchronous>, transform_indices = @transform_1, window_bounds = array<i64: 4, 4, 64, 128>}, {pipeline_mode = #tpu.pipeline_mode<synchronous>, transform_indices = @transform_2, window_bounds = array<i64: 1, 128>}, {transform_indices = @transform_3, window_bounds = array<i64: 1, 1, 4, 128>}, {transform_indices = @transform_4, window_bounds = array<i64: 1, 1, 2, 128>}]} {
    %c0_i32 = arith.constant 0 : i32
    %0 = arith.cmpi eq, %arg2, %c0_i32 : i32
    %1 = arith.extui %0 : i1 to i32
    %c0_i32_0 = arith.constant 0 : i32
    %2 = arith.cmpi ne, %1, %c0_i32_0 : i32
    scf.if %2 {
      %cst_38 = arith.constant 0.000000e+00 : f32
      %39 = vector.broadcast %cst_38 : f32 to vector<1x1x4x128xf32>
      %c0_39 = arith.constant 0 : index
      %c0_40 = arith.constant 0 : index
      %c0_41 = arith.constant 0 : index
      %c0_42 = arith.constant 0 : index
      %40 = vector.load %arg6[%c0_39, %c0_40, %c0_41, %c0_42] : memref<1x1x4x128xf32, #tpu.memory_space<vmem>>, vector<1x1x4x128xf32>
      tpu.vector_store %arg6[%c0_39, %c0_40, %c0_41, %c0_42], %39 {strides = array<i32>} : memref<1x1x4x128xf32, #tpu.memory_space<vmem>>, vector<1x1x4x128xf32>,
    } else {
    }
    %cst = arith.constant 0.000000e+00 : f32
    %3 = vector.broadcast %cst : f32 to vector<4x128xf32>
    %c0 = arith.constant 0 : index
    %c0_1 = arith.constant 0 : index
    %c0_2 = arith.constant 0 : index
    %c0_3 = arith.constant 0 : index
    %4 = vector.load %arg3[%c0, %c0_1, %c0_2, %c0_3] : memref<1x2x5x64xbf16, #tpu.memory_space<vmem>>, vector<1x1x4x64xbf16>
    %5 = vector.shape_cast %4 : vector<1x1x4x64xbf16> to vector<4x64xbf16>
    %6 = arith.index_cast %arg2 : i32 to index
    %c0_4 = arith.constant 0 : index
    %c0_5 = arith.constant 0 : index
    %c0_6 = arith.constant 0 : index
    %7 = vector.load %arg4[%6, %c0_4, %c0_5, %c0_6] : memref<4x4x64x128xbf16, #tpu.memory_space<vmem>>, vector<1x1x64x128xbf16>
    %8 = vector.shape_cast %7 : vector<1x1x64x128xbf16> to vector<64x128xbf16>
    %cst_7 = arith.constant dense<0.000000e+00> : vector<4x128xf32>
    %9 = tpu.matmul %5, %8, %cst_7 {dimension_numbers = #tpu.dot_dimension_numbers<[1], [0], [0], [1], [0, 0, 1, 1], [], []>} : vector<4x64xbf16>, vector<64x128xbf16>, vector<4x128xf32> -> vector<4x128xf32>
    %10 = arith.addf %3, %9 : vector<4x128xf32>
    %c0_8 = arith.constant 0 : index
    %c1 = arith.constant 1 : index
    %c0_9 = arith.constant 0 : index
    %c0_10 = arith.constant 0 : index
    %11 = vector.load %arg3[%c0_8, %c1, %c0_9, %c0_10] : memref<1x2x5x64xbf16, #tpu.memory_space<vmem>>, vector<1x1x4x64xbf16>
    %12 = vector.shape_cast %11 : vector<1x1x4x64xbf16> to vector<4x64xbf16>
    %13 = arith.index_cast %arg2 : i32 to index
    %c1_11 = arith.constant 1 : index
    %c0_12 = arith.constant 0 : index
    %c0_13 = arith.constant 0 : index
    %14 = vector.load %arg4[%13, %c1_11, %c0_12, %c0_13] : memref<4x4x64x128xbf16, #tpu.memory_space<vmem>>, vector<1x1x64x128xbf16>
    %15 = vector.shape_cast %14 : vector<1x1x64x128xbf16> to vector<64x128xbf16>
    %cst_14 = arith.constant dense<0.000000e+00> : vector<4x128xf32>
    %16 = tpu.matmul %12, %15, %cst_14 {dimension_numbers = #tpu.dot_dimension_numbers<[1], [0], [0], [1], [0, 0, 1, 1], [], []>} : vector<4x64xbf16>, vector<64x128xbf16>, vector<4x128xf32> -> vector<4x128xf32>
    %17 = arith.addf %10, %16 : vector<4x128xf32>
    %c0_15 = arith.constant 0 : index
    %c0_16 = arith.constant 0 : index
    %c1_17 = arith.constant 1 : index
    %c0_18 = arith.constant 0 : index
    %18 = vector.load %arg3[%c0_15, %c0_16, %c1_17, %c0_18] : memref<1x2x5x64xbf16, #tpu.memory_space<vmem>>, vector<1x1x4x64xbf16>
    %19 = vector.shape_cast %18 : vector<1x1x4x64xbf16> to vector<4x64xbf16>
    %20 = arith.index_cast %arg2 : i32 to index
    %c2 = arith.constant 2 : index
    %c0_19 = arith.constant 0 : index
    %c0_20 = arith.constant 0 : index
    %21 = vector.load %arg4[%20, %c2, %c0_19, %c0_20] : memref<4x4x64x128xbf16, #tpu.memory_space<vmem>>, vector<1x1x64x128xbf16>
    %22 = vector.shape_cast %21 : vector<1x1x64x128xbf16> to vector<64x128xbf16>
    %cst_21 = arith.constant dense<0.000000e+00> : vector<4x128xf32>
    %23 = tpu.matmul %19, %22, %cst_21 {dimension_numbers = #tpu.dot_dimension_numbers<[1], [0], [0], [1], [0, 0, 1, 1], [], []>} : vector<4x64xbf16>, vector<64x128xbf16>, vector<4x128xf32> -> vector<4x128xf32>
    %24 = arith.addf %17, %23 : vector<4x128xf32>
    %c0_22 = arith.constant 0 : index
    %c1_23 = arith.constant 1 : index
    %c1_24 = arith.constant 1 : index
    %c0_25 = arith.constant 0 : index
    %25 = vector.load %arg3[%c0_22, %c1_23, %c1_24, %c0_25] : memref<1x2x5x64xbf16, #tpu.memory_space<vmem>>, vector<1x1x4x64xbf16>
    %26 = vector.shape_cast %25 : vector<1x1x4x64xbf16> to vector<4x64xbf16>
    %27 = arith.index_cast %arg2 : i32 to index
    %c3 = arith.constant 3 : index
    %c0_26 = arith.constant 0 : index
    %c0_27 = arith.constant 0 : index
    %28 = vector.load %arg4[%27, %c3, %c0_26, %c0_27] : memref<4x4x64x128xbf16, #tpu.memory_space<vmem>>, vector<1x1x64x128xbf16>
    %29 = vector.shape_cast %28 : vector<1x1x64x128xbf16> to vector<64x128xbf16>
    %cst_28 = arith.constant dense<0.000000e+00> : vector<4x128xf32>
    %30 = tpu.matmul %26, %29, %cst_28 {dimension_numbers = #tpu.dot_dimension_numbers<[1], [0], [0], [1], [0, 0, 1, 1], [], []>} : vector<4x64xbf16>, vector<64x128xbf16>, vector<4x128xf32> -> vector<4x128xf32>
    %31 = arith.addf %24, %30 : vector<4x128xf32>
    %c0_29 = arith.constant 0 : index
    %c0_30 = arith.constant 0 : index
    %c0_31 = arith.constant 0 : index
    %c0_32 = arith.constant 0 : index
    %32 = vector.load %arg6[%c0_29, %c0_30, %c0_31, %c0_32] : memref<1x1x4x128xf32, #tpu.memory_space<vmem>>, vector<1x1x4x128xf32>
    %33 = vector.shape_cast %31 : vector<4x128xf32> to vector<1x1x4x128xf32>
    %34 = arith.addf %32, %33 : vector<1x1x4x128xf32>
    %c0_33 = arith.constant 0 : index
    %c0_34 = arith.constant 0 : index
    %c0_35 = arith.constant 0 : index
    %c0_36 = arith.constant 0 : index
    %35 = vector.load %arg6[%c0_33, %c0_34, %c0_35, %c0_36] : memref<1x1x4x128xf32, #tpu.memory_space<vmem>>, vector<1x1x4x128xf32>
    tpu.vector_store %arg6[%c0_33, %c0_34, %c0_35, %c0_36], %34 {strides = array<i32>} : memref<1x1x4x128xf32, #tpu.memory_space<vmem>>, vector<1x1x4x128xf32>,
    %c3_i32 = arith.constant 3 : i32
    %36 = arith.cmpi eq, %arg2, %c3_i32 : i32
    %37 = arith.extui %36 : i1 to i32
    %c0_i32_37 = arith.constant 0 : i32
    %38 = arith.cmpi ne, %37, %c0_i32_37 : i32
    scf.if %38 {
      %c0_38 = arith.constant 0 : index
      %c0_39 = arith.constant 0 : index
      %c0_40 = arith.constant 0 : index
      %c0_41 = arith.constant 0 : index
      %39 = vector.load %arg6[%c0_38, %c0_39, %c0_40, %c0_41] : memref<1x1x4x128xf32, #tpu.memory_space<vmem>>, vector<1x1x4x128xf32>
      %c0_42 = arith.constant 0 : index
      %c0_43 = arith.constant 0 : index
      %40 = vector.load %arg5[%c0_42, %c0_43] : memref<1x128xf32, #tpu.memory_space<vmem>>, vector<1x128xf32>
      %41 = vector.shape_cast %40 : vector<1x128xf32> to vector<1x1x1x128xf32>
      %42 = vector.broadcast %41 : vector<1x1x1x128xf32> to vector<1x1x4x128xf32>
      %43 = arith.addf %39, %42 : vector<1x1x4x128xf32>
      %c0_44 = arith.constant 0 : index
      %c0_45 = arith.constant 0 : index
      %c0_46 = arith.constant 0 : index
      %c0_47 = arith.constant 0 : index
      %44 = vector.load %arg6[%c0_44, %c0_45, %c0_46, %c0_47] : memref<1x1x4x128xf32, #tpu.memory_space<vmem>>, vector<1x1x4x128xf32>
      tpu.vector_store %arg6[%c0_44, %c0_45, %c0_46, %c0_47], %43 {strides = array<i32>} : memref<1x1x4x128xf32, #tpu.memory_space<vmem>>, vector<1x1x4x128xf32>,
      %cst_48 = arith.constant dense<0.000000e+00> : vector<1x1x128xf32>
      %45 = vector.multi_reduction <add>, %43, %cst_48 [2] : vector<1x1x4x128xf32> to vector<1x1x128xf32>
      %46 = vector.shape_cast %45 : vector<1x1x128xf32> to vector<1x1x1x128xf32>
      %c0_49 = arith.constant 0 : index
      %c0_50 = arith.constant 0 : index
      %c0_51 = arith.constant 0 : index
      %c0_52 = arith.constant 0 : index
      %47 = vector.load %arg7[%c0_49, %c0_50, %c0_51, %c0_52] : memref<1x1x2x128xf32, #tpu.memory_space<vmem>>, vector<1x1x1x128xf32>
      tpu.vector_store %arg7[%c0_49, %c0_50, %c0_51, %c0_52], %46 {strides = array<i32>} : memref<1x1x2x128xf32, #tpu.memory_space<vmem>>, vector<1x1x1x128xf32>,
      %48 = arith.mulf %43, %43 : vector<1x1x4x128xf32>
      %cst_53 = arith.constant dense<0.000000e+00> : vector<1x1x128xf32>
      %49 = vector.multi_reduction <add>, %48, %cst_53 [2] : vector<1x1x4x128xf32> to vector<1x1x128xf32>
      %50 = vector.shape_cast %49 : vector<1x1x128xf32> to vector<1x1x1x128xf32>
      %c0_54 = arith.constant 0 : index
      %c0_55 = arith.constant 0 : index
      %c1_56 = arith.constant 1 : index
      %c0_57 = arith.constant 0 : index
      %51 = vector.load %arg7[%c0_54, %c0_55, %c1_56, %c0_57] : memref<1x1x2x128xf32, #tpu.memory_space<vmem>>, vector<1x1x1x128xf32>
      tpu.vector_store %arg7[%c0_54, %c0_55, %c1_56, %c0_57], %50 {strides = array<i32>} : memref<1x1x2x128xf32, #tpu.memory_space<vmem>>, vector<1x1x1x128xf32>,
    } else {
    }
    return
  }
  func.func @transform_0(%arg0: i32, %arg1: i32, %arg2: i32) -> (i32, i32, i32, i32) {
    %c2_i32 = arith.constant 2 : i32
    %0 = arith.muli %arg1, %c2_i32 : i32
    %1 = arith.addi %0, %arg2 : i32
    %c0_i32 = arith.constant 0 : i32
    %c0_i32_0 = arith.constant 0 : i32
    %c0_i32_1 = arith.constant 0 : i32
    return %arg0, %1, %c0_i32, %c0_i32_0 : i32, i32, i32, i32
  }
  func.func @transform_1(%arg0: i32, %arg1: i32, %arg2: i32) -> (i32, i32, i32, i32) {
    %c0_i32 = arith.constant 0 : i32
    %c0_i32_0 = arith.constant 0 : i32
    %c0_i32_1 = arith.constant 0 : i32
    %c0_i32_2 = arith.constant 0 : i32
    %c0_i32_3 = arith.constant 0 : i32
    return %c0_i32, %c0_i32_0, %c0_i32_1, %c0_i32_2 : i32, i32, i32, i32
  }
  func.func @transform_2(%arg0: i32, %arg1: i32, %arg2: i32) -> (i32, i32) {
    %c0_i32 = arith.constant 0 : i32
    %c0_i32_0 = arith.constant 0 : i32
    %c0_i32_1 = arith.constant 0 : i32
    return %c0_i32, %c0_i32_0 : i32, i32
  }
  func.func @transform_3(%arg0: i32, %arg1: i32, %arg2: i32) -> (i32, i32, i32, i32) {
    %c0_i32 = arith.constant 0 : i32
    %c0_i32_0 = arith.constant 0 : i32
    %c0_i32_1 = arith.constant 0 : i32
    return %arg0, %arg1, %c0_i32, %c0_i32_0 : i32, i32, i32, i32
  }
  func.func @transform_4(%arg0: i32, %arg1: i32, %arg2: i32) -> (i32, i32, i32, i32) {
    %c0_i32 = arith.constant 0 : i32
    %c0_i32_0 = arith.constant 0 : i32
    %c0_i32_1 = arith.constant 0 : i32
    return %arg0, %arg1, %c0_i32, %c0_i32_0 : i32, i32, i32, i32
  }
}

module attributes {stable_mosaic.version = 11 : i64} {
  func.func @_affine_lrelu_kernel(%arg0: i32, %arg1: memref<32x128xf32, #tpu.memory_space<vmem>>, %arg2: memref<1x128xf32, #tpu.memory_space<vmem>>, %arg3: memref<1x128xf32, #tpu.memory_space<vmem>>, %arg4: memref<32x128xf32, #tpu.memory_space<vmem>>) attributes {dimension_semantics = [#tpu.dimension_semantics<parallel>], iteration_bounds = array<i64: 1>, scalar_prefetch = 0 : i64, scratch_operands = 0 : i64, tpu.core_type = #tpu.core_type<tc>, window_params = [{transform_indices = @transform_0, window_bounds = array<i64: 32, 128>}, {pipeline_mode = #tpu.pipeline_mode<synchronous>, transform_indices = @transform_1, window_bounds = array<i64: 1, 128>}, {pipeline_mode = #tpu.pipeline_mode<synchronous>, transform_indices = @transform_2, window_bounds = array<i64: 1, 128>}, {transform_indices = @transform_3, window_bounds = array<i64: 32, 128>}]} {
    %c0 = arith.constant 0 : index
    %c0_0 = arith.constant 0 : index
    %0 = vector.load %arg1[%c0, %c0_0] : memref<32x128xf32, #tpu.memory_space<vmem>>, vector<32x128xf32>
    %c0_1 = arith.constant 0 : index
    %c0_2 = arith.constant 0 : index
    %1 = vector.load %arg2[%c0_1, %c0_2] : memref<1x128xf32, #tpu.memory_space<vmem>>, vector<1x128xf32>
    %2 = vector.broadcast %1 : vector<1x128xf32> to vector<32x128xf32>
    %3 = arith.mulf %0, %2 : vector<32x128xf32>
    %c0_3 = arith.constant 0 : index
    %c0_4 = arith.constant 0 : index
    %4 = vector.load %arg3[%c0_3, %c0_4] : memref<1x128xf32, #tpu.memory_space<vmem>>, vector<1x128xf32>
    %5 = vector.broadcast %4 : vector<1x128xf32> to vector<32x128xf32>
    %6 = arith.addf %3, %5 : vector<32x128xf32>
    %cst = arith.constant 0.000000e+00 : f32
    %7 = vector.broadcast %cst : f32 to vector<32x128xf32>
    %8 = arith.cmpf oge, %6, %7 : vector<32x128xf32>
    %cst_5 = arith.constant 2.000000e-01 : f32
    %9 = vector.broadcast %cst_5 : f32 to vector<32x128xf32>
    %10 = arith.mulf %9, %6 : vector<32x128xf32>
    %11 = arith.select %8, %6, %10 : vector<32x128xi1>, vector<32x128xf32>
    %c0_6 = arith.constant 0 : index
    %c0_7 = arith.constant 0 : index
    %12 = vector.load %arg4[%c0_6, %c0_7] : memref<32x128xf32, #tpu.memory_space<vmem>>, vector<32x128xf32>
    tpu.vector_store %arg4[%c0_6, %c0_7], %11 {strides = array<i32>} : memref<32x128xf32, #tpu.memory_space<vmem>>, vector<32x128xf32>,
    return
  }
  func.func @transform_0(%arg0: i32) -> (i32, i32) {
    %c0_i32 = arith.constant 0 : i32
    %c0_i32_0 = arith.constant 0 : i32
    return %arg0, %c0_i32 : i32, i32
  }
  func.func @transform_1(%arg0: i32) -> (i32, i32) {
    %c0_i32 = arith.constant 0 : i32
    %c0_i32_0 = arith.constant 0 : i32
    %c0_i32_1 = arith.constant 0 : i32
    return %c0_i32, %c0_i32_0 : i32, i32
  }
  func.func @transform_2(%arg0: i32) -> (i32, i32) {
    %c0_i32 = arith.constant 0 : i32
    %c0_i32_0 = arith.constant 0 : i32
    %c0_i32_1 = arith.constant 0 : i32
    return %c0_i32, %c0_i32_0 : i32, i32
  }
  func.func @transform_3(%arg0: i32) -> (i32, i32) {
    %c0_i32 = arith.constant 0 : i32
    %c0_i32_0 = arith.constant 0 : i32
    return %arg0, %c0_i32 : i32, i32
  }
}

module attributes {stable_mosaic.version = 11 : i64} {
  func.func @_direct_conv_kernel(%arg0: i32, %arg1: i32, %arg2: i32, %arg3: memref<1x2x3x128xbf16, #tpu.memory_space<vmem>>, %arg4: memref<4x4x128x256xbf16, #tpu.memory_space<vmem>>, %arg5: memref<1x256xf32, #tpu.memory_space<vmem>>, %arg6: memref<1x1x2x256xf32, #tpu.memory_space<vmem>>, %arg7: memref<1x1x2x256xf32, #tpu.memory_space<vmem>>) attributes {dimension_semantics = [#tpu.dimension_semantics<parallel>, #tpu.dimension_semantics<parallel>, #tpu.dimension_semantics<arbitrary>], iteration_bounds = array<i64: 2, 2, 4>, scalar_prefetch = 0 : i64, scratch_operands = 0 : i64, tpu.core_type = #tpu.core_type<tc>, window_params = [{transform_indices = @transform_0, window_bounds = array<i64: 1, 2, 3, 128>}, {pipeline_mode = #tpu.pipeline_mode<synchronous>, transform_indices = @transform_1, window_bounds = array<i64: 4, 4, 128, 256>}, {pipeline_mode = #tpu.pipeline_mode<synchronous>, transform_indices = @transform_2, window_bounds = array<i64: 1, 256>}, {transform_indices = @transform_3, window_bounds = array<i64: 1, 1, 2, 256>}, {transform_indices = @transform_4, window_bounds = array<i64: 1, 1, 2, 256>}]} {
    %c0_i32 = arith.constant 0 : i32
    %0 = arith.cmpi eq, %arg2, %c0_i32 : i32
    %1 = arith.extui %0 : i1 to i32
    %c0_i32_0 = arith.constant 0 : i32
    %2 = arith.cmpi ne, %1, %c0_i32_0 : i32
    scf.if %2 {
      %cst_38 = arith.constant 0.000000e+00 : f32
      %39 = vector.broadcast %cst_38 : f32 to vector<1x1x2x256xf32>
      %c0_39 = arith.constant 0 : index
      %c0_40 = arith.constant 0 : index
      %c0_41 = arith.constant 0 : index
      %c0_42 = arith.constant 0 : index
      %40 = vector.load %arg6[%c0_39, %c0_40, %c0_41, %c0_42] : memref<1x1x2x256xf32, #tpu.memory_space<vmem>>, vector<1x1x2x256xf32>
      tpu.vector_store %arg6[%c0_39, %c0_40, %c0_41, %c0_42], %39 {strides = array<i32>} : memref<1x1x2x256xf32, #tpu.memory_space<vmem>>, vector<1x1x2x256xf32>,
    } else {
    }
    %cst = arith.constant 0.000000e+00 : f32
    %3 = vector.broadcast %cst : f32 to vector<2x256xf32>
    %c0 = arith.constant 0 : index
    %c0_1 = arith.constant 0 : index
    %c0_2 = arith.constant 0 : index
    %c0_3 = arith.constant 0 : index
    %4 = vector.load %arg3[%c0, %c0_1, %c0_2, %c0_3] : memref<1x2x3x128xbf16, #tpu.memory_space<vmem>>, vector<1x1x2x128xbf16>
    %5 = vector.shape_cast %4 : vector<1x1x2x128xbf16> to vector<2x128xbf16>
    %6 = arith.index_cast %arg2 : i32 to index
    %c0_4 = arith.constant 0 : index
    %c0_5 = arith.constant 0 : index
    %c0_6 = arith.constant 0 : index
    %7 = vector.load %arg4[%6, %c0_4, %c0_5, %c0_6] : memref<4x4x128x256xbf16, #tpu.memory_space<vmem>>, vector<1x1x128x256xbf16>
    %8 = vector.shape_cast %7 : vector<1x1x128x256xbf16> to vector<128x256xbf16>
    %cst_7 = arith.constant dense<0.000000e+00> : vector<2x256xf32>
    %9 = tpu.matmul %5, %8, %cst_7 {dimension_numbers = #tpu.dot_dimension_numbers<[1], [0], [0], [1], [0, 0, 1, 1], [], []>} : vector<2x128xbf16>, vector<128x256xbf16>, vector<2x256xf32> -> vector<2x256xf32>
    %10 = arith.addf %3, %9 : vector<2x256xf32>
    %c0_8 = arith.constant 0 : index
    %c1 = arith.constant 1 : index
    %c0_9 = arith.constant 0 : index
    %c0_10 = arith.constant 0 : index
    %11 = vector.load %arg3[%c0_8, %c1, %c0_9, %c0_10] : memref<1x2x3x128xbf16, #tpu.memory_space<vmem>>, vector<1x1x2x128xbf16>
    %12 = vector.shape_cast %11 : vector<1x1x2x128xbf16> to vector<2x128xbf16>
    %13 = arith.index_cast %arg2 : i32 to index
    %c1_11 = arith.constant 1 : index
    %c0_12 = arith.constant 0 : index
    %c0_13 = arith.constant 0 : index
    %14 = vector.load %arg4[%13, %c1_11, %c0_12, %c0_13] : memref<4x4x128x256xbf16, #tpu.memory_space<vmem>>, vector<1x1x128x256xbf16>
    %15 = vector.shape_cast %14 : vector<1x1x128x256xbf16> to vector<128x256xbf16>
    %cst_14 = arith.constant dense<0.000000e+00> : vector<2x256xf32>
    %16 = tpu.matmul %12, %15, %cst_14 {dimension_numbers = #tpu.dot_dimension_numbers<[1], [0], [0], [1], [0, 0, 1, 1], [], []>} : vector<2x128xbf16>, vector<128x256xbf16>, vector<2x256xf32> -> vector<2x256xf32>
    %17 = arith.addf %10, %16 : vector<2x256xf32>
    %c0_15 = arith.constant 0 : index
    %c0_16 = arith.constant 0 : index
    %c1_17 = arith.constant 1 : index
    %c0_18 = arith.constant 0 : index
    %18 = vector.load %arg3[%c0_15, %c0_16, %c1_17, %c0_18] : memref<1x2x3x128xbf16, #tpu.memory_space<vmem>>, vector<1x1x2x128xbf16>
    %19 = vector.shape_cast %18 : vector<1x1x2x128xbf16> to vector<2x128xbf16>
    %20 = arith.index_cast %arg2 : i32 to index
    %c2 = arith.constant 2 : index
    %c0_19 = arith.constant 0 : index
    %c0_20 = arith.constant 0 : index
    %21 = vector.load %arg4[%20, %c2, %c0_19, %c0_20] : memref<4x4x128x256xbf16, #tpu.memory_space<vmem>>, vector<1x1x128x256xbf16>
    %22 = vector.shape_cast %21 : vector<1x1x128x256xbf16> to vector<128x256xbf16>
    %cst_21 = arith.constant dense<0.000000e+00> : vector<2x256xf32>
    %23 = tpu.matmul %19, %22, %cst_21 {dimension_numbers = #tpu.dot_dimension_numbers<[1], [0], [0], [1], [0, 0, 1, 1], [], []>} : vector<2x128xbf16>, vector<128x256xbf16>, vector<2x256xf32> -> vector<2x256xf32>
    %24 = arith.addf %17, %23 : vector<2x256xf32>
    %c0_22 = arith.constant 0 : index
    %c1_23 = arith.constant 1 : index
    %c1_24 = arith.constant 1 : index
    %c0_25 = arith.constant 0 : index
    %25 = vector.load %arg3[%c0_22, %c1_23, %c1_24, %c0_25] : memref<1x2x3x128xbf16, #tpu.memory_space<vmem>>, vector<1x1x2x128xbf16>
    %26 = vector.shape_cast %25 : vector<1x1x2x128xbf16> to vector<2x128xbf16>
    %27 = arith.index_cast %arg2 : i32 to index
    %c3 = arith.constant 3 : index
    %c0_26 = arith.constant 0 : index
    %c0_27 = arith.constant 0 : index
    %28 = vector.load %arg4[%27, %c3, %c0_26, %c0_27] : memref<4x4x128x256xbf16, #tpu.memory_space<vmem>>, vector<1x1x128x256xbf16>
    %29 = vector.shape_cast %28 : vector<1x1x128x256xbf16> to vector<128x256xbf16>
    %cst_28 = arith.constant dense<0.000000e+00> : vector<2x256xf32>
    %30 = tpu.matmul %26, %29, %cst_28 {dimension_numbers = #tpu.dot_dimension_numbers<[1], [0], [0], [1], [0, 0, 1, 1], [], []>} : vector<2x128xbf16>, vector<128x256xbf16>, vector<2x256xf32> -> vector<2x256xf32>
    %31 = arith.addf %24, %30 : vector<2x256xf32>
    %c0_29 = arith.constant 0 : index
    %c0_30 = arith.constant 0 : index
    %c0_31 = arith.constant 0 : index
    %c0_32 = arith.constant 0 : index
    %32 = vector.load %arg6[%c0_29, %c0_30, %c0_31, %c0_32] : memref<1x1x2x256xf32, #tpu.memory_space<vmem>>, vector<1x1x2x256xf32>
    %33 = vector.shape_cast %31 : vector<2x256xf32> to vector<1x1x2x256xf32>
    %34 = arith.addf %32, %33 : vector<1x1x2x256xf32>
    %c0_33 = arith.constant 0 : index
    %c0_34 = arith.constant 0 : index
    %c0_35 = arith.constant 0 : index
    %c0_36 = arith.constant 0 : index
    %35 = vector.load %arg6[%c0_33, %c0_34, %c0_35, %c0_36] : memref<1x1x2x256xf32, #tpu.memory_space<vmem>>, vector<1x1x2x256xf32>
    tpu.vector_store %arg6[%c0_33, %c0_34, %c0_35, %c0_36], %34 {strides = array<i32>} : memref<1x1x2x256xf32, #tpu.memory_space<vmem>>, vector<1x1x2x256xf32>,
    %c3_i32 = arith.constant 3 : i32
    %36 = arith.cmpi eq, %arg2, %c3_i32 : i32
    %37 = arith.extui %36 : i1 to i32
    %c0_i32_37 = arith.constant 0 : i32
    %38 = arith.cmpi ne, %37, %c0_i32_37 : i32
    scf.if %38 {
      %c0_38 = arith.constant 0 : index
      %c0_39 = arith.constant 0 : index
      %c0_40 = arith.constant 0 : index
      %c0_41 = arith.constant 0 : index
      %39 = vector.load %arg6[%c0_38, %c0_39, %c0_40, %c0_41] : memref<1x1x2x256xf32, #tpu.memory_space<vmem>>, vector<1x1x2x256xf32>
      %c0_42 = arith.constant 0 : index
      %c0_43 = arith.constant 0 : index
      %40 = vector.load %arg5[%c0_42, %c0_43] : memref<1x256xf32, #tpu.memory_space<vmem>>, vector<1x256xf32>
      %41 = vector.shape_cast %40 : vector<1x256xf32> to vector<1x1x1x256xf32>
      %42 = vector.broadcast %41 : vector<1x1x1x256xf32> to vector<1x1x2x256xf32>
      %43 = arith.addf %39, %42 : vector<1x1x2x256xf32>
      %c0_44 = arith.constant 0 : index
      %c0_45 = arith.constant 0 : index
      %c0_46 = arith.constant 0 : index
      %c0_47 = arith.constant 0 : index
      %44 = vector.load %arg6[%c0_44, %c0_45, %c0_46, %c0_47] : memref<1x1x2x256xf32, #tpu.memory_space<vmem>>, vector<1x1x2x256xf32>
      tpu.vector_store %arg6[%c0_44, %c0_45, %c0_46, %c0_47], %43 {strides = array<i32>} : memref<1x1x2x256xf32, #tpu.memory_space<vmem>>, vector<1x1x2x256xf32>,
      %cst_48 = arith.constant dense<0.000000e+00> : vector<1x1x256xf32>
      %45 = vector.multi_reduction <add>, %43, %cst_48 [2] : vector<1x1x2x256xf32> to vector<1x1x256xf32>
      %46 = vector.shape_cast %45 : vector<1x1x256xf32> to vector<1x1x1x256xf32>
      %c0_49 = arith.constant 0 : index
      %c0_50 = arith.constant 0 : index
      %c0_51 = arith.constant 0 : index
      %c0_52 = arith.constant 0 : index
      %47 = vector.load %arg7[%c0_49, %c0_50, %c0_51, %c0_52] : memref<1x1x2x256xf32, #tpu.memory_space<vmem>>, vector<1x1x1x256xf32>
      tpu.vector_store %arg7[%c0_49, %c0_50, %c0_51, %c0_52], %46 {strides = array<i32>} : memref<1x1x2x256xf32, #tpu.memory_space<vmem>>, vector<1x1x1x256xf32>,
      %48 = arith.mulf %43, %43 : vector<1x1x2x256xf32>
      %cst_53 = arith.constant dense<0.000000e+00> : vector<1x1x256xf32>
      %49 = vector.multi_reduction <add>, %48, %cst_53 [2] : vector<1x1x2x256xf32> to vector<1x1x256xf32>
      %50 = vector.shape_cast %49 : vector<1x1x256xf32> to vector<1x1x1x256xf32>
      %c0_54 = arith.constant 0 : index
      %c0_55 = arith.constant 0 : index
      %c1_56 = arith.constant 1 : index
      %c0_57 = arith.constant 0 : index
      %51 = vector.load %arg7[%c0_54, %c0_55, %c1_56, %c0_57] : memref<1x1x2x256xf32, #tpu.memory_space<vmem>>, vector<1x1x1x256xf32>
      tpu.vector_store %arg7[%c0_54, %c0_55, %c1_56, %c0_57], %50 {strides = array<i32>} : memref<1x1x2x256xf32, #tpu.memory_space<vmem>>, vector<1x1x1x256xf32>,
    } else {
    }
    return
  }
  func.func @transform_0(%arg0: i32, %arg1: i32, %arg2: i32) -> (i32, i32, i32, i32) {
    %c2_i32 = arith.constant 2 : i32
    %0 = arith.muli %arg1, %c2_i32 : i32
    %1 = arith.addi %0, %arg2 : i32
    %c0_i32 = arith.constant 0 : i32
    %c0_i32_0 = arith.constant 0 : i32
    %c0_i32_1 = arith.constant 0 : i32
    return %arg0, %1, %c0_i32, %c0_i32_0 : i32, i32, i32, i32
  }
  func.func @transform_1(%arg0: i32, %arg1: i32, %arg2: i32) -> (i32, i32, i32, i32) {
    %c0_i32 = arith.constant 0 : i32
    %c0_i32_0 = arith.constant 0 : i32
    %c0_i32_1 = arith.constant 0 : i32
    %c0_i32_2 = arith.constant 0 : i32
    %c0_i32_3 = arith.constant 0 : i32
    return %c0_i32, %c0_i32_0, %c0_i32_1, %c0_i32_2 : i32, i32, i32, i32
  }
  func.func @transform_2(%arg0: i32, %arg1: i32, %arg2: i32) -> (i32, i32) {
    %c0_i32 = arith.constant 0 : i32
    %c0_i32_0 = arith.constant 0 : i32
    %c0_i32_1 = arith.constant 0 : i32
    return %c0_i32, %c0_i32_0 : i32, i32
  }
  func.func @transform_3(%arg0: i32, %arg1: i32, %arg2: i32) -> (i32, i32, i32, i32) {
    %c0_i32 = arith.constant 0 : i32
    %c0_i32_0 = arith.constant 0 : i32
    %c0_i32_1 = arith.constant 0 : i32
    return %arg0, %arg1, %c0_i32, %c0_i32_0 : i32, i32, i32, i32
  }
  func.func @transform_4(%arg0: i32, %arg1: i32, %arg2: i32) -> (i32, i32, i32, i32) {
    %c0_i32 = arith.constant 0 : i32
    %c0_i32_0 = arith.constant 0 : i32
    %c0_i32_1 = arith.constant 0 : i32
    return %arg0, %arg1, %c0_i32, %c0_i32_0 : i32, i32, i32, i32
  }
}

module attributes {stable_mosaic.version = 11 : i64} {
  func.func @_affine_lrelu_kernel(%arg0: i32, %arg1: memref<8x256xf32, #tpu.memory_space<vmem>>, %arg2: memref<1x256xf32, #tpu.memory_space<vmem>>, %arg3: memref<1x256xf32, #tpu.memory_space<vmem>>, %arg4: memref<8x256xf32, #tpu.memory_space<vmem>>) attributes {dimension_semantics = [#tpu.dimension_semantics<parallel>], iteration_bounds = array<i64: 1>, scalar_prefetch = 0 : i64, scratch_operands = 0 : i64, tpu.core_type = #tpu.core_type<tc>, window_params = [{transform_indices = @transform_0, window_bounds = array<i64: 8, 256>}, {pipeline_mode = #tpu.pipeline_mode<synchronous>, transform_indices = @transform_1, window_bounds = array<i64: 1, 256>}, {pipeline_mode = #tpu.pipeline_mode<synchronous>, transform_indices = @transform_2, window_bounds = array<i64: 1, 256>}, {transform_indices = @transform_3, window_bounds = array<i64: 8, 256>}]} {
    %c0 = arith.constant 0 : index
    %c0_0 = arith.constant 0 : index
    %0 = vector.load %arg1[%c0, %c0_0] : memref<8x256xf32, #tpu.memory_space<vmem>>, vector<8x256xf32>
    %c0_1 = arith.constant 0 : index
    %c0_2 = arith.constant 0 : index
    %1 = vector.load %arg2[%c0_1, %c0_2] : memref<1x256xf32, #tpu.memory_space<vmem>>, vector<1x256xf32>
    %2 = vector.broadcast %1 : vector<1x256xf32> to vector<8x256xf32>
    %3 = arith.mulf %0, %2 : vector<8x256xf32>
    %c0_3 = arith.constant 0 : index
    %c0_4 = arith.constant 0 : index
    %4 = vector.load %arg3[%c0_3, %c0_4] : memref<1x256xf32, #tpu.memory_space<vmem>>, vector<1x256xf32>
    %5 = vector.broadcast %4 : vector<1x256xf32> to vector<8x256xf32>
    %6 = arith.addf %3, %5 : vector<8x256xf32>
    %cst = arith.constant 0.000000e+00 : f32
    %7 = vector.broadcast %cst : f32 to vector<8x256xf32>
    %8 = arith.cmpf oge, %6, %7 : vector<8x256xf32>
    %cst_5 = arith.constant 2.000000e-01 : f32
    %9 = vector.broadcast %cst_5 : f32 to vector<8x256xf32>
    %10 = arith.mulf %9, %6 : vector<8x256xf32>
    %11 = arith.select %8, %6, %10 : vector<8x256xi1>, vector<8x256xf32>
    %c0_6 = arith.constant 0 : index
    %c0_7 = arith.constant 0 : index
    %12 = vector.load %arg4[%c0_6, %c0_7] : memref<8x256xf32, #tpu.memory_space<vmem>>, vector<8x256xf32>
    tpu.vector_store %arg4[%c0_6, %c0_7], %11 {strides = array<i32>} : memref<8x256xf32, #tpu.memory_space<vmem>>, vector<8x256xf32>,
    return
  }
  func.func @transform_0(%arg0: i32) -> (i32, i32) {
    %c0_i32 = arith.constant 0 : i32
    %c0_i32_0 = arith.constant 0 : i32
    return %arg0, %c0_i32 : i32, i32
  }
  func.func @transform_1(%arg0: i32) -> (i32, i32) {
    %c0_i32 = arith.constant 0 : i32
    %c0_i32_0 = arith.constant 0 : i32
    %c0_i32_1 = arith.constant 0 : i32
    return %c0_i32, %c0_i32_0 : i32, i32
  }
  func.func @transform_2(%arg0: i32) -> (i32, i32) {
    %c0_i32 = arith.constant 0 : i32
    %c0_i32_0 = arith.constant 0 : i32
    %c0_i32_1 = arith.constant 0 : i32
    return %c0_i32, %c0_i32_0 : i32, i32
  }
  func.func @transform_3(%arg0: i32) -> (i32, i32) {
    %c0_i32 = arith.constant 0 : i32
    %c0_i32_0 = arith.constant 0 : i32
    return %arg0, %c0_i32 : i32, i32
  }
}

module attributes {stable_mosaic.version = 11 : i64} {
  func.func @_direct_conv_kernel(%arg0: i32, %arg1: i32, %arg2: i32, %arg3: memref<1x1x4x256xbf16, #tpu.memory_space<vmem>>, %arg4: memref<3x3x256x512xbf16, #tpu.memory_space<vmem>>, %arg5: memref<1x512xf32, #tpu.memory_space<vmem>>, %arg6: memref<1x1x2x512xf32, #tpu.memory_space<vmem>>, %arg7: memref<1x1x2x512xf32, #tpu.memory_space<vmem>>) attributes {dimension_semantics = [#tpu.dimension_semantics<parallel>, #tpu.dimension_semantics<parallel>, #tpu.dimension_semantics<arbitrary>], iteration_bounds = array<i64: 2, 2, 3>, scalar_prefetch = 0 : i64, scratch_operands = 0 : i64, tpu.core_type = #tpu.core_type<tc>, window_params = [{transform_indices = @transform_0, window_bounds = array<i64: 1, 1, 4, 256>}, {pipeline_mode = #tpu.pipeline_mode<synchronous>, transform_indices = @transform_1, window_bounds = array<i64: 3, 3, 256, 512>}, {pipeline_mode = #tpu.pipeline_mode<synchronous>, transform_indices = @transform_2, window_bounds = array<i64: 1, 512>}, {transform_indices = @transform_3, window_bounds = array<i64: 1, 1, 2, 512>}, {transform_indices = @transform_4, window_bounds = array<i64: 1, 1, 2, 512>}]} {
    %c0_i32 = arith.constant 0 : i32
    %0 = arith.cmpi eq, %arg2, %c0_i32 : i32
    %1 = arith.extui %0 : i1 to i32
    %c0_i32_0 = arith.constant 0 : i32
    %2 = arith.cmpi ne, %1, %c0_i32_0 : i32
    scf.if %2 {
      %cst_31 = arith.constant 0.000000e+00 : f32
      %32 = vector.broadcast %cst_31 : f32 to vector<1x1x2x512xf32>
      %c0_32 = arith.constant 0 : index
      %c0_33 = arith.constant 0 : index
      %c0_34 = arith.constant 0 : index
      %c0_35 = arith.constant 0 : index
      %33 = vector.load %arg6[%c0_32, %c0_33, %c0_34, %c0_35] : memref<1x1x2x512xf32, #tpu.memory_space<vmem>>, vector<1x1x2x512xf32>
      tpu.vector_store %arg6[%c0_32, %c0_33, %c0_34, %c0_35], %32 {strides = array<i32>} : memref<1x1x2x512xf32, #tpu.memory_space<vmem>>, vector<1x1x2x512xf32>,
    } else {
    }
    %cst = arith.constant 0.000000e+00 : f32
    %3 = vector.broadcast %cst : f32 to vector<2x512xf32>
    %c0 = arith.constant 0 : index
    %c0_1 = arith.constant 0 : index
    %c0_2 = arith.constant 0 : index
    %c0_3 = arith.constant 0 : index
    %4 = vector.load %arg3[%c0, %c0_1, %c0_2, %c0_3] : memref<1x1x4x256xbf16, #tpu.memory_space<vmem>>, vector<1x1x2x256xbf16>
    %5 = vector.shape_cast %4 : vector<1x1x2x256xbf16> to vector<2x256xbf16>
    %6 = arith.index_cast %arg2 : i32 to index
    %c0_4 = arith.constant 0 : index
    %c0_5 = arith.constant 0 : index
    %c0_6 = arith.constant 0 : index
    %7 = vector.load %arg4[%6, %c0_4, %c0_5, %c0_6] : memref<3x3x256x512xbf16, #tpu.memory_space<vmem>>, vector<1x1x256x512xbf16>
    %8 = vector.shape_cast %7 : vector<1x1x256x512xbf16> to vector<256x512xbf16>
    %cst_7 = arith.constant dense<0.000000e+00> : vector<2x512xf32>
    %9 = tpu.matmul %5, %8, %cst_7 {dimension_numbers = #tpu.dot_dimension_numbers<[1], [0], [0], [1], [0, 0, 1, 1], [], []>} : vector<2x256xbf16>, vector<256x512xbf16>, vector<2x512xf32> -> vector<2x512xf32>
    %10 = arith.addf %3, %9 : vector<2x512xf32>
    %c0_8 = arith.constant 0 : index
    %c0_9 = arith.constant 0 : index
    %c1 = arith.constant 1 : index
    %c0_10 = arith.constant 0 : index
    %11 = vector.load %arg3[%c0_8, %c0_9, %c1, %c0_10] : memref<1x1x4x256xbf16, #tpu.memory_space<vmem>>, vector<1x1x2x256xbf16>
    %12 = vector.shape_cast %11 : vector<1x1x2x256xbf16> to vector<2x256xbf16>
    %13 = arith.index_cast %arg2 : i32 to index
    %c1_11 = arith.constant 1 : index
    %c0_12 = arith.constant 0 : index
    %c0_13 = arith.constant 0 : index
    %14 = vector.load %arg4[%13, %c1_11, %c0_12, %c0_13] : memref<3x3x256x512xbf16, #tpu.memory_space<vmem>>, vector<1x1x256x512xbf16>
    %15 = vector.shape_cast %14 : vector<1x1x256x512xbf16> to vector<256x512xbf16>
    %cst_14 = arith.constant dense<0.000000e+00> : vector<2x512xf32>
    %16 = tpu.matmul %12, %15, %cst_14 {dimension_numbers = #tpu.dot_dimension_numbers<[1], [0], [0], [1], [0, 0, 1, 1], [], []>} : vector<2x256xbf16>, vector<256x512xbf16>, vector<2x512xf32> -> vector<2x512xf32>
    %17 = arith.addf %10, %16 : vector<2x512xf32>
    %c0_15 = arith.constant 0 : index
    %c0_16 = arith.constant 0 : index
    %c2 = arith.constant 2 : index
    %c0_17 = arith.constant 0 : index
    %18 = vector.load %arg3[%c0_15, %c0_16, %c2, %c0_17] : memref<1x1x4x256xbf16, #tpu.memory_space<vmem>>, vector<1x1x2x256xbf16>
    %19 = vector.shape_cast %18 : vector<1x1x2x256xbf16> to vector<2x256xbf16>
    %20 = arith.index_cast %arg2 : i32 to index
    %c2_18 = arith.constant 2 : index
    %c0_19 = arith.constant 0 : index
    %c0_20 = arith.constant 0 : index
    %21 = vector.load %arg4[%20, %c2_18, %c0_19, %c0_20] : memref<3x3x256x512xbf16, #tpu.memory_space<vmem>>, vector<1x1x256x512xbf16>
    %22 = vector.shape_cast %21 : vector<1x1x256x512xbf16> to vector<256x512xbf16>
    %cst_21 = arith.constant dense<0.000000e+00> : vector<2x512xf32>
    %23 = tpu.matmul %19, %22, %cst_21 {dimension_numbers = #tpu.dot_dimension_numbers<[1], [0], [0], [1], [0, 0, 1, 1], [], []>} : vector<2x256xbf16>, vector<256x512xbf16>, vector<2x512xf32> -> vector<2x512xf32>
    %24 = arith.addf %17, %23 : vector<2x512xf32>
    %c0_22 = arith.constant 0 : index
    %c0_23 = arith.constant 0 : index
    %c0_24 = arith.constant 0 : index
    %c0_25 = arith.constant 0 : index
    %25 = vector.load %arg6[%c0_22, %c0_23, %c0_24, %c0_25] : memref<1x1x2x512xf32, #tpu.memory_space<vmem>>, vector<1x1x2x512xf32>
    %26 = vector.shape_cast %24 : vector<2x512xf32> to vector<1x1x2x512xf32>
    %27 = arith.addf %25, %26 : vector<1x1x2x512xf32>
    %c0_26 = arith.constant 0 : index
    %c0_27 = arith.constant 0 : index
    %c0_28 = arith.constant 0 : index
    %c0_29 = arith.constant 0 : index
    %28 = vector.load %arg6[%c0_26, %c0_27, %c0_28, %c0_29] : memref<1x1x2x512xf32, #tpu.memory_space<vmem>>, vector<1x1x2x512xf32>
    tpu.vector_store %arg6[%c0_26, %c0_27, %c0_28, %c0_29], %27 {strides = array<i32>} : memref<1x1x2x512xf32, #tpu.memory_space<vmem>>, vector<1x1x2x512xf32>,
    %c2_i32 = arith.constant 2 : i32
    %29 = arith.cmpi eq, %arg2, %c2_i32 : i32
    %30 = arith.extui %29 : i1 to i32
    %c0_i32_30 = arith.constant 0 : i32
    %31 = arith.cmpi ne, %30, %c0_i32_30 : i32
    scf.if %31 {
      %c0_31 = arith.constant 0 : index
      %c0_32 = arith.constant 0 : index
      %c0_33 = arith.constant 0 : index
      %c0_34 = arith.constant 0 : index
      %32 = vector.load %arg6[%c0_31, %c0_32, %c0_33, %c0_34] : memref<1x1x2x512xf32, #tpu.memory_space<vmem>>, vector<1x1x2x512xf32>
      %c0_35 = arith.constant 0 : index
      %c0_36 = arith.constant 0 : index
      %33 = vector.load %arg5[%c0_35, %c0_36] : memref<1x512xf32, #tpu.memory_space<vmem>>, vector<1x512xf32>
      %34 = vector.shape_cast %33 : vector<1x512xf32> to vector<1x1x1x512xf32>
      %35 = vector.broadcast %34 : vector<1x1x1x512xf32> to vector<1x1x2x512xf32>
      %36 = arith.addf %32, %35 : vector<1x1x2x512xf32>
      %c0_37 = arith.constant 0 : index
      %c0_38 = arith.constant 0 : index
      %c0_39 = arith.constant 0 : index
      %c0_40 = arith.constant 0 : index
      %37 = vector.load %arg6[%c0_37, %c0_38, %c0_39, %c0_40] : memref<1x1x2x512xf32, #tpu.memory_space<vmem>>, vector<1x1x2x512xf32>
      tpu.vector_store %arg6[%c0_37, %c0_38, %c0_39, %c0_40], %36 {strides = array<i32>} : memref<1x1x2x512xf32, #tpu.memory_space<vmem>>, vector<1x1x2x512xf32>,
      %cst_41 = arith.constant dense<0.000000e+00> : vector<1x1x512xf32>
      %38 = vector.multi_reduction <add>, %36, %cst_41 [2] : vector<1x1x2x512xf32> to vector<1x1x512xf32>
      %39 = vector.shape_cast %38 : vector<1x1x512xf32> to vector<1x1x1x512xf32>
      %c0_42 = arith.constant 0 : index
      %c0_43 = arith.constant 0 : index
      %c0_44 = arith.constant 0 : index
      %c0_45 = arith.constant 0 : index
      %40 = vector.load %arg7[%c0_42, %c0_43, %c0_44, %c0_45] : memref<1x1x2x512xf32, #tpu.memory_space<vmem>>, vector<1x1x1x512xf32>
      tpu.vector_store %arg7[%c0_42, %c0_43, %c0_44, %c0_45], %39 {strides = array<i32>} : memref<1x1x2x512xf32, #tpu.memory_space<vmem>>, vector<1x1x1x512xf32>,
      %41 = arith.mulf %36, %36 : vector<1x1x2x512xf32>
      %cst_46 = arith.constant dense<0.000000e+00> : vector<1x1x512xf32>
      %42 = vector.multi_reduction <add>, %41, %cst_46 [2] : vector<1x1x2x512xf32> to vector<1x1x512xf32>
      %43 = vector.shape_cast %42 : vector<1x1x512xf32> to vector<1x1x1x512xf32>
      %c0_47 = arith.constant 0 : index
      %c0_48 = arith.constant 0 : index
      %c1_49 = arith.constant 1 : index
      %c0_50 = arith.constant 0 : index
      %44 = vector.load %arg7[%c0_47, %c0_48, %c1_49, %c0_50] : memref<1x1x2x512xf32, #tpu.memory_space<vmem>>, vector<1x1x1x512xf32>
      tpu.vector_store %arg7[%c0_47, %c0_48, %c1_49, %c0_50], %43 {strides = array<i32>} : memref<1x1x2x512xf32, #tpu.memory_space<vmem>>, vector<1x1x1x512xf32>,
    } else {
    }
    return
  }
  func.func @transform_0(%arg0: i32, %arg1: i32, %arg2: i32) -> (i32, i32, i32, i32) {
    %c1_i32 = arith.constant 1 : i32
    %0 = arith.muli %arg1, %c1_i32 : i32
    %1 = arith.addi %0, %arg2 : i32
    %c0_i32 = arith.constant 0 : i32
    %c0_i32_0 = arith.constant 0 : i32
    %c0_i32_1 = arith.constant 0 : i32
    return %arg0, %1, %c0_i32, %c0_i32_0 : i32, i32, i32, i32
  }
  func.func @transform_1(%arg0: i32, %arg1: i32, %arg2: i32) -> (i32, i32, i32, i32) {
    %c0_i32 = arith.constant 0 : i32
    %c0_i32_0 = arith.constant 0 : i32
    %c0_i32_1 = arith.constant 0 : i32
    %c0_i32_2 = arith.constant 0 : i32
    %c0_i32_3 = arith.constant 0 : i32
    return %c0_i32, %c0_i32_0, %c0_i32_1, %c0_i32_2 : i32, i32, i32, i32
  }
  func.func @transform_2(%arg0: i32, %arg1: i32, %arg2: i32) -> (i32, i32) {
    %c0_i32 = arith.constant 0 : i32
    %c0_i32_0 = arith.constant 0 : i32
    %c0_i32_1 = arith.constant 0 : i32
    return %c0_i32, %c0_i32_0 : i32, i32
  }
  func.func @transform_3(%arg0: i32, %arg1: i32, %arg2: i32) -> (i32, i32, i32, i32) {
    %c0_i32 = arith.constant 0 : i32
    %c0_i32_0 = arith.constant 0 : i32
    %c0_i32_1 = arith.constant 0 : i32
    return %arg0, %arg1, %c0_i32, %c0_i32_0 : i32, i32, i32, i32
  }
  func.func @transform_4(%arg0: i32, %arg1: i32, %arg2: i32) -> (i32, i32, i32, i32) {
    %c0_i32 = arith.constant 0 : i32
    %c0_i32_0 = arith.constant 0 : i32
    %c0_i32_1 = arith.constant 0 : i32
    return %arg0, %arg1, %c0_i32, %c0_i32_0 : i32, i32, i32, i32
  }
}

module attributes {stable_mosaic.version = 11 : i64} {
  func.func @_affine_lrelu_kernel(%arg0: i32, %arg1: memref<8x512xf32, #tpu.memory_space<vmem>>, %arg2: memref<1x512xf32, #tpu.memory_space<vmem>>, %arg3: memref<1x512xf32, #tpu.memory_space<vmem>>, %arg4: memref<8x512xf32, #tpu.memory_space<vmem>>) attributes {dimension_semantics = [#tpu.dimension_semantics<parallel>], iteration_bounds = array<i64: 1>, scalar_prefetch = 0 : i64, scratch_operands = 0 : i64, tpu.core_type = #tpu.core_type<tc>, window_params = [{transform_indices = @transform_0, window_bounds = array<i64: 8, 512>}, {pipeline_mode = #tpu.pipeline_mode<synchronous>, transform_indices = @transform_1, window_bounds = array<i64: 1, 512>}, {pipeline_mode = #tpu.pipeline_mode<synchronous>, transform_indices = @transform_2, window_bounds = array<i64: 1, 512>}, {transform_indices = @transform_3, window_bounds = array<i64: 8, 512>}]} {
    %c0 = arith.constant 0 : index
    %c0_0 = arith.constant 0 : index
    %0 = vector.load %arg1[%c0, %c0_0] : memref<8x512xf32, #tpu.memory_space<vmem>>, vector<8x512xf32>
    %c0_1 = arith.constant 0 : index
    %c0_2 = arith.constant 0 : index
    %1 = vector.load %arg2[%c0_1, %c0_2] : memref<1x512xf32, #tpu.memory_space<vmem>>, vector<1x512xf32>
    %2 = vector.broadcast %1 : vector<1x512xf32> to vector<8x512xf32>
    %3 = arith.mulf %0, %2 : vector<8x512xf32>
    %c0_3 = arith.constant 0 : index
    %c0_4 = arith.constant 0 : index
    %4 = vector.load %arg3[%c0_3, %c0_4] : memref<1x512xf32, #tpu.memory_space<vmem>>, vector<1x512xf32>
    %5 = vector.broadcast %4 : vector<1x512xf32> to vector<8x512xf32>
    %6 = arith.addf %3, %5 : vector<8x512xf32>
    %cst = arith.constant 0.000000e+00 : f32
    %7 = vector.broadcast %cst : f32 to vector<8x512xf32>
    %8 = arith.cmpf oge, %6, %7 : vector<8x512xf32>
    %cst_5 = arith.constant 2.000000e-01 : f32
    %9 = vector.broadcast %cst_5 : f32 to vector<8x512xf32>
    %10 = arith.mulf %9, %6 : vector<8x512xf32>
    %11 = arith.select %8, %6, %10 : vector<8x512xi1>, vector<8x512xf32>
    %c0_6 = arith.constant 0 : index
    %c0_7 = arith.constant 0 : index
    %12 = vector.load %arg4[%c0_6, %c0_7] : memref<8x512xf32, #tpu.memory_space<vmem>>, vector<8x512xf32>
    tpu.vector_store %arg4[%c0_6, %c0_7], %11 {strides = array<i32>} : memref<8x512xf32, #tpu.memory_space<vmem>>, vector<8x512xf32>,
    return
  }
  func.func @transform_0(%arg0: i32) -> (i32, i32) {
    %c0_i32 = arith.constant 0 : i32
    %c0_i32_0 = arith.constant 0 : i32
    return %arg0, %c0_i32 : i32, i32
  }
  func.func @transform_1(%arg0: i32) -> (i32, i32) {
    %c0_i32 = arith.constant 0 : i32
    %c0_i32_0 = arith.constant 0 : i32
    %c0_i32_1 = arith.constant 0 : i32
    return %c0_i32, %c0_i32_0 : i32, i32
  }
  func.func @transform_2(%arg0: i32) -> (i32, i32) {
    %c0_i32 = arith.constant 0 : i32
    %c0_i32_0 = arith.constant 0 : i32
    %c0_i32_1 = arith.constant 0 : i32
    return %c0_i32, %c0_i32_0 : i32, i32
  }
  func.func @transform_3(%arg0: i32) -> (i32, i32) {
    %c0_i32 = arith.constant 0 : i32
    %c0_i32_0 = arith.constant 0 : i32
    return %arg0, %c0_i32 : i32, i32
  }
}

module attributes {stable_mosaic.version = 11 : i64} {
  func.func @_direct_conv_kernel(%arg0: i32, %arg1: i32, %arg2: i32, %arg3: memref<1x1x4x512xbf16, #tpu.memory_space<vmem>>, %arg4: memref<3x3x512x512xbf16, #tpu.memory_space<vmem>>, %arg5: memref<1x512xf32, #tpu.memory_space<vmem>>, %arg6: memref<1x1x2x512xf32, #tpu.memory_space<vmem>>, %arg7: memref<1x1x2x512xf32, #tpu.memory_space<vmem>>) attributes {dimension_semantics = [#tpu.dimension_semantics<parallel>, #tpu.dimension_semantics<parallel>, #tpu.dimension_semantics<arbitrary>], iteration_bounds = array<i64: 2, 2, 3>, scalar_prefetch = 0 : i64, scratch_operands = 0 : i64, tpu.core_type = #tpu.core_type<tc>, window_params = [{transform_indices = @transform_0, window_bounds = array<i64: 1, 1, 4, 512>}, {pipeline_mode = #tpu.pipeline_mode<synchronous>, transform_indices = @transform_1, window_bounds = array<i64: 3, 3, 512, 512>}, {pipeline_mode = #tpu.pipeline_mode<synchronous>, transform_indices = @transform_2, window_bounds = array<i64: 1, 512>}, {transform_indices = @transform_3, window_bounds = array<i64: 1, 1, 2, 512>}, {transform_indices = @transform_4, window_bounds = array<i64: 1, 1, 2, 512>}]} {
    %c0_i32 = arith.constant 0 : i32
    %0 = arith.cmpi eq, %arg2, %c0_i32 : i32
    %1 = arith.extui %0 : i1 to i32
    %c0_i32_0 = arith.constant 0 : i32
    %2 = arith.cmpi ne, %1, %c0_i32_0 : i32
    scf.if %2 {
      %cst_31 = arith.constant 0.000000e+00 : f32
      %32 = vector.broadcast %cst_31 : f32 to vector<1x1x2x512xf32>
      %c0_32 = arith.constant 0 : index
      %c0_33 = arith.constant 0 : index
      %c0_34 = arith.constant 0 : index
      %c0_35 = arith.constant 0 : index
      %33 = vector.load %arg6[%c0_32, %c0_33, %c0_34, %c0_35] : memref<1x1x2x512xf32, #tpu.memory_space<vmem>>, vector<1x1x2x512xf32>
      tpu.vector_store %arg6[%c0_32, %c0_33, %c0_34, %c0_35], %32 {strides = array<i32>} : memref<1x1x2x512xf32, #tpu.memory_space<vmem>>, vector<1x1x2x512xf32>,
    } else {
    }
    %cst = arith.constant 0.000000e+00 : f32
    %3 = vector.broadcast %cst : f32 to vector<2x512xf32>
    %c0 = arith.constant 0 : index
    %c0_1 = arith.constant 0 : index
    %c0_2 = arith.constant 0 : index
    %c0_3 = arith.constant 0 : index
    %4 = vector.load %arg3[%c0, %c0_1, %c0_2, %c0_3] : memref<1x1x4x512xbf16, #tpu.memory_space<vmem>>, vector<1x1x2x512xbf16>
    %5 = vector.shape_cast %4 : vector<1x1x2x512xbf16> to vector<2x512xbf16>
    %6 = arith.index_cast %arg2 : i32 to index
    %c0_4 = arith.constant 0 : index
    %c0_5 = arith.constant 0 : index
    %c0_6 = arith.constant 0 : index
    %7 = vector.load %arg4[%6, %c0_4, %c0_5, %c0_6] : memref<3x3x512x512xbf16, #tpu.memory_space<vmem>>, vector<1x1x512x512xbf16>
    %8 = vector.shape_cast %7 : vector<1x1x512x512xbf16> to vector<512x512xbf16>
    %cst_7 = arith.constant dense<0.000000e+00> : vector<2x512xf32>
    %9 = tpu.matmul %5, %8, %cst_7 {dimension_numbers = #tpu.dot_dimension_numbers<[1], [0], [0], [1], [0, 0, 1, 1], [], []>} : vector<2x512xbf16>, vector<512x512xbf16>, vector<2x512xf32> -> vector<2x512xf32>
    %10 = arith.addf %3, %9 : vector<2x512xf32>
    %c0_8 = arith.constant 0 : index
    %c0_9 = arith.constant 0 : index
    %c1 = arith.constant 1 : index
    %c0_10 = arith.constant 0 : index
    %11 = vector.load %arg3[%c0_8, %c0_9, %c1, %c0_10] : memref<1x1x4x512xbf16, #tpu.memory_space<vmem>>, vector<1x1x2x512xbf16>
    %12 = vector.shape_cast %11 : vector<1x1x2x512xbf16> to vector<2x512xbf16>
    %13 = arith.index_cast %arg2 : i32 to index
    %c1_11 = arith.constant 1 : index
    %c0_12 = arith.constant 0 : index
    %c0_13 = arith.constant 0 : index
    %14 = vector.load %arg4[%13, %c1_11, %c0_12, %c0_13] : memref<3x3x512x512xbf16, #tpu.memory_space<vmem>>, vector<1x1x512x512xbf16>
    %15 = vector.shape_cast %14 : vector<1x1x512x512xbf16> to vector<512x512xbf16>
    %cst_14 = arith.constant dense<0.000000e+00> : vector<2x512xf32>
    %16 = tpu.matmul %12, %15, %cst_14 {dimension_numbers = #tpu.dot_dimension_numbers<[1], [0], [0], [1], [0, 0, 1, 1], [], []>} : vector<2x512xbf16>, vector<512x512xbf16>, vector<2x512xf32> -> vector<2x512xf32>
    %17 = arith.addf %10, %16 : vector<2x512xf32>
    %c0_15 = arith.constant 0 : index
    %c0_16 = arith.constant 0 : index
    %c2 = arith.constant 2 : index
    %c0_17 = arith.constant 0 : index
    %18 = vector.load %arg3[%c0_15, %c0_16, %c2, %c0_17] : memref<1x1x4x512xbf16, #tpu.memory_space<vmem>>, vector<1x1x2x512xbf16>
    %19 = vector.shape_cast %18 : vector<1x1x2x512xbf16> to vector<2x512xbf16>
    %20 = arith.index_cast %arg2 : i32 to index
    %c2_18 = arith.constant 2 : index
    %c0_19 = arith.constant 0 : index
    %c0_20 = arith.constant 0 : index
    %21 = vector.load %arg4[%20, %c2_18, %c0_19, %c0_20] : memref<3x3x512x512xbf16, #tpu.memory_space<vmem>>, vector<1x1x512x512xbf16>
    %22 = vector.shape_cast %21 : vector<1x1x512x512xbf16> to vector<512x512xbf16>
    %cst_21 = arith.constant dense<0.000000e+00> : vector<2x512xf32>
    %23 = tpu.matmul %19, %22, %cst_21 {dimension_numbers = #tpu.dot_dimension_numbers<[1], [0], [0], [1], [0, 0, 1, 1], [], []>} : vector<2x512xbf16>, vector<512x512xbf16>, vector<2x512xf32> -> vector<2x512xf32>
    %24 = arith.addf %17, %23 : vector<2x512xf32>
    %c0_22 = arith.constant 0 : index
    %c0_23 = arith.constant 0 : index
    %c0_24 = arith.constant 0 : index
    %c0_25 = arith.constant 0 : index
    %25 = vector.load %arg6[%c0_22, %c0_23, %c0_24, %c0_25] : memref<1x1x2x512xf32, #tpu.memory_space<vmem>>, vector<1x1x2x512xf32>
    %26 = vector.shape_cast %24 : vector<2x512xf32> to vector<1x1x2x512xf32>
    %27 = arith.addf %25, %26 : vector<1x1x2x512xf32>
    %c0_26 = arith.constant 0 : index
    %c0_27 = arith.constant 0 : index
    %c0_28 = arith.constant 0 : index
    %c0_29 = arith.constant 0 : index
    %28 = vector.load %arg6[%c0_26, %c0_27, %c0_28, %c0_29] : memref<1x1x2x512xf32, #tpu.memory_space<vmem>>, vector<1x1x2x512xf32>
    tpu.vector_store %arg6[%c0_26, %c0_27, %c0_28, %c0_29], %27 {strides = array<i32>} : memref<1x1x2x512xf32, #tpu.memory_space<vmem>>, vector<1x1x2x512xf32>,
    %c2_i32 = arith.constant 2 : i32
    %29 = arith.cmpi eq, %arg2, %c2_i32 : i32
    %30 = arith.extui %29 : i1 to i32
    %c0_i32_30 = arith.constant 0 : i32
    %31 = arith.cmpi ne, %30, %c0_i32_30 : i32
    scf.if %31 {
      %c0_31 = arith.constant 0 : index
      %c0_32 = arith.constant 0 : index
      %c0_33 = arith.constant 0 : index
      %c0_34 = arith.constant 0 : index
      %32 = vector.load %arg6[%c0_31, %c0_32, %c0_33, %c0_34] : memref<1x1x2x512xf32, #tpu.memory_space<vmem>>, vector<1x1x2x512xf32>
      %c0_35 = arith.constant 0 : index
      %c0_36 = arith.constant 0 : index
      %33 = vector.load %arg5[%c0_35, %c0_36] : memref<1x512xf32, #tpu.memory_space<vmem>>, vector<1x512xf32>
      %34 = vector.shape_cast %33 : vector<1x512xf32> to vector<1x1x1x512xf32>
      %35 = vector.broadcast %34 : vector<1x1x1x512xf32> to vector<1x1x2x512xf32>
      %36 = arith.addf %32, %35 : vector<1x1x2x512xf32>
      %c0_37 = arith.constant 0 : index
      %c0_38 = arith.constant 0 : index
      %c0_39 = arith.constant 0 : index
      %c0_40 = arith.constant 0 : index
      %37 = vector.load %arg6[%c0_37, %c0_38, %c0_39, %c0_40] : memref<1x1x2x512xf32, #tpu.memory_space<vmem>>, vector<1x1x2x512xf32>
      tpu.vector_store %arg6[%c0_37, %c0_38, %c0_39, %c0_40], %36 {strides = array<i32>} : memref<1x1x2x512xf32, #tpu.memory_space<vmem>>, vector<1x1x2x512xf32>,
      %cst_41 = arith.constant dense<0.000000e+00> : vector<1x1x512xf32>
      %38 = vector.multi_reduction <add>, %36, %cst_41 [2] : vector<1x1x2x512xf32> to vector<1x1x512xf32>
      %39 = vector.shape_cast %38 : vector<1x1x512xf32> to vector<1x1x1x512xf32>
      %c0_42 = arith.constant 0 : index
      %c0_43 = arith.constant 0 : index
      %c0_44 = arith.constant 0 : index
      %c0_45 = arith.constant 0 : index
      %40 = vector.load %arg7[%c0_42, %c0_43, %c0_44, %c0_45] : memref<1x1x2x512xf32, #tpu.memory_space<vmem>>, vector<1x1x1x512xf32>
      tpu.vector_store %arg7[%c0_42, %c0_43, %c0_44, %c0_45], %39 {strides = array<i32>} : memref<1x1x2x512xf32, #tpu.memory_space<vmem>>, vector<1x1x1x512xf32>,
      %41 = arith.mulf %36, %36 : vector<1x1x2x512xf32>
      %cst_46 = arith.constant dense<0.000000e+00> : vector<1x1x512xf32>
      %42 = vector.multi_reduction <add>, %41, %cst_46 [2] : vector<1x1x2x512xf32> to vector<1x1x512xf32>
      %43 = vector.shape_cast %42 : vector<1x1x512xf32> to vector<1x1x1x512xf32>
      %c0_47 = arith.constant 0 : index
      %c0_48 = arith.constant 0 : index
      %c1_49 = arith.constant 1 : index
      %c0_50 = arith.constant 0 : index
      %44 = vector.load %arg7[%c0_47, %c0_48, %c1_49, %c0_50] : memref<1x1x2x512xf32, #tpu.memory_space<vmem>>, vector<1x1x1x512xf32>
      tpu.vector_store %arg7[%c0_47, %c0_48, %c1_49, %c0_50], %43 {strides = array<i32>} : memref<1x1x2x512xf32, #tpu.memory_space<vmem>>, vector<1x1x1x512xf32>,
    } else {
    }
    return
  }
  func.func @transform_0(%arg0: i32, %arg1: i32, %arg2: i32) -> (i32, i32, i32, i32) {
    %c1_i32 = arith.constant 1 : i32
    %0 = arith.muli %arg1, %c1_i32 : i32
    %1 = arith.addi %0, %arg2 : i32
    %c0_i32 = arith.constant 0 : i32
    %c0_i32_0 = arith.constant 0 : i32
    %c0_i32_1 = arith.constant 0 : i32
    return %arg0, %1, %c0_i32, %c0_i32_0 : i32, i32, i32, i32
  }
  func.func @transform_1(%arg0: i32, %arg1: i32, %arg2: i32) -> (i32, i32, i32, i32) {
    %c0_i32 = arith.constant 0 : i32
    %c0_i32_0 = arith.constant 0 : i32
    %c0_i32_1 = arith.constant 0 : i32
    %c0_i32_2 = arith.constant 0 : i32
    %c0_i32_3 = arith.constant 0 : i32
    return %c0_i32, %c0_i32_0, %c0_i32_1, %c0_i32_2 : i32, i32, i32, i32
  }
  func.func @transform_2(%arg0: i32, %arg1: i32, %arg2: i32) -> (i32, i32) {
    %c0_i32 = arith.constant 0 : i32
    %c0_i32_0 = arith.constant 0 : i32
    %c0_i32_1 = arith.constant 0 : i32
    return %c0_i32, %c0_i32_0 : i32, i32
  }
  func.func @transform_3(%arg0: i32, %arg1: i32, %arg2: i32) -> (i32, i32, i32, i32) {
    %c0_i32 = arith.constant 0 : i32
    %c0_i32_0 = arith.constant 0 : i32
    %c0_i32_1 = arith.constant 0 : i32
    return %arg0, %arg1, %c0_i32, %c0_i32_0 : i32, i32, i32, i32
  }
  func.func @transform_4(%arg0: i32, %arg1: i32, %arg2: i32) -> (i32, i32, i32, i32) {
    %c0_i32 = arith.constant 0 : i32
    %c0_i32_0 = arith.constant 0 : i32
    %c0_i32_1 = arith.constant 0 : i32
    return %arg0, %arg1, %c0_i32, %c0_i32_0 : i32, i32, i32, i32
  }
}

module attributes {stable_mosaic.version = 11 : i64} {
  func.func @_direct_conv_kernel(%arg0: i32, %arg1: i32, %arg2: i32, %arg3: memref<1x1x4x512xbf16, #tpu.memory_space<vmem>>, %arg4: memref<3x3x512x1xbf16, #tpu.memory_space<vmem>>, %arg5: memref<1x1xf32, #tpu.memory_space<vmem>>, %arg6: memref<1x1x2x1xf32, #tpu.memory_space<vmem>>) attributes {dimension_semantics = [#tpu.dimension_semantics<parallel>, #tpu.dimension_semantics<parallel>, #tpu.dimension_semantics<arbitrary>], iteration_bounds = array<i64: 2, 2, 3>, scalar_prefetch = 0 : i64, scratch_operands = 0 : i64, tpu.core_type = #tpu.core_type<tc>, window_params = [{transform_indices = @transform_0, window_bounds = array<i64: 1, 1, 4, 512>}, {pipeline_mode = #tpu.pipeline_mode<synchronous>, transform_indices = @transform_1, window_bounds = array<i64: 3, 3, 512, 1>}, {pipeline_mode = #tpu.pipeline_mode<synchronous>, transform_indices = @transform_2, window_bounds = array<i64: 1, 1>}, {transform_indices = @transform_3, window_bounds = array<i64: 1, 1, 2, 1>}]} {
    %c0_i32 = arith.constant 0 : i32
    %0 = arith.cmpi eq, %arg2, %c0_i32 : i32
    %1 = arith.extui %0 : i1 to i32
    %c0_i32_0 = arith.constant 0 : i32
    %2 = arith.cmpi ne, %1, %c0_i32_0 : i32
    scf.if %2 {
      %cst_31 = arith.constant 0.000000e+00 : f32
      %32 = vector.broadcast %cst_31 : f32 to vector<1x1x2x1xf32>
      %c0_32 = arith.constant 0 : index
      %c0_33 = arith.constant 0 : index
      %c0_34 = arith.constant 0 : index
      %c0_35 = arith.constant 0 : index
      %33 = vector.load %arg6[%c0_32, %c0_33, %c0_34, %c0_35] : memref<1x1x2x1xf32, #tpu.memory_space<vmem>>, vector<1x1x2x1xf32>
      tpu.vector_store %arg6[%c0_32, %c0_33, %c0_34, %c0_35], %32 {strides = array<i32>} : memref<1x1x2x1xf32, #tpu.memory_space<vmem>>, vector<1x1x2x1xf32>,
    } else {
    }
    %cst = arith.constant 0.000000e+00 : f32
    %3 = vector.broadcast %cst : f32 to vector<2x1xf32>
    %c0 = arith.constant 0 : index
    %c0_1 = arith.constant 0 : index
    %c0_2 = arith.constant 0 : index
    %c0_3 = arith.constant 0 : index
    %4 = vector.load %arg3[%c0, %c0_1, %c0_2, %c0_3] : memref<1x1x4x512xbf16, #tpu.memory_space<vmem>>, vector<1x1x2x512xbf16>
    %5 = vector.shape_cast %4 : vector<1x1x2x512xbf16> to vector<2x512xbf16>
    %6 = arith.index_cast %arg2 : i32 to index
    %c0_4 = arith.constant 0 : index
    %c0_5 = arith.constant 0 : index
    %c0_6 = arith.constant 0 : index
    %7 = vector.load %arg4[%6, %c0_4, %c0_5, %c0_6] : memref<3x3x512x1xbf16, #tpu.memory_space<vmem>>, vector<1x1x512x1xbf16>
    %8 = vector.shape_cast %7 : vector<1x1x512x1xbf16> to vector<512x1xbf16>
    %cst_7 = arith.constant dense<0.000000e+00> : vector<2x1xf32>
    %9 = tpu.matmul %5, %8, %cst_7 {dimension_numbers = #tpu.dot_dimension_numbers<[1], [0], [0], [1], [0, 0, 1, 1], [], []>} : vector<2x512xbf16>, vector<512x1xbf16>, vector<2x1xf32> -> vector<2x1xf32>
    %10 = arith.addf %3, %9 : vector<2x1xf32>
    %c0_8 = arith.constant 0 : index
    %c0_9 = arith.constant 0 : index
    %c1 = arith.constant 1 : index
    %c0_10 = arith.constant 0 : index
    %11 = vector.load %arg3[%c0_8, %c0_9, %c1, %c0_10] : memref<1x1x4x512xbf16, #tpu.memory_space<vmem>>, vector<1x1x2x512xbf16>
    %12 = vector.shape_cast %11 : vector<1x1x2x512xbf16> to vector<2x512xbf16>
    %13 = arith.index_cast %arg2 : i32 to index
    %c1_11 = arith.constant 1 : index
    %c0_12 = arith.constant 0 : index
    %c0_13 = arith.constant 0 : index
    %14 = vector.load %arg4[%13, %c1_11, %c0_12, %c0_13] : memref<3x3x512x1xbf16, #tpu.memory_space<vmem>>, vector<1x1x512x1xbf16>
    %15 = vector.shape_cast %14 : vector<1x1x512x1xbf16> to vector<512x1xbf16>
    %cst_14 = arith.constant dense<0.000000e+00> : vector<2x1xf32>
    %16 = tpu.matmul %12, %15, %cst_14 {dimension_numbers = #tpu.dot_dimension_numbers<[1], [0], [0], [1], [0, 0, 1, 1], [], []>} : vector<2x512xbf16>, vector<512x1xbf16>, vector<2x1xf32> -> vector<2x1xf32>
    %17 = arith.addf %10, %16 : vector<2x1xf32>
    %c0_15 = arith.constant 0 : index
    %c0_16 = arith.constant 0 : index
    %c2 = arith.constant 2 : index
    %c0_17 = arith.constant 0 : index
    %18 = vector.load %arg3[%c0_15, %c0_16, %c2, %c0_17] : memref<1x1x4x512xbf16, #tpu.memory_space<vmem>>, vector<1x1x2x512xbf16>
    %19 = vector.shape_cast %18 : vector<1x1x2x512xbf16> to vector<2x512xbf16>
    %20 = arith.index_cast %arg2 : i32 to index
    %c2_18 = arith.constant 2 : index
    %c0_19 = arith.constant 0 : index
    %c0_20 = arith.constant 0 : index
    %21 = vector.load %arg4[%20, %c2_18, %c0_19, %c0_20] : memref<3x3x512x1xbf16, #tpu.memory_space<vmem>>, vector<1x1x512x1xbf16>
    %22 = vector.shape_cast %21 : vector<1x1x512x1xbf16> to vector<512x1xbf16>
    %cst_21 = arith.constant dense<0.000000e+00> : vector<2x1xf32>
    %23 = tpu.matmul %19, %22, %cst_21 {dimension_numbers = #tpu.dot_dimension_numbers<[1], [0], [0], [1], [0, 0, 1, 1], [], []>} : vector<2x512xbf16>, vector<512x1xbf16>, vector<2x1xf32> -> vector<2x1xf32>
    %24 = arith.addf %17, %23 : vector<2x1xf32>
    %c0_22 = arith.constant 0 : index
    %c0_23 = arith.constant 0 : index
    %c0_24 = arith.constant 0 : index
    %c0_25 = arith.constant 0 : index
    %25 = vector.load %arg6[%c0_22, %c0_23, %c0_24, %c0_25] : memref<1x1x2x1xf32, #tpu.memory_space<vmem>>, vector<1x1x2x1xf32>
    %26 = vector.shape_cast %24 : vector<2x1xf32> to vector<1x1x2x1xf32>
    %27 = arith.addf %25, %26 : vector<1x1x2x1xf32>
    %c0_26 = arith.constant 0 : index
    %c0_27 = arith.constant 0 : index
    %c0_28 = arith.constant 0 : index
    %c0_29 = arith.constant 0 : index
    %28 = vector.load %arg6[%c0_26, %c0_27, %c0_28, %c0_29] : memref<1x1x2x1xf32, #tpu.memory_space<vmem>>, vector<1x1x2x1xf32>
    tpu.vector_store %arg6[%c0_26, %c0_27, %c0_28, %c0_29], %27 {strides = array<i32>} : memref<1x1x2x1xf32, #tpu.memory_space<vmem>>, vector<1x1x2x1xf32>,
    %c2_i32 = arith.constant 2 : i32
    %29 = arith.cmpi eq, %arg2, %c2_i32 : i32
    %30 = arith.extui %29 : i1 to i32
    %c0_i32_30 = arith.constant 0 : i32
    %31 = arith.cmpi ne, %30, %c0_i32_30 : i32
    scf.if %31 {
      %c0_31 = arith.constant 0 : index
      %c0_32 = arith.constant 0 : index
      %c0_33 = arith.constant 0 : index
      %c0_34 = arith.constant 0 : index
      %32 = vector.load %arg6[%c0_31, %c0_32, %c0_33, %c0_34] : memref<1x1x2x1xf32, #tpu.memory_space<vmem>>, vector<1x1x2x1xf32>
      %c0_35 = arith.constant 0 : index
      %c0_36 = arith.constant 0 : index
      %33 = vector.load %arg5[%c0_35, %c0_36] : memref<1x1xf32, #tpu.memory_space<vmem>>, vector<1x1xf32>
      %34 = vector.shape_cast %33 : vector<1x1xf32> to vector<1x1x1x1xf32>
      %35 = vector.broadcast %34 : vector<1x1x1x1xf32> to vector<1x1x2x1xf32>
      %36 = arith.addf %32, %35 : vector<1x1x2x1xf32>
      %37 = arith.negf %36 : vector<1x1x2x1xf32>
      %38 = math.exp %37 : vector<1x1x2x1xf32>
      %cst_37 = arith.constant 1.000000e+00 : f32
      %39 = vector.broadcast %cst_37 : f32 to vector<1x1x2x1xf32>
      %40 = arith.addf %39, %38 : vector<1x1x2x1xf32>
      %41 = arith.divf %39, %40 : vector<1x1x2x1xf32>
      %c0_38 = arith.constant 0 : index
      %c0_39 = arith.constant 0 : index
      %c0_40 = arith.constant 0 : index
      %c0_41 = arith.constant 0 : index
      %42 = vector.load %arg6[%c0_38, %c0_39, %c0_40, %c0_41] : memref<1x1x2x1xf32, #tpu.memory_space<vmem>>, vector<1x1x2x1xf32>
      tpu.vector_store %arg6[%c0_38, %c0_39, %c0_40, %c0_41], %41 {strides = array<i32>} : memref<1x1x2x1xf32, #tpu.memory_space<vmem>>, vector<1x1x2x1xf32>,
    } else {
    }
    return
  }
  func.func @transform_0(%arg0: i32, %arg1: i32, %arg2: i32) -> (i32, i32, i32, i32) {
    %c1_i32 = arith.constant 1 : i32
    %0 = arith.muli %arg1, %c1_i32 : i32
    %1 = arith.addi %0, %arg2 : i32
    %c0_i32 = arith.constant 0 : i32
    %c0_i32_0 = arith.constant 0 : i32
    %c0_i32_1 = arith.constant 0 : i32
    return %arg0, %1, %c0_i32, %c0_i32_0 : i32, i32, i32, i32
  }
  func.func @transform_1(%arg0: i32, %arg1: i32, %arg2: i32) -> (i32, i32, i32, i32) {
    %c0_i32 = arith.constant 0 : i32
    %c0_i32_0 = arith.constant 0 : i32
    %c0_i32_1 = arith.constant 0 : i32
    %c0_i32_2 = arith.constant 0 : i32
    %c0_i32_3 = arith.constant 0 : i32
    return %c0_i32, %c0_i32_0, %c0_i32_1, %c0_i32_2 : i32, i32, i32, i32
  }
  func.func @transform_2(%arg0: i32, %arg1: i32, %arg2: i32) -> (i32, i32) {
    %c0_i32 = arith.constant 0 : i32
    %c0_i32_0 = arith.constant 0 : i32
    %c0_i32_1 = arith.constant 0 : i32
    return %c0_i32, %c0_i32_0 : i32, i32
  }
  func.func @transform_3(%arg0: i32, %arg1: i32, %arg2: i32) -> (i32, i32, i32, i32) {
    %c0_i32 = arith.constant 0 : i32
    %c0_i32_0 = arith.constant 0 : i32
    %c0_i32_1 = arith.constant 0 : i32
    return %arg0, %arg1, %c0_i32, %c0_i32_0 : i32, i32, i32, i32
  }
}

</mosaic_0001>

<llo_original>
// kernel: discriminator_forward.10
$region0: #{discriminator_forward.10}
  #allocation0 [shape = 'u32[]', space=smem, size = 0x4, offset = 0x4, fixed_abs, tag = 'smem constant byte address 0x4 - core index']
  #allocation1 [shape = 'u32[144,128]{1,0:T(1,128)}', space=vmem, size = 0x12000, scoped, tag = 'internal scratch']
  %s0 = inlined_call_operand.vmem [shape: f32[2,36,9,6], index: 0, kind: input, shape index: {}]
  %s1 = inlined_call_operand.vmem [shape: f32[4,4,6,64], index: 1, kind: input, shape index: {}]
  %s2 = inlined_call_operand.hbm [shape: f32[1,64], index: 2, kind: input, shape index: {}]
  %s3 = inlined_call_operand.vmem [shape: f32[2,8,8,64], index: 3, kind: output, shape index: {}]
  %s4 = sld [smem:[#allocation0]]
  $region57: #{discriminator_forward.10} parent=0
    _
  %s6 = ssub.s32 1, %s4
  %s7 = scalar_select 0, %s6, %s4
  $region1: #{discriminator_forward.10} parent=0
    #allocation2 [shape = 'u8[512]{0}', space=vmem, size = 0x400, scoped, tag = 'input window, operand 2, single buffered']
    #allocation3 [shape = 's32[2]{0}', space=sflag, size = 0x8, scoped, tag = 'scoped memory for discriminator_forward.10']
    %8 = vsyncpa [#allocation3], 0
    loop: start=0, step=1, limit=66
    $region2: #{discriminator_forward.10} parent=1 // loop_pre_header
      _
    $region3: #{discriminator_forward.10} parent=1 // loop_header
      %s10 = sphi 0, %s14
      %p11 = scmp.ge.s32.totalorder %s10, 66
      %s17 = sphi 0, %s36
      %s18 = sphi 0, %s32
      %s19 = sphi 0, %s28
      %s20 = sphi 0, %s17
      %s21 = sphi 0, %s18
      %s22 = sphi 0, %s19
      %s23 = sphi 0, %s20
      %s24 = sphi 0, %s21
      %s25 = sphi 0, %s22
      %s45 = sphi 0, %s47
      %s48 = sphi 0, %s45
      %s49 = sphi 0, %s48
      %s65 = sphi 0, %s49
      %s69 = sphi 0, %s69
      %s71 = sphi 0, %s69
      %s72 = sphi 0, %s71
      %s86 = sphi 0, %s72
      %s90 = sphi 0, %s90
      %s92 = sphi 0, %s90
      %s93 = sphi 0, %s92
      %s107 = sphi 0, %s93
      %s115 = sphi 0, %s117
      %s118 = sphi 0, %s115
      %s119 = sphi 0, %s118
      %s135 = sphi 0, %s119
    $region4: #{discriminator_forward.10} parent=1 // loop_header_branch
      %13 = sbr.rel (%p11) target = $region8
    $region5: #{discriminator_forward.10} parent=1 // loop_body
      %s15 = ssub.s32 %s10, 1
      %s16 = ssub.s32 %s10, 2
      %s26 = sadd.s32 1, %s19
      %p27 = scmp.ge.s32.totalorder %s26, 4
      %s28 = scalar_select %p27, 0, %s26
      %s29 = sadd.s32 1, %s18
      %s30 = scalar_select %p27, %s29, %s18
      %p31 = scmp.ge.s32.totalorder %s30, 8
      %s32 = scalar_select %p31, 0, %s30
      %s33 = sadd.s32 1, %s17
      %s34 = scalar_select %p31, %s33, %s17
      %p35 = scmp.ge.s32.totalorder %s34, 2
      %s36 = scalar_select %p35, 0, %s34
      %s37 = smul.u32 %s18, 2
      %s38 = sadd.s32 %s37, %s19
      %s39 = smul.u32 %s32, 2
      %s40 = sadd.s32 %s39, %s28
      %s41 = ssub.s32 %s17, %s36
      %s42 = ssub.s32 %s38, %s40
      %s43 = sor.u32 %s41, %s42
      %p44 = scmp.eq.s32.totalorder %s43, 0
      %s46 = sadd.s32 %s45, 1
      %s47 = scalar_select %p44, %s45, %s46
      %p50 = pneg %p44
      %p51 = scmp.eq.s32.totalorder %s10, 63
      %p52 = por %p50, %p51
      %p53 = scmp.ne.s32.totalorder %s45, %s48
      %p54 = scmp.eq.s32.totalorder %s10, 0
      %p55 = por %p53, %p54
      %p56 = scmp.ne.s32.totalorder %s45, %s48
      %p57 = scmp.eq.s32.totalorder %s15, 63
      %p58 = por %p56, %p57
      %p59 = scmp.ne.s32.totalorder %s48, %s49
      %p60 = scmp.eq.s32.totalorder %s15, 0
      %p61 = por %p59, %p60
      %p62 = scmp.ne.s32.totalorder %s48, %s49
      %p63 = scmp.eq.s32.totalorder %s16, 63
      %p64 = por %p62, %p63
      %p66 = scmp.ne.s32.totalorder %s49, %s65
      %p67 = scmp.eq.s32.totalorder %s16, 0
      %p68 = por %p66, %p67
      %s70 = sadd.s32 %s69, 1
      %p73 = scmp.eq.s32.totalorder %s10, 63
      %p74 = scmp.ne.s32.totalorder %s69, %s71
      %p75 = scmp.eq.s32.totalorder %s10, 0
      %p76 = por %p74, %p75
      %p77 = scmp.ne.s32.totalorder %s69, %s71
      %p78 = scmp.eq.s32.totalorder %s15, 63
      %p79 = por %p77, %p78
      %p80 = scmp.ne.s32.totalorder %s71, %s72
      %p81 = scmp.eq.s32.totalorder %s15, 0
      %p82 = por %p80, %p81
      %p83 = scmp.ne.s32.totalorder %s71, %s72
      %p84 = scmp.eq.s32.totalorder %s16, 63
      %p85 = por %p83, %p84
      %p87 = scmp.ne.s32.totalorder %s72, %s86
      %p88 = scmp.eq.s32.totalorder %s16, 0
      %p89 = por %p87, %p88
      %s91 = sadd.s32 %s90, 1
      %p94 = scmp.eq.s32.totalorder %s10, 63
      %p95 = scmp.ne.s32.totalorder %s90, %s92
      %p96 = scmp.eq.s32.totalorder %s10, 0
      %p97 = por %p95, %p96
      %p98 = scmp.ne.s32.totalorder %s90, %s92
      %p99 = scmp.eq.s32.totalorder %s15, 63
      %p100 = por %p98, %p99
      %p101 = scmp.ne.s32.totalorder %s92, %s93
      %p102 = scmp.eq.s32.totalorder %s15, 0
      %p103 = por %p101, %p102
      %p104 = scmp.ne.s32.totalorder %s92, %s93
      %p105 = scmp.eq.s32.totalorder %s16, 63
      %p106 = por %p104, %p105
      %p108 = scmp.ne.s32.totalorder %s93, %s107
      %p109 = scmp.eq.s32.totalorder %s16, 0
      %p110 = por %p108, %p109
      %s111 = ssub.s32 %s17, %s36
      %s112 = ssub.s32 %s18, %s32
      %s113 = sor.u32 %s111, %s112
      %p114 = scmp.eq.s32.totalorder %s113, 0
      %s116 = sadd.s32 %s115, 1
      %s117 = scalar_select %p114, %s115, %s116
      %p120 = pneg %p114
      %p121 = scmp.eq.s32.totalorder %s10, 63
      %p122 = por %p120, %p121
      %p123 = scmp.ne.s32.totalorder %s115, %s118
      %p124 = scmp.eq.s32.totalorder %s10, 0
      %p125 = por %p123, %p124
      %p126 = scmp.ne.s32.totalorder %s115, %s118
      %p127 = scmp.eq.s32.totalorder %s15, 63
      %p128 = por %p126, %p127
      %p129 = scmp.ne.s32.totalorder %s118, %s119
      %p130 = scmp.eq.s32.totalorder %s15, 0
      %p131 = por %p129, %p130
      %p132 = scmp.ne.s32.totalorder %s118, %s119
      %p133 = scmp.eq.s32.totalorder %s16, 63
      %p134 = por %p132, %p133
      %p136 = scmp.ne.s32.totalorder %s119, %s135
      %p137 = scmp.eq.s32.totalorder %s16, 0
      %p138 = por %p136, %p137
      %p139 = scmp.le.s32.totalorder 1, %s10
      %p140 = scmp.lt.s32.totalorder %s10, 65
      %p141 = pnand %p139, %p140
      %p142 = pneg %p141
      // Predicated region
      $region9: #{discriminator_forward.10} parent=5 // pred_check
        _
      $region10: #{discriminator_forward.10} parent=5 // pred_check_branch
        %144 = sbr.rel (%p141) target = $region12
      $region11: #{discriminator_forward.10} parent=5 // pred_region
        %s145 = ssub.s32 %s10, 1
        // Predicated region
        $region13: #{discriminator_forward.10} parent=11 // pred_check
          %p146 = pneg %p82
        $region14: #{discriminator_forward.10} parent=11 // pred_check_branch
          %148 = sbr.rel (%p146) target = $region16
        $region15: #{discriminator_forward.10} parent=11 // pred_region
          _
        $region16: #{discriminator_forward.10} parent=11 // pred_fallthru
          _
        // Predicated region
        $region17: #{discriminator_forward.10} parent=11 // pred_check
          %p149 = pneg %p103
        $region18: #{discriminator_forward.10} parent=11 // pred_check_branch
          %151 = sbr.rel (%p149) target = $region20
        $region19: #{discriminator_forward.10} parent=11 // pred_region
          %s153 = ssub.s32 16, 16
          %154 = vsyncadd [#allocation3], %s153
          %s156 = sshll.u32 [#allocation2], 4
          %s157 = int_to_ptr.vmem [resolvable:$true] %s156
          %159 = dma.hbm_to_vmem [thread:$0]  %s2, 16, %s157, [#allocation3]
        $region20: #{discriminator_forward.10} parent=11 // pred_fallthru
          _
      $region12: #{discriminator_forward.10} parent=5 // pred_fallthru
        _
      %p160 = scmp.lt.s32.totalorder %s10, 64
      // Predicated region
      $region21: #{discriminator_forward.10} parent=5 // pred_check
        %p161 = pneg %p160
      $region22: #{discriminator_forward.10} parent=5 // pred_check_branch
        %163 = sbr.rel (%p161) target = $region24
      $region23: #{discriminator_forward.10} parent=5 // pred_region
        // Predicated region
        $region25: #{discriminator_forward.10} parent=23 // pred_check
          %p164 = pneg %p55
        $region26: #{discriminator_forward.10} parent=23 // pred_check_branch
          %166 = sbr.rel (%p164) target = $region28
        $region27: #{discriminator_forward.10} parent=23 // pred_region
          %s167 = smul.u32 %s18, 2
          %s168 = sadd.s32 %s167, %s19
          %s169 = smul.u32 2, %s168
          %p170 = scmp.lt.s32.totalorder %s17, 1
          %s171 = scalar_select %p170, %s17, 1
          %p172 = scmp.lt.s32.totalorder %s169, 35
          %s173 = scalar_select %p172, %s169, 35
          %s174 = smul.addr %s173, 2
          %s175 = smul.addr %s171, 72
          %s176 = sadd.s32 %s174, %s175
          %s177 = smul.addr %s176, 8
          %s178 = scalar_lea.vmem %s0, %s177
          %s179 = smul.u32 %s18, 2
          %s180 = sadd.s32 %s179, %s19
          %s181 = smul.u32 2, %s180
        $region28: #{discriminator_forward.10} parent=23 // pred_fallthru
          _
      $region24: #{discriminator_forward.10} parent=5 // pred_fallthru
        _
      %p182 = scmp.le.s32.totalorder 1, %s10
      %p183 = scmp.lt.s32.totalorder %s10, 65
      %p184 = pnand %p182, %p183
      %p185 = pneg %p184
      // Predicated region
      $region29: #{discriminator_forward.10} parent=5 // pred_check
        _
      $region30: #{discriminator_forward.10} parent=5 // pred_check_branch
        %187 = sbr.rel (%p184) target = $region32
      $region31: #{discriminator_forward.10} parent=5 // pred_region
        %s188 = ssub.s32 %s10, 1
        // Predicated region
        $region33: #{discriminator_forward.10} parent=31 // pred_check
          %p189 = pneg %p103
        $region34: #{discriminator_forward.10} parent=31 // pred_check_branch
          %191 = sbr.rel (%p189) target = $region36
        $region35: #{discriminator_forward.10} parent=31 // pred_region
          %192 = dma.done [#allocation3], 16
        $region36: #{discriminator_forward.10} parent=31 // pred_fallthru
          _
        %s193 = smul.u32 %s21, 2
        %s194 = sadd.s32 %s193, %s22
        %s195 = smul.u32 2, %s194
        %p196 = scmp.lt.s32.totalorder %s20, 1
        %s197 = scalar_select %p196, %s20, 1
        %p198 = scmp.lt.s32.totalorder %s195, 35
        %s199 = scalar_select %p198, %s195, 35
        %s200 = smul.addr %s199, 2
        %s201 = smul.addr %s197, 72
        %s202 = sadd.s32 %s200, %s201
        %s203 = smul.addr %s202, 8
        %s204 = scalar_lea.vmem %s0, %s203
        %p205 = pneg %p61
        %p206 = pneg %p58
        %p207 = pneg %p82
        %p208 = pneg %p79
        %p209 = pneg %p103
        %p210 = pneg %p100
        %p211 = pneg %p131
        %p212 = pneg %p128
        %p213 = scmp.lt.s32.totalorder %s20, 1
        %s214 = scalar_select %p213, %s20, 1
        %p215 = scmp.lt.s32.totalorder %s21, 7
        %s216 = scalar_select %p215, %s21, 7
        %s217 = smul.addr %s214, 8
        %s218 = sadd.s32 %s216, %s217
        %s219 = smul.addr %s218, 8
        %s220 = scalar_lea.vmem %s3, %s219
        %s221 = smul.u32 %s21, 2
        %s222 = sadd.s32 %s221, %s22
        %s223 = smul.u32 2, %s222
        %p224 = scmp.lt.s32.totalorder %s20, 1
        %s225 = scalar_select %p224, %s20, 1
        %p226 = scmp.lt.s32.totalorder %s223, 35
        %s227 = scalar_select %p226, %s223, 35
        %s228 = smul.addr %s227, 2
        %s229 = smul.addr %s225, 72
        %s230 = sadd.s32 %s228, %s229
        %s231 = smul.addr %s230, 8
        %s232 = scalar_lea.vmem %s0, %s231
        %s233 = smul.u32 %s21, 2
        %s234 = sadd.s32 %s233, %s22
        %s235 = smul.u32 2, %s234
        %p236 = scmp.lt.s32.totalorder %s20, 1
        %s237 = scalar_select %p236, %s20, 1
        %p238 = scmp.lt.s32.totalorder %s21, 7
        %s239 = scalar_select %p238, %s21, 7
        %s240 = smul.addr %s237, 8
        %s241 = sadd.s32 %s239, %s240
        %s242 = smul.addr %s241, 8
        %s243 = scalar_lea.vmem %s3, %s242
        %p244 = scmp.eq.s32.totalorder %s22, 0
        // Predicated region
        $region37: #{discriminator_forward.10} parent=31 // pred_check
          %p245 = pneg %p244
        $region38: #{discriminator_forward.10} parent=31 // pred_check_branch
          %247 = sbr.rel (%p245) target = $region40
        $region39: #{discriminator_forward.10} parent=31 // pred_region
          %vm248 = vcmask 523264
          %249 = vst.msk [vmem:[%s243] sm:$0xff] %vm248, 0.0
        $region40: #{discriminator_forward.10} parent=31 // pred_fallthru
          _
        %v250 = vld [vmem:[%s232] sm:$0xff]
        %s251 = smul.u32 %s22, 32
        %s252 = scalar_lea.vmem %s1, %s251
        %v253 = vld [vmem:[%s252] sm:$0x3f]
        %s254 = scalar_lea.vmem %s232, 16
        %v255 = vld [vmem:[%s254] sm:$0xff]
        %s256 = sadd.s32 8, %s251
        %s257 = scalar_lea.vmem %s1, %s256
        %v258 = vld [vmem:[%s257] sm:$0x3f]
        %vm259 = vcmask 48128
        %v261 = vsel %vm259, %v255, 0
        %vm263 = vcmask 1045504
        %v265 = vsel %vm263, %v258, 0
        %267 = vmatprep.subr.mxu0 0.0
        %268 = vmatpush1.msra.mxu0 0.0
        %269 = vmatprep.subr.mxu0 0.0
        %270 = vmatpush1.msra.mxu0 0.0
        %271 = vmatprep.subr.mxu0 0.0
        %272 = vmatpush1.msra.mxu0 0.0
        %273 = vmatprep.subr.mxu0 0.0
        %274 = vmatpush1.msra.mxu0 0.0
        %275 = vmatprep.subr.mxu0 0.0
        %276 = vmatpush1.msra.mxu0 0.0
        %277 = vmatprep.subr.mxu0 0.0
        %278 = vmatpush1.msra.mxu0 0.0
        %279 = vmatprep.subr.mxu0 0.0
        %280 = vmatpush1.msra.mxu0 0.0
        %281 = vmatprep.subr.mxu0 0.0
        %282 = vmatpush1.msra.mxu0 0.0
        %283 = vmatprep.subr.mxu0 0.0
        %284 = vmatpush1.msra.mxu0 0.0
        %285 = vmatprep.subr.mxu0 0.0
        %286 = vmatpush1.msra.mxu0 0.0
        %287 = vmatprep.subr.mxu0 0.0
        %288 = vmatpush1.msra.mxu0 0.0
        %289 = vmatprep.subr.mxu0 0.0
        %290 = vmatpush1.msra.mxu0 0.0
        %291 = vmatprep.subr.mxu0 0.0
        %292 = vmatpush1.msra.mxu0 0.0
        %293 = vmatprep.subr.mxu0 0.0
        %294 = vmatpush1.msra.mxu0 0.0
        %295 = vmatprep.subr.mxu0 0.0
        %296 = vmatpush1.msra.mxu0 0.0
        %297 = vmatprep.subr.mxu0 0.0
        %298 = vmatpush1.msra.mxu0 %v265
        %299 = vmatprep.subr.mxu0 0.0
        %300 = vmatpush2.msra.mxu0 0.0
        %301 = vmatprep.subr.mxu0 0.0
        %302 = vmatpush2.msra.mxu0 0.0
        %303 = vmatprep.subr.mxu0 0.0
        %304 = vmatpush2.msra.mxu0 0.0
        %305 = vmatprep.subr.mxu0 0.0
        %306 = vmatpush2.msra.mxu0 0.0
        %307 = vmatprep.subr.mxu0 0.0
        %308 = vmatpush2.msra.mxu0 0.0
        %309 = vmatprep.subr.mxu0 0.0
        %310 = vmatpush2.msra.mxu0 0.0
        %311 = vmatprep.subr.mxu0 0.0
        %312 = vmatpush2.msra.mxu0 0.0
        %313 = vmatprep.subr.mxu0 0.0
        %314 = vmatpush2.msra.mxu0 0.0
        %315 = vmatprep.subr.mxu0 0.0
        %316 = vmatpush2.msra.mxu0 0.0
        %317 = vmatprep.subr.mxu0 0.0
        %318 = vmatpush2.msra.mxu0 0.0
        %319 = vmatprep.subr.mxu0 0.0
        %320 = vmatpush2.msra.mxu0 0.0
        %321 = vmatprep.subr.mxu0 0.0
        %322 = vmatpush2.msra.mxu0 0.0
        %323 = vmatprep.subr.mxu0 0.0
        %324 = vmatpush2.msra.mxu0 0.0
        %325 = vmatprep.subr.mxu0 0.0
        %326 = vmatpush2.msra.mxu0 0.0
        %327 = vmatprep.subr.mxu0 0.0
        %328 = vmatpush2.msra.mxu0 0.0
        %329 = vmatprep.subr.mxu0 0.0
        %330 = vmatpush2.msra.mxu0 0.0
        %331 = vmatprep.mubr.f32.mxu0 0.0
        %332 = vmatmul.mubr.f32.gmra.mxu0 %v261
        %v333 = vpop.f32.mrf.mxu0
        %v334 = vadd.f32 0.0, %v333
        %v335 = vpop.f32.mrf.mxu0
        %336 = vdwg.mxu0
        %v338 = vsel %vm259, %v250, 0
        %v341 = vsel %vm263, %v253, 0
        %343 = vmatprep.subr.mxu0 0.0
        %344 = vmatpush1.msra.mxu0 0.0
        %345 = vmatprep.subr.mxu0 0.0
        %346 = vmatpush1.msra.mxu0 0.0
        %347 = vmatprep.subr.mxu0 0.0
        %348 = vmatpush1.msra.mxu0 0.0
        %349 = vmatprep.subr.mxu0 0.0
        %350 = vmatpush1.msra.mxu0 0.0
        %351 = vmatprep.subr.mxu0 0.0
        %352 = vmatpush1.msra.mxu0 0.0
        %353 = vmatprep.subr.mxu0 0.0
        %354 = vmatpush1.msra.mxu0 0.0
        %355 = vmatprep.subr.mxu0 0.0
        %356 = vmatpush1.msra.mxu0 0.0
        %357 = vmatprep.subr.mxu0 0.0
        %358 = vmatpush1.msra.mxu0 0.0
        %359 = vmatprep.subr.mxu0 0.0
        %360 = vmatpush1.msra.mxu0 0.0
        %361 = vmatprep.subr.mxu0 0.0
        %362 = vmatpush1.msra.mxu0 0.0
        %363 = vmatprep.subr.mxu0 0.0
        %364 = vmatpush1.msra.mxu0 0.0
        %365 = vmatprep.subr.mxu0 0.0
        %366 = vmatpush1.msra.mxu0 0.0
        %367 = vmatprep.subr.mxu0 0.0
        %368 = vmatpush1.msra.mxu0 0.0
        %369 = vmatprep.subr.mxu0 0.0
        %370 = vmatpush1.msra.mxu0 0.0
        %371 = vmatprep.subr.mxu0 0.0
        %372 = vmatpush1.msra.mxu0 0.0
        %373 = vmatprep.subr.mxu0 0.0
        %374 = vmatpush1.msra.mxu0 %v341
        %375 = vmatprep.subr.mxu0 0.0
        %376 = vmatpush2.msra.mxu0 0.0
        %377 = vmatprep.subr.mxu0 0.0
        %378 = vmatpush2.msra.mxu0 0.0
        %379 = vmatprep.subr.mxu0 0.0
        %380 = vmatpush2.msra.mxu0 0.0
        %381 = vmatprep.subr.mxu0 0.0
        %382 = vmatpush2.msra.mxu0 0.0
        %383 = vmatprep.subr.mxu0 0.0
        %384 = vmatpush2.msra.mxu0 0.0
        %385 = vmatprep.subr.mxu0 0.0
        %386 = vmatpush2.msra.mxu0 0.0
        %387 = vmatprep.subr.mxu0 0.0
        %388 = vmatpush2.msra.mxu0 0.0
        %389 = vmatprep.subr.mxu0 0.0
        %390 = vmatpush2.msra.mxu0 0.0
        %391 = vmatprep.subr.mxu0 0.0
        %392 = vmatpush2.msra.mxu0 0.0
        %393 = vmatprep.subr.mxu0 0.0
        %394 = vmatpush2.msra.mxu0 0.0
        %395 = vmatprep.subr.mxu0 0.0
        %396 = vmatpush2.msra.mxu0 0.0
        %397 = vmatprep.subr.mxu0 0.0
        %398 = vmatpush2.msra.mxu0 0.0
        %399 = vmatprep.subr.mxu0 0.0
        %400 = vmatpush2.msra.mxu0 0.0
        %401 = vmatprep.subr.mxu0 0.0
        %402 = vmatpush2.msra.mxu0 0.0
        %403 = vmatprep.subr.mxu0 0.0
        %404 = vmatpush2.msra.mxu0 0.0
        %405 = vmatprep.subr.mxu0 0.0
        %406 = vmatpush2.msra.mxu0 0.0
        %407 = vmatprep.mubr.f32.mxu0 0.0
        %408 = vmatmul.mubr.f32.gmra.mxu0 %v338
        %v409 = vpop.f32.mrf.mxu0
        %v410 = vadd.f32 %v334, %v409
        %v411 = vpop.f32.mrf.mxu0
        %412 = vdwg.mxu0
        %v413 = vld [vmem:[%s232 + $0x1] sm:$0xff]
        %s414 = sadd.s32 16, %s251
        %s415 = scalar_lea.vmem %s1, %s414
        %v416 = vld [vmem:[%s415] sm:$0x3f]
        %v418 = vsel %vm259, %v413, 0
        %v421 = vsel %vm263, %v416, 0
        %423 = vmatprep.subr.mxu0 0.0
        %424 = vmatpush1.msra.mxu0 0.0
        %425 = vmatprep.subr.mxu0 0.0
        %426 = vmatpush1.msra.mxu0 0.0
        %427 = vmatprep.subr.mxu0 0.0
        %428 = vmatpush1.msra.mxu0 0.0
        %429 = vmatprep.subr.mxu0 0.0
        %430 = vmatpush1.msra.mxu0 0.0
        %431 = vmatprep.subr.mxu0 0.0
        %432 = vmatpush1.msra.mxu0 0.0
        %433 = vmatprep.subr.mxu0 0.0
        %434 = vmatpush1.msra.mxu0 0.0
        %435 = vmatprep.subr.mxu0 0.0
        %436 = vmatpush1.msra.mxu0 0.0
        %437 = vmatprep.subr.mxu0 0.0
        %438 = vmatpush1.msra.mxu0 0.0
        %439 = vmatprep.subr.mxu0 0.0
        %440 = vmatpush1.msra.mxu0 0.0
        %441 = vmatprep.subr.mxu0 0.0
        %442 = vmatpush1.msra.mxu0 0.0
        %443 = vmatprep.subr.mxu0 0.0
        %444 = vmatpush1.msra.mxu0 0.0
        %445 = vmatprep.subr.mxu0 0.0
        %446 = vmatpush1.msra.mxu0 0.0
        %447 = vmatprep.subr.mxu0 0.0
        %448 = vmatpush1.msra.mxu0 0.0
        %449 = vmatprep.subr.mxu0 0.0
        %450 = vmatpush1.msra.mxu0 0.0
        %451 = vmatprep.subr.mxu0 0.0
        %452 = vmatpush1.msra.mxu0 0.0
        %453 = vmatprep.subr.mxu0 0.0
        %454 = vmatpush1.msra.mxu0 %v421
        %455 = vmatprep.subr.mxu0 0.0
        %456 = vmatpush2.msra.mxu0 0.0
        %457 = vmatprep.subr.mxu0 0.0
        %458 = vmatpush2.msra.mxu0 0.0
        %459 = vmatprep.subr.mxu0 0.0
        %460 = vmatpush2.msra.mxu0 0.0
        %461 = vmatprep.subr.mxu0 0.0
        %462 = vmatpush2.msra.mxu0 0.0
        %463 = vmatprep.subr.mxu0 0.0
        %464 = vmatpush2.msra.mxu0 0.0
        %465 = vmatprep.subr.mxu0 0.0
        %466 = vmatpush2.msra.mxu0 0.0
        %467 = vmatprep.subr.mxu0 0.0
        %468 = vmatpush2.msra.mxu0 0.0
        %469 = vmatprep.subr.mxu0 0.0
        %470 = vmatpush2.msra.mxu0 0.0
        %471 = vmatprep.subr.mxu0 0.0
        %472 = vmatpush2.msra.mxu0 0.0
        %473 = vmatprep.subr.mxu0 0.0
        %474 = vmatpush2.msra.mxu0 0.0
        %475 = vmatprep.subr.mxu0 0.0
        %476 = vmatpush2.msra.mxu0 0.0
        %477 = vmatprep.subr.mxu0 0.0
        %478 = vmatpush2.msra.mxu0 0.0
        %479 = vmatprep.subr.mxu0 0.0
        %480 = vmatpush2.msra.mxu0 0.0
        %481 = vmatprep.subr.mxu0 0.0
        %482 = vmatpush2.msra.mxu0 0.0
        %483 = vmatprep.subr.mxu0 0.0
        %484 = vmatpush2.msra.mxu0 0.0
        %485 = vmatprep.subr.mxu0 0.0
        %486 = vmatpush2.msra.mxu0 0.0
        %487 = vmatprep.mubr.f32.mxu0 0.0
        %488 = vmatmul.mubr.f32.gmra.mxu0 %v418
        %v489 = vpop.f32.mrf.mxu0
        %v490 = vadd.f32 0.0, %v489
        %v491 = vpop.f32.mrf.mxu0
        %492 = vdwg.mxu0
        %v493 = vadd.f32 %v410, %v490
        %v494 = vld [vmem:[%s254 + $0x1] sm:$0xff]
        %s495 = sadd.s32 24, %s251
        %s496 = scalar_lea.vmem %s1, %s495
        %v497 = vld [vmem:[%s496] sm:$0x3f]
        %v499 = vsel %vm259, %v494, 0
        %v502 = vsel %vm263, %v497, 0
        %504 = vmatprep.subr.mxu0 0.0
        %505 = vmatpush1.msra.mxu0 0.0
        %506 = vmatprep.subr.mxu0 0.0
        %507 = vmatpush1.msra.mxu0 0.0
        %508 = vmatprep.subr.mxu0 0.0
        %509 = vmatpush1.msra.mxu0 0.0
        %510 = vmatprep.subr.mxu0 0.0
        %511 = vmatpush1.msra.mxu0 0.0
        %512 = vmatprep.subr.mxu0 0.0
        %513 = vmatpush1.msra.mxu0 0.0
        %514 = vmatprep.subr.mxu0 0.0
        %515 = vmatpush1.msra.mxu0 0.0
        %516 = vmatprep.subr.mxu0 0.0
        %517 = vmatpush1.msra.mxu0 0.0
        %518 = vmatprep.subr.mxu0 0.0
        %519 = vmatpush1.msra.mxu0 0.0
        %520 = vmatprep.subr.mxu0 0.0
        %521 = vmatpush1.msra.mxu0 0.0
        %522 = vmatprep.subr.mxu0 0.0
        %523 = vmatpush1.msra.mxu0 0.0
        %524 = vmatprep.subr.mxu0 0.0
        %525 = vmatpush1.msra.mxu0 0.0
        %526 = vmatprep.subr.mxu0 0.0
        %527 = vmatpush1.msra.mxu0 0.0
        %528 = vmatprep.subr.mxu0 0.0
        %529 = vmatpush1.msra.mxu0 0.0
        %530 = vmatprep.subr.mxu0 0.0
        %531 = vmatpush1.msra.mxu0 0.0
        %532 = vmatprep.subr.mxu0 0.0
        %533 = vmatpush1.msra.mxu0 0.0
        %534 = vmatprep.subr.mxu0 0.0
        %535 = vmatpush1.msra.mxu0 %v502
        %536 = vmatprep.subr.mxu0 0.0
        %537 = vmatpush2.msra.mxu0 0.0
        %538 = vmatprep.subr.mxu0 0.0
        %539 = vmatpush2.msra.mxu0 0.0
        %540 = vmatprep.subr.mxu0 0.0
        %541 = vmatpush2.msra.mxu0 0.0
        %542 = vmatprep.subr.mxu0 0.0
        %543 = vmatpush2.msra.mxu0 0.0
        %544 = vmatprep.subr.mxu0 0.0
        %545 = vmatpush2.msra.mxu0 0.0
        %546 = vmatprep.subr.mxu0 0.0
        %547 = vmatpush2.msra.mxu0 0.0
        %548 = vmatprep.subr.mxu0 0.0
        %549 = vmatpush2.msra.mxu0 0.0
        %550 = vmatprep.subr.mxu0 0.0
        %551 = vmatpush2.msra.mxu0 0.0
        %552 = vmatprep.subr.mxu0 0.0
        %553 = vmatpush2.msra.mxu0 0.0
        %554 = vmatprep.subr.mxu0 0.0
        %555 = vmatpush2.msra.mxu0 0.0
        %556 = vmatprep.subr.mxu0 0.0
        %557 = vmatpush2.msra.mxu0 0.0
        %558 = vmatprep.subr.mxu0 0.0
        %559 = vmatpush2.msra.mxu0 0.0
        %560 = vmatprep.subr.mxu0 0.0
        %561 = vmatpush2.msra.mxu0 0.0
        %562 = vmatprep.subr.mxu0 0.0
        %563 = vmatpush2.msra.mxu0 0.0
        %564 = vmatprep.subr.mxu0 0.0
        %565 = vmatpush2.msra.mxu0 0.0
        %566 = vmatprep.subr.mxu0 0.0
        %567 = vmatpush2.msra.mxu0 0.0
        %568 = vmatprep.mubr.f32.mxu0 0.0
        %569 = vmatmul.mubr.f32.gmra.mxu0 %v499
        %v570 = vpop.f32.mrf.mxu0
        %v571 = vadd.f32 0.0, %v570
        %v572 = vpop.f32.mrf.mxu0
        %573 = vdwg.mxu0
        %v574 = vadd.f32 %v493, %v571
        %v575 = vld [vmem:[%s243] sm:$0xff]
        %v576 = vadd.f32 %v575, %v574
        %vm577 = vcmask 523264
        %578 = vst.msk [vmem:[%s243] sm:$0xff] %vm577, %v576
        %p579 = scmp.eq.s32.totalorder %s22, 3
        // Predicated region
        $region41: #{discriminator_forward.10} parent=31 // pred_check
          %p580 = pneg %p579
        $region42: #{discriminator_forward.10} parent=31 // pred_check_branch
          %582 = sbr.rel (%p580) target = $region44
        $region43: #{discriminator_forward.10} parent=31 // pred_region
          %v583 = vld [vmem:[%s243] sm:$0xff]
          %v584 = vld [vmem:[#allocation2] sm:$0x1]
          %v586 = vlaneseq
          %v587 = vshrl.u32 %v586, 7
          %v588 = vsub.s32 0, %v587
          %v589 = vrot.slane %v584, %v588
          %v591 = vadd.f32 %v583, %v589
          %vm592 = vcmp.ge.f32.partialorder %v591, 0.0
          %v593 = vmul.f32 %v591, 0.2
          %v594 = vsel %vm592, %v591, %v593
          %595 = vst.msk [vmem:[%s243] sm:$0xff] %vm577, %v594
        $region44: #{discriminator_forward.10} parent=31 // pred_fallthru
          _
        %p596 = scmp.lt.s32.totalorder %s20, 1
        %s597 = scalar_select %p596, %s20, 1
        %p598 = scmp.lt.s32.totalorder %s21, 7
        %s599 = scalar_select %p598, %s21, 7
        %s600 = smul.addr %s597, 8
        %s601 = sadd.s32 %s599, %s600
        %s602 = smul.addr %s601, 8
        %s603 = scalar_lea.vmem %s3, %s602
        // Predicated region
        $region45: #{discriminator_forward.10} parent=31 // pred_check
          %p604 = pneg %p128
        $region46: #{discriminator_forward.10} parent=31 // pred_check_branch
          %606 = sbr.rel (%p604) target = $region48
        $region47: #{discriminator_forward.10} parent=31 // pred_region
          _
        $region48: #{discriminator_forward.10} parent=31 // pred_fallthru
          _
      $region32: #{discriminator_forward.10} parent=5 // pred_fallthru
        _
      %p607 = scmp.le.s32.totalorder 2, %s10
      // Predicated region
      $region49: #{discriminator_forward.10} parent=5 // pred_check
        %p608 = pneg %p607
      $region50: #{discriminator_forward.10} parent=5 // pred_check_branch
        %610 = sbr.rel (%p608) target = $region52
      $region51: #{discriminator_forward.10} parent=5 // pred_region
        %s611 = ssub.s32 %s10, 2
        // Predicated region
        $region53: #{discriminator_forward.10} parent=51 // pred_check
          %p612 = pneg %p134
        $region54: #{discriminator_forward.10} parent=51 // pred_check_branch
          %614 = sbr.rel (%p612) target = $region56
        $region55: #{discriminator_forward.10} parent=51 // pred_region
          %p615 = scmp.lt.s32.totalorder %s23, 1
          %s616 = scalar_select %p615, %s23, 1
          %p617 = scmp.lt.s32.totalorder %s24, 7
          %s618 = scalar_select %p617, %s24, 7
          %s619 = smul.addr %s616, 8
          %s620 = sadd.s32 %s618, %s619
          %s621 = smul.addr %s620, 8
          %s622 = scalar_lea.vmem %s3, %s621
        $region56: #{discriminator_forward.10} parent=51 // pred_fallthru
          _
      $region52: #{discriminator_forward.10} parent=5 // pred_fallthru
        _
    $region6: #{discriminator_forward.10} parent=1 // loop_footer
      %s14 = sadd.s32 1, %s10
    $region7: #{discriminator_forward.10} parent=1 // loop_footer_branch
      %9 = sbr.rel target = $region3
    $region8: #{discriminator_forward.10} parent=1 // loop_exit
      _
    %623 = vsyncpa [#allocation3], 1
    %s624 = scalar_lea.sflag [#allocation3], 1
    %625 = vsyncpa %s624, 1

// kernel: discriminator_forward.12
$region0: #{discriminator_forward.12}
  #allocation0 [shape = 'u32[]', space=smem, size = 0x4, offset = 0x4, fixed_abs, tag = 'smem constant byte address 0x4 - core index']
  #allocation1 [shape = 'u32[144,128]{1,0:T(1,128)}', space=vmem, size = 0x12000, scoped, tag = 'internal scratch']
  %s0 = inlined_call_operand.vmem [shape: f32[32,128], index: 0, kind: input, shape index: {}]
  %s1 = inlined_call_operand.vmem [shape: f32[1,128], index: 1, kind: input, shape index: {}]
  %s2 = inlined_call_operand.vmem [shape: f32[1,128], index: 2, kind: input, shape index: {}]
  %s3 = inlined_call_operand.vmem [shape: f32[32,128], index: 3, kind: output, shape index: {}]
  %s4 = sld [smem:[#allocation0]]
  $region22: #{discriminator_forward.12} parent=0
    _
  %s6 = ssub.s32 1, %s4
  %s7 = scalar_select 0, %s6, %s4
  // Predicated region
  $region2: #{discriminator_forward.12} parent=0 // pred_check
    _
  $region3: #{discriminator_forward.12} parent=0 // pred_check_branch
    %9 = sbr.rel (0) target = $region5
  $region4: #{discriminator_forward.12} parent=0 // pred_region
    _
  $region5: #{discriminator_forward.12} parent=0 // pred_fallthru
    _
  // Predicated region
  $region6: #{discriminator_forward.12} parent=0 // pred_check
    _
  $region7: #{discriminator_forward.12} parent=0 // pred_check_branch
    %11 = sbr.rel (0) target = $region9
  $region8: #{discriminator_forward.12} parent=0 // pred_region
    _
  $region9: #{discriminator_forward.12} parent=0 // pred_fallthru
    _
  // Predicated region
  $region10: #{discriminator_forward.12} parent=0 // pred_check
    _
  $region11: #{discriminator_forward.12} parent=0 // pred_check_branch
    %13 = sbr.rel (0) target = $region13
  $region12: #{discriminator_forward.12} parent=0 // pred_region
    _
  $region13: #{discriminator_forward.12} parent=0 // pred_fallthru
    _
  %v14 = vld [vmem:[%s0] sm:$0xff]
  %v15 = vld [vmem:[%s0 + $0x8] sm:$0xff]
  %v16 = vld [vmem:[%s0 + $0x10] sm:$0xff]
  %v17 = vld [vmem:[%s0 + $0x18] sm:$0xff]
  %v18 = vld [vmem:[%s1] sm:$0x1]
  %v20 = vlaneseq
  %v21 = vshrl.u32 %v20, 7
  %v22 = vsub.s32 0, %v21
  %v23 = vrot.slane %v18, %v22
  %v25 = vmul.f32 %v14, %v23
  %v26 = vmul.f32 %v15, %v23
  %v27 = vmul.f32 %v16, %v23
  %v28 = vmul.f32 %v17, %v23
  %v29 = vld [vmem:[%s2] sm:$0x1]
  %v31 = vlaneseq
  %v32 = vshrl.u32 %v31, 7
  %v33 = vsub.s32 0, %v32
  %v34 = vrot.slane %v29, %v33
  %v36 = vadd.f32 %v25, %v34
  %v37 = vadd.f32 %v26, %v34
  %v38 = vadd.f32 %v27, %v34
  %v39 = vadd.f32 %v28, %v34
  %vm40 = vcmp.ge.f32.partialorder %v36, 0.0
  %vm41 = vcmp.ge.f32.partialorder %v37, 0.0
  %vm42 = vcmp.ge.f32.partialorder %v38, 0.0
  %vm43 = vcmp.ge.f32.partialorder %v39, 0.0
  %v44 = vmul.f32 %v36, 0.2
  %v45 = vmul.f32 %v37, 0.2
  %v46 = vmul.f32 %v38, 0.2
  %v47 = vmul.f32 %v39, 0.2
  %v48 = vsel %vm40, %v36, %v44
  %v49 = vsel %vm41, %v37, %v45
  %v50 = vsel %vm42, %v38, %v46
  %v51 = vsel %vm43, %v39, %v47
  %52 = vst [vmem:[%s3] sm:$0xff] %v48
  %53 = vst [vmem:[%s3 + $0x8] sm:$0xff] %v49
  %54 = vst [vmem:[%s3 + $0x10] sm:$0xff] %v50
  %55 = vst [vmem:[%s3 + $0x18] sm:$0xff] %v51
  // Predicated region
  $region14: #{discriminator_forward.12} parent=0 // pred_check
    _
  $region15: #{discriminator_forward.12} parent=0 // pred_check_branch
    %57 = sbr.rel (0) target = $region17
  $region16: #{discriminator_forward.12} parent=0 // pred_region
    _
  $region17: #{discriminator_forward.12} parent=0 // pred_fallthru
    _
  // Predicated region
  $region18: #{discriminator_forward.12} parent=0 // pred_check
    _
  $region19: #{discriminator_forward.12} parent=0 // pred_check_branch
    %59 = sbr.rel (0) target = $region21
  $region20: #{discriminator_forward.12} parent=0 // pred_region
    _
  $region21: #{discriminator_forward.12} parent=0 // pred_fallthru
    _

// kernel: discriminator_forward.11
$region0: #{discriminator_forward.11}
  #allocation0 [shape = 'u32[]', space=smem, size = 0x4, offset = 0x4, fixed_abs, tag = 'smem constant byte address 0x4 - core index']
  #allocation1 [shape = 'u32[144,128]{1,0:T(1,128)}', space=vmem, size = 0x12000, scoped, tag = 'internal scratch']
  %s0 = inlined_call_operand.vmem [shape: bf16[2,20,5,64], index: 0, kind: input, shape index: {}]
  %s1 = inlined_call_operand.vmem [shape: bf16[4,4,64,128], index: 1, kind: input, shape index: {}]
  %s2 = inlined_call_operand.hbm [shape: f32[1,128], index: 2, kind: input, shape index: {}]
  %s3 = inlined_call_operand.vmem [shape: f32[2,4,4,128], index: 3, kind: output, shape index: {0}]
  %s4 = inlined_call_operand.vmem [shape: f32[2,4,2,128], index: 4, kind: output, shape index: {1}]
  %5 = xla_tuple %s3, %s4
  %s6 = sld [smem:[#allocation0]]
  $region65: #{discriminator_forward.11} parent=0
    _
  %s8 = ssub.s32 1, %s6
  %s9 = scalar_select 0, %s8, %s6
  $region1: #{discriminator_forward.11} parent=0
    #allocation2 [shape = 'u8[512]{0}', space=vmem, size = 0x400, scoped, tag = 'input window, operand 2, single buffered']
    #allocation3 [shape = 's32[2]{0}', space=sflag, size = 0x8, scoped, tag = 'scoped memory for discriminator_forward.11']
    %10 = vsyncpa [#allocation3], 0
    loop: start=0, step=1, limit=34
    $region2: #{discriminator_forward.11} parent=1 // loop_pre_header
      _
    $region3: #{discriminator_forward.11} parent=1 // loop_header
      %s12 = sphi 0, %s16
      %p13 = scmp.ge.s32.totalorder %s12, 34
      %s19 = sphi 0, %s38
      %s20 = sphi 0, %s34
      %s21 = sphi 0, %s30
      %s22 = sphi 0, %s19
      %s23 = sphi 0, %s20
      %s24 = sphi 0, %s21
      %s25 = sphi 0, %s22
      %s26 = sphi 0, %s23
      %s27 = sphi 0, %s24
      %s47 = sphi 0, %s49
      %s50 = sphi 0, %s47
      %s51 = sphi 0, %s50
      %s67 = sphi 0, %s51
      %s71 = sphi 0, %s71
      %s73 = sphi 0, %s71
      %s74 = sphi 0, %s73
      %s88 = sphi 0, %s74
      %s92 = sphi 0, %s92
      %s94 = sphi 0, %s92
      %s95 = sphi 0, %s94
      %s109 = sphi 0, %s95
      %s117 = sphi 0, %s119
      %s120 = sphi 0, %s117
      %s121 = sphi 0, %s120
      %s137 = sphi 0, %s121
      %s145 = sphi 0, %s147
      %s148 = sphi 0, %s145
      %s149 = sphi 0, %s148
      %s165 = sphi 0, %s149
    $region4: #{discriminator_forward.11} parent=1 // loop_header_branch
      %15 = sbr.rel (%p13) target = $region8
    $region5: #{discriminator_forward.11} parent=1 // loop_body
      %s17 = ssub.s32 %s12, 1
      %s18 = ssub.s32 %s12, 2
      %s28 = sadd.s32 1, %s21
      %p29 = scmp.ge.s32.totalorder %s28, 4
      %s30 = scalar_select %p29, 0, %s28
      %s31 = sadd.s32 1, %s20
      %s32 = scalar_select %p29, %s31, %s20
      %p33 = scmp.ge.s32.totalorder %s32, 4
      %s34 = scalar_select %p33, 0, %s32
      %s35 = sadd.s32 1, %s19
      %s36 = scalar_select %p33, %s35, %s19
      %p37 = scmp.ge.s32.totalorder %s36, 2
      %s38 = scalar_select %p37, 0, %s36
      %s39 = smul.u32 %s20, 2
      %s40 = sadd.s32 %s39, %s21
      %s41 = smul.u32 %s34, 2
      %s42 = sadd.s32 %s41, %s30
      %s43 = ssub.s32 %s19, %s38
      %s44 = ssub.s32 %s40, %s42
      %s45 = sor.u32 %s43, %s44
      %p46 = scmp.eq.s32.totalorder %s45, 0
      %s48 = sadd.s32 %s47, 1
      %s49 = scalar_select %p46, %s47, %s48
      %p52 = pneg %p46
      %p53 = scmp.eq.s32.totalorder %s12, 31
      %p54 = por %p52, %p53
      %p55 = scmp.ne.s32.totalorder %s47, %s50
      %p56 = scmp.eq.s32.totalorder %s12, 0
      %p57 = por %p55, %p56
      %p58 = scmp.ne.s32.totalorder %s47, %s50
      %p59 = scmp.eq.s32.totalorder %s17, 31
      %p60 = por %p58, %p59
      %p61 = scmp.ne.s32.totalorder %s50, %s51
      %p62 = scmp.eq.s32.totalorder %s17, 0
      %p63 = por %p61, %p62
      %p64 = scmp.ne.s32.totalorder %s50, %s51
      %p65 = scmp.eq.s32.totalorder %s18, 31
      %p66 = por %p64, %p65
      %p68 = scmp.ne.s32.totalorder %s51, %s67
      %p69 = scmp.eq.s32.totalorder %s18, 0
      %p70 = por %p68, %p69
      %s72 = sadd.s32 %s71, 1
      %p75 = scmp.eq.s32.totalorder %s12, 31
      %p76 = scmp.ne.s32.totalorder %s71, %s73
      %p77 = scmp.eq.s32.totalorder %s12, 0
      %p78 = por %p76, %p77
      %p79 = scmp.ne.s32.totalorder %s71, %s73
      %p80 = scmp.eq.s32.totalorder %s17, 31
      %p81 = por %p79, %p80
      %p82 = scmp.ne.s32.totalorder %s73, %s74
      %p83 = scmp.eq.s32.totalorder %s17, 0
      %p84 = por %p82, %p83
      %p85 = scmp.ne.s32.totalorder %s73, %s74
      %p86 = scmp.eq.s32.totalorder %s18, 31
      %p87 = por %p85, %p86
      %p89 = scmp.ne.s32.totalorder %s74, %s88
      %p90 = scmp.eq.s32.totalorder %s18, 0
      %p91 = por %p89, %p90
      %s93 = sadd.s32 %s92, 1
      %p96 = scmp.eq.s32.totalorder %s12, 31
      %p97 = scmp.ne.s32.totalorder %s92, %s94
      %p98 = scmp.eq.s32.totalorder %s12, 0
      %p99 = por %p97, %p98
      %p100 = scmp.ne.s32.totalorder %s92, %s94
      %p101 = scmp.eq.s32.totalorder %s17, 31
      %p102 = por %p100, %p101
      %p103 = scmp.ne.s32.totalorder %s94, %s95
      %p104 = scmp.eq.s32.totalorder %s17, 0
      %p105 = por %p103, %p104
      %p106 = scmp.ne.s32.totalorder %s94, %s95
      %p107 = scmp.eq.s32.totalorder %s18, 31
      %p108 = por %p106, %p107
      %p110 = scmp.ne.s32.totalorder %s95, %s109
      %p111 = scmp.eq.s32.totalorder %s18, 0
      %p112 = por %p110, %p111
      %s113 = ssub.s32 %s19, %s38
      %s114 = ssub.s32 %s20, %s34
      %s115 = sor.u32 %s113, %s114
      %p116 = scmp.eq.s32.totalorder %s115, 0
      %s118 = sadd.s32 %s117, 1
      %s119 = scalar_select %p116, %s117, %s118
      %p122 = pneg %p116
      %p123 = scmp.eq.s32.totalorder %s12, 31
      %p124 = por %p122, %p123
      %p125 = scmp.ne.s32.totalorder %s117, %s120
      %p126 = scmp.eq.s32.totalorder %s12, 0
      %p127 = por %p125, %p126
      %p128 = scmp.ne.s32.totalorder %s117, %s120
      %p129 = scmp.eq.s32.totalorder %s17, 31
      %p130 = por %p128, %p129
      %p131 = scmp.ne.s32.totalorder %s120, %s121
      %p132 = scmp.eq.s32.totalorder %s17, 0
      %p133 = por %p131, %p132
      %p134 = scmp.ne.s32.totalorder %s120, %s121
      %p135 = scmp.eq.s32.totalorder %s18, 31
      %p136 = por %p134, %p135
      %p138 = scmp.ne.s32.totalorder %s121, %s137
      %p139 = scmp.eq.s32.totalorder %s18, 0
      %p140 = por %p138, %p139
      %s141 = ssub.s32 %s19, %s38
      %s142 = ssub.s32 %s20, %s34
      %s143 = sor.u32 %s141, %s142
      %p144 = scmp.eq.s32.totalorder %s143, 0
      %s146 = sadd.s32 %s145, 1
      %s147 = scalar_select %p144, %s145, %s146
      %p150 = pneg %p144
      %p151 = scmp.eq.s32.totalorder %s12, 31
      %p152 = por %p150, %p151
      %p153 = scmp.ne.s32.totalorder %s145, %s148
      %p154 = scmp.eq.s32.totalorder %s12, 0
      %p155 = por %p153, %p154
      %p156 = scmp.ne.s32.totalorder %s145, %s148
      %p157 = scmp.eq.s32.totalorder %s17, 31
      %p158 = por %p156, %p157
      %p159 = scmp.ne.s32.totalorder %s148, %s149
      %p160 = scmp.eq.s32.totalorder %s17, 0
      %p161 = por %p159, %p160
      %p162 = scmp.ne.s32.totalorder %s148, %s149
      %p163 = scmp.eq.s32.totalorder %s18, 31
      %p164 = por %p162, %p163
      %p166 = scmp.ne.s32.totalorder %s149, %s165
      %p167 = scmp.eq.s32.totalorder %s18, 0
      %p168 = por %p166, %p167
      %p169 = scmp.le.s32.totalorder 1, %s12
      %p170 = scmp.lt.s32.totalorder %s12, 33
      %p171 = pnand %p169, %p170
      %p172 = pneg %p171
      // Predicated region
      $region9: #{discriminator_forward.11} parent=5 // pred_check
        _
      $region10: #{discriminator_forward.11} parent=5 // pred_check_branch
        %174 = sbr.rel (%p171) target = $region12
      $region11: #{discriminator_forward.11} parent=5 // pred_region
        %s175 = ssub.s32 %s12, 1
        // Predicated region
        $region13: #{discriminator_forward.11} parent=11 // pred_check
          %p176 = pneg %p84
        $region14: #{discriminator_forward.11} parent=11 // pred_check_branch
          %178 = sbr.rel (%p176) target = $region16
        $region15: #{discriminator_forward.11} parent=11 // pred_region
          _
        $region16: #{discriminator_forward.11} parent=11 // pred_fallthru
          _
        // Predicated region
        $region17: #{discriminator_forward.11} parent=11 // pred_check
          %p179 = pneg %p105
        $region18: #{discriminator_forward.11} parent=11 // pred_check_branch
          %181 = sbr.rel (%p179) target = $region20
        $region19: #{discriminator_forward.11} parent=11 // pred_region
          %s183 = ssub.s32 16, 16
          %184 = vsyncadd [#allocation3], %s183
          %s186 = sshll.u32 [#allocation2], 4
          %s187 = int_to_ptr.vmem [resolvable:$true] %s186
          %189 = dma.hbm_to_vmem [thread:$0]  %s2, 16, %s187, [#allocation3]
        $region20: #{discriminator_forward.11} parent=11 // pred_fallthru
          _
      $region12: #{discriminator_forward.11} parent=5 // pred_fallthru
        _
      %p190 = scmp.lt.s32.totalorder %s12, 32
      // Predicated region
      $region21: #{discriminator_forward.11} parent=5 // pred_check
        %p191 = pneg %p190
      $region22: #{discriminator_forward.11} parent=5 // pred_check_branch
        %193 = sbr.rel (%p191) target = $region24
      $region23: #{discriminator_forward.11} parent=5 // pred_region
        // Predicated region
        $region25: #{discriminator_forward.11} parent=23 // pred_check
          %p194 = pneg %p57
        $region26: #{discriminator_forward.11} parent=23 // pred_check_branch
          %196 = sbr.rel (%p194) target = $region28
        $region27: #{discriminator_forward.11} parent=23 // pred_region
          %s197 = smul.u32 %s20, 2
          %s198 = sadd.s32 %s197, %s21
          %s199 = smul.u32 2, %s198
          %p200 = scmp.lt.s32.totalorder %s19, 1
          %s201 = scalar_select %p200, %s19, 1
          %p202 = scmp.lt.s32.totalorder %s199, 19
          %s203 = scalar_select %p202, %s199, 19
          %s204 = smul.addr %s201, 20
          %s205 = sadd.s32 %s203, %s204
          %s206 = smul.addr %s205, 4
          %s207 = scalar_lea.vmem %s0, %s206
          %s208 = smul.u32 %s20, 2
          %s209 = sadd.s32 %s208, %s21
          %s210 = smul.u32 2, %s209
        $region28: #{discriminator_forward.11} parent=23 // pred_fallthru
          _
      $region24: #{discriminator_forward.11} parent=5 // pred_fallthru
        _
      %p211 = scmp.le.s32.totalorder 1, %s12
      %p212 = scmp.lt.s32.totalorder %s12, 33
      %p213 = pnand %p211, %p212
      %p214 = pneg %p213
      // Predicated region
      $region29: #{discriminator_forward.11} parent=5 // pred_check
        _
      $region30: #{discriminator_forward.11} parent=5 // pred_check_branch
        %216 = sbr.rel (%p213) target = $region32
      $region31: #{discriminator_forward.11} parent=5 // pred_region
        %s217 = ssub.s32 %s12, 1
        // Predicated region
        $region33: #{discriminator_forward.11} parent=31 // pred_check
          %p218 = pneg %p105
        $region34: #{discriminator_forward.11} parent=31 // pred_check_branch
          %220 = sbr.rel (%p218) target = $region36
        $region35: #{discriminator_forward.11} parent=31 // pred_region
          %221 = dma.done [#allocation3], 16
        $region36: #{discriminator_forward.11} parent=31 // pred_fallthru
          _
        %s222 = smul.u32 %s23, 2
        %s223 = sadd.s32 %s222, %s24
        %s224 = smul.u32 2, %s223
        %p225 = scmp.lt.s32.totalorder %s22, 1
        %s226 = scalar_select %p225, %s22, 1
        %p227 = scmp.lt.s32.totalorder %s224, 19
        %s228 = scalar_select %p227, %s224, 19
        %s229 = smul.addr %s226, 20
        %s230 = sadd.s32 %s228, %s229
        %s231 = smul.addr %s230, 4
        %s232 = scalar_lea.vmem %s0, %s231
        %p233 = pneg %p63
        %p234 = pneg %p60
        %p235 = pneg %p84
        %p236 = pneg %p81
        %p237 = pneg %p105
        %p238 = pneg %p102
        %p239 = pneg %p133
        %p240 = pneg %p130
        %p241 = scmp.lt.s32.totalorder %s22, 1
        %s242 = scalar_select %p241, %s22, 1
        %p243 = scmp.lt.s32.totalorder %s23, 3
        %s244 = scalar_select %p243, %s23, 3
        %s245 = smul.addr %s242, 4
        %s246 = sadd.s32 %s244, %s245
        %s247 = smul.addr %s246, 4
        %s248 = scalar_lea.vmem %s3, %s247
        %p249 = pneg %p161
        %p250 = pneg %p158
        %p251 = scmp.lt.s32.totalorder %s22, 1
        %s252 = scalar_select %p251, %s22, 1
        %p253 = scmp.lt.s32.totalorder %s23, 3
        %s254 = scalar_select %p253, %s23, 3
        %s255 = smul.addr %s252, 4
        %s256 = sadd.s32 %s254, %s255
        %s257 = smul.addr %s256, 2
        %s258 = scalar_lea.vmem %s4, %s257
        %s259 = smul.u32 %s23, 2
        %s260 = sadd.s32 %s259, %s24
        %s261 = smul.u32 2, %s260
        %p262 = scmp.lt.s32.totalorder %s22, 1
        %s263 = scalar_select %p262, %s22, 1
        %p264 = scmp.lt.s32.totalorder %s261, 19
        %s265 = scalar_select %p264, %s261, 19
        %s266 = smul.addr %s263, 20
        %s267 = sadd.s32 %s265, %s266
        %s268 = smul.addr %s267, 4
        %s269 = scalar_lea.vmem %s0, %s268
        %s270 = smul.u32 %s23, 2
        %s271 = sadd.s32 %s270, %s24
        %s272 = smul.u32 2, %s271
        %p273 = scmp.lt.s32.totalorder %s22, 1
        %s274 = scalar_select %p273, %s22, 1
        %p275 = scmp.lt.s32.totalorder %s23, 3
        %s276 = scalar_select %p275, %s23, 3
        %s277 = smul.addr %s274, 4
        %s278 = sadd.s32 %s276, %s277
        %s279 = smul.addr %s278, 4
        %s280 = scalar_lea.vmem %s3, %s279
        %p281 = scmp.lt.s32.totalorder %s22, 1
        %s282 = scalar_select %p281, %s22, 1
        %p283 = scmp.lt.s32.totalorder %s23, 3
        %s284 = scalar_select %p283, %s23, 3
        %s285 = smul.addr %s282, 4
        %s286 = sadd.s32 %s284, %s285
        %s287 = smul.addr %s286, 2
        %s288 = scalar_lea.vmem %s4, %s287
        %p290 = scmp.eq.s32.totalorder %s24, 0
        // Predicated region
        $region37: #{discriminator_forward.11} parent=31 // pred_check
          %p291 = pneg %p290
        $region38: #{discriminator_forward.11} parent=31 // pred_check_branch
          %293 = sbr.rel (%p291) target = $region40
        $region39: #{discriminator_forward.11} parent=31 // pred_region
          %294 = vst [vmem:[%s280] sm:$0xf] 0.0
        $region40: #{discriminator_forward.11} parent=31 // pred_fallthru
          _
        %v295 = vld [vmem:[%s269] sm:$0x3]
        %s296 = smul.u32 %s24, 32
        %s297 = smul.addr %s296, 4
        %s298 = scalar_lea.vmem %s1, %s297
        %v299 = vld [vmem:[%s298] sm:$0xf]
        %v300 = vld [vmem:[%s298 + $0x4] sm:$0xf]
        %v301 = vld [vmem:[%s298 + $0x8] sm:$0xf]
        %v302 = vld [vmem:[%s298 + $0xc] sm:$0xf]
        %v303 = vld [vmem:[%s298 + $0x10] sm:$0xf]
        %v304 = vld [vmem:[%s298 + $0x14] sm:$0xf]
        %v305 = vld [vmem:[%s298 + $0x18] sm:$0xf]
        %v306 = vld [vmem:[%s298 + $0x1c] sm:$0xf]
        %s307 = scalar_lea.vmem %s269, 4
        %v308 = vld [vmem:[%s307] sm:$0x3]
        %s309 = sadd.s32 8, %s296
        %s310 = smul.addr %s309, 4
        %s311 = scalar_lea.vmem %s1, %s310
        %v312 = vld [vmem:[%s311] sm:$0xf]
        %v313 = vld [vmem:[%s311 + $0x4] sm:$0xf]
        %v314 = vld [vmem:[%s311 + $0x8] sm:$0xf]
        %v315 = vld [vmem:[%s311 + $0xc] sm:$0xf]
        %v316 = vld [vmem:[%s311 + $0x10] sm:$0xf]
        %v317 = vld [vmem:[%s311 + $0x14] sm:$0xf]
        %v318 = vld [vmem:[%s311 + $0x18] sm:$0xf]
        %v319 = vld [vmem:[%s311 + $0x1c] sm:$0xf]
        %v328 = vunpack.c.l.b16 %v312
        %v329 = vunpack.c.l.b16 %v313
        %v330 = vunpack.c.l.b16 %v314
        %v331 = vunpack.c.l.b16 %v315
        %v332 = vunpack.c.l.b16 %v316
        %v333 = vunpack.c.l.b16 %v317
        %v334 = vunpack.c.l.b16 %v318
        %v335 = vunpack.c.l.b16 %v319
        %v336 = vpack.c.b16 %v329, %v328
        %v337 = vpack.c.b16 %v331, %v330
        %v338 = vpack.c.b16 %v333, %v332
        %v339 = vpack.c.b16 %v335, %v334
        %vm344 = vcmask 523264
        %v346 = vsel %vm344, %v308, 0
        %348 = vmatprep.subr.bf16.mxu0 0
        %349 = vmatpush1.bf16.msra.mxu0 0
        %350 = vmatprep.subr.bf16.mxu0 0
        %351 = vmatpush1.bf16.msra.mxu0 0
        %352 = vmatprep.subr.bf16.mxu0 0
        %353 = vmatpush1.bf16.msra.mxu0 0
        %354 = vmatprep.subr.bf16.mxu0 0
        %355 = vmatpush1.bf16.msra.mxu0 0
        %356 = vmatprep.subr.bf16.mxu0 0
        %357 = vmatpush1.bf16.msra.mxu0 %v339
        %358 = vmatprep.subr.bf16.mxu0 0
        %359 = vmatpush1.bf16.msra.mxu0 %v338
        %360 = vmatprep.subr.bf16.mxu0 0
        %361 = vmatpush1.bf16.msra.mxu0 %v337
        %362 = vmatprep.subr.bf16.mxu0 0
        %363 = vmatpush1.bf16.msra.mxu0 %v336
        %364 = vmatprep.subr.bf16.mxu0 0
        %365 = vmatpush2.bf16.msra.mxu0 0
        %366 = vmatprep.subr.bf16.mxu0 0
        %367 = vmatpush2.bf16.msra.mxu0 0
        %368 = vmatprep.subr.bf16.mxu0 0
        %369 = vmatpush2.bf16.msra.mxu0 0
        %370 = vmatprep.subr.bf16.mxu0 0
        %371 = vmatpush2.bf16.msra.mxu0 0
        %372 = vmatprep.subr.bf16.mxu0 0
        %373 = vmatpush2.bf16.msra.mxu0 0
        %374 = vmatprep.subr.bf16.mxu0 0
        %375 = vmatpush2.bf16.msra.mxu0 0
        %376 = vmatprep.subr.bf16.mxu0 0
        %377 = vmatpush2.bf16.msra.mxu0 0
        %378 = vmatprep.subr.bf16.mxu0 0
        %379 = vmatpush2.bf16.msra.mxu0 0
        %380 = vmatprep.mubr.bf16.mxu0 0
        %381 = vmatmul.mubr.bf16.gmra.mxu0 %v346
        %v382 = vpop.f32.mrf.mxu0
        %v383 = vadd.f32 0.0, %v382
        %v384 = vpop.f32.mrf.mxu0
        %v385 = vpop.f32.mrf.mxu0
        %v386 = vpop.f32.mrf.mxu0
        %387 = vdwg.mxu0
        %v396 = vunpack.c.l.b16 %v299
        %v397 = vunpack.c.l.b16 %v300
        %v398 = vunpack.c.l.b16 %v301
        %v399 = vunpack.c.l.b16 %v302
        %v400 = vunpack.c.l.b16 %v303
        %v401 = vunpack.c.l.b16 %v304
        %v402 = vunpack.c.l.b16 %v305
        %v403 = vunpack.c.l.b16 %v306
        %v404 = vpack.c.b16 %v397, %v396
        %v405 = vpack.c.b16 %v399, %v398
        %v406 = vpack.c.b16 %v401, %v400
        %v407 = vpack.c.b16 %v403, %v402
        %v413 = vsel %vm344, %v295, 0
        %415 = vmatprep.subr.bf16.mxu0 0
        %416 = vmatpush1.bf16.msra.mxu0 0
        %417 = vmatprep.subr.bf16.mxu0 0
        %418 = vmatpush1.bf16.msra.mxu0 0
        %419 = vmatprep.subr.bf16.mxu0 0
        %420 = vmatpush1.bf16.msra.mxu0 0
        %421 = vmatprep.subr.bf16.mxu0 0
        %422 = vmatpush1.bf16.msra.mxu0 0
        %423 = vmatprep.subr.bf16.mxu0 0
        %424 = vmatpush1.bf16.msra.mxu0 %v407
        %425 = vmatprep.subr.bf16.mxu0 0
        %426 = vmatpush1.bf16.msra.mxu0 %v406
        %427 = vmatprep.subr.bf16.mxu0 0
        %428 = vmatpush1.bf16.msra.mxu0 %v405
        %429 = vmatprep.subr.bf16.mxu0 0
        %430 = vmatpush1.bf16.msra.mxu0 %v404
        %431 = vmatprep.subr.bf16.mxu0 0
        %432 = vmatpush2.bf16.msra.mxu0 0
        %433 = vmatprep.subr.bf16.mxu0 0
        %434 = vmatpush2.bf16.msra.mxu0 0
        %435 = vmatprep.subr.bf16.mxu0 0
        %436 = vmatpush2.bf16.msra.mxu0 0
        %437 = vmatprep.subr.bf16.mxu0 0
        %438 = vmatpush2.bf16.msra.mxu0 0
        %439 = vmatprep.subr.bf16.mxu0 0
        %440 = vmatpush2.bf16.msra.mxu0 0
        %441 = vmatprep.subr.bf16.mxu0 0
        %442 = vmatpush2.bf16.msra.mxu0 0
        %443 = vmatprep.subr.bf16.mxu0 0
        %444 = vmatpush2.bf16.msra.mxu0 0
        %445 = vmatprep.subr.bf16.mxu0 0
        %446 = vmatpush2.bf16.msra.mxu0 0
        %447 = vmatprep.mubr.bf16.mxu0 0
        %448 = vmatmul.mubr.bf16.gmra.mxu0 %v413
        %v449 = vpop.f32.mrf.mxu0
        %v450 = vadd.f32 %v383, %v449
        %v451 = vpop.f32.mrf.mxu0
        %v452 = vpop.f32.mrf.mxu0
        %v453 = vpop.f32.mrf.mxu0
        %454 = vdwg.mxu0
        %v455 = vld [vmem:[%s269] sm:$0x7]
        %s456 = sadd.s32 16, %s296
        %s457 = smul.addr %s456, 4
        %s458 = scalar_lea.vmem %s1, %s457
        %v459 = vld [vmem:[%s458] sm:$0xf]
        %v460 = vld [vmem:[%s458 + $0x4] sm:$0xf]
        %v461 = vld [vmem:[%s458 + $0x8] sm:$0xf]
        %v462 = vld [vmem:[%s458 + $0xc] sm:$0xf]
        %v463 = vld [vmem:[%s458 + $0x10] sm:$0xf]
        %v464 = vld [vmem:[%s458 + $0x14] sm:$0xf]
        %v465 = vld [vmem:[%s458 + $0x18] sm:$0xf]
        %v466 = vld [vmem:[%s458 + $0x1c] sm:$0xf]
        %v468 = vunpack.c.l.b16 %v455
        %v469 = vpack.c.b16 %v468, %v468
        %v471 = vshrl.u32 %v469, 16
        %v473 = vshll.u32 %v469, 16
        %v475 = vrot.slane %v473, 1
        %v476 = vor.u32 %v471, %v475
        %v485 = vunpack.c.l.b16 %v459
        %v486 = vunpack.c.l.b16 %v460
        %v487 = vunpack.c.l.b16 %v461
        %v488 = vunpack.c.l.b16 %v462
        %v489 = vunpack.c.l.b16 %v463
        %v490 = vunpack.c.l.b16 %v464
        %v491 = vunpack.c.l.b16 %v465
        %v492 = vunpack.c.l.b16 %v466
        %v493 = vpack.c.b16 %v486, %v485
        %v494 = vpack.c.b16 %v488, %v487
        %v495 = vpack.c.b16 %v490, %v489
        %v496 = vpack.c.b16 %v492, %v491
        %v502 = vsel %vm344, %v476, 0
        %504 = vmatprep.subr.bf16.mxu0 0
        %505 = vmatpush1.bf16.msra.mxu0 0
        %506 = vmatprep.subr.bf16.mxu0 0
        %507 = vmatpush1.bf16.msra.mxu0 0
        %508 = vmatprep.subr.bf16.mxu0 0
        %509 = vmatpush1.bf16.msra.mxu0 0
        %510 = vmatprep.subr.bf16.mxu0 0
        %511 = vmatpush1.bf16.msra.mxu0 0
        %512 = vmatprep.subr.bf16.mxu0 0
        %513 = vmatpush1.bf16.msra.mxu0 %v496
        %514 = vmatprep.subr.bf16.mxu0 0
        %515 = vmatpush1.bf16.msra.mxu0 %v495
        %516 = vmatprep.subr.bf16.mxu0 0
        %517 = vmatpush1.bf16.msra.mxu0 %v494
        %518 = vmatprep.subr.bf16.mxu0 0
        %519 = vmatpush1.bf16.msra.mxu0 %v493
        %520 = vmatprep.subr.bf16.mxu0 0
        %521 = vmatpush2.bf16.msra.mxu0 0
        %522 = vmatprep.subr.bf16.mxu0 0
        %523 = vmatpush2.bf16.msra.mxu0 0
        %524 = vmatprep.subr.bf16.mxu0 0
        %525 = vmatpush2.bf16.msra.mxu0 0
        %526 = vmatprep.subr.bf16.mxu0 0
        %527 = vmatpush2.bf16.msra.mxu0 0
        %528 = vmatprep.subr.bf16.mxu0 0
        %529 = vmatpush2.bf16.msra.mxu0 0
        %530 = vmatprep.subr.bf16.mxu0 0
        %531 = vmatpush2.bf16.msra.mxu0 0
        %532 = vmatprep.subr.bf16.mxu0 0
        %533 = vmatpush2.bf16.msra.mxu0 0
        %534 = vmatprep.subr.bf16.mxu0 0
        %535 = vmatpush2.bf16.msra.mxu0 0
        %536 = vmatprep.mubr.bf16.mxu0 0
        %537 = vmatmul.mubr.bf16.gmra.mxu0 %v502
        %v538 = vpop.f32.mrf.mxu0
        %v539 = vadd.f32 0.0, %v538
        %v540 = vpop.f32.mrf.mxu0
        %v541 = vpop.f32.mrf.mxu0
        %v542 = vpop.f32.mrf.mxu0
        %543 = vdwg.mxu0
        %v544 = vadd.f32 %v450, %v539
        %v545 = vld [vmem:[%s307] sm:$0x7]
        %s546 = sadd.s32 24, %s296
        %s547 = smul.addr %s546, 4
        %s548 = scalar_lea.vmem %s1, %s547
        %v549 = vld [vmem:[%s548] sm:$0xf]
        %v550 = vld [vmem:[%s548 + $0x4] sm:$0xf]
        %v551 = vld [vmem:[%s548 + $0x8] sm:$0xf]
        %v552 = vld [vmem:[%s548 + $0xc] sm:$0xf]
        %v553 = vld [vmem:[%s548 + $0x10] sm:$0xf]
        %v554 = vld [vmem:[%s548 + $0x14] sm:$0xf]
        %v555 = vld [vmem:[%s548 + $0x18] sm:$0xf]
        %v556 = vld [vmem:[%s548 + $0x1c] sm:$0xf]
        %v558 = vunpack.c.l.b16 %v545
        %v559 = vpack.c.b16 %v558, %v558
        %v561 = vshrl.u32 %v559, 16
        %v563 = vshll.u32 %v559, 16
        %v565 = vrot.slane %v563, 1
        %v566 = vor.u32 %v561, %v565
        %v575 = vunpack.c.l.b16 %v549
        %v576 = vunpack.c.l.b16 %v550
        %v577 = vunpack.c.l.b16 %v551
        %v578 = vunpack.c.l.b16 %v552
        %v579 = vunpack.c.l.b16 %v553
        %v580 = vunpack.c.l.b16 %v554
        %v581 = vunpack.c.l.b16 %v555
        %v582 = vunpack.c.l.b16 %v556
        %v583 = vpack.c.b16 %v576, %v575
        %v584 = vpack.c.b16 %v578, %v577
        %v585 = vpack.c.b16 %v580, %v579
        %v586 = vpack.c.b16 %v582, %v581
        %v592 = vsel %vm344, %v566, 0
        %594 = vmatprep.subr.bf16.mxu0 0
        %595 = vmatpush1.bf16.msra.mxu0 0
        %596 = vmatprep.subr.bf16.mxu0 0
        %597 = vmatpush1.bf16.msra.mxu0 0
        %598 = vmatprep.subr.bf16.mxu0 0
        %599 = vmatpush1.bf16.msra.mxu0 0
        %600 = vmatprep.subr.bf16.mxu0 0
        %601 = vmatpush1.bf16.msra.mxu0 0
        %602 = vmatprep.subr.bf16.mxu0 0
        %603 = vmatpush1.bf16.msra.mxu0 %v586
        %604 = vmatprep.subr.bf16.mxu0 0
        %605 = vmatpush1.bf16.msra.mxu0 %v585
        %606 = vmatprep.subr.bf16.mxu0 0
        %607 = vmatpush1.bf16.msra.mxu0 %v584
        %608 = vmatprep.subr.bf16.mxu0 0
        %609 = vmatpush1.bf16.msra.mxu0 %v583
        %610 = vmatprep.subr.bf16.mxu0 0
        %611 = vmatpush2.bf16.msra.mxu0 0
        %612 = vmatprep.subr.bf16.mxu0 0
        %613 = vmatpush2.bf16.msra.mxu0 0
        %614 = vmatprep.subr.bf16.mxu0 0
        %615 = vmatpush2.bf16.msra.mxu0 0
        %616 = vmatprep.subr.bf16.mxu0 0
        %617 = vmatpush2.bf16.msra.mxu0 0
        %618 = vmatprep.subr.bf16.mxu0 0
        %619 = vmatpush2.bf16.msra.mxu0 0
        %620 = vmatprep.subr.bf16.mxu0 0
        %621 = vmatpush2.bf16.msra.mxu0 0
        %622 = vmatprep.subr.bf16.mxu0 0
        %623 = vmatpush2.bf16.msra.mxu0 0
        %624 = vmatprep.subr.bf16.mxu0 0
        %625 = vmatpush2.bf16.msra.mxu0 0
        %626 = vmatprep.mubr.bf16.mxu0 0
        %627 = vmatmul.mubr.bf16.gmra.mxu0 %v592
        %v628 = vpop.f32.mrf.mxu0
        %v629 = vadd.f32 0.0, %v628
        %v630 = vpop.f32.mrf.mxu0
        %v631 = vpop.f32.mrf.mxu0
        %v632 = vpop.f32.mrf.mxu0
        %633 = vdwg.mxu0
        %v634 = vadd.f32 %v544, %v629
        %v635 = vld [vmem:[%s280] sm:$0xf]
        %v636 = vadd.f32 %v635, %v634
        %637 = vst [vmem:[%s280] sm:$0xf] %v636
        %p638 = scmp.eq.s32.totalorder %s24, 3
        // Predicated region
        $region41: #{discriminator_forward.11} parent=31 // pred_check
          %p639 = pneg %p638
        $region42: #{discriminator_forward.11} parent=31 // pred_check_branch
          %641 = sbr.rel (%p639) target = $region44
        $region43: #{discriminator_forward.11} parent=31 // pred_region
          %v642 = vld [vmem:[%s280] sm:$0xf]
          %v643 = vld [vmem:[#allocation2] sm:$0x1]
          %v645 = vlaneseq
          %v646 = vshrl.u32 %v645, 7
          %v647 = vsub.s32 0, %v646
          %v648 = vrot.slane %v643, %v647
          %v650 = vadd.f32 %v642, %v648
          %651 = vst [vmem:[%s280] sm:$0xf] %v650
          %vm652 = vcmask 1043456
          %v653 = vsel %vm652, %v650, 0.0
          %v654 = vrot.slane %v653, 4
          %v655 = vadd.f32 %v653, %v654
          %v656 = vrot.slane %v655, 2
          %v657 = vadd.f32 %v655, %v656
          %v658 = vrot.slane %v657, 1
          %v659 = vadd.f32 %v657, %v658
          %660 = vst [vmem:[%s288] sm:$0x1] %v659
          %v661 = vmul.f32 %v650, %v650
          %v662 = vsel %vm652, %v661, 0.0
          %v663 = vrot.slane %v662, 4
          %v664 = vadd.f32 %v662, %v663
          %v665 = vrot.slane %v664, 2
          %v666 = vadd.f32 %v664, %v665
          %v667 = vrot.slane %v666, 1
          %v668 = vadd.f32 %v666, %v667
          %669 = vst [vmem:[%s288 + $0x1] sm:$0x1] %v668
        $region44: #{discriminator_forward.11} parent=31 // pred_fallthru
          _
        %p670 = scmp.lt.s32.totalorder %s22, 1
        %s671 = scalar_select %p670, %s22, 1
        %p672 = scmp.lt.s32.totalorder %s23, 3
        %s673 = scalar_select %p672, %s23, 3
        %s674 = smul.addr %s671, 4
        %s675 = sadd.s32 %s673, %s674
        %s676 = smul.addr %s675, 4
        %s677 = scalar_lea.vmem %s3, %s676
        %p678 = scmp.lt.s32.totalorder %s22, 1
        %s679 = scalar_select %p678, %s22, 1
        %p680 = scmp.lt.s32.totalorder %s23, 3
        %s681 = scalar_select %p680, %s23, 3
        %s682 = smul.addr %s679, 4
        %s683 = sadd.s32 %s681, %s682
        %s684 = smul.addr %s683, 2
        %s685 = scalar_lea.vmem %s4, %s684
        // Predicated region
        $region45: #{discriminator_forward.11} parent=31 // pred_check
          %p686 = pneg %p130
        $region46: #{discriminator_forward.11} parent=31 // pred_check_branch
          %688 = sbr.rel (%p686) target = $region48
        $region47: #{discriminator_forward.11} parent=31 // pred_region
          _
        $region48: #{discriminator_forward.11} parent=31 // pred_fallthru
          _
        // Predicated region
        $region49: #{discriminator_forward.11} parent=31 // pred_check
          %p689 = pneg %p158
        $region50: #{discriminator_forward.11} parent=31 // pred_check_branch
          %691 = sbr.rel (%p689) target = $region52
        $region51: #{discriminator_forward.11} parent=31 // pred_region
          _
        $region52: #{discriminator_forward.11} parent=31 // pred_fallthru
          _
      $region32: #{discriminator_forward.11} parent=5 // pred_fallthru
        _
      %p692 = scmp.le.s32.totalorder 2, %s12
      // Predicated region
      $region53: #{discriminator_forward.11} parent=5 // pred_check
        %p693 = pneg %p692
      $region54: #{discriminator_forward.11} parent=5 // pred_check_branch
        %695 = sbr.rel (%p693) target = $region56
      $region55: #{discriminator_forward.11} parent=5 // pred_region
        %s696 = ssub.s32 %s12, 2
        // Predicated region
        $region57: #{discriminator_forward.11} parent=55 // pred_check
          %p697 = pneg %p136
        $region58: #{discriminator_forward.11} parent=55 // pred_check_branch
          %699 = sbr.rel (%p697) target = $region60
        $region59: #{discriminator_forward.11} parent=55 // pred_region
          %p700 = scmp.lt.s32.totalorder %s25, 1
          %s701 = scalar_select %p700, %s25, 1
          %p702 = scmp.lt.s32.totalorder %s26, 3
          %s703 = scalar_select %p702, %s26, 3
          %s704 = smul.addr %s701, 4
          %s705 = sadd.s32 %s703, %s704
          %s706 = smul.addr %s705, 4
          %s707 = scalar_lea.vmem %s3, %s706
        $region60: #{discriminator_forward.11} parent=55 // pred_fallthru
          _
        // Predicated region
        $region61: #{discriminator_forward.11} parent=55 // pred_check
          %p708 = pneg %p164
        $region62: #{discriminator_forward.11} parent=55 // pred_check_branch
          %710 = sbr.rel (%p708) target = $region64
        $region63: #{discriminator_forward.11} parent=55 // pred_region
          %p711 = scmp.lt.s32.totalorder %s25, 1
          %s712 = scalar_select %p711, %s25, 1
          %p713 = scmp.lt.s32.totalorder %s26, 3
          %s714 = scalar_select %p713, %s26, 3
          %s715 = smul.addr %s712, 4
          %s716 = sadd.s32 %s714, %s715
          %s717 = smul.addr %s716, 2
          %s718 = scalar_lea.vmem %s4, %s717
        $region64: #{discriminator_forward.11} parent=55 // pred_fallthru
          _
      $region56: #{discriminator_forward.11} parent=5 // pred_fallthru
        _
    $region6: #{discriminator_forward.11} parent=1 // loop_footer
      %s16 = sadd.s32 1, %s12
    $region7: #{discriminator_forward.11} parent=1 // loop_footer_branch
      %11 = sbr.rel target = $region3
    $region8: #{discriminator_forward.11} parent=1 // loop_exit
      _
    %719 = vsyncpa [#allocation3], 1
    %s720 = scalar_lea.sflag [#allocation3], 1
    %721 = vsyncpa %s720, 1

// kernel: discriminator_forward.14
$region0: #{discriminator_forward.14}
  #allocation0 [shape = 'u32[]', space=smem, size = 0x4, offset = 0x4, fixed_abs, tag = 'smem constant byte address 0x4 - core index']
  #allocation1 [shape = 'u32[144,128]{1,0:T(1,128)}', space=vmem, size = 0x12000, scoped, tag = 'internal scratch']
  %s0 = inlined_call_operand.vmem [shape: f32[8,256], index: 0, kind: input, shape index: {}]
  %s1 = inlined_call_operand.vmem [shape: f32[1,256], index: 1, kind: input, shape index: {}]
  %s2 = inlined_call_operand.vmem [shape: f32[1,256], index: 2, kind: input, shape index: {}]
  %s3 = inlined_call_operand.vmem [shape: f32[8,256], index: 3, kind: output, shape index: {}]
  %s4 = sld [smem:[#allocation0]]
  $region22: #{discriminator_forward.14} parent=0
    _
  %s6 = ssub.s32 1, %s4
  %s7 = scalar_select 0, %s6, %s4
  // Predicated region
  $region2: #{discriminator_forward.14} parent=0 // pred_check
    _
  $region3: #{discriminator_forward.14} parent=0 // pred_check_branch
    %9 = sbr.rel (0) target = $region5
  $region4: #{discriminator_forward.14} parent=0 // pred_region
    _
  $region5: #{discriminator_forward.14} parent=0 // pred_fallthru
    _
  // Predicated region
  $region6: #{discriminator_forward.14} parent=0 // pred_check
    _
  $region7: #{discriminator_forward.14} parent=0 // pred_check_branch
    %11 = sbr.rel (0) target = $region9
  $region8: #{discriminator_forward.14} parent=0 // pred_region
    _
  $region9: #{discriminator_forward.14} parent=0 // pred_fallthru
    _
  // Predicated region
  $region10: #{discriminator_forward.14} parent=0 // pred_check
    _
  $region11: #{discriminator_forward.14} parent=0 // pred_check_branch
    %13 = sbr.rel (0) target = $region13
  $region12: #{discriminator_forward.14} parent=0 // pred_region
    _
  $region13: #{discriminator_forward.14} parent=0 // pred_fallthru
    _
  %v14 = vld [vmem:[%s0] sm:$0xff]
  %v15 = vld [vmem:[%s0 + $0x8] sm:$0xff]
  %v16 = vld [vmem:[%s1] sm:$0x3]
  %v18 = vlaneseq
  %v19 = vshrl.u32 %v18, 7
  %v20 = vsub.s32 0, %v19
  %v21 = vrot.slane %v16, %v20
  %v22 = vlaneseq
  %v23 = vshrl.u32 %v22, 7
  %v24 = vsub.s32 1, %v23
  %v25 = vrot.slane %v16, %v24
  %v28 = vmul.f32 %v14, %v21
  %v29 = vmul.f32 %v15, %v25
  %v30 = vld [vmem:[%s2] sm:$0x3]
  %v32 = vlaneseq
  %v33 = vshrl.u32 %v32, 7
  %v34 = vsub.s32 0, %v33
  %v35 = vrot.slane %v30, %v34
  %v36 = vlaneseq
  %v37 = vshrl.u32 %v36, 7
  %v38 = vsub.s32 1, %v37
  %v39 = vrot.slane %v30, %v38
  %v42 = vadd.f32 %v28, %v35
  %v43 = vadd.f32 %v29, %v39
  %vm44 = vcmp.ge.f32.partialorder %v42, 0.0
  %vm45 = vcmp.ge.f32.partialorder %v43, 0.0
  %v46 = vmul.f32 %v42, 0.2
  %v47 = vmul.f32 %v43, 0.2
  %v48 = vsel %vm44, %v42, %v46
  %v49 = vsel %vm45, %v43, %v47
  %50 = vst [vmem:[%s3] sm:$0xff] %v48
  %51 = vst [vmem:[%s3 + $0x8] sm:$0xff] %v49
  // Predicated region
  $region14: #{discriminator_forward.14} parent=0 // pred_check
    _
  $region15: #{discriminator_forward.14} parent=0 // pred_check_branch
    %53 = sbr.rel (0) target = $region17
  $region16: #{discriminator_forward.14} parent=0 // pred_region
    _
  $region17: #{discriminator_forward.14} parent=0 // pred_fallthru
    _
  // Predicated region
  $region18: #{discriminator_forward.14} parent=0 // pred_check
    _
  $region19: #{discriminator_forward.14} parent=0 // pred_check_branch
    %55 = sbr.rel (0) target = $region21
  $region20: #{discriminator_forward.14} parent=0 // pred_region
    _
  $region21: #{discriminator_forward.14} parent=0 // pred_fallthru
    _

// kernel: discriminator_forward.13
$region0: #{discriminator_forward.13}
  #allocation0 [shape = 'u32[]', space=smem, size = 0x4, offset = 0x4, fixed_abs, tag = 'smem constant byte address 0x4 - core index']
  #allocation1 [shape = 'u32[144,128]{1,0:T(1,128)}', space=vmem, size = 0x12000, scoped, tag = 'internal scratch']
  %s0 = inlined_call_operand.vmem [shape: bf16[2,12,3,128], index: 0, kind: input, shape index: {}]
  %s1 = inlined_call_operand.vmem [shape: bf16[4,4,128,256], index: 1, kind: input, shape index: {}]
  %s2 = inlined_call_operand.vmem [shape: f32[1,256], index: 2, kind: input, shape index: {}]
  %s3 = inlined_call_operand.vmem [shape: f32[2,2,2,256], index: 3, kind: output, shape index: {0}]
  %s4 = inlined_call_operand.vmem [shape: f32[2,2,2,256], index: 4, kind: output, shape index: {1}]
  %5 = xla_tuple %s3, %s4
  %s6 = sld [smem:[#allocation0]]
  $region61: #{discriminator_forward.13} parent=0
    _
  %s8 = ssub.s32 1, %s6
  %s9 = scalar_select 0, %s8, %s6
  loop: start=0, step=1, limit=18
  $region2: #{discriminator_forward.13} parent=0 // loop_pre_header
    _
  $region3: #{discriminator_forward.13} parent=0 // loop_header
    %s11 = sphi 0, %s15
    %p12 = scmp.ge.s32.totalorder %s11, 18
    %s18 = sphi 0, %s37
    %s19 = sphi 0, %s33
    %s20 = sphi 0, %s29
    %s21 = sphi 0, %s18
    %s22 = sphi 0, %s19
    %s23 = sphi 0, %s20
    %s24 = sphi 0, %s21
    %s25 = sphi 0, %s22
    %s26 = sphi 0, %s23
    %s46 = sphi 0, %s48
    %s49 = sphi 0, %s46
    %s50 = sphi 0, %s49
    %s66 = sphi 0, %s50
    %s70 = sphi 0, %s70
    %s72 = sphi 0, %s70
    %s73 = sphi 0, %s72
    %s87 = sphi 0, %s73
    %s91 = sphi 0, %s91
    %s93 = sphi 0, %s91
    %s94 = sphi 0, %s93
    %s108 = sphi 0, %s94
    %s116 = sphi 0, %s118
    %s119 = sphi 0, %s116
    %s120 = sphi 0, %s119
    %s136 = sphi 0, %s120
    %s144 = sphi 0, %s146
    %s147 = sphi 0, %s144
    %s148 = sphi 0, %s147
    %s164 = sphi 0, %s148
  $region4: #{discriminator_forward.13} parent=0 // loop_header_branch
    %14 = sbr.rel (%p12) target = $region8
  $region5: #{discriminator_forward.13} parent=0 // loop_body
    %s16 = ssub.s32 %s11, 1
    %s17 = ssub.s32 %s11, 2
    %s27 = sadd.s32 1, %s20
    %p28 = scmp.ge.s32.totalorder %s27, 4
    %s29 = scalar_select %p28, 0, %s27
    %s30 = sadd.s32 1, %s19
    %s31 = scalar_select %p28, %s30, %s19
    %p32 = scmp.ge.s32.totalorder %s31, 2
    %s33 = scalar_select %p32, 0, %s31
    %s34 = sadd.s32 1, %s18
    %s35 = scalar_select %p32, %s34, %s18
    %p36 = scmp.ge.s32.totalorder %s35, 2
    %s37 = scalar_select %p36, 0, %s35
    %s38 = smul.u32 %s19, 2
    %s39 = sadd.s32 %s38, %s20
    %s40 = smul.u32 %s33, 2
    %s41 = sadd.s32 %s40, %s29
    %s42 = ssub.s32 %s18, %s37
    %s43 = ssub.s32 %s39, %s41
    %s44 = sor.u32 %s42, %s43
    %p45 = scmp.eq.s32.totalorder %s44, 0
    %s47 = sadd.s32 %s46, 1
    %s48 = scalar_select %p45, %s46, %s47
    %p51 = pneg %p45
    %p52 = scmp.eq.s32.totalorder %s11, 15
    %p53 = por %p51, %p52
    %p54 = scmp.ne.s32.totalorder %s46, %s49
    %p55 = scmp.eq.s32.totalorder %s11, 0
    %p56 = por %p54, %p55
    %p57 = scmp.ne.s32.totalorder %s46, %s49
    %p58 = scmp.eq.s32.totalorder %s16, 15
    %p59 = por %p57, %p58
    %p60 = scmp.ne.s32.totalorder %s49, %s50
    %p61 = scmp.eq.s32.totalorder %s16, 0
    %p62 = por %p60, %p61
    %p63 = scmp.ne.s32.totalorder %s49, %s50
    %p64 = scmp.eq.s32.totalorder %s17, 15
    %p65 = por %p63, %p64
    %p67 = scmp.ne.s32.totalorder %s50, %s66
    %p68 = scmp.eq.s32.totalorder %s17, 0
    %p69 = por %p67, %p68
    %s71 = sadd.s32 %s70, 1
    %p74 = scmp.eq.s32.totalorder %s11, 15
    %p75 = scmp.ne.s32.totalorder %s70, %s72
    %p76 = scmp.eq.s32.totalorder %s11, 0
    %p77 = por %p75, %p76
    %p78 = scmp.ne.s32.totalorder %s70, %s72
    %p79 = scmp.eq.s32.totalorder %s16, 15
    %p80 = por %p78, %p79
    %p81 = scmp.ne.s32.totalorder %s72, %s73
    %p82 = scmp.eq.s32.totalorder %s16, 0
    %p83 = por %p81, %p82
    %p84 = scmp.ne.s32.totalorder %s72, %s73
    %p85 = scmp.eq.s32.totalorder %s17, 15
    %p86 = por %p84, %p85
    %p88 = scmp.ne.s32.totalorder %s73, %s87
    %p89 = scmp.eq.s32.totalorder %s17, 0
    %p90 = por %p88, %p89
    %s92 = sadd.s32 %s91, 1
    %p95 = scmp.eq.s32.totalorder %s11, 15
    %p96 = scmp.ne.s32.totalorder %s91, %s93
    %p97 = scmp.eq.s32.totalorder %s11, 0
    %p98 = por %p96, %p97
    %p99 = scmp.ne.s32.totalorder %s91, %s93
    %p100 = scmp.eq.s32.totalorder %s16, 15
    %p101 = por %p99, %p100
    %p102 = scmp.ne.s32.totalorder %s93, %s94
    %p103 = scmp.eq.s32.totalorder %s16, 0
    %p104 = por %p102, %p103
    %p105 = scmp.ne.s32.totalorder %s93, %s94
    %p106 = scmp.eq.s32.totalorder %s17, 15
    %p107 = por %p105, %p106
    %p109 = scmp.ne.s32.totalorder %s94, %s108
    %p110 = scmp.eq.s32.totalorder %s17, 0
    %p111 = por %p109, %p110
    %s112 = ssub.s32 %s18, %s37
    %s113 = ssub.s32 %s19, %s33
    %s114 = sor.u32 %s112, %s113
    %p115 = scmp.eq.s32.totalorder %s114, 0
    %s117 = sadd.s32 %s116, 1
    %s118 = scalar_select %p115, %s116, %s117
    %p121 = pneg %p115
    %p122 = scmp.eq.s32.totalorder %s11, 15
    %p123 = por %p121, %p122
    %p124 = scmp.ne.s32.totalorder %s116, %s119
    %p125 = scmp.eq.s32.totalorder %s11, 0
    %p126 = por %p124, %p125
    %p127 = scmp.ne.s32.totalorder %s116, %s119
    %p128 = scmp.eq.s32.totalorder %s16, 15
    %p129 = por %p127, %p128
    %p130 = scmp.ne.s32.totalorder %s119, %s120
    %p131 = scmp.eq.s32.totalorder %s16, 0
    %p132 = por %p130, %p131
    %p133 = scmp.ne.s32.totalorder %s119, %s120
    %p134 = scmp.eq.s32.totalorder %s17, 15
    %p135 = por %p133, %p134
    %p137 = scmp.ne.s32.totalorder %s120, %s136
    %p138 = scmp.eq.s32.totalorder %s17, 0
    %p139 = por %p137, %p138
    %s140 = ssub.s32 %s18, %s37
    %s141 = ssub.s32 %s19, %s33
    %s142 = sor.u32 %s140, %s141
    %p143 = scmp.eq.s32.totalorder %s142, 0
    %s145 = sadd.s32 %s144, 1
    %s146 = scalar_select %p143, %s144, %s145
    %p149 = pneg %p143
    %p150 = scmp.eq.s32.totalorder %s11, 15
    %p151 = por %p149, %p150
    %p152 = scmp.ne.s32.totalorder %s144, %s147
    %p153 = scmp.eq.s32.totalorder %s11, 0
    %p154 = por %p152, %p153
    %p155 = scmp.ne.s32.totalorder %s144, %s147
    %p156 = scmp.eq.s32.totalorder %s16, 15
    %p157 = por %p155, %p156
    %p158 = scmp.ne.s32.totalorder %s147, %s148
    %p159 = scmp.eq.s32.totalorder %s16, 0
    %p160 = por %p158, %p159
    %p161 = scmp.ne.s32.totalorder %s147, %s148
    %p162 = scmp.eq.s32.totalorder %s17, 15
    %p163 = por %p161, %p162
    %p165 = scmp.ne.s32.totalorder %s148, %s164
    %p166 = scmp.eq.s32.totalorder %s17, 0
    %p167 = por %p165, %p166
    %p168 = scmp.le.s32.totalorder 1, %s11
    %p169 = scmp.lt.s32.totalorder %s11, 17
    %p170 = pnand %p168, %p169
    %p171 = pneg %p170
    // Predicated region
    $region9: #{discriminator_forward.13} parent=5 // pred_check
      _
    $region10: #{discriminator_forward.13} parent=5 // pred_check_branch
      %173 = sbr.rel (%p170) target = $region12
    $region11: #{discriminator_forward.13} parent=5 // pred_region
      %s174 = ssub.s32 %s11, 1
      // Predicated region
      $region13: #{discriminator_forward.13} parent=11 // pred_check
        %p175 = pneg %p83
      $region14: #{discriminator_forward.13} parent=11 // pred_check_branch
        %177 = sbr.rel (%p175) target = $region16
      $region15: #{discriminator_forward.13} parent=11 // pred_region
        _
      $region16: #{discriminator_forward.13} parent=11 // pred_fallthru
        _
      // Predicated region
      $region17: #{discriminator_forward.13} parent=11 // pred_check
        %p178 = pneg %p104
      $region18: #{discriminator_forward.13} parent=11 // pred_check_branch
        %180 = sbr.rel (%p178) target = $region20
      $region19: #{discriminator_forward.13} parent=11 // pred_region
        _
      $region20: #{discriminator_forward.13} parent=11 // pred_fallthru
        _
    $region12: #{discriminator_forward.13} parent=5 // pred_fallthru
      _
    %p181 = scmp.lt.s32.totalorder %s11, 16
    // Predicated region
    $region21: #{discriminator_forward.13} parent=5 // pred_check
      %p182 = pneg %p181
    $region22: #{discriminator_forward.13} parent=5 // pred_check_branch
      %184 = sbr.rel (%p182) target = $region24
    $region23: #{discriminator_forward.13} parent=5 // pred_region
      // Predicated region
      $region25: #{discriminator_forward.13} parent=23 // pred_check
        %p185 = pneg %p56
      $region26: #{discriminator_forward.13} parent=23 // pred_check_branch
        %187 = sbr.rel (%p185) target = $region28
      $region27: #{discriminator_forward.13} parent=23 // pred_region
        %s188 = smul.u32 %s19, 2
        %s189 = sadd.s32 %s188, %s20
        %s190 = smul.u32 2, %s189
        %p191 = scmp.lt.s32.totalorder %s18, 1
        %s192 = scalar_select %p191, %s18, 1
        %p193 = scmp.lt.s32.totalorder %s190, 11
        %s194 = scalar_select %p193, %s190, 11
        %s195 = smul.addr %s192, 12
        %s196 = sadd.s32 %s194, %s195
        %s197 = smul.addr %s196, 2
        %s198 = scalar_lea.vmem %s0, %s197
        %s199 = smul.u32 %s19, 2
        %s200 = sadd.s32 %s199, %s20
        %s201 = smul.u32 2, %s200
      $region28: #{discriminator_forward.13} parent=23 // pred_fallthru
        _
    $region24: #{discriminator_forward.13} parent=5 // pred_fallthru
      _
    %p202 = scmp.le.s32.totalorder 1, %s11
    %p203 = scmp.lt.s32.totalorder %s11, 17
    %p204 = pnand %p202, %p203
    %p205 = pneg %p204
    // Predicated region
    $region29: #{discriminator_forward.13} parent=5 // pred_check
      _
    $region30: #{discriminator_forward.13} parent=5 // pred_check_branch
      %207 = sbr.rel (%p204) target = $region32
    $region31: #{discriminator_forward.13} parent=5 // pred_region
      %s208 = ssub.s32 %s11, 1
      %s209 = smul.u32 %s22, 2
      %s210 = sadd.s32 %s209, %s23
      %s211 = smul.u32 2, %s210
      %p212 = scmp.lt.s32.totalorder %s21, 1
      %s213 = scalar_select %p212, %s21, 1
      %p214 = scmp.lt.s32.totalorder %s211, 11
      %s215 = scalar_select %p214, %s211, 11
      %s216 = smul.addr %s213, 12
      %s217 = sadd.s32 %s215, %s216
      %s218 = smul.addr %s217, 2
      %s219 = scalar_lea.vmem %s0, %s218
      %p220 = pneg %p62
      %p221 = pneg %p59
      %p222 = pneg %p83
      %p223 = pneg %p80
      %p224 = pneg %p104
      %p225 = pneg %p101
      %p226 = pneg %p132
      %p227 = pneg %p129
      %p228 = scmp.lt.s32.totalorder %s21, 1
      %s229 = scalar_select %p228, %s21, 1
      %p230 = scmp.lt.s32.totalorder %s22, 1
      %s231 = scalar_select %p230, %s22, 1
      %s232 = smul.addr %s231, 2
      %s233 = smul.addr %s229, 4
      %s234 = sadd.s32 %s232, %s233
      %s235 = smul.addr %s234, 2
      %s236 = scalar_lea.vmem %s3, %s235
      %p237 = pneg %p160
      %p238 = pneg %p157
      %p239 = scmp.lt.s32.totalorder %s21, 1
      %s240 = scalar_select %p239, %s21, 1
      %p241 = scmp.lt.s32.totalorder %s22, 1
      %s242 = scalar_select %p241, %s22, 1
      %s243 = smul.addr %s242, 2
      %s244 = smul.addr %s240, 4
      %s245 = sadd.s32 %s243, %s244
      %s246 = smul.addr %s245, 2
      %s247 = scalar_lea.vmem %s4, %s246
      %s248 = smul.u32 %s22, 2
      %s249 = sadd.s32 %s248, %s23
      %s250 = smul.u32 2, %s249
      %p251 = scmp.lt.s32.totalorder %s21, 1
      %s252 = scalar_select %p251, %s21, 1
      %p253 = scmp.lt.s32.totalorder %s250, 11
      %s254 = scalar_select %p253, %s250, 11
      %s255 = smul.addr %s252, 12
      %s256 = sadd.s32 %s254, %s255
      %s257 = smul.addr %s256, 2
      %s258 = scalar_lea.vmem %s0, %s257
      %s259 = smul.u32 %s22, 2
      %s260 = sadd.s32 %s259, %s23
      %s261 = smul.u32 2, %s260
      %p262 = scmp.lt.s32.totalorder %s21, 1
      %s263 = scalar_select %p262, %s21, 1
      %p264 = scmp.lt.s32.totalorder %s22, 1
      %s265 = scalar_select %p264, %s22, 1
      %s266 = smul.addr %s265, 2
      %s267 = smul.addr %s263, 4
      %s268 = sadd.s32 %s266, %s267
      %s269 = smul.addr %s268, 2
      %s270 = scalar_lea.vmem %s3, %s269
      %p271 = scmp.lt.s32.totalorder %s21, 1
      %s272 = scalar_select %p271, %s21, 1
      %p273 = scmp.lt.s32.totalorder %s22, 1
      %s274 = scalar_select %p273, %s22, 1
      %s275 = smul.addr %s274, 2
      %s276 = smul.addr %s272, 4
      %s277 = sadd.s32 %s275, %s276
      %s278 = smul.addr %s277, 2
      %s279 = scalar_lea.vmem %s4, %s278
      %p281 = scmp.eq.s32.totalorder %s23, 0
      // Predicated region
      $region33: #{discriminator_forward.13} parent=31 // pred_check
        %p282 = pneg %p281
      $region34: #{discriminator_forward.13} parent=31 // pred_check_branch
        %284 = sbr.rel (%p282) target = $region36
      $region35: #{discriminator_forward.13} parent=31 // pred_region
        %285 = vst [vmem:[%s270] sm:$0xf] 0.0
      $region36: #{discriminator_forward.13} parent=31 // pred_fallthru
        _
      %v286 = vld [vmem:[%s258] sm:$0x1]
      %s287 = smul.u32 %s23, 128
      %s288 = smul.addr %s287, 4
      %s289 = scalar_lea.vmem %s1, %s288
      %v290 = vld [vmem:[%s289] sm:$0xff]
      %v291 = vld [vmem:[%s289 + $0x8] sm:$0xff]
      %v292 = vld [vmem:[%s289 + $0x10] sm:$0xff]
      %v293 = vld [vmem:[%s289 + $0x18] sm:$0xff]
      %v294 = vld [vmem:[%s289 + $0x20] sm:$0xff]
      %v295 = vld [vmem:[%s289 + $0x28] sm:$0xff]
      %v296 = vld [vmem:[%s289 + $0x30] sm:$0xff]
      %v297 = vld [vmem:[%s289 + $0x38] sm:$0xff]
      %v298 = vld [vmem:[%s289 + $0x40] sm:$0xff]
      %v299 = vld [vmem:[%s289 + $0x48] sm:$0xff]
      %v300 = vld [vmem:[%s289 + $0x50] sm:$0xff]
      %v301 = vld [vmem:[%s289 + $0x58] sm:$0xff]
      %v302 = vld [vmem:[%s289 + $0x60] sm:$0xff]
      %v303 = vld [vmem:[%s289 + $0x68] sm:$0xff]
      %v304 = vld [vmem:[%s289 + $0x70] sm:$0xff]
      %v305 = vld [vmem:[%s289 + $0x78] sm:$0xff]
      %s306 = scalar_lea.vmem %s258, 2
      %v307 = vld [vmem:[%s306] sm:$0x1]
      %s308 = sadd.s32 32, %s287
      %s309 = smul.addr %s308, 4
      %s310 = scalar_lea.vmem %s1, %s309
      %v311 = vld [vmem:[%s310] sm:$0xff]
      %v312 = vld [vmem:[%s310 + $0x8] sm:$0xff]
      %v313 = vld [vmem:[%s310 + $0x10] sm:$0xff]
      %v314 = vld [vmem:[%s310 + $0x18] sm:$0xff]
      %v315 = vld [vmem:[%s310 + $0x20] sm:$0xff]
      %v316 = vld [vmem:[%s310 + $0x28] sm:$0xff]
      %v317 = vld [vmem:[%s310 + $0x30] sm:$0xff]
      %v318 = vld [vmem:[%s310 + $0x38] sm:$0xff]
      %v319 = vld [vmem:[%s310 + $0x40] sm:$0xff]
      %v320 = vld [vmem:[%s310 + $0x48] sm:$0xff]
      %v321 = vld [vmem:[%s310 + $0x50] sm:$0xff]
      %v322 = vld [vmem:[%s310 + $0x58] sm:$0xff]
      %v323 = vld [vmem:[%s310 + $0x60] sm:$0xff]
      %v324 = vld [vmem:[%s310 + $0x68] sm:$0xff]
      %v325 = vld [vmem:[%s310 + $0x70] sm:$0xff]
      %v326 = vld [vmem:[%s310 + $0x78] sm:$0xff]
      %v343 = vunpack.c.l.b16 %v311
      %v344 = vunpack.c.h.b16 %v311
      %v345 = vunpack.c.l.b16 %v312
      %v346 = vunpack.c.h.b16 %v312
      %v347 = vunpack.c.l.b16 %v313
      %v348 = vunpack.c.h.b16 %v313
      %v349 = vunpack.c.l.b16 %v314
      %v350 = vunpack.c.h.b16 %v314
      %v351 = vunpack.c.l.b16 %v315
      %v352 = vunpack.c.h.b16 %v315
      %v353 = vunpack.c.l.b16 %v316
      %v354 = vunpack.c.h.b16 %v316
      %v355 = vunpack.c.l.b16 %v317
      %v356 = vunpack.c.h.b16 %v317
      %v357 = vunpack.c.l.b16 %v318
      %v358 = vunpack.c.h.b16 %v318
      %v359 = vunpack.c.l.b16 %v319
      %v360 = vunpack.c.h.b16 %v319
      %v361 = vunpack.c.l.b16 %v320
      %v362 = vunpack.c.h.b16 %v320
      %v363 = vunpack.c.l.b16 %v321
      %v364 = vunpack.c.h.b16 %v321
      %v365 = vunpack.c.l.b16 %v322
      %v366 = vunpack.c.h.b16 %v322
      %v367 = vunpack.c.l.b16 %v323
      %v368 = vunpack.c.h.b16 %v323
      %v369 = vunpack.c.l.b16 %v324
      %v370 = vunpack.c.h.b16 %v324
      %v371 = vunpack.c.l.b16 %v325
      %v372 = vunpack.c.h.b16 %v325
      %v373 = vunpack.c.l.b16 %v326
      %v374 = vunpack.c.h.b16 %v326
      %v375 = vpack.c.b16 %v345, %v343
      %v376 = vpack.c.b16 %v346, %v344
      %v377 = vpack.c.b16 %v349, %v347
      %v378 = vpack.c.b16 %v350, %v348
      %v379 = vpack.c.b16 %v353, %v351
      %v380 = vpack.c.b16 %v354, %v352
      %v381 = vpack.c.b16 %v357, %v355
      %v382 = vpack.c.b16 %v358, %v356
      %v383 = vpack.c.b16 %v361, %v359
      %v384 = vpack.c.b16 %v362, %v360
      %v385 = vpack.c.b16 %v365, %v363
      %v386 = vpack.c.b16 %v366, %v364
      %v387 = vpack.c.b16 %v369, %v367
      %v388 = vpack.c.b16 %v370, %v368
      %v389 = vpack.c.b16 %v373, %v371
      %v390 = vpack.c.b16 %v374, %v372
      %407 = vmatprep.subr.bf16.mxu0 %v390
      %408 = vmatpush1.bf16.msra.mxu0 %v389
      %409 = vmatprep.subr.bf16.mxu0 %v388
      %410 = vmatpush1.bf16.msra.mxu0 %v387
      %411 = vmatprep.subr.bf16.mxu0 %v386
      %412 = vmatpush1.bf16.msra.mxu0 %v385
      %413 = vmatprep.subr.bf16.mxu0 %v384
      %414 = vmatpush1.bf16.msra.mxu0 %v383
      %415 = vmatprep.subr.bf16.mxu0 %v382
      %416 = vmatpush1.bf16.msra.mxu0 %v381
      %417 = vmatprep.subr.bf16.mxu0 %v380
      %418 = vmatpush1.bf16.msra.mxu0 %v379
      %419 = vmatprep.subr.bf16.mxu0 %v378
      %420 = vmatpush1.bf16.msra.mxu0 %v377
      %421 = vmatprep.subr.bf16.mxu0 %v376
      %422 = vmatpush1.bf16.msra.mxu0 %v375
      %423 = vmatprep.subr.bf16.mxu0 0
      %424 = vmatpush2.bf16.msra.mxu0 0
      %425 = vmatprep.subr.bf16.mxu0 0
      %426 = vmatpush2.bf16.msra.mxu0 0
      %427 = vmatprep.subr.bf16.mxu0 0
      %428 = vmatpush2.bf16.msra.mxu0 0
      %429 = vmatprep.subr.bf16.mxu0 0
      %430 = vmatpush2.bf16.msra.mxu0 0
      %431 = vmatprep.subr.bf16.mxu0 0
      %432 = vmatpush2.bf16.msra.mxu0 0
      %433 = vmatprep.subr.bf16.mxu0 0
      %434 = vmatpush2.bf16.msra.mxu0 0
      %435 = vmatprep.subr.bf16.mxu0 0
      %436 = vmatpush2.bf16.msra.mxu0 0
      %437 = vmatprep.subr.bf16.mxu0 0
      %438 = vmatpush2.bf16.msra.mxu0 0
      %439 = vmatprep.mubr.bf16.mxu0 0
      %440 = vmatmul.mubr.bf16.gmra.mxu0 %v307
      %v441 = vpop.f32.mrf.mxu0
      %v442 = vadd.f32 0.0, %v441
      %v443 = vpop.f32.mrf.mxu0
      %v444 = vadd.f32 0.0, %v443
      %v445 = vpop.f32.mrf.mxu0
      %v446 = vpop.f32.mrf.mxu0
      %447 = vdwg.mxu0
      %v464 = vunpack.c.l.b16 %v290
      %v465 = vunpack.c.h.b16 %v290
      %v466 = vunpack.c.l.b16 %v291
      %v467 = vunpack.c.h.b16 %v291
      %v468 = vunpack.c.l.b16 %v292
      %v469 = vunpack.c.h.b16 %v292
      %v470 = vunpack.c.l.b16 %v293
      %v471 = vunpack.c.h.b16 %v293
      %v472 = vunpack.c.l.b16 %v294
      %v473 = vunpack.c.h.b16 %v294
      %v474 = vunpack.c.l.b16 %v295
      %v475 = vunpack.c.h.b16 %v295
      %v476 = vunpack.c.l.b16 %v296
      %v477 = vunpack.c.h.b16 %v296
      %v478 = vunpack.c.l.b16 %v297
      %v479 = vunpack.c.h.b16 %v297
      %v480 = vunpack.c.l.b16 %v298
      %v481 = vunpack.c.h.b16 %v298
      %v482 = vunpack.c.l.b16 %v299
      %v483 = vunpack.c.h.b16 %v299
      %v484 = vunpack.c.l.b16 %v300
      %v485 = vunpack.c.h.b16 %v300
      %v486 = vunpack.c.l.b16 %v301
      %v487 = vunpack.c.h.b16 %v301
      %v488 = vunpack.c.l.b16 %v302
      %v489 = vunpack.c.h.b16 %v302
      %v490 = vunpack.c.l.b16 %v303
      %v491 = vunpack.c.h.b16 %v303
      %v492 = vunpack.c.l.b16 %v304
      %v493 = vunpack.c.h.b16 %v304
      %v494 = vunpack.c.l.b16 %v305
      %v495 = vunpack.c.h.b16 %v305
      %v496 = vpack.c.b16 %v466, %v464
      %v497 = vpack.c.b16 %v467, %v465
      %v498 = vpack.c.b16 %v470, %v468
      %v499 = vpack.c.b16 %v471, %v469
      %v500 = vpack.c.b16 %v474, %v472
      %v501 = vpack.c.b16 %v475, %v473
      %v502 = vpack.c.b16 %v478, %v476
      %v503 = vpack.c.b16 %v479, %v477
      %v504 = vpack.c.b16 %v482, %v480
      %v505 = vpack.c.b16 %v483, %v481
      %v506 = vpack.c.b16 %v486, %v484
      %v507 = vpack.c.b16 %v487, %v485
      %v508 = vpack.c.b16 %v490, %v488
      %v509 = vpack.c.b16 %v491, %v489
      %v510 = vpack.c.b16 %v494, %v492
      %v511 = vpack.c.b16 %v495, %v493
      %528 = vmatprep.subr.bf16.mxu0 %v511
      %529 = vmatpush1.bf16.msra.mxu0 %v510
      %530 = vmatprep.subr.bf16.mxu0 %v509
      %531 = vmatpush1.bf16.msra.mxu0 %v508
      %532 = vmatprep.subr.bf16.mxu0 %v507
      %533 = vmatpush1.bf16.msra.mxu0 %v506
      %534 = vmatprep.subr.bf16.mxu0 %v505
      %535 = vmatpush1.bf16.msra.mxu0 %v504
      %536 = vmatprep.subr.bf16.mxu0 %v503
      %537 = vmatpush1.bf16.msra.mxu0 %v502
      %538 = vmatprep.subr.bf16.mxu0 %v501
      %539 = vmatpush1.bf16.msra.mxu0 %v500
      %540 = vmatprep.subr.bf16.mxu0 %v499
      %541 = vmatpush1.bf16.msra.mxu0 %v498
      %542 = vmatprep.subr.bf16.mxu0 %v497
      %543 = vmatpush1.bf16.msra.mxu0 %v496
      %544 = vmatprep.subr.bf16.mxu0 0
      %545 = vmatpush2.bf16.msra.mxu0 0
      %546 = vmatprep.subr.bf16.mxu0 0
      %547 = vmatpush2.bf16.msra.mxu0 0
      %548 = vmatprep.subr.bf16.mxu0 0
      %549 = vmatpush2.bf16.msra.mxu0 0
      %550 = vmatprep.subr.bf16.mxu0 0
      %551 = vmatpush2.bf16.msra.mxu0 0
      %552 = vmatprep.subr.bf16.mxu0 0
      %553 = vmatpush2.bf16.msra.mxu0 0
      %554 = vmatprep.subr.bf16.mxu0 0
      %555 = vmatpush2.bf16.msra.mxu0 0
      %556 = vmatprep.subr.bf16.mxu0 0
      %557 = vmatpush2.bf16.msra.mxu0 0
      %558 = vmatprep.subr.bf16.mxu0 0
      %559 = vmatpush2.bf16.msra.mxu0 0
      %560 = vmatprep.mubr.bf16.mxu0 0
      %561 = vmatmul.mubr.bf16.gmra.mxu0 %v286
      %v562 = vpop.f32.mrf.mxu0
      %v563 = vadd.f32 %v442, %v562
      %v564 = vpop.f32.mrf.mxu0
      %v565 = vadd.f32 %v444, %v564
      %v566 = vpop.f32.mrf.mxu0
      %v567 = vpop.f32.mrf.mxu0
      %568 = vdwg.mxu0
      %v569 = vld [vmem:[%s258] sm:$0x3]
      %s570 = sadd.s32 64, %s287
      %s571 = smul.addr %s570, 4
      %s572 = scalar_lea.vmem %s1, %s571
      %v573 = vld [vmem:[%s572] sm:$0xff]
      %v574 = vld [vmem:[%s572 + $0x8] sm:$0xff]
      %v575 = vld [vmem:[%s572 + $0x10] sm:$0xff]
      %v576 = vld [vmem:[%s572 + $0x18] sm:$0xff]
      %v577 = vld [vmem:[%s572 + $0x20] sm:$0xff]
      %v578 = vld [vmem:[%s572 + $0x28] sm:$0xff]
      %v579 = vld [vmem:[%s572 + $0x30] sm:$0xff]
      %v580 = vld [vmem:[%s572 + $0x38] sm:$0xff]
      %v581 = vld [vmem:[%s572 + $0x40] sm:$0xff]
      %v582 = vld [vmem:[%s572 + $0x48] sm:$0xff]
      %v583 = vld [vmem:[%s572 + $0x50] sm:$0xff]
      %v584 = vld [vmem:[%s572 + $0x58] sm:$0xff]
      %v585 = vld [vmem:[%s572 + $0x60] sm:$0xff]
      %v586 = vld [vmem:[%s572 + $0x68] sm:$0xff]
      %v587 = vld [vmem:[%s572 + $0x70] sm:$0xff]
      %v588 = vld [vmem:[%s572 + $0x78] sm:$0xff]
      %v591 = vunpack.c.l.s4 1983009808
      %v592 = vunpack.c.0.s8 %v591
      %v593 = vlaneseq
      %v594 = vshrl.u32 %v593, 7
      %v595 = vsub.s32 %v592, %v594
      %v596 = vrot.slane %v569, %v595
      %v598 = vshrl.u32 %v596, 16
      %v600 = vshll.u32 %v596, 16
      %v602 = vrot.slane %v600, 1
      %v603 = vor.u32 %v598, %v602
      %v621 = vunpack.c.l.b16 %v573
      %v622 = vunpack.c.h.b16 %v573
      %v623 = vunpack.c.l.b16 %v574
      %v624 = vunpack.c.h.b16 %v574
      %v625 = vunpack.c.l.b16 %v575
      %v626 = vunpack.c.h.b16 %v575
      %v627 = vunpack.c.l.b16 %v576
      %v628 = vunpack.c.h.b16 %v576
      %v629 = vunpack.c.l.b16 %v577
      %v630 = vunpack.c.h.b16 %v577
      %v631 = vunpack.c.l.b16 %v578
      %v632 = vunpack.c.h.b16 %v578
      %v633 = vunpack.c.l.b16 %v579
      %v634 = vunpack.c.h.b16 %v579
      %v635 = vunpack.c.l.b16 %v580
      %v636 = vunpack.c.h.b16 %v580
      %v637 = vunpack.c.l.b16 %v581
      %v638 = vunpack.c.h.b16 %v581
      %v639 = vunpack.c.l.b16 %v582
      %v640 = vunpack.c.h.b16 %v582
      %v641 = vunpack.c.l.b16 %v583
      %v642 = vunpack.c.h.b16 %v583
      %v643 = vunpack.c.l.b16 %v584
      %v644 = vunpack.c.h.b16 %v584
      %v645 = vunpack.c.l.b16 %v585
      %v646 = vunpack.c.h.b16 %v585
      %v647 = vunpack.c.l.b16 %v586
      %v648 = vunpack.c.h.b16 %v586
      %v649 = vunpack.c.l.b16 %v587
      %v650 = vunpack.c.h.b16 %v587
      %v651 = vunpack.c.l.b16 %v588
      %v652 = vunpack.c.h.b16 %v588
      %v653 = vpack.c.b16 %v623, %v621
      %v654 = vpack.c.b16 %v624, %v622
      %v655 = vpack.c.b16 %v627, %v625
      %v656 = vpack.c.b16 %v628, %v626
      %v657 = vpack.c.b16 %v631, %v629
      %v658 = vpack.c.b16 %v632, %v630
      %v659 = vpack.c.b16 %v635, %v633
      %v660 = vpack.c.b16 %v636, %v634
      %v661 = vpack.c.b16 %v639, %v637
      %v662 = vpack.c.b16 %v640, %v638
      %v663 = vpack.c.b16 %v643, %v641
      %v664 = vpack.c.b16 %v644, %v642
      %v665 = vpack.c.b16 %v647, %v645
      %v666 = vpack.c.b16 %v648, %v646
      %v667 = vpack.c.b16 %v651, %v649
      %v668 = vpack.c.b16 %v652, %v650
      %685 = vmatprep.subr.bf16.mxu0 %v668
      %686 = vmatpush1.bf16.msra.mxu0 %v667
      %687 = vmatprep.subr.bf16.mxu0 %v666
      %688 = vmatpush1.bf16.msra.mxu0 %v665
      %689 = vmatprep.subr.bf16.mxu0 %v664
      %690 = vmatpush1.bf16.msra.mxu0 %v663
      %691 = vmatprep.subr.bf16.mxu0 %v662
      %692 = vmatpush1.bf16.msra.mxu0 %v661
      %693 = vmatprep.subr.bf16.mxu0 %v660
      %694 = vmatpush1.bf16.msra.mxu0 %v659
      %695 = vmatprep.subr.bf16.mxu0 %v658
      %696 = vmatpush1.bf16.msra.mxu0 %v657
      %697 = vmatprep.subr.bf16.mxu0 %v656
      %698 = vmatpush1.bf16.msra.mxu0 %v655
      %699 = vmatprep.subr.bf16.mxu0 %v654
      %700 = vmatpush1.bf16.msra.mxu0 %v653
      %701 = vmatprep.subr.bf16.mxu0 0
      %702 = vmatpush2.bf16.msra.mxu0 0
      %703 = vmatprep.subr.bf16.mxu0 0
      %704 = vmatpush2.bf16.msra.mxu0 0
      %705 = vmatprep.subr.bf16.mxu0 0
      %706 = vmatpush2.bf16.msra.mxu0 0
      %707 = vmatprep.subr.bf16.mxu0 0
      %708 = vmatpush2.bf16.msra.mxu0 0
      %709 = vmatprep.subr.bf16.mxu0 0
      %710 = vmatpush2.bf16.msra.mxu0 0
      %711 = vmatprep.subr.bf16.mxu0 0
      %712 = vmatpush2.bf16.msra.mxu0 0
      %713 = vmatprep.subr.bf16.mxu0 0
      %714 = vmatpush2.bf16.msra.mxu0 0
      %715 = vmatprep.subr.bf16.mxu0 0
      %716 = vmatpush2.bf16.msra.mxu0 0
      %717 = vmatprep.mubr.bf16.mxu0 0
      %718 = vmatmul.mubr.bf16.gmra.mxu0 %v603
      %v719 = vpop.f32.mrf.mxu0
      %v720 = vadd.f32 0.0, %v719
      %v721 = vpop.f32.mrf.mxu0
      %v722 = vadd.f32 0.0, %v721
      %v723 = vpop.f32.mrf.mxu0
      %v724 = vpop.f32.mrf.mxu0
      %725 = vdwg.mxu0
      %v726 = vadd.f32 %v563, %v720
      %v727 = vadd.f32 %v565, %v722
      %v728 = vld [vmem:[%s306] sm:$0x3]
      %s729 = sadd.s32 96, %s287
      %s730 = smul.addr %s729, 4
      %s731 = scalar_lea.vmem %s1, %s730
      %v732 = vld [vmem:[%s731] sm:$0xff]
      %v733 = vld [vmem:[%s731 + $0x8] sm:$0xff]
      %v734 = vld [vmem:[%s731 + $0x10] sm:$0xff]
      %v735 = vld [vmem:[%s731 + $0x18] sm:$0xff]
      %v736 = vld [vmem:[%s731 + $0x20] sm:$0xff]
      %v737 = vld [vmem:[%s731 + $0x28] sm:$0xff]
      %v738 = vld [vmem:[%s731 + $0x30] sm:$0xff]
      %v739 = vld [vmem:[%s731 + $0x38] sm:$0xff]
      %v740 = vld [vmem:[%s731 + $0x40] sm:$0xff]
      %v741 = vld [vmem:[%s731 + $0x48] sm:$0xff]
      %v742 = vld [vmem:[%s731 + $0x50] sm:$0xff]
      %v743 = vld [vmem:[%s731 + $0x58] sm:$0xff]
      %v744 = vld [vmem:[%s731 + $0x60] sm:$0xff]
      %v745 = vld [vmem:[%s731 + $0x68] sm:$0xff]
      %v746 = vld [vmem:[%s731 + $0x70] sm:$0xff]
      %v747 = vld [vmem:[%s731 + $0x78] sm:$0xff]
      %v750 = vunpack.c.l.s4 1983009808
      %v751 = vunpack.c.0.s8 %v750
      %v752 = vlaneseq
      %v753 = vshrl.u32 %v752, 7
      %v754 = vsub.s32 %v751, %v753
      %v755 = vrot.slane %v728, %v754
      %v757 = vshrl.u32 %v755, 16
      %v759 = vshll.u32 %v755, 16
      %v761 = vrot.slane %v759, 1
      %v762 = vor.u32 %v757, %v761
      %v780 = vunpack.c.l.b16 %v732
      %v781 = vunpack.c.h.b16 %v732
      %v782 = vunpack.c.l.b16 %v733
      %v783 = vunpack.c.h.b16 %v733
      %v784 = vunpack.c.l.b16 %v734
      %v785 = vunpack.c.h.b16 %v734
      %v786 = vunpack.c.l.b16 %v735
      %v787 = vunpack.c.h.b16 %v735
      %v788 = vunpack.c.l.b16 %v736
      %v789 = vunpack.c.h.b16 %v736
      %v790 = vunpack.c.l.b16 %v737
      %v791 = vunpack.c.h.b16 %v737
      %v792 = vunpack.c.l.b16 %v738
      %v793 = vunpack.c.h.b16 %v738
      %v794 = vunpack.c.l.b16 %v739
      %v795 = vunpack.c.h.b16 %v739
      %v796 = vunpack.c.l.b16 %v740
      %v797 = vunpack.c.h.b16 %v740
      %v798 = vunpack.c.l.b16 %v741
      %v799 = vunpack.c.h.b16 %v741
      %v800 = vunpack.c.l.b16 %v742
      %v801 = vunpack.c.h.b16 %v742
      %v802 = vunpack.c.l.b16 %v743
      %v803 = vunpack.c.h.b16 %v743
      %v804 = vunpack.c.l.b16 %v744
      %v805 = vunpack.c.h.b16 %v744
      %v806 = vunpack.c.l.b16 %v745
      %v807 = vunpack.c.h.b16 %v745
      %v808 = vunpack.c.l.b16 %v746
      %v809 = vunpack.c.h.b16 %v746
      %v810 = vunpack.c.l.b16 %v747
      %v811 = vunpack.c.h.b16 %v747
      %v812 = vpack.c.b16 %v782, %v780
      %v813 = vpack.c.b16 %v783, %v781
      %v814 = vpack.c.b16 %v786, %v784
      %v815 = vpack.c.b16 %v787, %v785
      %v816 = vpack.c.b16 %v790, %v788
      %v817 = vpack.c.b16 %v791, %v789
      %v818 = vpack.c.b16 %v794, %v792
      %v819 = vpack.c.b16 %v795, %v793
      %v820 = vpack.c.b16 %v798, %v796
      %v821 = vpack.c.b16 %v799, %v797
      %v822 = vpack.c.b16 %v802, %v800
      %v823 = vpack.c.b16 %v803, %v801
      %v824 = vpack.c.b16 %v806, %v804
      %v825 = vpack.c.b16 %v807, %v805
      %v826 = vpack.c.b16 %v810, %v808
      %v827 = vpack.c.b16 %v811, %v809
      %844 = vmatprep.subr.bf16.mxu0 %v827
      %845 = vmatpush1.bf16.msra.mxu0 %v826
      %846 = vmatprep.subr.bf16.mxu0 %v825
      %847 = vmatpush1.bf16.msra.mxu0 %v824
      %848 = vmatprep.subr.bf16.mxu0 %v823
      %849 = vmatpush1.bf16.msra.mxu0 %v822
      %850 = vmatprep.subr.bf16.mxu0 %v821
      %851 = vmatpush1.bf16.msra.mxu0 %v820
      %852 = vmatprep.subr.bf16.mxu0 %v819
      %853 = vmatpush1.bf16.msra.mxu0 %v818
      %854 = vmatprep.subr.bf16.mxu0 %v817
      %855 = vmatpush1.bf16.msra.mxu0 %v816
      %856 = vmatprep.subr.bf16.mxu0 %v815
      %857 = vmatpush1.bf16.msra.mxu0 %v814
      %858 = vmatprep.subr.bf16.mxu0 %v813
      %859 = vmatpush1.bf16.msra.mxu0 %v812
      %860 = vmatprep.subr.bf16.mxu0 0
      %861 = vmatpush2.bf16.msra.mxu0 0
      %862 = vmatprep.subr.bf16.mxu0 0
      %863 = vmatpush2.bf16.msra.mxu0 0
      %864 = vmatprep.subr.bf16.mxu0 0
      %865 = vmatpush2.bf16.msra.mxu0 0
      %866 = vmatprep.subr.bf16.mxu0 0
      %867 = vmatpush2.bf16.msra.mxu0 0
      %868 = vmatprep.subr.bf16.mxu0 0
      %869 = vmatpush2.bf16.msra.mxu0 0
      %870 = vmatprep.subr.bf16.mxu0 0
      %871 = vmatpush2.bf16.msra.mxu0 0
      %872 = vmatprep.subr.bf16.mxu0 0
      %873 = vmatpush2.bf16.msra.mxu0 0
      %874 = vmatprep.subr.bf16.mxu0 0
      %875 = vmatpush2.bf16.msra.mxu0 0
      %876 = vmatprep.mubr.bf16.mxu0 0
      %877 = vmatmul.mubr.bf16.gmra.mxu0 %v762
      %v878 = vpop.f32.mrf.mxu0
      %v879 = vadd.f32 0.0, %v878
      %v880 = vpop.f32.mrf.mxu0
      %v881 = vadd.f32 0.0, %v880
      %v882 = vpop.f32.mrf.mxu0
      %v883 = vpop.f32.mrf.mxu0
      %884 = vdwg.mxu0
      %v885 = vadd.f32 %v726, %v879
      %v886 = vadd.f32 %v727, %v881
      %v887 = vld [vmem:[%s270] sm:$0xf]
      %v890 = vcombine.low %v885, %v886
      %v892 = vunpack.c.l.s4 1983009808
      %v893 = vunpack.c.0.s8 %v892
      %v894 = vlaneseq
      %v895 = vshrl.u32 %v894, 7
      %v896 = vsub.s32 %v893, %v895
      %v897 = vrot.slane %v890, %v896
      %v899 = vadd.f32 %v887, %v897
      %900 = vst [vmem:[%s270] sm:$0xf] %v899
      %p901 = scmp.eq.s32.totalorder %s23, 3
      // Predicated region
      $region37: #{discriminator_forward.13} parent=31 // pred_check
        %p902 = pneg %p901
      $region38: #{discriminator_forward.13} parent=31 // pred_check_branch
        %904 = sbr.rel (%p902) target = $region40
      $region39: #{discriminator_forward.13} parent=31 // pred_region
        %v905 = vld [vmem:[%s270] sm:$0xf]
        %v906 = vld [vmem:[%s2] sm:$0x3]
        %v908 = vlaneseq
        %v909 = vshrl.u32 %v908, 7
        %v910 = vsub.s32 0, %v909
        %v911 = vrot.slane %v906, %v910
        %v912 = vlaneseq
        %v913 = vshrl.u32 %v912, 7
        %v914 = vsub.s32 1, %v913
        %v915 = vrot.slane %v906, %v914
        %v916 = vcombine.low %v911, %v915
        %v918 = vunpack.c.l.s4 1983009808
        %v919 = vunpack.c.0.s8 %v918
        %v920 = vlaneseq
        %v921 = vshrl.u32 %v920, 7
        %v922 = vsub.s32 %v919, %v921
        %v923 = vrot.slane %v916, %v922
        %v925 = vadd.f32 %v905, %v923
        %926 = vst [vmem:[%s270] sm:$0xf] %v925
        %v929 = vunpack.c.l.s4 1983009808
        %v930 = vunpack.c.0.s8 %v929
        %v931 = vlaneseq
        %v932 = vshrl.u32 %v931, 7
        %v933 = vsub.s32 %v930, %v932
        %v934 = vrot.slane %v925, %v933
        %v935 = vcombine.high %v934, %v934
        %vm938 = vcmask 1041408
        %v939 = vsel %vm938, %v934, 0.0
        %v940 = vrot.slane %v939, 4
        %v941 = vadd.f32 %v939, %v940
        %v942 = vrot.slane %v941, 2
        %v943 = vadd.f32 %v941, %v942
        %v944 = vrot.slane %v943, 1
        %v945 = vadd.f32 %v943, %v944
        %v946 = vsel %vm938, %v935, 0.0
        %v947 = vrot.slane %v946, 4
        %v948 = vadd.f32 %v946, %v947
        %v949 = vrot.slane %v948, 2
        %v950 = vadd.f32 %v948, %v949
        %v951 = vrot.slane %v950, 1
        %v952 = vadd.f32 %v950, %v951
        %v955 = vcombine.low %v945, %v952
        %v957 = vunpack.c.l.s4 1966171168
        %v958 = vunpack.c.0.s8 %v957
        %v959 = vlaneseq
        %v960 = vshrl.u32 %v959, 7
        %v961 = vsub.s32 %v958, %v960
        %v962 = vrot.slane %v955, %v961
        %v964 = vunpack.c.l.s4 1966171168
        %v965 = vunpack.c.0.s8 %v964
        %v966 = vlaneseq
        %v967 = vshrl.u32 %v966, 7
        %v968 = vsub.s32 %v965, %v967
        %v969 = vrot.slane %v962, %v968
        %v971 = vlaneseq
        %vm972 = vcmp.ge.s32.totalorder %v971, 0
        %vm973 = vcmp.lt.s32.totalorder %v971, 256
        %vm974 = vmand %vm972, %vm973
        %975 = vst.msk [vmem:[%s279] ss:$2 sm:$0x3] %vm974, %v969
        %v976 = vmul.f32 %v925, %v925
        %v979 = vunpack.c.l.s4 1983009808
        %v980 = vunpack.c.0.s8 %v979
        %v981 = vlaneseq
        %v982 = vshrl.u32 %v981, 7
        %v983 = vsub.s32 %v980, %v982
        %v984 = vrot.slane %v976, %v983
        %v985 = vcombine.high %v984, %v984
        %v988 = vsel %vm938, %v984, 0.0
        %v989 = vrot.slane %v988, 4
        %v990 = vadd.f32 %v988, %v989
        %v991 = vrot.slane %v990, 2
        %v992 = vadd.f32 %v990, %v991
        %v993 = vrot.slane %v992, 1
        %v994 = vadd.f32 %v992, %v993
        %v995 = vsel %vm938, %v985, 0.0
        %v996 = vrot.slane %v995, 4
        %v997 = vadd.f32 %v995, %v996
        %v998 = vrot.slane %v997, 2
        %v999 = vadd.f32 %v997, %v998
        %v1000 = vrot.slane %v999, 1
        %v1001 = vadd.f32 %v999, %v1000
        %v1004 = vcombine.low %v994, %v1001
        %v1006 = vunpack.c.l.s4 1966171168
        %v1007 = vunpack.c.0.s8 %v1006
        %v1008 = vlaneseq
        %v1009 = vshrl.u32 %v1008, 7
        %v1010 = vsub.s32 %v1007, %v1009
        %v1011 = vrot.slane %v1004, %v1010
        %v1013 = vunpack.c.l.s4 1966171168
        %v1014 = vunpack.c.0.s8 %v1013
        %v1015 = vlaneseq
        %v1016 = vshrl.u32 %v1015, 7
        %v1017 = vsub.s32 %v1014, %v1016
        %v1018 = vrot.slane %v1011, %v1017
        %s1020 = scalar_lea.vmem %s279, 1
        %1021 = vst.msk [vmem:[%s1020] ss:$2 sm:$0x3] %vm974, %v1018
      $region40: #{discriminator_forward.13} parent=31 // pred_fallthru
        _
      %p1022 = scmp.lt.s32.totalorder %s21, 1
      %s1023 = scalar_select %p1022, %s21, 1
      %p1024 = scmp.lt.s32.totalorder %s22, 1
      %s1025 = scalar_select %p1024, %s22, 1
      %s1026 = smul.addr %s1025, 2
      %s1027 = smul.addr %s1023, 4
      %s1028 = sadd.s32 %s1026, %s1027
      %s1029 = smul.addr %s1028, 2
      %s1030 = scalar_lea.vmem %s3, %s1029
      %p1031 = scmp.lt.s32.totalorder %s21, 1
      %s1032 = scalar_select %p1031, %s21, 1
      %p1033 = scmp.lt.s32.totalorder %s22, 1
      %s1034 = scalar_select %p1033, %s22, 1
      %s1035 = smul.addr %s1034, 2
      %s1036 = smul.addr %s1032, 4
      %s1037 = sadd.s32 %s1035, %s1036
      %s1038 = smul.addr %s1037, 2
      %s1039 = scalar_lea.vmem %s4, %s1038
      // Predicated region
      $region41: #{discriminator_forward.13} parent=31 // pred_check
        %p1040 = pneg %p129
      $region42: #{discriminator_forward.13} parent=31 // pred_check_branch
        %1042 = sbr.rel (%p1040) target = $region44
      $region43: #{discriminator_forward.13} parent=31 // pred_region
        _
      $region44: #{discriminator_forward.13} parent=31 // pred_fallthru
        _
      // Predicated region
      $region45: #{discriminator_forward.13} parent=31 // pred_check
        %p1043 = pneg %p157
      $region46: #{discriminator_forward.13} parent=31 // pred_check_branch
        %1045 = sbr.rel (%p1043) target = $region48
      $region47: #{discriminator_forward.13} parent=31 // pred_region
        _
      $region48: #{discriminator_forward.13} parent=31 // pred_fallthru
        _
    $region32: #{discriminator_forward.13} parent=5 // pred_fallthru
      _
    %p1046 = scmp.le.s32.totalorder 2, %s11
    // Predicated region
    $region49: #{discriminator_forward.13} parent=5 // pred_check
      %p1047 = pneg %p1046
    $region50: #{discriminator_forward.13} parent=5 // pred_check_branch
      %1049 = sbr.rel (%p1047) target = $region52
    $region51: #{discriminator_forward.13} parent=5 // pred_region
      %s1050 = ssub.s32 %s11, 2
      // Predicated region
      $region53: #{discriminator_forward.13} parent=51 // pred_check
        %p1051 = pneg %p135
      $region54: #{discriminator_forward.13} parent=51 // pred_check_branch
        %1053 = sbr.rel (%p1051) target = $region56
      $region55: #{discriminator_forward.13} parent=51 // pred_region
        %p1054 = scmp.lt.s32.totalorder %s24, 1
        %s1055 = scalar_select %p1054, %s24, 1
        %p1056 = scmp.lt.s32.totalorder %s25, 1
        %s1057 = scalar_select %p1056, %s25, 1
        %s1058 = smul.addr %s1057, 2
        %s1059 = smul.addr %s1055, 4
        %s1060 = sadd.s32 %s1058, %s1059
        %s1061 = smul.addr %s1060, 2
        %s1062 = scalar_lea.vmem %s3, %s1061
      $region56: #{discriminator_forward.13} parent=51 // pred_fallthru
        _
      // Predicated region
      $region57: #{discriminator_forward.13} parent=51 // pred_check
        %p1063 = pneg %p163
      $region58: #{discriminator_forward.13} parent=51 // pred_check_branch
        %1065 = sbr.rel (%p1063) target = $region60
      $region59: #{discriminator_forward.13} parent=51 // pred_region
        %p1066 = scmp.lt.s32.totalorder %s24, 1
        %s1067 = scalar_select %p1066, %s24, 1
        %p1068 = scmp.lt.s32.totalorder %s25, 1
        %s1069 = scalar_select %p1068, %s25, 1
        %s1070 = smul.addr %s1069, 2
        %s1071 = smul.addr %s1067, 4
        %s1072 = sadd.s32 %s1070, %s1071
        %s1073 = smul.addr %s1072, 2
        %s1074 = scalar_lea.vmem %s4, %s1073
      $region60: #{discriminator_forward.13} parent=51 // pred_fallthru
        _
    $region52: #{discriminator_forward.13} parent=5 // pred_fallthru
      _
  $region6: #{discriminator_forward.13} parent=0 // loop_footer
    %s15 = sadd.s32 1, %s11
  $region7: #{discriminator_forward.13} parent=0 // loop_footer_branch
    %10 = sbr.rel target = $region3
  $region8: #{discriminator_forward.13} parent=0 // loop_exit
    _

// kernel: discriminator_forward.16
$region0: #{discriminator_forward.16}
  #allocation0 [shape = 'u32[]', space=smem, size = 0x4, offset = 0x4, fixed_abs, tag = 'smem constant byte address 0x4 - core index']
  #allocation1 [shape = 'u32[144,128]{1,0:T(1,128)}', space=vmem, size = 0x12000, scoped, tag = 'internal scratch']
  %s0 = inlined_call_operand.vmem [shape: f32[8,512], index: 0, kind: input, shape index: {}]
  %s1 = inlined_call_operand.vmem [shape: f32[1,512], index: 1, kind: input, shape index: {}]
  %s2 = inlined_call_operand.vmem [shape: f32[1,512], index: 2, kind: input, shape index: {}]
  %s3 = inlined_call_operand.vmem [shape: f32[8,512], index: 3, kind: output, shape index: {}]
  %s4 = sld [smem:[#allocation0]]
  $region22: #{discriminator_forward.16} parent=0
    _
  %s6 = ssub.s32 1, %s4
  %s7 = scalar_select 0, %s6, %s4
  // Predicated region
  $region2: #{discriminator_forward.16} parent=0 // pred_check
    _
  $region3: #{discriminator_forward.16} parent=0 // pred_check_branch
    %9 = sbr.rel (0) target = $region5
  $region4: #{discriminator_forward.16} parent=0 // pred_region
    _
  $region5: #{discriminator_forward.16} parent=0 // pred_fallthru
    _
  // Predicated region
  $region6: #{discriminator_forward.16} parent=0 // pred_check
    _
  $region7: #{discriminator_forward.16} parent=0 // pred_check_branch
    %11 = sbr.rel (0) target = $region9
  $region8: #{discriminator_forward.16} parent=0 // pred_region
    _
  $region9: #{discriminator_forward.16} parent=0 // pred_fallthru
    _
  // Predicated region
  $region10: #{discriminator_forward.16} parent=0 // pred_check
    _
  $region11: #{discriminator_forward.16} parent=0 // pred_check_branch
    %13 = sbr.rel (0) target = $region13
  $region12: #{discriminator_forward.16} parent=0 // pred_region
    _
  $region13: #{discriminator_forward.16} parent=0 // pred_fallthru
    _
  %v14 = vld [vmem:[%s0] sm:$0xff]
  %v15 = vld [vmem:[%s0 + $0x8] sm:$0xff]
  %v16 = vld [vmem:[%s0 + $0x10] sm:$0xff]
  %v17 = vld [vmem:[%s0 + $0x18] sm:$0xff]
  %v18 = vld [vmem:[%s1] sm:$0xf]
  %v20 = vlaneseq
  %v21 = vshrl.u32 %v20, 7
  %v22 = vsub.s32 0, %v21
  %v23 = vrot.slane %v18, %v22
  %v24 = vlaneseq
  %v25 = vshrl.u32 %v24, 7
  %v26 = vsub.s32 1, %v25
  %v27 = vrot.slane %v18, %v26
  %v28 = vlaneseq
  %v29 = vshrl.u32 %v28, 7
  %v30 = vsub.s32 2, %v29
  %v31 = vrot.slane %v18, %v30
  %v32 = vlaneseq
  %v33 = vshrl.u32 %v32, 7
  %v34 = vsub.s32 3, %v33
  %v35 = vrot.slane %v18, %v34
  %v40 = vmul.f32 %v14, %v23
  %v41 = vmul.f32 %v15, %v27
  %v42 = vmul.f32 %v16, %v31
  %v43 = vmul.f32 %v17, %v35
  %v44 = vld [vmem:[%s2] sm:$0xf]
  %v46 = vlaneseq
  %v47 = vshrl.u32 %v46, 7
  %v48 = vsub.s32 0, %v47
  %v49 = vrot.slane %v44, %v48
  %v50 = vlaneseq
  %v51 = vshrl.u32 %v50, 7
  %v52 = vsub.s32 1, %v51
  %v53 = vrot.slane %v44, %v52
  %v54 = vlaneseq
  %v55 = vshrl.u32 %v54, 7
  %v56 = vsub.s32 2, %v55
  %v57 = vrot.slane %v44, %v56
  %v58 = vlaneseq
  %v59 = vshrl.u32 %v58, 7
  %v60 = vsub.s32 3, %v59
  %v61 = vrot.slane %v44, %v60
  %v66 = vadd.f32 %v40, %v49
  %v67 = vadd.f32 %v41, %v53
  %v68 = vadd.f32 %v42, %v57
  %v69 = vadd.f32 %v43, %v61
  %vm70 = vcmp.ge.f32.partialorder %v66, 0.0
  %vm71 = vcmp.ge.f32.partialorder %v67, 0.0
  %vm72 = vcmp.ge.f32.partialorder %v68, 0.0
  %vm73 = vcmp.ge.f32.partialorder %v69, 0.0
  %v74 = vmul.f32 %v66, 0.2
  %v75 = vmul.f32 %v67, 0.2
  %v76 = vmul.f32 %v68, 0.2
  %v77 = vmul.f32 %v69, 0.2
  %v78 = vsel %vm70, %v66, %v74
  %v79 = vsel %vm71, %v67, %v75
  %v80 = vsel %vm72, %v68, %v76
  %v81 = vsel %vm73, %v69, %v77
  %82 = vst [vmem:[%s3] sm:$0xff] %v78
  %83 = vst [vmem:[%s3 + $0x8] sm:$0xff] %v79
  %84 = vst [vmem:[%s3 + $0x10] sm:$0xff] %v80
  %85 = vst [vmem:[%s3 + $0x18] sm:$0xff] %v81
  // Predicated region
  $region14: #{discriminator_forward.16} parent=0 // pred_check
    _
  $region15: #{discriminator_forward.16} parent=0 // pred_check_branch
    %87 = sbr.rel (0) target = $region17
  $region16: #{discriminator_forward.16} parent=0 // pred_region
    _
  $region17: #{discriminator_forward.16} parent=0 // pred_fallthru
    _
  // Predicated region
  $region18: #{discriminator_forward.16} parent=0 // pred_check
    _
  $region19: #{discriminator_forward.16} parent=0 // pred_check_branch
    %89 = sbr.rel (0) target = $region21
  $region20: #{discriminator_forward.16} parent=0 // pred_region
    _
  $region21: #{discriminator_forward.16} parent=0 // pred_fallthru
    _

// kernel: discriminator_forward.15
$region0: #{discriminator_forward.15}
  #allocation0 [shape = 'u32[]', space=smem, size = 0x4, offset = 0x4, fixed_abs, tag = 'smem constant byte address 0x4 - core index']
  #allocation1 [shape = 'u32[144,128]{1,0:T(1,128)}', space=vmem, size = 0x12000, scoped, tag = 'internal scratch']
  %s0 = inlined_call_operand.vmem [shape: bf16[2,4,4,256], index: 0, kind: input, shape index: {}]
  %s1 = inlined_call_operand.vmem [shape: bf16[3,3,256,512], index: 1, kind: input, shape index: {}]
  %s2 = inlined_call_operand.vmem [shape: f32[1,512], index: 2, kind: input, shape index: {}]
  %s3 = inlined_call_operand.vmem [shape: f32[2,2,2,512], index: 3, kind: output, shape index: {0}]
  %s4 = inlined_call_operand.vmem [shape: f32[2,2,2,512], index: 4, kind: output, shape index: {1}]
  %5 = xla_tuple %s3, %s4
  %s6 = sld [smem:[#allocation0]]
  $region61: #{discriminator_forward.15} parent=0
    _
  %s8 = ssub.s32 1, %s6
  %s9 = scalar_select 0, %s8, %s6
  loop: start=0, step=1, limit=14
  $region2: #{discriminator_forward.15} parent=0 // loop_pre_header
    _
  $region3: #{discriminator_forward.15} parent=0 // loop_header
    %s11 = sphi 0, %s15
    %p12 = scmp.ge.s32.totalorder %s11, 14
    %s18 = sphi 0, %s37
    %s19 = sphi 0, %s33
    %s20 = sphi 0, %s29
    %s21 = sphi 0, %s18
    %s22 = sphi 0, %s19
    %s23 = sphi 0, %s20
    %s24 = sphi 0, %s21
    %s25 = sphi 0, %s22
    %s26 = sphi 0, %s23
    %s44 = sphi 0, %s46
    %s47 = sphi 0, %s44
    %s48 = sphi 0, %s47
    %s64 = sphi 0, %s48
    %s68 = sphi 0, %s68
    %s70 = sphi 0, %s68
    %s71 = sphi 0, %s70
    %s85 = sphi 0, %s71
    %s89 = sphi 0, %s89
    %s91 = sphi 0, %s89
    %s92 = sphi 0, %s91
    %s106 = sphi 0, %s92
    %s114 = sphi 0, %s116
    %s117 = sphi 0, %s114
    %s118 = sphi 0, %s117
    %s134 = sphi 0, %s118
    %s142 = sphi 0, %s144
    %s145 = sphi 0, %s142
    %s146 = sphi 0, %s145
    %s162 = sphi 0, %s146
  $region4: #{discriminator_forward.15} parent=0 // loop_header_branch
    %14 = sbr.rel (%p12) target = $region8
  $region5: #{discriminator_forward.15} parent=0 // loop_body
    %s16 = ssub.s32 %s11, 1
    %s17 = ssub.s32 %s11, 2
    %s27 = sadd.s32 1, %s20
    %p28 = scmp.ge.s32.totalorder %s27, 3
    %s29 = scalar_select %p28, 0, %s27
    %s30 = sadd.s32 1, %s19
    %s31 = scalar_select %p28, %s30, %s19
    %p32 = scmp.ge.s32.totalorder %s31, 2
    %s33 = scalar_select %p32, 0, %s31
    %s34 = sadd.s32 1, %s18
    %s35 = scalar_select %p32, %s34, %s18
    %p36 = scmp.ge.s32.totalorder %s35, 2
    %s37 = scalar_select %p36, 0, %s35
    %s38 = sadd.s32 %s19, %s20
    %s39 = sadd.s32 %s33, %s29
    %s40 = ssub.s32 %s18, %s37
    %s41 = ssub.s32 %s38, %s39
    %s42 = sor.u32 %s40, %s41
    %p43 = scmp.eq.s32.totalorder %s42, 0
    %s45 = sadd.s32 %s44, 1
    %s46 = scalar_select %p43, %s44, %s45
    %p49 = pneg %p43
    %p50 = scmp.eq.s32.totalorder %s11, 11
    %p51 = por %p49, %p50
    %p52 = scmp.ne.s32.totalorder %s44, %s47
    %p53 = scmp.eq.s32.totalorder %s11, 0
    %p54 = por %p52, %p53
    %p55 = scmp.ne.s32.totalorder %s44, %s47
    %p56 = scmp.eq.s32.totalorder %s16, 11
    %p57 = por %p55, %p56
    %p58 = scmp.ne.s32.totalorder %s47, %s48
    %p59 = scmp.eq.s32.totalorder %s16, 0
    %p60 = por %p58, %p59
    %p61 = scmp.ne.s32.totalorder %s47, %s48
    %p62 = scmp.eq.s32.totalorder %s17, 11
    %p63 = por %p61, %p62
    %p65 = scmp.ne.s32.totalorder %s48, %s64
    %p66 = scmp.eq.s32.totalorder %s17, 0
    %p67 = por %p65, %p66
    %s69 = sadd.s32 %s68, 1
    %p72 = scmp.eq.s32.totalorder %s11, 11
    %p73 = scmp.ne.s32.totalorder %s68, %s70
    %p74 = scmp.eq.s32.totalorder %s11, 0
    %p75 = por %p73, %p74
    %p76 = scmp.ne.s32.totalorder %s68, %s70
    %p77 = scmp.eq.s32.totalorder %s16, 11
    %p78 = por %p76, %p77
    %p79 = scmp.ne.s32.totalorder %s70, %s71
    %p80 = scmp.eq.s32.totalorder %s16, 0
    %p81 = por %p79, %p80
    %p82 = scmp.ne.s32.totalorder %s70, %s71
    %p83 = scmp.eq.s32.totalorder %s17, 11
    %p84 = por %p82, %p83
    %p86 = scmp.ne.s32.totalorder %s71, %s85
    %p87 = scmp.eq.s32.totalorder %s17, 0
    %p88 = por %p86, %p87
    %s90 = sadd.s32 %s89, 1
    %p93 = scmp.eq.s32.totalorder %s11, 11
    %p94 = scmp.ne.s32.totalorder %s89, %s91
    %p95 = scmp.eq.s32.totalorder %s11, 0
    %p96 = por %p94, %p95
    %p97 = scmp.ne.s32.totalorder %s89, %s91
    %p98 = scmp.eq.s32.totalorder %s16, 11
    %p99 = por %p97, %p98
    %p100 = scmp.ne.s32.totalorder %s91, %s92
    %p101 = scmp.eq.s32.totalorder %s16, 0
    %p102 = por %p100, %p101
    %p103 = scmp.ne.s32.totalorder %s91, %s92
    %p104 = scmp.eq.s32.totalorder %s17, 11
    %p105 = por %p103, %p104
    %p107 = scmp.ne.s32.totalorder %s92, %s106
    %p108 = scmp.eq.s32.totalorder %s17, 0
    %p109 = por %p107, %p108
    %s110 = ssub.s32 %s18, %s37
    %s111 = ssub.s32 %s19, %s33
    %s112 = sor.u32 %s110, %s111
    %p113 = scmp.eq.s32.totalorder %s112, 0
    %s115 = sadd.s32 %s114, 1
    %s116 = scalar_select %p113, %s114, %s115
    %p119 = pneg %p113
    %p120 = scmp.eq.s32.totalorder %s11, 11
    %p121 = por %p119, %p120
    %p122 = scmp.ne.s32.totalorder %s114, %s117
    %p123 = scmp.eq.s32.totalorder %s11, 0
    %p124 = por %p122, %p123
    %p125 = scmp.ne.s32.totalorder %s114, %s117
    %p126 = scmp.eq.s32.totalorder %s16, 11
    %p127 = por %p125, %p126
    %p128 = scmp.ne.s32.totalorder %s117, %s118
    %p129 = scmp.eq.s32.totalorder %s16, 0
    %p130 = por %p128, %p129
    %p131 = scmp.ne.s32.totalorder %s117, %s118
    %p132 = scmp.eq.s32.totalorder %s17, 11
    %p133 = por %p131, %p132
    %p135 = scmp.ne.s32.totalorder %s118, %s134
    %p136 = scmp.eq.s32.totalorder %s17, 0
    %p137 = por %p135, %p136
    %s138 = ssub.s32 %s18, %s37
    %s139 = ssub.s32 %s19, %s33
    %s140 = sor.u32 %s138, %s139
    %p141 = scmp.eq.s32.totalorder %s140, 0
    %s143 = sadd.s32 %s142, 1
    %s144 = scalar_select %p141, %s142, %s143
    %p147 = pneg %p141
    %p148 = scmp.eq.s32.totalorder %s11, 11
    %p149 = por %p147, %p148
    %p150 = scmp.ne.s32.totalorder %s142, %s145
    %p151 = scmp.eq.s32.totalorder %s11, 0
    %p152 = por %p150, %p151
    %p153 = scmp.ne.s32.totalorder %s142, %s145
    %p154 = scmp.eq.s32.totalorder %s16, 11
    %p155 = por %p153, %p154
    %p156 = scmp.ne.s32.totalorder %s145, %s146
    %p157 = scmp.eq.s32.totalorder %s16, 0
    %p158 = por %p156, %p157
    %p159 = scmp.ne.s32.totalorder %s145, %s146
    %p160 = scmp.eq.s32.totalorder %s17, 11
    %p161 = por %p159, %p160
    %p163 = scmp.ne.s32.totalorder %s146, %s162
    %p164 = scmp.eq.s32.totalorder %s17, 0
    %p165 = por %p163, %p164
    %p166 = scmp.le.s32.totalorder 1, %s11
    %p167 = scmp.lt.s32.totalorder %s11, 13
    %p168 = pnand %p166, %p167
    %p169 = pneg %p168
    // Predicated region
    $region9: #{discriminator_forward.15} parent=5 // pred_check
      _
    $region10: #{discriminator_forward.15} parent=5 // pred_check_branch
      %171 = sbr.rel (%p168) target = $region12
    $region11: #{discriminator_forward.15} parent=5 // pred_region
      %s172 = ssub.s32 %s11, 1
      // Predicated region
      $region13: #{discriminator_forward.15} parent=11 // pred_check
        %p173 = pneg %p81
      $region14: #{discriminator_forward.15} parent=11 // pred_check_branch
        %175 = sbr.rel (%p173) target = $region16
      $region15: #{discriminator_forward.15} parent=11 // pred_region
        _
      $region16: #{discriminator_forward.15} parent=11 // pred_fallthru
        _
      // Predicated region
      $region17: #{discriminator_forward.15} parent=11 // pred_check
        %p176 = pneg %p102
      $region18: #{discriminator_forward.15} parent=11 // pred_check_branch
        %178 = sbr.rel (%p176) target = $region20
      $region19: #{discriminator_forward.15} parent=11 // pred_region
        _
      $region20: #{discriminator_forward.15} parent=11 // pred_fallthru
        _
    $region12: #{discriminator_forward.15} parent=5 // pred_fallthru
      _
    %p179 = scmp.lt.s32.totalorder %s11, 12
    // Predicated region
    $region21: #{discriminator_forward.15} parent=5 // pred_check
      %p180 = pneg %p179
    $region22: #{discriminator_forward.15} parent=5 // pred_check_branch
      %182 = sbr.rel (%p180) target = $region24
    $region23: #{discriminator_forward.15} parent=5 // pred_region
      // Predicated region
      $region25: #{discriminator_forward.15} parent=23 // pred_check
        %p183 = pneg %p54
      $region26: #{discriminator_forward.15} parent=23 // pred_check_branch
        %185 = sbr.rel (%p183) target = $region28
      $region27: #{discriminator_forward.15} parent=23 // pred_region
        %s186 = sadd.s32 %s19, %s20
        %p187 = scmp.lt.s32.totalorder %s18, 1
        %s188 = scalar_select %p187, %s18, 1
        %p189 = scmp.lt.s32.totalorder %s186, 3
        %s190 = scalar_select %p189, %s186, 3
        %s191 = smul.addr %s190, 2
        %s192 = smul.addr %s188, 8
        %s193 = sadd.s32 %s191, %s192
        %s194 = smul.addr %s193, 2
        %s195 = scalar_lea.vmem %s0, %s194
        %s196 = sadd.s32 %s19, %s20
      $region28: #{discriminator_forward.15} parent=23 // pred_fallthru
        _
    $region24: #{discriminator_forward.15} parent=5 // pred_fallthru
      _
    %p197 = scmp.le.s32.totalorder 1, %s11
    %p198 = scmp.lt.s32.totalorder %s11, 13
    %p199 = pnand %p197, %p198
    %p200 = pneg %p199
    // Predicated region
    $region29: #{discriminator_forward.15} parent=5 // pred_check
      _
    $region30: #{discriminator_forward.15} parent=5 // pred_check_branch
      %202 = sbr.rel (%p199) target = $region32
    $region31: #{discriminator_forward.15} parent=5 // pred_region
      %s203 = ssub.s32 %s11, 1
      %s204 = sadd.s32 %s22, %s23
      %p205 = scmp.lt.s32.totalorder %s21, 1
      %s206 = scalar_select %p205, %s21, 1
      %p207 = scmp.lt.s32.totalorder %s204, 3
      %s208 = scalar_select %p207, %s204, 3
      %s209 = smul.addr %s208, 2
      %s210 = smul.addr %s206, 8
      %s211 = sadd.s32 %s209, %s210
      %s212 = smul.addr %s211, 2
      %s213 = scalar_lea.vmem %s0, %s212
      %p214 = pneg %p60
      %p215 = pneg %p57
      %p216 = pneg %p81
      %p217 = pneg %p78
      %p218 = pneg %p102
      %p219 = pneg %p99
      %p220 = pneg %p130
      %p221 = pneg %p127
      %p222 = scmp.lt.s32.totalorder %s21, 1
      %s223 = scalar_select %p222, %s21, 1
      %p224 = scmp.lt.s32.totalorder %s22, 1
      %s225 = scalar_select %p224, %s22, 1
      %s226 = smul.addr %s225, 4
      %s227 = smul.addr %s223, 8
      %s228 = sadd.s32 %s226, %s227
      %s229 = smul.addr %s228, 2
      %s230 = scalar_lea.vmem %s3, %s229
      %p231 = pneg %p158
      %p232 = pneg %p155
      %p233 = scmp.lt.s32.totalorder %s21, 1
      %s234 = scalar_select %p233, %s21, 1
      %p235 = scmp.lt.s32.totalorder %s22, 1
      %s236 = scalar_select %p235, %s22, 1
      %s237 = smul.addr %s236, 4
      %s238 = smul.addr %s234, 8
      %s239 = sadd.s32 %s237, %s238
      %s240 = smul.addr %s239, 2
      %s241 = scalar_lea.vmem %s4, %s240
      %s242 = sadd.s32 %s22, %s23
      %p243 = scmp.lt.s32.totalorder %s21, 1
      %s244 = scalar_select %p243, %s21, 1
      %p245 = scmp.lt.s32.totalorder %s242, 3
      %s246 = scalar_select %p245, %s242, 3
      %s247 = smul.addr %s246, 2
      %s248 = smul.addr %s244, 8
      %s249 = sadd.s32 %s247, %s248
      %s250 = smul.addr %s249, 2
      %s251 = scalar_lea.vmem %s0, %s250
      %s252 = sadd.s32 %s22, %s23
      %p253 = scmp.lt.s32.totalorder %s21, 1
      %s254 = scalar_select %p253, %s21, 1
      %p255 = scmp.lt.s32.totalorder %s22, 1
      %s256 = scalar_select %p255, %s22, 1
      %s257 = smul.addr %s256, 4
      %s258 = smul.addr %s254, 8
      %s259 = sadd.s32 %s257, %s258
      %s260 = smul.addr %s259, 2
      %s261 = scalar_lea.vmem %s3, %s260
      %p262 = scmp.lt.s32.totalorder %s21, 1
      %s263 = scalar_select %p262, %s21, 1
      %p264 = scmp.lt.s32.totalorder %s22, 1
      %s265 = scalar_select %p264, %s22, 1
      %s266 = smul.addr %s265, 4
      %s267 = smul.addr %s263, 8
      %s268 = sadd.s32 %s266, %s267
      %s269 = smul.addr %s268, 2
      %s270 = scalar_lea.vmem %s4, %s269
      %p271 = scmp.eq.s32.totalorder %s23, 0
      // Predicated region
      $region33: #{discriminator_forward.15} parent=31 // pred_check
        %p272 = pneg %p271
      $region34: #{discriminator_forward.15} parent=31 // pred_check_branch
        %274 = sbr.rel (%p272) target = $region36
      $region35: #{discriminator_forward.15} parent=31 // pred_region
        %275 = vst [vmem:[%s261] sm:$0xff] 0.0
      $region36: #{discriminator_forward.15} parent=31 // pred_fallthru
        _
      %v276 = vld [vmem:[%s251] sm:$0x5]
      %s277 = smul.u32 %s23, 384
      %s278 = smul.addr %s277, 4
      %s279 = scalar_lea.vmem %s1, %s278
      %v280 = vld [vmem:[%s279] sm:$0xff]
      %v281 = vld [vmem:[%s279 + $0x8] sm:$0xff]
      %v282 = vld [vmem:[%s279 + $0x10] sm:$0xff]
      %v283 = vld [vmem:[%s279 + $0x18] sm:$0xff]
      %v284 = vld [vmem:[%s279 + $0x20] sm:$0xff]
      %v285 = vld [vmem:[%s279 + $0x28] sm:$0xff]
      %v286 = vld [vmem:[%s279 + $0x30] sm:$0xff]
      %v287 = vld [vmem:[%s279 + $0x38] sm:$0xff]
      %v288 = vld [vmem:[%s279 + $0x40] sm:$0xff]
      %v289 = vld [vmem:[%s279 + $0x48] sm:$0xff]
      %v290 = vld [vmem:[%s279 + $0x50] sm:$0xff]
      %v291 = vld [vmem:[%s279 + $0x58] sm:$0xff]
      %v292 = vld [vmem:[%s279 + $0x60] sm:$0xff]
      %v293 = vld [vmem:[%s279 + $0x68] sm:$0xff]
      %v294 = vld [vmem:[%s279 + $0x70] sm:$0xff]
      %v295 = vld [vmem:[%s279 + $0x78] sm:$0xff]
      %v296 = vld [vmem:[%s279 + $0x80] sm:$0xff]
      %v297 = vld [vmem:[%s279 + $0x88] sm:$0xff]
      %v298 = vld [vmem:[%s279 + $0x90] sm:$0xff]
      %v299 = vld [vmem:[%s279 + $0x98] sm:$0xff]
      %v300 = vld [vmem:[%s279 + $0xa0] sm:$0xff]
      %v301 = vld [vmem:[%s279 + $0xa8] sm:$0xff]
      %v302 = vld [vmem:[%s279 + $0xb0] sm:$0xff]
      %v303 = vld [vmem:[%s279 + $0xb8] sm:$0xff]
      %v304 = vld [vmem:[%s279 + $0xc0] sm:$0xff]
      %v305 = vld [vmem:[%s279 + $0xc8] sm:$0xff]
      %v306 = vld [vmem:[%s279 + $0xd0] sm:$0xff]
      %v307 = vld [vmem:[%s279 + $0xd8] sm:$0xff]
      %v308 = vld [vmem:[%s279 + $0xe0] sm:$0xff]
      %v309 = vld [vmem:[%s279 + $0xe8] sm:$0xff]
      %v310 = vld [vmem:[%s279 + $0xf0] sm:$0xff]
      %v311 = vld [vmem:[%s279 + $0xf8] sm:$0xff]
      %v312 = vld [vmem:[%s279 + $0x100] sm:$0xff]
      %v313 = vld [vmem:[%s279 + $0x108] sm:$0xff]
      %v314 = vld [vmem:[%s279 + $0x110] sm:$0xff]
      %v315 = vld [vmem:[%s279 + $0x118] sm:$0xff]
      %v316 = vld [vmem:[%s279 + $0x120] sm:$0xff]
      %v317 = vld [vmem:[%s279 + $0x128] sm:$0xff]
      %v318 = vld [vmem:[%s279 + $0x130] sm:$0xff]
      %v319 = vld [vmem:[%s279 + $0x138] sm:$0xff]
      %v320 = vld [vmem:[%s279 + $0x140] sm:$0xff]
      %v321 = vld [vmem:[%s279 + $0x148] sm:$0xff]
      %v322 = vld [vmem:[%s279 + $0x150] sm:$0xff]
      %v323 = vld [vmem:[%s279 + $0x158] sm:$0xff]
      %v324 = vld [vmem:[%s279 + $0x160] sm:$0xff]
      %v325 = vld [vmem:[%s279 + $0x168] sm:$0xff]
      %v326 = vld [vmem:[%s279 + $0x170] sm:$0xff]
      %v327 = vld [vmem:[%s279 + $0x178] sm:$0xff]
      %v328 = vld [vmem:[%s279 + $0x180] sm:$0xff]
      %v329 = vld [vmem:[%s279 + $0x188] sm:$0xff]
      %v330 = vld [vmem:[%s279 + $0x190] sm:$0xff]
      %v331 = vld [vmem:[%s279 + $0x198] sm:$0xff]
      %v332 = vld [vmem:[%s279 + $0x1a0] sm:$0xff]
      %v333 = vld [vmem:[%s279 + $0x1a8] sm:$0xff]
      %v334 = vld [vmem:[%s279 + $0x1b0] sm:$0xff]
      %v335 = vld [vmem:[%s279 + $0x1b8] sm:$0xff]
      %v336 = vld [vmem:[%s279 + $0x1c0] sm:$0xff]
      %v337 = vld [vmem:[%s279 + $0x1c8] sm:$0xff]
      %v338 = vld [vmem:[%s279 + $0x1d0] sm:$0xff]
      %v339 = vld [vmem:[%s279 + $0x1d8] sm:$0xff]
      %v340 = vld [vmem:[%s279 + $0x1e0] sm:$0xff]
      %v341 = vld [vmem:[%s279 + $0x1e8] sm:$0xff]
      %v342 = vld [vmem:[%s279 + $0x1f0] sm:$0xff]
      %v343 = vld [vmem:[%s279 + $0x1f8] sm:$0xff]
      %v344 = vld [vmem:[%s251] sm:$0xf]
      %s345 = sadd.s32 128, %s277
      %s346 = smul.addr %s345, 4
      %s347 = scalar_lea.vmem %s1, %s346
      %v348 = vld [vmem:[%s347] sm:$0xff]
      %v349 = vld [vmem:[%s347 + $0x8] sm:$0xff]
      %v350 = vld [vmem:[%s347 + $0x10] sm:$0xff]
      %v351 = vld [vmem:[%s347 + $0x18] sm:$0xff]
      %v352 = vld [vmem:[%s347 + $0x20] sm:$0xff]
      %v353 = vld [vmem:[%s347 + $0x28] sm:$0xff]
      %v354 = vld [vmem:[%s347 + $0x30] sm:$0xff]
      %v355 = vld [vmem:[%s347 + $0x38] sm:$0xff]
      %v356 = vld [vmem:[%s347 + $0x40] sm:$0xff]
      %v357 = vld [vmem:[%s347 + $0x48] sm:$0xff]
      %v358 = vld [vmem:[%s347 + $0x50] sm:$0xff]
      %v359 = vld [vmem:[%s347 + $0x58] sm:$0xff]
      %v360 = vld [vmem:[%s347 + $0x60] sm:$0xff]
      %v361 = vld [vmem:[%s347 + $0x68] sm:$0xff]
      %v362 = vld [vmem:[%s347 + $0x70] sm:$0xff]
      %v363 = vld [vmem:[%s347 + $0x78] sm:$0xff]
      %v364 = vld [vmem:[%s347 + $0x80] sm:$0xff]
      %v365 = vld [vmem:[%s347 + $0x88] sm:$0xff]
      %v366 = vld [vmem:[%s347 + $0x90] sm:$0xff]
      %v367 = vld [vmem:[%s347 + $0x98] sm:$0xff]
      %v368 = vld [vmem:[%s347 + $0xa0] sm:$0xff]
      %v369 = vld [vmem:[%s347 + $0xa8] sm:$0xff]
      %v370 = vld [vmem:[%s347 + $0xb0] sm:$0xff]
      %v371 = vld [vmem:[%s347 + $0xb8] sm:$0xff]
      %v372 = vld [vmem:[%s347 + $0xc0] sm:$0xff]
      %v373 = vld [vmem:[%s347 + $0xc8] sm:$0xff]
      %v374 = vld [vmem:[%s347 + $0xd0] sm:$0xff]
      %v375 = vld [vmem:[%s347 + $0xd8] sm:$0xff]
      %v376 = vld [vmem:[%s347 + $0xe0] sm:$0xff]
      %v377 = vld [vmem:[%s347 + $0xe8] sm:$0xff]
      %v378 = vld [vmem:[%s347 + $0xf0] sm:$0xff]
      %v379 = vld [vmem:[%s347 + $0xf8] sm:$0xff]
      %v380 = vld [vmem:[%s347 + $0x100] sm:$0xff]
      %v381 = vld [vmem:[%s347 + $0x108] sm:$0xff]
      %v382 = vld [vmem:[%s347 + $0x110] sm:$0xff]
      %v383 = vld [vmem:[%s347 + $0x118] sm:$0xff]
      %v384 = vld [vmem:[%s347 + $0x120] sm:$0xff]
      %v385 = vld [vmem:[%s347 + $0x128] sm:$0xff]
      %v386 = vld [vmem:[%s347 + $0x130] sm:$0xff]
      %v387 = vld [vmem:[%s347 + $0x138] sm:$0xff]
      %v388 = vld [vmem:[%s347 + $0x140] sm:$0xff]
      %v389 = vld [vmem:[%s347 + $0x148] sm:$0xff]
      %v390 = vld [vmem:[%s347 + $0x150] sm:$0xff]
      %v391 = vld [vmem:[%s347 + $0x158] sm:$0xff]
      %v392 = vld [vmem:[%s347 + $0x160] sm:$0xff]
      %v393 = vld [vmem:[%s347 + $0x168] sm:$0xff]
      %v394 = vld [vmem:[%s347 + $0x170] sm:$0xff]
      %v395 = vld [vmem:[%s347 + $0x178] sm:$0xff]
      %v396 = vld [vmem:[%s347 + $0x180] sm:$0xff]
      %v397 = vld [vmem:[%s347 + $0x188] sm:$0xff]
      %v398 = vld [vmem:[%s347 + $0x190] sm:$0xff]
      %v399 = vld [vmem:[%s347 + $0x198] sm:$0xff]
      %v400 = vld [vmem:[%s347 + $0x1a0] sm:$0xff]
      %v401 = vld [vmem:[%s347 + $0x1a8] sm:$0xff]
      %v402 = vld [vmem:[%s347 + $0x1b0] sm:$0xff]
      %v403 = vld [vmem:[%s347 + $0x1b8] sm:$0xff]
      %v404 = vld [vmem:[%s347 + $0x1c0] sm:$0xff]
      %v405 = vld [vmem:[%s347 + $0x1c8] sm:$0xff]
      %v406 = vld [vmem:[%s347 + $0x1d0] sm:$0xff]
      %v407 = vld [vmem:[%s347 + $0x1d8] sm:$0xff]
      %v408 = vld [vmem:[%s347 + $0x1e0] sm:$0xff]
      %v409 = vld [vmem:[%s347 + $0x1e8] sm:$0xff]
      %v410 = vld [vmem:[%s347 + $0x1f0] sm:$0xff]
      %v411 = vld [vmem:[%s347 + $0x1f8] sm:$0xff]
      %v414 = vunpack.c.l.s4 1983009808
      %v415 = vunpack.c.0.s8 %v414
      %v416 = vlaneseq
      %v417 = vshrl.u32 %v416, 7
      %v418 = vsub.s32 %v415, %v417
      %v419 = vrot.slane %v344, %v418
      %v420 = vcombine.high %v419, %v419
      %v422 = vshrl.u32 %v419, 16
      %v424 = vshll.u32 %v419, 16
      %v426 = vrot.slane %v424, 1
      %v427 = vor.u32 %v422, %v426
      %v429 = vshrl.u32 %v420, 16
      %v431 = vshll.u32 %v420, 16
      %v433 = vrot.slane %v431, 1
      %v434 = vor.u32 %v429, %v433
      %v501 = vunpack.c.l.b16 %v348
      %v502 = vunpack.c.h.b16 %v348
      %v503 = vunpack.c.l.b16 %v349
      %v504 = vunpack.c.h.b16 %v349
      %v505 = vunpack.c.l.b16 %v350
      %v506 = vunpack.c.h.b16 %v350
      %v507 = vunpack.c.l.b16 %v351
      %v508 = vunpack.c.h.b16 %v351
      %v509 = vunpack.c.l.b16 %v352
      %v510 = vunpack.c.h.b16 %v352
      %v511 = vunpack.c.l.b16 %v353
      %v512 = vunpack.c.h.b16 %v353
      %v513 = vunpack.c.l.b16 %v354
      %v514 = vunpack.c.h.b16 %v354
      %v515 = vunpack.c.l.b16 %v355
      %v516 = vunpack.c.h.b16 %v355
      %v517 = vunpack.c.l.b16 %v356
      %v518 = vunpack.c.h.b16 %v356
      %v519 = vunpack.c.l.b16 %v357
      %v520 = vunpack.c.h.b16 %v357
      %v521 = vunpack.c.l.b16 %v358
      %v522 = vunpack.c.h.b16 %v358
      %v523 = vunpack.c.l.b16 %v359
      %v524 = vunpack.c.h.b16 %v359
      %v525 = vunpack.c.l.b16 %v360
      %v526 = vunpack.c.h.b16 %v360
      %v527 = vunpack.c.l.b16 %v361
      %v528 = vunpack.c.h.b16 %v361
      %v529 = vunpack.c.l.b16 %v362
      %v530 = vunpack.c.h.b16 %v362
      %v531 = vunpack.c.l.b16 %v363
      %v532 = vunpack.c.h.b16 %v363
      %v533 = vunpack.c.l.b16 %v364
      %v534 = vunpack.c.h.b16 %v364
      %v535 = vunpack.c.l.b16 %v365
      %v536 = vunpack.c.h.b16 %v365
      %v537 = vunpack.c.l.b16 %v366
      %v538 = vunpack.c.h.b16 %v366
      %v539 = vunpack.c.l.b16 %v367
      %v540 = vunpack.c.h.b16 %v367
      %v541 = vunpack.c.l.b16 %v368
      %v542 = vunpack.c.h.b16 %v368
      %v543 = vunpack.c.l.b16 %v369
      %v544 = vunpack.c.h.b16 %v369
      %v545 = vunpack.c.l.b16 %v370
      %v546 = vunpack.c.h.b16 %v370
      %v547 = vunpack.c.l.b16 %v371
      %v548 = vunpack.c.h.b16 %v371
      %v549 = vunpack.c.l.b16 %v372
      %v550 = vunpack.c.h.b16 %v372
      %v551 = vunpack.c.l.b16 %v373
      %v552 = vunpack.c.h.b16 %v373
      %v553 = vunpack.c.l.b16 %v374
      %v554 = vunpack.c.h.b16 %v374
      %v555 = vunpack.c.l.b16 %v375
      %v556 = vunpack.c.h.b16 %v375
      %v557 = vunpack.c.l.b16 %v376
      %v558 = vunpack.c.h.b16 %v376
      %v559 = vunpack.c.l.b16 %v377
      %v560 = vunpack.c.h.b16 %v377
      %v561 = vunpack.c.l.b16 %v378
      %v562 = vunpack.c.h.b16 %v378
      %v563 = vunpack.c.l.b16 %v379
      %v564 = vunpack.c.h.b16 %v379
      %v565 = vunpack.c.l.b16 %v380
      %v566 = vunpack.c.h.b16 %v380
      %v567 = vunpack.c.l.b16 %v381
      %v568 = vunpack.c.h.b16 %v381
      %v569 = vunpack.c.l.b16 %v382
      %v570 = vunpack.c.h.b16 %v382
      %v571 = vunpack.c.l.b16 %v383
      %v572 = vunpack.c.h.b16 %v383
      %v573 = vunpack.c.l.b16 %v384
      %v574 = vunpack.c.h.b16 %v384
      %v575 = vunpack.c.l.b16 %v385
      %v576 = vunpack.c.h.b16 %v385
      %v577 = vunpack.c.l.b16 %v386
      %v578 = vunpack.c.h.b16 %v386
      %v579 = vunpack.c.l.b16 %v387
      %v580 = vunpack.c.h.b16 %v387
      %v581 = vunpack.c.l.b16 %v388
      %v582 = vunpack.c.h.b16 %v388
      %v583 = vunpack.c.l.b16 %v389
      %v584 = vunpack.c.h.b16 %v389
      %v585 = vunpack.c.l.b16 %v390
      %v586 = vunpack.c.h.b16 %v390
      %v587 = vunpack.c.l.b16 %v391
      %v588 = vunpack.c.h.b16 %v391
      %v589 = vunpack.c.l.b16 %v392
      %v590 = vunpack.c.h.b16 %v392
      %v591 = vunpack.c.l.b16 %v393
      %v592 = vunpack.c.h.b16 %v393
      %v593 = vunpack.c.l.b16 %v394
      %v594 = vunpack.c.h.b16 %v394
      %v595 = vunpack.c.l.b16 %v395
      %v596 = vunpack.c.h.b16 %v395
      %v597 = vunpack.c.l.b16 %v396
      %v598 = vunpack.c.h.b16 %v396
      %v599 = vunpack.c.l.b16 %v397
      %v600 = vunpack.c.h.b16 %v397
      %v601 = vunpack.c.l.b16 %v398
      %v602 = vunpack.c.h.b16 %v398
      %v603 = vunpack.c.l.b16 %v399
      %v604 = vunpack.c.h.b16 %v399
      %v605 = vunpack.c.l.b16 %v400
      %v606 = vunpack.c.h.b16 %v400
      %v607 = vunpack.c.l.b16 %v401
      %v608 = vunpack.c.h.b16 %v401
      %v609 = vunpack.c.l.b16 %v402
      %v610 = vunpack.c.h.b16 %v402
      %v611 = vunpack.c.l.b16 %v403
      %v612 = vunpack.c.h.b16 %v403
      %v613 = vunpack.c.l.b16 %v404
      %v614 = vunpack.c.h.b16 %v404
      %v615 = vunpack.c.l.b16 %v405
      %v616 = vunpack.c.h.b16 %v405
      %v617 = vunpack.c.l.b16 %v406
      %v618 = vunpack.c.h.b16 %v406
      %v619 = vunpack.c.l.b16 %v407
      %v620 = vunpack.c.h.b16 %v407
      %v621 = vunpack.c.l.b16 %v408
      %v622 = vunpack.c.h.b16 %v408
      %v623 = vunpack.c.l.b16 %v409
      %v624 = vunpack.c.h.b16 %v409
      %v625 = vunpack.c.l.b16 %v410
      %v626 = vunpack.c.h.b16 %v410
      %v627 = vunpack.c.l.b16 %v411
      %v628 = vunpack.c.h.b16 %v411
      %v629 = vpack.c.b16 %v505, %v501
      %v630 = vpack.c.b16 %v506, %v502
      %v631 = vpack.c.b16 %v507, %v503
      %v632 = vpack.c.b16 %v508, %v504
      %v633 = vpack.c.b16 %v513, %v509
      %v634 = vpack.c.b16 %v514, %v510
      %v635 = vpack.c.b16 %v515, %v511
      %v636 = vpack.c.b16 %v516, %v512
      %v637 = vpack.c.b16 %v521, %v517
      %v638 = vpack.c.b16 %v522, %v518
      %v639 = vpack.c.b16 %v523, %v519
      %v640 = vpack.c.b16 %v524, %v520
      %v641 = vpack.c.b16 %v529, %v525
      %v642 = vpack.c.b16 %v530, %v526
      %v643 = vpack.c.b16 %v531, %v527
      %v644 = vpack.c.b16 %v532, %v528
      %v645 = vpack.c.b16 %v537, %v533
      %v646 = vpack.c.b16 %v538, %v534
      %v647 = vpack.c.b16 %v539, %v535
      %v648 = vpack.c.b16 %v540, %v536
      %v649 = vpack.c.b16 %v545, %v541
      %v650 = vpack.c.b16 %v546, %v542
      %v651 = vpack.c.b16 %v547, %v543
      %v652 = vpack.c.b16 %v548, %v544
      %v653 = vpack.c.b16 %v553, %v549
      %v654 = vpack.c.b16 %v554, %v550
      %v655 = vpack.c.b16 %v555, %v551
      %v656 = vpack.c.b16 %v556, %v552
      %v657 = vpack.c.b16 %v561, %v557
      %v658 = vpack.c.b16 %v562, %v558
      %v659 = vpack.c.b16 %v563, %v559
      %v660 = vpack.c.b16 %v564, %v560
      %v661 = vpack.c.b16 %v569, %v565
      %v662 = vpack.c.b16 %v570, %v566
      %v663 = vpack.c.b16 %v571, %v567
      %v664 = vpack.c.b16 %v572, %v568
      %v665 = vpack.c.b16 %v577, %v573
      %v666 = vpack.c.b16 %v578, %v574
      %v667 = vpack.c.b16 %v579, %v575
      %v668 = vpack.c.b16 %v580, %v576
      %v669 = vpack.c.b16 %v585, %v581
      %v670 = vpack.c.b16 %v586, %v582
      %v671 = vpack.c.b16 %v587, %v583
      %v672 = vpack.c.b16 %v588, %v584
      %v673 = vpack.c.b16 %v593, %v589
      %v674 = vpack.c.b16 %v594, %v590
      %v675 = vpack.c.b16 %v595, %v591
      %v676 = vpack.c.b16 %v596, %v592
      %v677 = vpack.c.b16 %v601, %v597
      %v678 = vpack.c.b16 %v602, %v598
      %v679 = vpack.c.b16 %v603, %v599
      %v680 = vpack.c.b16 %v604, %v600
      %v681 = vpack.c.b16 %v609, %v605
      %v682 = vpack.c.b16 %v610, %v606
      %v683 = vpack.c.b16 %v611, %v607
      %v684 = vpack.c.b16 %v612, %v608
      %v685 = vpack.c.b16 %v617, %v613
      %v686 = vpack.c.b16 %v618, %v614
      %v687 = vpack.c.b16 %v619, %v615
      %v688 = vpack.c.b16 %v620, %v616
      %v689 = vpack.c.b16 %v625, %v621
      %v690 = vpack.c.b16 %v626, %v622
      %v691 = vpack.c.b16 %v627, %v623
      %v692 = vpack.c.b16 %v628, %v624
      %757 = vmatprep.subr.bf16.mxu0 %v658
      %758 = vmatpush1.bf16.msra.mxu0 %v657
      %759 = vmatprep.subr.bf16.mxu0 %v654
      %760 = vmatpush1.bf16.msra.mxu0 %v653
      %761 = vmatprep.subr.bf16.mxu0 %v650
      %762 = vmatpush1.bf16.msra.mxu0 %v649
      %763 = vmatprep.subr.bf16.mxu0 %v646
      %764 = vmatpush1.bf16.msra.mxu0 %v645
      %765 = vmatprep.subr.bf16.mxu0 %v642
      %766 = vmatpush1.bf16.msra.mxu0 %v641
      %767 = vmatprep.subr.bf16.mxu0 %v638
      %768 = vmatpush1.bf16.msra.mxu0 %v637
      %769 = vmatprep.subr.bf16.mxu0 %v634
      %770 = vmatpush1.bf16.msra.mxu0 %v633
      %771 = vmatprep.subr.bf16.mxu0 %v630
      %772 = vmatpush1.bf16.msra.mxu0 %v629
      %773 = vmatprep.subr.bf16.mxu0 %v690
      %774 = vmatpush2.bf16.msra.mxu0 %v689
      %775 = vmatprep.subr.bf16.mxu0 %v686
      %776 = vmatpush2.bf16.msra.mxu0 %v685
      %777 = vmatprep.subr.bf16.mxu0 %v682
      %778 = vmatpush2.bf16.msra.mxu0 %v681
      %779 = vmatprep.subr.bf16.mxu0 %v678
      %780 = vmatpush2.bf16.msra.mxu0 %v677
      %781 = vmatprep.subr.bf16.mxu0 %v674
      %782 = vmatpush2.bf16.msra.mxu0 %v673
      %783 = vmatprep.subr.bf16.mxu0 %v670
      %784 = vmatpush2.bf16.msra.mxu0 %v669
      %785 = vmatprep.subr.bf16.mxu0 %v666
      %786 = vmatpush2.bf16.msra.mxu0 %v665
      %787 = vmatprep.subr.bf16.mxu0 %v662
      %788 = vmatpush2.bf16.msra.mxu0 %v661
      %789 = vmatprep.mubr.bf16.mxu0 %v434
      %790 = vmatmul.mubr.bf16.gmra.mxu0 %v427
      %v791 = vpop.f32.mrf.mxu0
      %v792 = vadd.f32 0.0, %v791
      %v793 = vpop.f32.mrf.mxu0
      %v794 = vadd.f32 0.0, %v793
      %v795 = vpop.f32.mrf.mxu0
      %v796 = vpop.f32.mrf.mxu0
      %797 = vdwg.mxu0
      %798 = vmatprep.subr.bf16.mxu0 %v660
      %799 = vmatpush1.bf16.msra.mxu0 %v659
      %800 = vmatprep.subr.bf16.mxu0 %v656
      %801 = vmatpush1.bf16.msra.mxu0 %v655
      %802 = vmatprep.subr.bf16.mxu0 %v652
      %803 = vmatpush1.bf16.msra.mxu0 %v651
      %804 = vmatprep.subr.bf16.mxu0 %v648
      %805 = vmatpush1.bf16.msra.mxu0 %v647
      %806 = vmatprep.subr.bf16.mxu0 %v644
      %807 = vmatpush1.bf16.msra.mxu0 %v643
      %808 = vmatprep.subr.bf16.mxu0 %v640
      %809 = vmatpush1.bf16.msra.mxu0 %v639
      %810 = vmatprep.subr.bf16.mxu0 %v636
      %811 = vmatpush1.bf16.msra.mxu0 %v635
      %812 = vmatprep.subr.bf16.mxu0 %v632
      %813 = vmatpush1.bf16.msra.mxu0 %v631
      %814 = vmatprep.subr.bf16.mxu0 %v692
      %815 = vmatpush2.bf16.msra.mxu0 %v691
      %816 = vmatprep.subr.bf16.mxu0 %v688
      %817 = vmatpush2.bf16.msra.mxu0 %v687
      %818 = vmatprep.subr.bf16.mxu0 %v684
      %819 = vmatpush2.bf16.msra.mxu0 %v683
      %820 = vmatprep.subr.bf16.mxu0 %v680
      %821 = vmatpush2.bf16.msra.mxu0 %v679
      %822 = vmatprep.subr.bf16.mxu0 %v676
      %823 = vmatpush2.bf16.msra.mxu0 %v675
      %824 = vmatprep.subr.bf16.mxu0 %v672
      %825 = vmatpush2.bf16.msra.mxu0 %v671
      %826 = vmatprep.subr.bf16.mxu0 %v668
      %827 = vmatpush2.bf16.msra.mxu0 %v667
      %828 = vmatprep.subr.bf16.mxu0 %v664
      %829 = vmatpush2.bf16.msra.mxu0 %v663
      %830 = vmatprep.mubr.bf16.mxu0 %v434
      %831 = vmatmul.mubr.bf16.gmra.mxu0 %v427
      %v832 = vpop.f32.mrf.mxu0
      %v833 = vadd.f32 0.0, %v832
      %v834 = vpop.f32.mrf.mxu0
      %v835 = vadd.f32 0.0, %v834
      %v836 = vpop.f32.mrf.mxu0
      %v837 = vpop.f32.mrf.mxu0
      %838 = vdwg.mxu0
      %v841 = vunpack.c.l.s4 1983009808
      %v842 = vunpack.c.0.s8 %v841
      %v843 = vlaneseq
      %v844 = vshrl.u32 %v843, 7
      %v845 = vsub.s32 %v842, %v844
      %v846 = vrot.slane %v276, %v845
      %v847 = vcombine.high %v846, %v846
      %v914 = vunpack.c.l.b16 %v280
      %v915 = vunpack.c.h.b16 %v280
      %v916 = vunpack.c.l.b16 %v281
      %v917 = vunpack.c.h.b16 %v281
      %v918 = vunpack.c.l.b16 %v282
      %v919 = vunpack.c.h.b16 %v282
      %v920 = vunpack.c.l.b16 %v283
      %v921 = vunpack.c.h.b16 %v283
      %v922 = vunpack.c.l.b16 %v284
      %v923 = vunpack.c.h.b16 %v284
      %v924 = vunpack.c.l.b16 %v285
      %v925 = vunpack.c.h.b16 %v285
      %v926 = vunpack.c.l.b16 %v286
      %v927 = vunpack.c.h.b16 %v286
      %v928 = vunpack.c.l.b16 %v287
      %v929 = vunpack.c.h.b16 %v287
      %v930 = vunpack.c.l.b16 %v288
      %v931 = vunpack.c.h.b16 %v288
      %v932 = vunpack.c.l.b16 %v289
      %v933 = vunpack.c.h.b16 %v289
      %v934 = vunpack.c.l.b16 %v290
      %v935 = vunpack.c.h.b16 %v290
      %v936 = vunpack.c.l.b16 %v291
      %v937 = vunpack.c.h.b16 %v291
      %v938 = vunpack.c.l.b16 %v292
      %v939 = vunpack.c.h.b16 %v292
      %v940 = vunpack.c.l.b16 %v293
      %v941 = vunpack.c.h.b16 %v293
      %v942 = vunpack.c.l.b16 %v294
      %v943 = vunpack.c.h.b16 %v294
      %v944 = vunpack.c.l.b16 %v295
      %v945 = vunpack.c.h.b16 %v295
      %v946 = vunpack.c.l.b16 %v296
      %v947 = vunpack.c.h.b16 %v296
      %v948 = vunpack.c.l.b16 %v297
      %v949 = vunpack.c.h.b16 %v297
      %v950 = vunpack.c.l.b16 %v298
      %v951 = vunpack.c.h.b16 %v298
      %v952 = vunpack.c.l.b16 %v299
      %v953 = vunpack.c.h.b16 %v299
      %v954 = vunpack.c.l.b16 %v300
      %v955 = vunpack.c.h.b16 %v300
      %v956 = vunpack.c.l.b16 %v301
      %v957 = vunpack.c.h.b16 %v301
      %v958 = vunpack.c.l.b16 %v302
      %v959 = vunpack.c.h.b16 %v302
      %v960 = vunpack.c.l.b16 %v303
      %v961 = vunpack.c.h.b16 %v303
      %v962 = vunpack.c.l.b16 %v304
      %v963 = vunpack.c.h.b16 %v304
      %v964 = vunpack.c.l.b16 %v305
      %v965 = vunpack.c.h.b16 %v305
      %v966 = vunpack.c.l.b16 %v306
      %v967 = vunpack.c.h.b16 %v306
      %v968 = vunpack.c.l.b16 %v307
      %v969 = vunpack.c.h.b16 %v307
      %v970 = vunpack.c.l.b16 %v308
      %v971 = vunpack.c.h.b16 %v308
      %v972 = vunpack.c.l.b16 %v309
      %v973 = vunpack.c.h.b16 %v309
      %v974 = vunpack.c.l.b16 %v310
      %v975 = vunpack.c.h.b16 %v310
      %v976 = vunpack.c.l.b16 %v311
      %v977 = vunpack.c.h.b16 %v311
      %v978 = vunpack.c.l.b16 %v312
      %v979 = vunpack.c.h.b16 %v312
      %v980 = vunpack.c.l.b16 %v313
      %v981 = vunpack.c.h.b16 %v313
      %v982 = vunpack.c.l.b16 %v314
      %v983 = vunpack.c.h.b16 %v314
      %v984 = vunpack.c.l.b16 %v315
      %v985 = vunpack.c.h.b16 %v315
      %v986 = vunpack.c.l.b16 %v316
      %v987 = vunpack.c.h.b16 %v316
      %v988 = vunpack.c.l.b16 %v317
      %v989 = vunpack.c.h.b16 %v317
      %v990 = vunpack.c.l.b16 %v318
      %v991 = vunpack.c.h.b16 %v318
      %v992 = vunpack.c.l.b16 %v319
      %v993 = vunpack.c.h.b16 %v319
      %v994 = vunpack.c.l.b16 %v320
      %v995 = vunpack.c.h.b16 %v320
      %v996 = vunpack.c.l.b16 %v321
      %v997 = vunpack.c.h.b16 %v321
      %v998 = vunpack.c.l.b16 %v322
      %v999 = vunpack.c.h.b16 %v322
      %v1000 = vunpack.c.l.b16 %v323
      %v1001 = vunpack.c.h.b16 %v323
      %v1002 = vunpack.c.l.b16 %v324
      %v1003 = vunpack.c.h.b16 %v324
      %v1004 = vunpack.c.l.b16 %v325
      %v1005 = vunpack.c.h.b16 %v325
      %v1006 = vunpack.c.l.b16 %v326
      %v1007 = vunpack.c.h.b16 %v326
      %v1008 = vunpack.c.l.b16 %v327
      %v1009 = vunpack.c.h.b16 %v327
      %v1010 = vunpack.c.l.b16 %v328
      %v1011 = vunpack.c.h.b16 %v328
      %v1012 = vunpack.c.l.b16 %v329
      %v1013 = vunpack.c.h.b16 %v329
      %v1014 = vunpack.c.l.b16 %v330
      %v1015 = vunpack.c.h.b16 %v330
      %v1016 = vunpack.c.l.b16 %v331
      %v1017 = vunpack.c.h.b16 %v331
      %v1018 = vunpack.c.l.b16 %v332
      %v1019 = vunpack.c.h.b16 %v332
      %v1020 = vunpack.c.l.b16 %v333
      %v1021 = vunpack.c.h.b16 %v333
      %v1022 = vunpack.c.l.b16 %v334
      %v1023 = vunpack.c.h.b16 %v334
      %v1024 = vunpack.c.l.b16 %v335
      %v1025 = vunpack.c.h.b16 %v335
      %v1026 = vunpack.c.l.b16 %v336
      %v1027 = vunpack.c.h.b16 %v336
      %v1028 = vunpack.c.l.b16 %v337
      %v1029 = vunpack.c.h.b16 %v337
      %v1030 = vunpack.c.l.b16 %v338
      %v1031 = vunpack.c.h.b16 %v338
      %v1032 = vunpack.c.l.b16 %v339
      %v1033 = vunpack.c.h.b16 %v339
      %v1034 = vunpack.c.l.b16 %v340
      %v1035 = vunpack.c.h.b16 %v340
      %v1036 = vunpack.c.l.b16 %v341
      %v1037 = vunpack.c.h.b16 %v341
      %v1038 = vunpack.c.l.b16 %v342
      %v1039 = vunpack.c.h.b16 %v342
      %v1040 = vunpack.c.l.b16 %v343
      %v1041 = vunpack.c.h.b16 %v343
      %v1042 = vpack.c.b16 %v918, %v914
      %v1043 = vpack.c.b16 %v919, %v915
      %v1044 = vpack.c.b16 %v920, %v916
      %v1045 = vpack.c.b16 %v921, %v917
      %v1046 = vpack.c.b16 %v926, %v922
      %v1047 = vpack.c.b16 %v927, %v923
      %v1048 = vpack.c.b16 %v928, %v924
      %v1049 = vpack.c.b16 %v929, %v925
      %v1050 = vpack.c.b16 %v934, %v930
      %v1051 = vpack.c.b16 %v935, %v931
      %v1052 = vpack.c.b16 %v936, %v932
      %v1053 = vpack.c.b16 %v937, %v933
      %v1054 = vpack.c.b16 %v942, %v938
      %v1055 = vpack.c.b16 %v943, %v939
      %v1056 = vpack.c.b16 %v944, %v940
      %v1057 = vpack.c.b16 %v945, %v941
      %v1058 = vpack.c.b16 %v950, %v946
      %v1059 = vpack.c.b16 %v951, %v947
      %v1060 = vpack.c.b16 %v952, %v948
      %v1061 = vpack.c.b16 %v953, %v949
      %v1062 = vpack.c.b16 %v958, %v954
      %v1063 = vpack.c.b16 %v959, %v955
      %v1064 = vpack.c.b16 %v960, %v956
      %v1065 = vpack.c.b16 %v961, %v957
      %v1066 = vpack.c.b16 %v966, %v962
      %v1067 = vpack.c.b16 %v967, %v963
      %v1068 = vpack.c.b16 %v968, %v964
      %v1069 = vpack.c.b16 %v969, %v965
      %v1070 = vpack.c.b16 %v974, %v970
      %v1071 = vpack.c.b16 %v975, %v971
      %v1072 = vpack.c.b16 %v976, %v972
      %v1073 = vpack.c.b16 %v977, %v973
      %v1074 = vpack.c.b16 %v982, %v978
      %v1075 = vpack.c.b16 %v983, %v979
      %v1076 = vpack.c.b16 %v984, %v980
      %v1077 = vpack.c.b16 %v985, %v981
      %v1078 = vpack.c.b16 %v990, %v986
      %v1079 = vpack.c.b16 %v991, %v987
      %v1080 = vpack.c.b16 %v992, %v988
      %v1081 = vpack.c.b16 %v993, %v989
      %v1082 = vpack.c.b16 %v998, %v994
      %v1083 = vpack.c.b16 %v999, %v995
      %v1084 = vpack.c.b16 %v1000, %v996
      %v1085 = vpack.c.b16 %v1001, %v997
      %v1086 = vpack.c.b16 %v1006, %v1002
      %v1087 = vpack.c.b16 %v1007, %v1003
      %v1088 = vpack.c.b16 %v1008, %v1004
      %v1089 = vpack.c.b16 %v1009, %v1005
      %v1090 = vpack.c.b16 %v1014, %v1010
      %v1091 = vpack.c.b16 %v1015, %v1011
      %v1092 = vpack.c.b16 %v1016, %v1012
      %v1093 = vpack.c.b16 %v1017, %v1013
      %v1094 = vpack.c.b16 %v1022, %v1018
      %v1095 = vpack.c.b16 %v1023, %v1019
      %v1096 = vpack.c.b16 %v1024, %v1020
      %v1097 = vpack.c.b16 %v1025, %v1021
      %v1098 = vpack.c.b16 %v1030, %v1026
      %v1099 = vpack.c.b16 %v1031, %v1027
      %v1100 = vpack.c.b16 %v1032, %v1028
      %v1101 = vpack.c.b16 %v1033, %v1029
      %v1102 = vpack.c.b16 %v1038, %v1034
      %v1103 = vpack.c.b16 %v1039, %v1035
      %v1104 = vpack.c.b16 %v1040, %v1036
      %v1105 = vpack.c.b16 %v1041, %v1037
      %1170 = vmatprep.subr.bf16.mxu0 %v1071
      %1171 = vmatpush1.bf16.msra.mxu0 %v1070
      %1172 = vmatprep.subr.bf16.mxu0 %v1067
      %1173 = vmatpush1.bf16.msra.mxu0 %v1066
      %1174 = vmatprep.subr.bf16.mxu0 %v1063
      %1175 = vmatpush1.bf16.msra.mxu0 %v1062
      %1176 = vmatprep.subr.bf16.mxu0 %v1059
      %1177 = vmatpush1.bf16.msra.mxu0 %v1058
      %1178 = vmatprep.subr.bf16.mxu0 %v1055
      %1179 = vmatpush1.bf16.msra.mxu0 %v1054
      %1180 = vmatprep.subr.bf16.mxu0 %v1051
      %1181 = vmatpush1.bf16.msra.mxu0 %v1050
      %1182 = vmatprep.subr.bf16.mxu0 %v1047
      %1183 = vmatpush1.bf16.msra.mxu0 %v1046
      %1184 = vmatprep.subr.bf16.mxu0 %v1043
      %1185 = vmatpush1.bf16.msra.mxu0 %v1042
      %1186 = vmatprep.subr.bf16.mxu0 %v1103
      %1187 = vmatpush2.bf16.msra.mxu0 %v1102
      %1188 = vmatprep.subr.bf16.mxu0 %v1099
      %1189 = vmatpush2.bf16.msra.mxu0 %v1098
      %1190 = vmatprep.subr.bf16.mxu0 %v1095
      %1191 = vmatpush2.bf16.msra.mxu0 %v1094
      %1192 = vmatprep.subr.bf16.mxu0 %v1091
      %1193 = vmatpush2.bf16.msra.mxu0 %v1090
      %1194 = vmatprep.subr.bf16.mxu0 %v1087
      %1195 = vmatpush2.bf16.msra.mxu0 %v1086
      %1196 = vmatprep.subr.bf16.mxu0 %v1083
      %1197 = vmatpush2.bf16.msra.mxu0 %v1082
      %1198 = vmatprep.subr.bf16.mxu0 %v1079
      %1199 = vmatpush2.bf16.msra.mxu0 %v1078
      %1200 = vmatprep.subr.bf16.mxu0 %v1075
      %1201 = vmatpush2.bf16.msra.mxu0 %v1074
      %1202 = vmatprep.mubr.bf16.mxu0 %v847
      %1203 = vmatmul.mubr.bf16.gmra.mxu0 %v846
      %v1204 = vpop.f32.mrf.mxu0
      %v1205 = vadd.f32 %v792, %v1204
      %v1206 = vpop.f32.mrf.mxu0
      %v1207 = vadd.f32 %v794, %v1206
      %v1208 = vpop.f32.mrf.mxu0
      %v1209 = vpop.f32.mrf.mxu0
      %1210 = vdwg.mxu0
      %1211 = vmatprep.subr.bf16.mxu0 %v1073
      %1212 = vmatpush1.bf16.msra.mxu0 %v1072
      %1213 = vmatprep.subr.bf16.mxu0 %v1069
      %1214 = vmatpush1.bf16.msra.mxu0 %v1068
      %1215 = vmatprep.subr.bf16.mxu0 %v1065
      %1216 = vmatpush1.bf16.msra.mxu0 %v1064
      %1217 = vmatprep.subr.bf16.mxu0 %v1061
      %1218 = vmatpush1.bf16.msra.mxu0 %v1060
      %1219 = vmatprep.subr.bf16.mxu0 %v1057
      %1220 = vmatpush1.bf16.msra.mxu0 %v1056
      %1221 = vmatprep.subr.bf16.mxu0 %v1053
      %1222 = vmatpush1.bf16.msra.mxu0 %v1052
      %1223 = vmatprep.subr.bf16.mxu0 %v1049
      %1224 = vmatpush1.bf16.msra.mxu0 %v1048
      %1225 = vmatprep.subr.bf16.mxu0 %v1045
      %1226 = vmatpush1.bf16.msra.mxu0 %v1044
      %1227 = vmatprep.subr.bf16.mxu0 %v1105
      %1228 = vmatpush2.bf16.msra.mxu0 %v1104
      %1229 = vmatprep.subr.bf16.mxu0 %v1101
      %1230 = vmatpush2.bf16.msra.mxu0 %v1100
      %1231 = vmatprep.subr.bf16.mxu0 %v1097
      %1232 = vmatpush2.bf16.msra.mxu0 %v1096
      %1233 = vmatprep.subr.bf16.mxu0 %v1093
      %1234 = vmatpush2.bf16.msra.mxu0 %v1092
      %1235 = vmatprep.subr.bf16.mxu0 %v1089
      %1236 = vmatpush2.bf16.msra.mxu0 %v1088
      %1237 = vmatprep.subr.bf16.mxu0 %v1085
      %1238 = vmatpush2.bf16.msra.mxu0 %v1084
      %1239 = vmatprep.subr.bf16.mxu0 %v1081
      %1240 = vmatpush2.bf16.msra.mxu0 %v1080
      %1241 = vmatprep.subr.bf16.mxu0 %v1077
      %1242 = vmatpush2.bf16.msra.mxu0 %v1076
      %1243 = vmatprep.mubr.bf16.mxu0 %v847
      %1244 = vmatmul.mubr.bf16.gmra.mxu0 %v846
      %v1245 = vpop.f32.mrf.mxu0
      %v1246 = vadd.f32 %v833, %v1245
      %v1247 = vpop.f32.mrf.mxu0
      %v1248 = vadd.f32 %v835, %v1247
      %v1249 = vpop.f32.mrf.mxu0
      %v1250 = vpop.f32.mrf.mxu0
      %1251 = vdwg.mxu0
      %v1252 = vld [vmem:[%s251] sm:$0xa]
      %s1253 = sadd.s32 256, %s277
      %s1254 = smul.addr %s1253, 4
      %s1255 = scalar_lea.vmem %s1, %s1254
      %v1256 = vld [vmem:[%s1255] sm:$0xff]
      %v1257 = vld [vmem:[%s1255 + $0x8] sm:$0xff]
      %v1258 = vld [vmem:[%s1255 + $0x10] sm:$0xff]
      %v1259 = vld [vmem:[%s1255 + $0x18] sm:$0xff]
      %v1260 = vld [vmem:[%s1255 + $0x20] sm:$0xff]
      %v1261 = vld [vmem:[%s1255 + $0x28] sm:$0xff]
      %v1262 = vld [vmem:[%s1255 + $0x30] sm:$0xff]
      %v1263 = vld [vmem:[%s1255 + $0x38] sm:$0xff]
      %v1264 = vld [vmem:[%s1255 + $0x40] sm:$0xff]
      %v1265 = vld [vmem:[%s1255 + $0x48] sm:$0xff]
      %v1266 = vld [vmem:[%s1255 + $0x50] sm:$0xff]
      %v1267 = vld [vmem:[%s1255 + $0x58] sm:$0xff]
      %v1268 = vld [vmem:[%s1255 + $0x60] sm:$0xff]
      %v1269 = vld [vmem:[%s1255 + $0x68] sm:$0xff]
      %v1270 = vld [vmem:[%s1255 + $0x70] sm:$0xff]
      %v1271 = vld [vmem:[%s1255 + $0x78] sm:$0xff]
      %v1272 = vld [vmem:[%s1255 + $0x80] sm:$0xff]
      %v1273 = vld [vmem:[%s1255 + $0x88] sm:$0xff]
      %v1274 = vld [vmem:[%s1255 + $0x90] sm:$0xff]
      %v1275 = vld [vmem:[%s1255 + $0x98] sm:$0xff]
      %v1276 = vld [vmem:[%s1255 + $0xa0] sm:$0xff]
      %v1277 = vld [vmem:[%s1255 + $0xa8] sm:$0xff]
      %v1278 = vld [vmem:[%s1255 + $0xb0] sm:$0xff]
      %v1279 = vld [vmem:[%s1255 + $0xb8] sm:$0xff]
      %v1280 = vld [vmem:[%s1255 + $0xc0] sm:$0xff]
      %v1281 = vld [vmem:[%s1255 + $0xc8] sm:$0xff]
      %v1282 = vld [vmem:[%s1255 + $0xd0] sm:$0xff]
      %v1283 = vld [vmem:[%s1255 + $0xd8] sm:$0xff]
      %v1284 = vld [vmem:[%s1255 + $0xe0] sm:$0xff]
      %v1285 = vld [vmem:[%s1255 + $0xe8] sm:$0xff]
      %v1286 = vld [vmem:[%s1255 + $0xf0] sm:$0xff]
      %v1287 = vld [vmem:[%s1255 + $0xf8] sm:$0xff]
      %v1288 = vld [vmem:[%s1255 + $0x100] sm:$0xff]
      %v1289 = vld [vmem:[%s1255 + $0x108] sm:$0xff]
      %v1290 = vld [vmem:[%s1255 + $0x110] sm:$0xff]
      %v1291 = vld [vmem:[%s1255 + $0x118] sm:$0xff]
      %v1292 = vld [vmem:[%s1255 + $0x120] sm:$0xff]
      %v1293 = vld [vmem:[%s1255 + $0x128] sm:$0xff]
      %v1294 = vld [vmem:[%s1255 + $0x130] sm:$0xff]
      %v1295 = vld [vmem:[%s1255 + $0x138] sm:$0xff]
      %v1296 = vld [vmem:[%s1255 + $0x140] sm:$0xff]
      %v1297 = vld [vmem:[%s1255 + $0x148] sm:$0xff]
      %v1298 = vld [vmem:[%s1255 + $0x150] sm:$0xff]
      %v1299 = vld [vmem:[%s1255 + $0x158] sm:$0xff]
      %v1300 = vld [vmem:[%s1255 + $0x160] sm:$0xff]
      %v1301 = vld [vmem:[%s1255 + $0x168] sm:$0xff]
      %v1302 = vld [vmem:[%s1255 + $0x170] sm:$0xff]
      %v1303 = vld [vmem:[%s1255 + $0x178] sm:$0xff]
      %v1304 = vld [vmem:[%s1255 + $0x180] sm:$0xff]
      %v1305 = vld [vmem:[%s1255 + $0x188] sm:$0xff]
      %v1306 = vld [vmem:[%s1255 + $0x190] sm:$0xff]
      %v1307 = vld [vmem:[%s1255 + $0x198] sm:$0xff]
      %v1308 = vld [vmem:[%s1255 + $0x1a0] sm:$0xff]
      %v1309 = vld [vmem:[%s1255 + $0x1a8] sm:$0xff]
      %v1310 = vld [vmem:[%s1255 + $0x1b0] sm:$0xff]
      %v1311 = vld [vmem:[%s1255 + $0x1b8] sm:$0xff]
      %v1312 = vld [vmem:[%s1255 + $0x1c0] sm:$0xff]
      %v1313 = vld [vmem:[%s1255 + $0x1c8] sm:$0xff]
      %v1314 = vld [vmem:[%s1255 + $0x1d0] sm:$0xff]
      %v1315 = vld [vmem:[%s1255 + $0x1d8] sm:$0xff]
      %v1316 = vld [vmem:[%s1255 + $0x1e0] sm:$0xff]
      %v1317 = vld [vmem:[%s1255 + $0x1e8] sm:$0xff]
      %v1318 = vld [vmem:[%s1255 + $0x1f0] sm:$0xff]
      %v1319 = vld [vmem:[%s1255 + $0x1f8] sm:$0xff]
      %v1322 = vunpack.c.l.s4 1983009808
      %v1323 = vunpack.c.0.s8 %v1322
      %v1324 = vlaneseq
      %v1325 = vshrl.u32 %v1324, 7
      %v1326 = vsub.s32 %v1323, %v1325
      %v1327 = vrot.slane %v1252, %v1326
      %v1328 = vcombine.high %v1327, %v1327
      %v1329 = vrot.slane %v1327, 1
      %v1330 = vrot.slane %v1328, 1
      %v1397 = vunpack.c.l.b16 %v1256
      %v1398 = vunpack.c.h.b16 %v1256
      %v1399 = vunpack.c.l.b16 %v1257
      %v1400 = vunpack.c.h.b16 %v1257
      %v1401 = vunpack.c.l.b16 %v1258
      %v1402 = vunpack.c.h.b16 %v1258
      %v1403 = vunpack.c.l.b16 %v1259
      %v1404 = vunpack.c.h.b16 %v1259
      %v1405 = vunpack.c.l.b16 %v1260
      %v1406 = vunpack.c.h.b16 %v1260
      %v1407 = vunpack.c.l.b16 %v1261
      %v1408 = vunpack.c.h.b16 %v1261
      %v1409 = vunpack.c.l.b16 %v1262
      %v1410 = vunpack.c.h.b16 %v1262
      %v1411 = vunpack.c.l.b16 %v1263
      %v1412 = vunpack.c.h.b16 %v1263
      %v1413 = vunpack.c.l.b16 %v1264
      %v1414 = vunpack.c.h.b16 %v1264
      %v1415 = vunpack.c.l.b16 %v1265
      %v1416 = vunpack.c.h.b16 %v1265
      %v1417 = vunpack.c.l.b16 %v1266
      %v1418 = vunpack.c.h.b16 %v1266
      %v1419 = vunpack.c.l.b16 %v1267
      %v1420 = vunpack.c.h.b16 %v1267
      %v1421 = vunpack.c.l.b16 %v1268
      %v1422 = vunpack.c.h.b16 %v1268
      %v1423 = vunpack.c.l.b16 %v1269
      %v1424 = vunpack.c.h.b16 %v1269
      %v1425 = vunpack.c.l.b16 %v1270
      %v1426 = vunpack.c.h.b16 %v1270
      %v1427 = vunpack.c.l.b16 %v1271
      %v1428 = vunpack.c.h.b16 %v1271
      %v1429 = vunpack.c.l.b16 %v1272
      %v1430 = vunpack.c.h.b16 %v1272
      %v1431 = vunpack.c.l.b16 %v1273
      %v1432 = vunpack.c.h.b16 %v1273
      %v1433 = vunpack.c.l.b16 %v1274
      %v1434 = vunpack.c.h.b16 %v1274
      %v1435 = vunpack.c.l.b16 %v1275
      %v1436 = vunpack.c.h.b16 %v1275
      %v1437 = vunpack.c.l.b16 %v1276
      %v1438 = vunpack.c.h.b16 %v1276
      %v1439 = vunpack.c.l.b16 %v1277
      %v1440 = vunpack.c.h.b16 %v1277
      %v1441 = vunpack.c.l.b16 %v1278
      %v1442 = vunpack.c.h.b16 %v1278
      %v1443 = vunpack.c.l.b16 %v1279
      %v1444 = vunpack.c.h.b16 %v1279
      %v1445 = vunpack.c.l.b16 %v1280
      %v1446 = vunpack.c.h.b16 %v1280
      %v1447 = vunpack.c.l.b16 %v1281
      %v1448 = vunpack.c.h.b16 %v1281
      %v1449 = vunpack.c.l.b16 %v1282
      %v1450 = vunpack.c.h.b16 %v1282
      %v1451 = vunpack.c.l.b16 %v1283
      %v1452 = vunpack.c.h.b16 %v1283
      %v1453 = vunpack.c.l.b16 %v1284
      %v1454 = vunpack.c.h.b16 %v1284
      %v1455 = vunpack.c.l.b16 %v1285
      %v1456 = vunpack.c.h.b16 %v1285
      %v1457 = vunpack.c.l.b16 %v1286
      %v1458 = vunpack.c.h.b16 %v1286
      %v1459 = vunpack.c.l.b16 %v1287
      %v1460 = vunpack.c.h.b16 %v1287
      %v1461 = vunpack.c.l.b16 %v1288
      %v1462 = vunpack.c.h.b16 %v1288
      %v1463 = vunpack.c.l.b16 %v1289
      %v1464 = vunpack.c.h.b16 %v1289
      %v1465 = vunpack.c.l.b16 %v1290
      %v1466 = vunpack.c.h.b16 %v1290
      %v1467 = vunpack.c.l.b16 %v1291
      %v1468 = vunpack.c.h.b16 %v1291
      %v1469 = vunpack.c.l.b16 %v1292
      %v1470 = vunpack.c.h.b16 %v1292
      %v1471 = vunpack.c.l.b16 %v1293
      %v1472 = vunpack.c.h.b16 %v1293
      %v1473 = vunpack.c.l.b16 %v1294
      %v1474 = vunpack.c.h.b16 %v1294
      %v1475 = vunpack.c.l.b16 %v1295
      %v1476 = vunpack.c.h.b16 %v1295
      %v1477 = vunpack.c.l.b16 %v1296
      %v1478 = vunpack.c.h.b16 %v1296
      %v1479 = vunpack.c.l.b16 %v1297
      %v1480 = vunpack.c.h.b16 %v1297
      %v1481 = vunpack.c.l.b16 %v1298
      %v1482 = vunpack.c.h.b16 %v1298
      %v1483 = vunpack.c.l.b16 %v1299
      %v1484 = vunpack.c.h.b16 %v1299
      %v1485 = vunpack.c.l.b16 %v1300
      %v1486 = vunpack.c.h.b16 %v1300
      %v1487 = vunpack.c.l.b16 %v1301
      %v1488 = vunpack.c.h.b16 %v1301
      %v1489 = vunpack.c.l.b16 %v1302
      %v1490 = vunpack.c.h.b16 %v1302
      %v1491 = vunpack.c.l.b16 %v1303
      %v1492 = vunpack.c.h.b16 %v1303
      %v1493 = vunpack.c.l.b16 %v1304
      %v1494 = vunpack.c.h.b16 %v1304
      %v1495 = vunpack.c.l.b16 %v1305
      %v1496 = vunpack.c.h.b16 %v1305
      %v1497 = vunpack.c.l.b16 %v1306
      %v1498 = vunpack.c.h.b16 %v1306
      %v1499 = vunpack.c.l.b16 %v1307
      %v1500 = vunpack.c.h.b16 %v1307
      %v1501 = vunpack.c.l.b16 %v1308
      %v1502 = vunpack.c.h.b16 %v1308
      %v1503 = vunpack.c.l.b16 %v1309
      %v1504 = vunpack.c.h.b16 %v1309
      %v1505 = vunpack.c.l.b16 %v1310
      %v1506 = vunpack.c.h.b16 %v1310
      %v1507 = vunpack.c.l.b16 %v1311
      %v1508 = vunpack.c.h.b16 %v1311
      %v1509 = vunpack.c.l.b16 %v1312
      %v1510 = vunpack.c.h.b16 %v1312
      %v1511 = vunpack.c.l.b16 %v1313
      %v1512 = vunpack.c.h.b16 %v1313
      %v1513 = vunpack.c.l.b16 %v1314
      %v1514 = vunpack.c.h.b16 %v1314
      %v1515 = vunpack.c.l.b16 %v1315
      %v1516 = vunpack.c.h.b16 %v1315
      %v1517 = vunpack.c.l.b16 %v1316
      %v1518 = vunpack.c.h.b16 %v1316
      %v1519 = vunpack.c.l.b16 %v1317
      %v1520 = vunpack.c.h.b16 %v1317
      %v1521 = vunpack.c.l.b16 %v1318
      %v1522 = vunpack.c.h.b16 %v1318
      %v1523 = vunpack.c.l.b16 %v1319
      %v1524 = vunpack.c.h.b16 %v1319
      %v1525 = vpack.c.b16 %v1401, %v1397
      %v1526 = vpack.c.b16 %v1402, %v1398
      %v1527 = vpack.c.b16 %v1403, %v1399
      %v1528 = vpack.c.b16 %v1404, %v1400
      %v1529 = vpack.c.b16 %v1409, %v1405
      %v1530 = vpack.c.b16 %v1410, %v1406
      %v1531 = vpack.c.b16 %v1411, %v1407
      %v1532 = vpack.c.b16 %v1412, %v1408
      %v1533 = vpack.c.b16 %v1417, %v1413
      %v1534 = vpack.c.b16 %v1418, %v1414
      %v1535 = vpack.c.b16 %v1419, %v1415
      %v1536 = vpack.c.b16 %v1420, %v1416
      %v1537 = vpack.c.b16 %v1425, %v1421
      %v1538 = vpack.c.b16 %v1426, %v1422
      %v1539 = vpack.c.b16 %v1427, %v1423
      %v1540 = vpack.c.b16 %v1428, %v1424
      %v1541 = vpack.c.b16 %v1433, %v1429
      %v1542 = vpack.c.b16 %v1434, %v1430
      %v1543 = vpack.c.b16 %v1435, %v1431
      %v1544 = vpack.c.b16 %v1436, %v1432
      %v1545 = vpack.c.b16 %v1441, %v1437
      %v1546 = vpack.c.b16 %v1442, %v1438
      %v1547 = vpack.c.b16 %v1443, %v1439
      %v1548 = vpack.c.b16 %v1444, %v1440
      %v1549 = vpack.c.b16 %v1449, %v1445
      %v1550 = vpack.c.b16 %v1450, %v1446
      %v1551 = vpack.c.b16 %v1451, %v1447
      %v1552 = vpack.c.b16 %v1452, %v1448
      %v1553 = vpack.c.b16 %v1457, %v1453
      %v1554 = vpack.c.b16 %v1458, %v1454
      %v1555 = vpack.c.b16 %v1459, %v1455
      %v1556 = vpack.c.b16 %v1460, %v1456
      %v1557 = vpack.c.b16 %v1465, %v1461
      %v1558 = vpack.c.b16 %v1466, %v1462
      %v1559 = vpack.c.b16 %v1467, %v1463
      %v1560 = vpack.c.b16 %v1468, %v1464
      %v1561 = vpack.c.b16 %v1473, %v1469
      %v1562 = vpack.c.b16 %v1474, %v1470
      %v1563 = vpack.c.b16 %v1475, %v1471
      %v1564 = vpack.c.b16 %v1476, %v1472
      %v1565 = vpack.c.b16 %v1481, %v1477
      %v1566 = vpack.c.b16 %v1482, %v1478
      %v1567 = vpack.c.b16 %v1483, %v1479
      %v1568 = vpack.c.b16 %v1484, %v1480
      %v1569 = vpack.c.b16 %v1489, %v1485
      %v1570 = vpack.c.b16 %v1490, %v1486
      %v1571 = vpack.c.b16 %v1491, %v1487
      %v1572 = vpack.c.b16 %v1492, %v1488
      %v1573 = vpack.c.b16 %v1497, %v1493
      %v1574 = vpack.c.b16 %v1498, %v1494
      %v1575 = vpack.c.b16 %v1499, %v1495
      %v1576 = vpack.c.b16 %v1500, %v1496
      %v1577 = vpack.c.b16 %v1505, %v1501
      %v1578 = vpack.c.b16 %v1506, %v1502
      %v1579 = vpack.c.b16 %v1507, %v1503
      %v1580 = vpack.c.b16 %v1508, %v1504
      %v1581 = vpack.c.b16 %v1513, %v1509
      %v1582 = vpack.c.b16 %v1514, %v1510
      %v1583 = vpack.c.b16 %v1515, %v1511
      %v1584 = vpack.c.b16 %v1516, %v1512
      %v1585 = vpack.c.b16 %v1521, %v1517
      %v1586 = vpack.c.b16 %v1522, %v1518
      %v1587 = vpack.c.b16 %v1523, %v1519
      %v1588 = vpack.c.b16 %v1524, %v1520
      %1653 = vmatprep.subr.bf16.mxu0 %v1554
      %1654 = vmatpush1.bf16.msra.mxu0 %v1553
      %1655 = vmatprep.subr.bf16.mxu0 %v1550
      %1656 = vmatpush1.bf16.msra.mxu0 %v1549
      %1657 = vmatprep.subr.bf16.mxu0 %v1546
      %1658 = vmatpush1.bf16.msra.mxu0 %v1545
      %1659 = vmatprep.subr.bf16.mxu0 %v1542
      %1660 = vmatpush1.bf16.msra.mxu0 %v1541
      %1661 = vmatprep.subr.bf16.mxu0 %v1538
      %1662 = vmatpush1.bf16.msra.mxu0 %v1537
      %1663 = vmatprep.subr.bf16.mxu0 %v1534
      %1664 = vmatpush1.bf16.msra.mxu0 %v1533
      %1665 = vmatprep.subr.bf16.mxu0 %v1530
      %1666 = vmatpush1.bf16.msra.mxu0 %v1529
      %1667 = vmatprep.subr.bf16.mxu0 %v1526
      %1668 = vmatpush1.bf16.msra.mxu0 %v1525
      %1669 = vmatprep.subr.bf16.mxu0 %v1586
      %1670 = vmatpush2.bf16.msra.mxu0 %v1585
      %1671 = vmatprep.subr.bf16.mxu0 %v1582
      %1672 = vmatpush2.bf16.msra.mxu0 %v1581
      %1673 = vmatprep.subr.bf16.mxu0 %v1578
      %1674 = vmatpush2.bf16.msra.mxu0 %v1577
      %1675 = vmatprep.subr.bf16.mxu0 %v1574
      %1676 = vmatpush2.bf16.msra.mxu0 %v1573
      %1677 = vmatprep.subr.bf16.mxu0 %v1570
      %1678 = vmatpush2.bf16.msra.mxu0 %v1569
      %1679 = vmatprep.subr.bf16.mxu0 %v1566
      %1680 = vmatpush2.bf16.msra.mxu0 %v1565
      %1681 = vmatprep.subr.bf16.mxu0 %v1562
      %1682 = vmatpush2.bf16.msra.mxu0 %v1561
      %1683 = vmatprep.subr.bf16.mxu0 %v1558
      %1684 = vmatpush2.bf16.msra.mxu0 %v1557
      %1685 = vmatprep.mubr.bf16.mxu0 %v1330
      %1686 = vmatmul.mubr.bf16.gmra.mxu0 %v1329
      %v1687 = vpop.f32.mrf.mxu0
      %v1688 = vadd.f32 0.0, %v1687
      %v1689 = vpop.f32.mrf.mxu0
      %v1690 = vadd.f32 0.0, %v1689
      %v1691 = vpop.f32.mrf.mxu0
      %v1692 = vpop.f32.mrf.mxu0
      %1693 = vdwg.mxu0
      %1694 = vmatprep.subr.bf16.mxu0 %v1556
      %1695 = vmatpush1.bf16.msra.mxu0 %v1555
      %1696 = vmatprep.subr.bf16.mxu0 %v1552
      %1697 = vmatpush1.bf16.msra.mxu0 %v1551
      %1698 = vmatprep.subr.bf16.mxu0 %v1548
      %1699 = vmatpush1.bf16.msra.mxu0 %v1547
      %1700 = vmatprep.subr.bf16.mxu0 %v1544
      %1701 = vmatpush1.bf16.msra.mxu0 %v1543
      %1702 = vmatprep.subr.bf16.mxu0 %v1540
      %1703 = vmatpush1.bf16.msra.mxu0 %v1539
      %1704 = vmatprep.subr.bf16.mxu0 %v1536
      %1705 = vmatpush1.bf16.msra.mxu0 %v1535
      %1706 = vmatprep.subr.bf16.mxu0 %v1532
      %1707 = vmatpush1.bf16.msra.mxu0 %v1531
      %1708 = vmatprep.subr.bf16.mxu0 %v1528
      %1709 = vmatpush1.bf16.msra.mxu0 %v1527
      %1710 = vmatprep.subr.bf16.mxu0 %v1588
      %1711 = vmatpush2.bf16.msra.mxu0 %v1587
      %1712 = vmatprep.subr.bf16.mxu0 %v1584
      %1713 = vmatpush2.bf16.msra.mxu0 %v1583
      %1714 = vmatprep.subr.bf16.mxu0 %v1580
      %1715 = vmatpush2.bf16.msra.mxu0 %v1579
      %1716 = vmatprep.subr.bf16.mxu0 %v1576
      %1717 = vmatpush2.bf16.msra.mxu0 %v1575
      %1718 = vmatprep.subr.bf16.mxu0 %v1572
      %1719 = vmatpush2.bf16.msra.mxu0 %v1571
      %1720 = vmatprep.subr.bf16.mxu0 %v1568
      %1721 = vmatpush2.bf16.msra.mxu0 %v1567
      %1722 = vmatprep.subr.bf16.mxu0 %v1564
      %1723 = vmatpush2.bf16.msra.mxu0 %v1563
      %1724 = vmatprep.subr.bf16.mxu0 %v1560
      %1725 = vmatpush2.bf16.msra.mxu0 %v1559
      %1726 = vmatprep.mubr.bf16.mxu0 %v1330
      %1727 = vmatmul.mubr.bf16.gmra.mxu0 %v1329
      %v1728 = vpop.f32.mrf.mxu0
      %v1729 = vadd.f32 0.0, %v1728
      %v1730 = vpop.f32.mrf.mxu0
      %v1731 = vadd.f32 0.0, %v1730
      %v1732 = vpop.f32.mrf.mxu0
      %v1733 = vpop.f32.mrf.mxu0
      %1734 = vdwg.mxu0
      %v1735 = vadd.f32 %v1205, %v1688
      %v1736 = vadd.f32 %v1207, %v1690
      %v1737 = vadd.f32 %v1246, %v1729
      %v1738 = vadd.f32 %v1248, %v1731
      %v1739 = vld [vmem:[%s261] sm:$0xff]
      %v1744 = vcombine.low %v1735, %v1736
      %v1745 = vcombine.low %v1737, %v1738
      %v1747 = vunpack.c.l.s4 1983009808
      %v1748 = vunpack.c.0.s8 %v1747
      %v1749 = vlaneseq
      %v1750 = vshrl.u32 %v1749, 7
      %v1751 = vsub.s32 %v1748, %v1750
      %v1752 = vrot.slane %v1744, %v1751
      %v1754 = vunpack.c.l.s4 1983009808
      %v1755 = vunpack.c.0.s8 %v1754
      %v1756 = vlaneseq
      %v1757 = vshrl.u32 %v1756, 7
      %v1758 = vsub.s32 %v1755, %v1757
      %v1759 = vrot.slane %v1745, %v1758
      %v1760 = vcombine.low %v1752, %v1759
      %v1762 = vadd.f32 %v1739, %v1760
      %1763 = vst [vmem:[%s261] sm:$0xff] %v1762
      %p1764 = scmp.eq.s32.totalorder %s23, 2
      // Predicated region
      $region37: #{discriminator_forward.15} parent=31 // pred_check
        %p1765 = pneg %p1764
      $region38: #{discriminator_forward.15} parent=31 // pred_check_branch
        %1767 = sbr.rel (%p1765) target = $region40
      $region39: #{discriminator_forward.15} parent=31 // pred_region
        %v1768 = vld [vmem:[%s261] sm:$0xff]
        %v1769 = vld [vmem:[%s2] sm:$0xf]
        %v1771 = vlaneseq
        %v1772 = vshrl.u32 %v1771, 7
        %v1773 = vsub.s32 0, %v1772
        %v1774 = vrot.slane %v1769, %v1773
        %v1775 = vlaneseq
        %v1776 = vshrl.u32 %v1775, 7
        %v1777 = vsub.s32 1, %v1776
        %v1778 = vrot.slane %v1769, %v1777
        %v1779 = vlaneseq
        %v1780 = vshrl.u32 %v1779, 7
        %v1781 = vsub.s32 2, %v1780
        %v1782 = vrot.slane %v1769, %v1781
        %v1783 = vlaneseq
        %v1784 = vshrl.u32 %v1783, 7
        %v1785 = vsub.s32 3, %v1784
        %v1786 = vrot.slane %v1769, %v1785
        %v1787 = vcombine.low %v1774, %v1778
        %v1788 = vcombine.low %v1782, %v1786
        %v1790 = vunpack.c.l.s4 1983009808
        %v1791 = vunpack.c.0.s8 %v1790
        %v1792 = vlaneseq
        %v1793 = vshrl.u32 %v1792, 7
        %v1794 = vsub.s32 %v1791, %v1793
        %v1795 = vrot.slane %v1787, %v1794
        %v1797 = vunpack.c.l.s4 1983009808
        %v1798 = vunpack.c.0.s8 %v1797
        %v1799 = vlaneseq
        %v1800 = vshrl.u32 %v1799, 7
        %v1801 = vsub.s32 %v1798, %v1800
        %v1802 = vrot.slane %v1788, %v1801
        %v1803 = vcombine.low %v1795, %v1802
        %v1805 = vadd.f32 %v1768, %v1803
        %1806 = vst [vmem:[%s261] sm:$0xff] %v1805
        %v1808 = vcombine.high %v1805, %v1805
        %v1810 = vunpack.c.l.s4 1983009808
        %v1811 = vunpack.c.0.s8 %v1810
        %v1812 = vlaneseq
        %v1813 = vshrl.u32 %v1812, 7
        %v1814 = vsub.s32 %v1811, %v1813
        %v1815 = vrot.slane %v1805, %v1814
        %v1817 = vunpack.c.l.s4 1983009808
        %v1818 = vunpack.c.0.s8 %v1817
        %v1819 = vlaneseq
        %v1820 = vshrl.u32 %v1819, 7
        %v1821 = vsub.s32 %v1818, %v1820
        %v1822 = vrot.slane %v1808, %v1821
        %v1823 = vcombine.high %v1815, %v1815
        %v1824 = vcombine.high %v1822, %v1822
        %vm1829 = vcmask 1041408
        %v1830 = vsel %vm1829, %v1815, 0.0
        %v1831 = vrot.slane %v1830, 4
        %v1832 = vadd.f32 %v1830, %v1831
        %v1833 = vrot.slane %v1832, 2
        %v1834 = vadd.f32 %v1832, %v1833
        %v1835 = vrot.slane %v1834, 1
        %v1836 = vadd.f32 %v1834, %v1835
        %v1837 = vsel %vm1829, %v1823, 0.0
        %v1838 = vrot.slane %v1837, 4
        %v1839 = vadd.f32 %v1837, %v1838
        %v1840 = vrot.slane %v1839, 2
        %v1841 = vadd.f32 %v1839, %v1840
        %v1842 = vrot.slane %v1841, 1
        %v1843 = vadd.f32 %v1841, %v1842
        %v1844 = vsel %vm1829, %v1822, 0.0
        %v1845 = vrot.slane %v1844, 4
        %v1846 = vadd.f32 %v1844, %v1845
        %v1847 = vrot.slane %v1846, 2
        %v1848 = vadd.f32 %v1846, %v1847
        %v1849 = vrot.slane %v1848, 1
        %v1850 = vadd.f32 %v1848, %v1849
        %v1851 = vsel %vm1829, %v1824, 0.0
        %v1852 = vrot.slane %v1851, 4
        %v1853 = vadd.f32 %v1851, %v1852
        %v1854 = vrot.slane %v1853, 2
        %v1855 = vadd.f32 %v1853, %v1854
        %v1856 = vrot.slane %v1855, 1
        %v1857 = vadd.f32 %v1855, %v1856
        %v1862 = vcombine.low %v1836, %v1843
        %v1863 = vcombine.low %v1850, %v1857
        %v1865 = vunpack.c.l.s4 1966171168
        %v1866 = vunpack.c.0.s8 %v1865
        %v1867 = vlaneseq
        %v1868 = vshrl.u32 %v1867, 7
        %v1869 = vsub.s32 %v1866, %v1868
        %v1870 = vrot.slane %v1862, %v1869
        %v1872 = vunpack.c.l.s4 1966171168
        %v1873 = vunpack.c.0.s8 %v1872
        %v1874 = vlaneseq
        %v1875 = vshrl.u32 %v1874, 7
        %v1876 = vsub.s32 %v1873, %v1875
        %v1877 = vrot.slane %v1863, %v1876
        %v1878 = vcombine.low %v1870, %v1877
        %v1880 = vunpack.c.l.s4 1966171168
        %v1881 = vunpack.c.0.s8 %v1880
        %v1882 = vlaneseq
        %v1883 = vshrl.u32 %v1882, 7
        %v1884 = vsub.s32 %v1881, %v1883
        %v1885 = vrot.slane %v1878, %v1884
        %v1887 = vlaneseq
        %vm1888 = vcmp.ge.s32.totalorder %v1887, 0
        %vm1889 = vcmp.lt.s32.totalorder %v1887, 512
        %vm1890 = vmand %vm1888, %vm1889
        %1891 = vst.msk [vmem:[%s270] ss:$2 sm:$0xf] %vm1890, %v1885
        %v1892 = vmul.f32 %v1805, %v1805
        %v1894 = vcombine.high %v1892, %v1892
        %v1896 = vunpack.c.l.s4 1983009808
        %v1897 = vunpack.c.0.s8 %v1896
        %v1898 = vlaneseq
        %v1899 = vshrl.u32 %v1898, 7
        %v1900 = vsub.s32 %v1897, %v1899
        %v1901 = vrot.slane %v1892, %v1900
        %v1903 = vunpack.c.l.s4 1983009808
        %v1904 = vunpack.c.0.s8 %v1903
        %v1905 = vlaneseq
        %v1906 = vshrl.u32 %v1905, 7
        %v1907 = vsub.s32 %v1904, %v1906
        %v1908 = vrot.slane %v1894, %v1907
        %v1909 = vcombine.high %v1901, %v1901
        %v1910 = vcombine.high %v1908, %v1908
        %v1915 = vsel %vm1829, %v1901, 0.0
        %v1916 = vrot.slane %v1915, 4
        %v1917 = vadd.f32 %v1915, %v1916
        %v1918 = vrot.slane %v1917, 2
        %v1919 = vadd.f32 %v1917, %v1918
        %v1920 = vrot.slane %v1919, 1
        %v1921 = vadd.f32 %v1919, %v1920
        %v1922 = vsel %vm1829, %v1909, 0.0
        %v1923 = vrot.slane %v1922, 4
        %v1924 = vadd.f32 %v1922, %v1923
        %v1925 = vrot.slane %v1924, 2
        %v1926 = vadd.f32 %v1924, %v1925
        %v1927 = vrot.slane %v1926, 1
        %v1928 = vadd.f32 %v1926, %v1927
        %v1929 = vsel %vm1829, %v1908, 0.0
        %v1930 = vrot.slane %v1929, 4
        %v1931 = vadd.f32 %v1929, %v1930
        %v1932 = vrot.slane %v1931, 2
        %v1933 = vadd.f32 %v1931, %v1932
        %v1934 = vrot.slane %v1933, 1
        %v1935 = vadd.f32 %v1933, %v1934
        %v1936 = vsel %vm1829, %v1910, 0.0
        %v1937 = vrot.slane %v1936, 4
        %v1938 = vadd.f32 %v1936, %v1937
        %v1939 = vrot.slane %v1938, 2
        %v1940 = vadd.f32 %v1938, %v1939
        %v1941 = vrot.slane %v1940, 1
        %v1942 = vadd.f32 %v1940, %v1941
        %v1947 = vcombine.low %v1921, %v1928
        %v1948 = vcombine.low %v1935, %v1942
        %v1950 = vunpack.c.l.s4 1966171168
        %v1951 = vunpack.c.0.s8 %v1950
        %v1952 = vlaneseq
        %v1953 = vshrl.u32 %v1952, 7
        %v1954 = vsub.s32 %v1951, %v1953
        %v1955 = vrot.slane %v1947, %v1954
        %v1957 = vunpack.c.l.s4 1966171168
        %v1958 = vunpack.c.0.s8 %v1957
        %v1959 = vlaneseq
        %v1960 = vshrl.u32 %v1959, 7
        %v1961 = vsub.s32 %v1958, %v1960
        %v1962 = vrot.slane %v1948, %v1961
        %v1963 = vcombine.low %v1955, %v1962
        %v1965 = vunpack.c.l.s4 1966171168
        %v1966 = vunpack.c.0.s8 %v1965
        %v1967 = vlaneseq
        %v1968 = vshrl.u32 %v1967, 7
        %v1969 = vsub.s32 %v1966, %v1968
        %v1970 = vrot.slane %v1963, %v1969
        %s1972 = scalar_lea.vmem %s270, 1
        %1973 = vst.msk [vmem:[%s1972] ss:$2 sm:$0xf] %vm1890, %v1970
      $region40: #{discriminator_forward.15} parent=31 // pred_fallthru
        _
      %p1974 = scmp.lt.s32.totalorder %s21, 1
      %s1975 = scalar_select %p1974, %s21, 1
      %p1976 = scmp.lt.s32.totalorder %s22, 1
      %s1977 = scalar_select %p1976, %s22, 1
      %s1978 = smul.addr %s1977, 4
      %s1979 = smul.addr %s1975, 8
      %s1980 = sadd.s32 %s1978, %s1979
      %s1981 = smul.addr %s1980, 2
      %s1982 = scalar_lea.vmem %s3, %s1981
      %p1983 = scmp.lt.s32.totalorder %s21, 1
      %s1984 = scalar_select %p1983, %s21, 1
      %p1985 = scmp.lt.s32.totalorder %s22, 1
      %s1986 = scalar_select %p1985, %s22, 1
      %s1987 = smul.addr %s1986, 4
      %s1988 = smul.addr %s1984, 8
      %s1989 = sadd.s32 %s1987, %s1988
      %s1990 = smul.addr %s1989, 2
      %s1991 = scalar_lea.vmem %s4, %s1990
      // Predicated region
      $region41: #{discriminator_forward.15} parent=31 // pred_check
        %p1992 = pneg %p127
      $region42: #{discriminator_forward.15} parent=31 // pred_check_branch
        %1994 = sbr.rel (%p1992) target = $region44
      $region43: #{discriminator_forward.15} parent=31 // pred_region
        _
      $region44: #{discriminator_forward.15} parent=31 // pred_fallthru
        _
      // Predicated region
      $region45: #{discriminator_forward.15} parent=31 // pred_check
        %p1995 = pneg %p155
      $region46: #{discriminator_forward.15} parent=31 // pred_check_branch
        %1997 = sbr.rel (%p1995) target = $region48
      $region47: #{discriminator_forward.15} parent=31 // pred_region
        _
      $region48: #{discriminator_forward.15} parent=31 // pred_fallthru
        _
    $region32: #{discriminator_forward.15} parent=5 // pred_fallthru
      _
    %p1998 = scmp.le.s32.totalorder 2, %s11
    // Predicated region
    $region49: #{discriminator_forward.15} parent=5 // pred_check
      %p1999 = pneg %p1998
    $region50: #{discriminator_forward.15} parent=5 // pred_check_branch
      %2001 = sbr.rel (%p1999) target = $region52
    $region51: #{discriminator_forward.15} parent=5 // pred_region
      %s2002 = ssub.s32 %s11, 2
      // Predicated region
      $region53: #{discriminator_forward.15} parent=51 // pred_check
        %p2003 = pneg %p133
      $region54: #{discriminator_forward.15} parent=51 // pred_check_branch
        %2005 = sbr.rel (%p2003) target = $region56
      $region55: #{discriminator_forward.15} parent=51 // pred_region
        %p2006 = scmp.lt.s32.totalorder %s24, 1
        %s2007 = scalar_select %p2006, %s24, 1
        %p2008 = scmp.lt.s32.totalorder %s25, 1
        %s2009 = scalar_select %p2008, %s25, 1
        %s2010 = smul.addr %s2009, 4
        %s2011 = smul.addr %s2007, 8
        %s2012 = sadd.s32 %s2010, %s2011
        %s2013 = smul.addr %s2012, 2
        %s2014 = scalar_lea.vmem %s3, %s2013
      $region56: #{discriminator_forward.15} parent=51 // pred_fallthru
        _
      // Predicated region
      $region57: #{discriminator_forward.15} parent=51 // pred_check
        %p2015 = pneg %p161
      $region58: #{discriminator_forward.15} parent=51 // pred_check_branch
        %2017 = sbr.rel (%p2015) target = $region60
      $region59: #{discriminator_forward.15} parent=51 // pred_region
        %p2018 = scmp.lt.s32.totalorder %s24, 1
        %s2019 = scalar_select %p2018, %s24, 1
        %p2020 = scmp.lt.s32.totalorder %s25, 1
        %s2021 = scalar_select %p2020, %s25, 1
        %s2022 = smul.addr %s2021, 4
        %s2023 = smul.addr %s2019, 8
        %s2024 = sadd.s32 %s2022, %s2023
        %s2025 = smul.addr %s2024, 2
        %s2026 = scalar_lea.vmem %s4, %s2025
      $region60: #{discriminator_forward.15} parent=51 // pred_fallthru
        _
    $region52: #{discriminator_forward.15} parent=5 // pred_fallthru
      _
  $region6: #{discriminator_forward.15} parent=0 // loop_footer
    %s15 = sadd.s32 1, %s11
  $region7: #{discriminator_forward.15} parent=0 // loop_footer_branch
    %10 = sbr.rel target = $region3
  $region8: #{discriminator_forward.15} parent=0 // loop_exit
    _

// kernel: discriminator_forward.19
$region0: #{discriminator_forward.19}
  #allocation0 [shape = 'u32[]', space=smem, size = 0x4, offset = 0x4, fixed_abs, tag = 'smem constant byte address 0x4 - core index']
  #allocation1 [shape = 'u32[144,128]{1,0:T(1,128)}', space=vmem, size = 0x12000, scoped, tag = 'internal scratch']
  #allocation2 [shape = 'f32[1,1]{1,0:T(1,128)S(1)}', space=vmem, size = 0x200, scoped, tag = 'scoped memory for discriminator_forward.19']
  %s0 = inlined_call_operand.vmem [shape: bf16[2,4,4,512], index: 0, kind: input, shape index: {}]
  %s1 = inlined_call_operand.vmem [shape: bf16[3,3,512,1], index: 1, kind: input, shape index: {}]
  %s2 = inlined_call_operand.<no memory space> [shape: f32[1,1], index: 2, kind: input, shape index: {}]
  %s3 = inlined_call_operand.vmem [shape: f32[2,2,2,1], index: 3, kind: output, shape index: {}]
  %s4 = sld [smem:[#allocation0]]
  $region53: #{discriminator_forward.19} parent=0
    _
  %s6 = ssub.s32 1, %s4
  %s7 = scalar_select 0, %s6, %s4
  %v8 = vstv %s2
  %9 = vst [vmem:[#allocation2] sm:$0x1] %v8
  loop: start=0, step=1, limit=14
  $region2: #{discriminator_forward.19} parent=0 // loop_pre_header
    _
  $region3: #{discriminator_forward.19} parent=0 // loop_header
    %s11 = sphi 0, %s15
    %p12 = scmp.ge.s32.totalorder %s11, 14
    %s18 = sphi 0, %s37
    %s19 = sphi 0, %s33
    %s20 = sphi 0, %s29
    %s21 = sphi 0, %s18
    %s22 = sphi 0, %s19
    %s23 = sphi 0, %s20
    %s24 = sphi 0, %s21
    %s25 = sphi 0, %s22
    %s26 = sphi 0, %s23
    %s44 = sphi 0, %s46
    %s47 = sphi 0, %s44
    %s48 = sphi 0, %s47
    %s64 = sphi 0, %s48
    %s68 = sphi 0, %s68
    %s70 = sphi 0, %s68
    %s71 = sphi 0, %s70
    %s85 = sphi 0, %s71
    %s89 = sphi 0, %s89
    %s91 = sphi 0, %s89
    %s92 = sphi 0, %s91
    %s106 = sphi 0, %s92
    %s114 = sphi 0, %s116
    %s117 = sphi 0, %s114
    %s118 = sphi 0, %s117
    %s134 = sphi 0, %s118
  $region4: #{discriminator_forward.19} parent=0 // loop_header_branch
    %14 = sbr.rel (%p12) target = $region8
  $region5: #{discriminator_forward.19} parent=0 // loop_body
    %s16 = ssub.s32 %s11, 1
    %s17 = ssub.s32 %s11, 2
    %s27 = sadd.s32 1, %s20
    %p28 = scmp.ge.s32.totalorder %s27, 3
    %s29 = scalar_select %p28, 0, %s27
    %s30 = sadd.s32 1, %s19
    %s31 = scalar_select %p28, %s30, %s19
    %p32 = scmp.ge.s32.totalorder %s31, 2
    %s33 = scalar_select %p32, 0, %s31
    %s34 = sadd.s32 1, %s18
    %s35 = scalar_select %p32, %s34, %s18
    %p36 = scmp.ge.s32.totalorder %s35, 2
    %s37 = scalar_select %p36, 0, %s35
    %s38 = sadd.s32 %s19, %s20
    %s39 = sadd.s32 %s33, %s29
    %s40 = ssub.s32 %s18, %s37
    %s41 = ssub.s32 %s38, %s39
    %s42 = sor.u32 %s40, %s41
    %p43 = scmp.eq.s32.totalorder %s42, 0
    %s45 = sadd.s32 %s44, 1
    %s46 = scalar_select %p43, %s44, %s45
    %p49 = pneg %p43
    %p50 = scmp.eq.s32.totalorder %s11, 11
    %p51 = por %p49, %p50
    %p52 = scmp.ne.s32.totalorder %s44, %s47
    %p53 = scmp.eq.s32.totalorder %s11, 0
    %p54 = por %p52, %p53
    %p55 = scmp.ne.s32.totalorder %s44, %s47
    %p56 = scmp.eq.s32.totalorder %s16, 11
    %p57 = por %p55, %p56
    %p58 = scmp.ne.s32.totalorder %s47, %s48
    %p59 = scmp.eq.s32.totalorder %s16, 0
    %p60 = por %p58, %p59
    %p61 = scmp.ne.s32.totalorder %s47, %s48
    %p62 = scmp.eq.s32.totalorder %s17, 11
    %p63 = por %p61, %p62
    %p65 = scmp.ne.s32.totalorder %s48, %s64
    %p66 = scmp.eq.s32.totalorder %s17, 0
    %p67 = por %p65, %p66
    %s69 = sadd.s32 %s68, 1
    %p72 = scmp.eq.s32.totalorder %s11, 11
    %p73 = scmp.ne.s32.totalorder %s68, %s70
    %p74 = scmp.eq.s32.totalorder %s11, 0
    %p75 = por %p73, %p74
    %p76 = scmp.ne.s32.totalorder %s68, %s70
    %p77 = scmp.eq.s32.totalorder %s16, 11
    %p78 = por %p76, %p77
    %p79 = scmp.ne.s32.totalorder %s70, %s71
    %p80 = scmp.eq.s32.totalorder %s16, 0
    %p81 = por %p79, %p80
    %p82 = scmp.ne.s32.totalorder %s70, %s71
    %p83 = scmp.eq.s32.totalorder %s17, 11
    %p84 = por %p82, %p83
    %p86 = scmp.ne.s32.totalorder %s71, %s85
    %p87 = scmp.eq.s32.totalorder %s17, 0
    %p88 = por %p86, %p87
    %s90 = sadd.s32 %s89, 1
    %p93 = scmp.eq.s32.totalorder %s11, 11
    %p94 = scmp.ne.s32.totalorder %s89, %s91
    %p95 = scmp.eq.s32.totalorder %s11, 0
    %p96 = por %p94, %p95
    %p97 = scmp.ne.s32.totalorder %s89, %s91
    %p98 = scmp.eq.s32.totalorder %s16, 11
    %p99 = por %p97, %p98
    %p100 = scmp.ne.s32.totalorder %s91, %s92
    %p101 = scmp.eq.s32.totalorder %s16, 0
    %p102 = por %p100, %p101
    %p103 = scmp.ne.s32.totalorder %s91, %s92
    %p104 = scmp.eq.s32.totalorder %s17, 11
    %p105 = por %p103, %p104
    %p107 = scmp.ne.s32.totalorder %s92, %s106
    %p108 = scmp.eq.s32.totalorder %s17, 0
    %p109 = por %p107, %p108
    %s110 = ssub.s32 %s18, %s37
    %s111 = ssub.s32 %s19, %s33
    %s112 = sor.u32 %s110, %s111
    %p113 = scmp.eq.s32.totalorder %s112, 0
    %s115 = sadd.s32 %s114, 1
    %s116 = scalar_select %p113, %s114, %s115
    %p119 = pneg %p113
    %p120 = scmp.eq.s32.totalorder %s11, 11
    %p121 = por %p119, %p120
    %p122 = scmp.ne.s32.totalorder %s114, %s117
    %p123 = scmp.eq.s32.totalorder %s11, 0
    %p124 = por %p122, %p123
    %p125 = scmp.ne.s32.totalorder %s114, %s117
    %p126 = scmp.eq.s32.totalorder %s16, 11
    %p127 = por %p125, %p126
    %p128 = scmp.ne.s32.totalorder %s117, %s118
    %p129 = scmp.eq.s32.totalorder %s16, 0
    %p130 = por %p128, %p129
    %p131 = scmp.ne.s32.totalorder %s117, %s118
    %p132 = scmp.eq.s32.totalorder %s17, 11
    %p133 = por %p131, %p132
    %p135 = scmp.ne.s32.totalorder %s118, %s134
    %p136 = scmp.eq.s32.totalorder %s17, 0
    %p137 = por %p135, %p136
    %p138 = scmp.le.s32.totalorder 1, %s11
    %p139 = scmp.lt.s32.totalorder %s11, 13
    %p140 = pnand %p138, %p139
    %p141 = pneg %p140
    // Predicated region
    $region9: #{discriminator_forward.19} parent=5 // pred_check
      _
    $region10: #{discriminator_forward.19} parent=5 // pred_check_branch
      %143 = sbr.rel (%p140) target = $region12
    $region11: #{discriminator_forward.19} parent=5 // pred_region
      %s144 = ssub.s32 %s11, 1
      // Predicated region
      $region13: #{discriminator_forward.19} parent=11 // pred_check
        %p145 = pneg %p81
      $region14: #{discriminator_forward.19} parent=11 // pred_check_branch
        %147 = sbr.rel (%p145) target = $region16
      $region15: #{discriminator_forward.19} parent=11 // pred_region
        _
      $region16: #{discriminator_forward.19} parent=11 // pred_fallthru
        _
      // Predicated region
      $region17: #{discriminator_forward.19} parent=11 // pred_check
        %p148 = pneg %p102
      $region18: #{discriminator_forward.19} parent=11 // pred_check_branch
        %150 = sbr.rel (%p148) target = $region20
      $region19: #{discriminator_forward.19} parent=11 // pred_region
        _
      $region20: #{discriminator_forward.19} parent=11 // pred_fallthru
        _
    $region12: #{discriminator_forward.19} parent=5 // pred_fallthru
      _
    %p151 = scmp.lt.s32.totalorder %s11, 12
    // Predicated region
    $region21: #{discriminator_forward.19} parent=5 // pred_check
      %p152 = pneg %p151
    $region22: #{discriminator_forward.19} parent=5 // pred_check_branch
      %154 = sbr.rel (%p152) target = $region24
    $region23: #{discriminator_forward.19} parent=5 // pred_region
      // Predicated region
      $region25: #{discriminator_forward.19} parent=23 // pred_check
        %p155 = pneg %p54
      $region26: #{discriminator_forward.19} parent=23 // pred_check_branch
        %157 = sbr.rel (%p155) target = $region28
      $region27: #{discriminator_forward.19} parent=23 // pred_region
        %s158 = sadd.s32 %s19, %s20
        %p159 = scmp.lt.s32.totalorder %s18, 1
        %s160 = scalar_select %p159, %s18, 1
        %p161 = scmp.lt.s32.totalorder %s158, 3
        %s162 = scalar_select %p161, %s158, 3
        %s163 = smul.addr %s162, 4
        %s164 = smul.addr %s160, 16
        %s165 = sadd.s32 %s163, %s164
        %s166 = smul.addr %s165, 2
        %s167 = scalar_lea.vmem %s0, %s166
        %s168 = sadd.s32 %s19, %s20
      $region28: #{discriminator_forward.19} parent=23 // pred_fallthru
        _
    $region24: #{discriminator_forward.19} parent=5 // pred_fallthru
      _
    %p169 = scmp.le.s32.totalorder 1, %s11
    %p170 = scmp.lt.s32.totalorder %s11, 13
    %p171 = pnand %p169, %p170
    %p172 = pneg %p171
    // Predicated region
    $region29: #{discriminator_forward.19} parent=5 // pred_check
      _
    $region30: #{discriminator_forward.19} parent=5 // pred_check_branch
      %174 = sbr.rel (%p171) target = $region32
    $region31: #{discriminator_forward.19} parent=5 // pred_region
      %s175 = ssub.s32 %s11, 1
      %s176 = sadd.s32 %s22, %s23
      %p177 = scmp.lt.s32.totalorder %s21, 1
      %s178 = scalar_select %p177, %s21, 1
      %p179 = scmp.lt.s32.totalorder %s176, 3
      %s180 = scalar_select %p179, %s176, 3
      %s181 = smul.addr %s180, 4
      %s182 = smul.addr %s178, 16
      %s183 = sadd.s32 %s181, %s182
      %s184 = smul.addr %s183, 2
      %s185 = scalar_lea.vmem %s0, %s184
      %p186 = pneg %p60
      %p187 = pneg %p57
      %p188 = pneg %p81
      %p189 = pneg %p78
      %p190 = pneg %p102
      %p191 = pneg %p99
      %p192 = pneg %p130
      %p193 = pneg %p127
      %p194 = scmp.lt.s32.totalorder %s21, 1
      %s195 = scalar_select %p194, %s21, 1
      %p196 = scmp.lt.s32.totalorder %s22, 1
      %s197 = scalar_select %p196, %s22, 1
      %s198 = smul.addr %s195, 2
      %s199 = sadd.s32 %s197, %s198
      %s200 = smul.addr %s199, 2
      %s201 = scalar_lea.vmem %s3, %s200
      %s202 = sadd.s32 %s22, %s23
      %p203 = scmp.lt.s32.totalorder %s21, 1
      %s204 = scalar_select %p203, %s21, 1
      %p205 = scmp.lt.s32.totalorder %s202, 3
      %s206 = scalar_select %p205, %s202, 3
      %s207 = smul.addr %s206, 4
      %s208 = smul.addr %s204, 16
      %s209 = sadd.s32 %s207, %s208
      %s210 = smul.addr %s209, 2
      %s211 = scalar_lea.vmem %s0, %s210
      %s212 = sadd.s32 %s22, %s23
      %p213 = scmp.lt.s32.totalorder %s21, 1
      %s214 = scalar_select %p213, %s21, 1
      %p215 = scmp.lt.s32.totalorder %s22, 1
      %s216 = scalar_select %p215, %s22, 1
      %s217 = smul.addr %s214, 2
      %s218 = sadd.s32 %s216, %s217
      %s219 = smul.addr %s218, 2
      %s220 = scalar_lea.vmem %s3, %s219
      %p222 = scmp.eq.s32.totalorder %s23, 0
      // Predicated region
      $region33: #{discriminator_forward.19} parent=31 // pred_check
        %p223 = pneg %p222
      $region34: #{discriminator_forward.19} parent=31 // pred_check_branch
        %225 = sbr.rel (%p223) target = $region36
      $region35: #{discriminator_forward.19} parent=31 // pred_region
        %vm226 = vcmask 1024
        %227 = vst.msk [vmem:[%s220] sm:$0x3] %vm226, 0.0
      $region36: #{discriminator_forward.19} parent=31 // pred_fallthru
        _
      %v228 = vld [vmem:[%s211] sm:$0x55]
      %s229 = smul.u32 %s23, 192
      %s230 = smul.addr %s229, 4
      %s231 = scalar_lea.vmem %s1, %s230
      %v232 = vld [vmem:[%s231] sm:$0xf]
      %v233 = vld [vmem:[%s231 + $0x4] sm:$0xf]
      %v234 = vld [vmem:[%s231 + $0x8] sm:$0xf]
      %v235 = vld [vmem:[%s231 + $0xc] sm:$0xf]
      %v236 = vld [vmem:[%s231 + $0x10] sm:$0xf]
      %v237 = vld [vmem:[%s231 + $0x14] sm:$0xf]
      %v238 = vld [vmem:[%s231 + $0x18] sm:$0xf]
      %v239 = vld [vmem:[%s231 + $0x1c] sm:$0xf]
      %v240 = vld [vmem:[%s231 + $0x20] sm:$0xf]
      %v241 = vld [vmem:[%s231 + $0x24] sm:$0xf]
      %v242 = vld [vmem:[%s231 + $0x28] sm:$0xf]
      %v243 = vld [vmem:[%s231 + $0x2c] sm:$0xf]
      %v244 = vld [vmem:[%s231 + $0x30] sm:$0xf]
      %v245 = vld [vmem:[%s231 + $0x34] sm:$0xf]
      %v246 = vld [vmem:[%s231 + $0x38] sm:$0xf]
      %v247 = vld [vmem:[%s231 + $0x3c] sm:$0xf]
      %v248 = vld [vmem:[%s231 + $0x40] sm:$0xf]
      %v249 = vld [vmem:[%s231 + $0x44] sm:$0xf]
      %v250 = vld [vmem:[%s231 + $0x48] sm:$0xf]
      %v251 = vld [vmem:[%s231 + $0x4c] sm:$0xf]
      %v252 = vld [vmem:[%s231 + $0x50] sm:$0xf]
      %v253 = vld [vmem:[%s231 + $0x54] sm:$0xf]
      %v254 = vld [vmem:[%s231 + $0x58] sm:$0xf]
      %v255 = vld [vmem:[%s231 + $0x5c] sm:$0xf]
      %v256 = vld [vmem:[%s231 + $0x60] sm:$0xf]
      %v257 = vld [vmem:[%s231 + $0x64] sm:$0xf]
      %v258 = vld [vmem:[%s231 + $0x68] sm:$0xf]
      %v259 = vld [vmem:[%s231 + $0x6c] sm:$0xf]
      %v260 = vld [vmem:[%s231 + $0x70] sm:$0xf]
      %v261 = vld [vmem:[%s231 + $0x74] sm:$0xf]
      %v262 = vld [vmem:[%s231 + $0x78] sm:$0xf]
      %v263 = vld [vmem:[%s231 + $0x7c] sm:$0xf]
      %v264 = vld [vmem:[%s231 + $0x80] sm:$0xf]
      %v265 = vld [vmem:[%s231 + $0x84] sm:$0xf]
      %v266 = vld [vmem:[%s231 + $0x88] sm:$0xf]
      %v267 = vld [vmem:[%s231 + $0x8c] sm:$0xf]
      %v268 = vld [vmem:[%s231 + $0x90] sm:$0xf]
      %v269 = vld [vmem:[%s231 + $0x94] sm:$0xf]
      %v270 = vld [vmem:[%s231 + $0x98] sm:$0xf]
      %v271 = vld [vmem:[%s231 + $0x9c] sm:$0xf]
      %v272 = vld [vmem:[%s231 + $0xa0] sm:$0xf]
      %v273 = vld [vmem:[%s231 + $0xa4] sm:$0xf]
      %v274 = vld [vmem:[%s231 + $0xa8] sm:$0xf]
      %v275 = vld [vmem:[%s231 + $0xac] sm:$0xf]
      %v276 = vld [vmem:[%s231 + $0xb0] sm:$0xf]
      %v277 = vld [vmem:[%s231 + $0xb4] sm:$0xf]
      %v278 = vld [vmem:[%s231 + $0xb8] sm:$0xf]
      %v279 = vld [vmem:[%s231 + $0xbc] sm:$0xf]
      %v280 = vld [vmem:[%s231 + $0xc0] sm:$0xf]
      %v281 = vld [vmem:[%s231 + $0xc4] sm:$0xf]
      %v282 = vld [vmem:[%s231 + $0xc8] sm:$0xf]
      %v283 = vld [vmem:[%s231 + $0xcc] sm:$0xf]
      %v284 = vld [vmem:[%s231 + $0xd0] sm:$0xf]
      %v285 = vld [vmem:[%s231 + $0xd4] sm:$0xf]
      %v286 = vld [vmem:[%s231 + $0xd8] sm:$0xf]
      %v287 = vld [vmem:[%s231 + $0xdc] sm:$0xf]
      %v288 = vld [vmem:[%s231 + $0xe0] sm:$0xf]
      %v289 = vld [vmem:[%s231 + $0xe4] sm:$0xf]
      %v290 = vld [vmem:[%s231 + $0xe8] sm:$0xf]
      %v291 = vld [vmem:[%s231 + $0xec] sm:$0xf]
      %v292 = vld [vmem:[%s231 + $0xf0] sm:$0xf]
      %v293 = vld [vmem:[%s231 + $0xf4] sm:$0xf]
      %v294 = vld [vmem:[%s231 + $0xf8] sm:$0xf]
      %v295 = vld [vmem:[%s231 + $0xfc] sm:$0xf]
      %v296 = vld [vmem:[%s211] sm:$0xff]
      %s297 = sadd.s32 64, %s229
      %s298 = smul.addr %s297, 4
      %s299 = scalar_lea.vmem %s1, %s298
      %v300 = vld [vmem:[%s299] sm:$0xf]
      %v301 = vld [vmem:[%s299 + $0x4] sm:$0xf]
      %v302 = vld [vmem:[%s299 + $0x8] sm:$0xf]
      %v303 = vld [vmem:[%s299 + $0xc] sm:$0xf]
      %v304 = vld [vmem:[%s299 + $0x10] sm:$0xf]
      %v305 = vld [vmem:[%s299 + $0x14] sm:$0xf]
      %v306 = vld [vmem:[%s299 + $0x18] sm:$0xf]
      %v307 = vld [vmem:[%s299 + $0x1c] sm:$0xf]
      %v308 = vld [vmem:[%s299 + $0x20] sm:$0xf]
      %v309 = vld [vmem:[%s299 + $0x24] sm:$0xf]
      %v310 = vld [vmem:[%s299 + $0x28] sm:$0xf]
      %v311 = vld [vmem:[%s299 + $0x2c] sm:$0xf]
      %v312 = vld [vmem:[%s299 + $0x30] sm:$0xf]
      %v313 = vld [vmem:[%s299 + $0x34] sm:$0xf]
      %v314 = vld [vmem:[%s299 + $0x38] sm:$0xf]
      %v315 = vld [vmem:[%s299 + $0x3c] sm:$0xf]
      %v316 = vld [vmem:[%s299 + $0x40] sm:$0xf]
      %v317 = vld [vmem:[%s299 + $0x44] sm:$0xf]
      %v318 = vld [vmem:[%s299 + $0x48] sm:$0xf]
      %v319 = vld [vmem:[%s299 + $0x4c] sm:$0xf]
      %v320 = vld [vmem:[%s299 + $0x50] sm:$0xf]
      %v321 = vld [vmem:[%s299 + $0x54] sm:$0xf]
      %v322 = vld [vmem:[%s299 + $0x58] sm:$0xf]
      %v323 = vld [vmem:[%s299 + $0x5c] sm:$0xf]
      %v324 = vld [vmem:[%s299 + $0x60] sm:$0xf]
      %v325 = vld [vmem:[%s299 + $0x64] sm:$0xf]
      %v326 = vld [vmem:[%s299 + $0x68] sm:$0xf]
      %v327 = vld [vmem:[%s299 + $0x6c] sm:$0xf]
      %v328 = vld [vmem:[%s299 + $0x70] sm:$0xf]
      %v329 = vld [vmem:[%s299 + $0x74] sm:$0xf]
      %v330 = vld [vmem:[%s299 + $0x78] sm:$0xf]
      %v331 = vld [vmem:[%s299 + $0x7c] sm:$0xf]
      %v332 = vld [vmem:[%s299 + $0x80] sm:$0xf]
      %v333 = vld [vmem:[%s299 + $0x84] sm:$0xf]
      %v334 = vld [vmem:[%s299 + $0x88] sm:$0xf]
      %v335 = vld [vmem:[%s299 + $0x8c] sm:$0xf]
      %v336 = vld [vmem:[%s299 + $0x90] sm:$0xf]
      %v337 = vld [vmem:[%s299 + $0x94] sm:$0xf]
      %v338 = vld [vmem:[%s299 + $0x98] sm:$0xf]
      %v339 = vld [vmem:[%s299 + $0x9c] sm:$0xf]
      %v340 = vld [vmem:[%s299 + $0xa0] sm:$0xf]
      %v341 = vld [vmem:[%s299 + $0xa4] sm:$0xf]
      %v342 = vld [vmem:[%s299 + $0xa8] sm:$0xf]
      %v343 = vld [vmem:[%s299 + $0xac] sm:$0xf]
      %v344 = vld [vmem:[%s299 + $0xb0] sm:$0xf]
      %v345 = vld [vmem:[%s299 + $0xb4] sm:$0xf]
      %v346 = vld [vmem:[%s299 + $0xb8] sm:$0xf]
      %v347 = vld [vmem:[%s299 + $0xbc] sm:$0xf]
      %v348 = vld [vmem:[%s299 + $0xc0] sm:$0xf]
      %v349 = vld [vmem:[%s299 + $0xc4] sm:$0xf]
      %v350 = vld [vmem:[%s299 + $0xc8] sm:$0xf]
      %v351 = vld [vmem:[%s299 + $0xcc] sm:$0xf]
      %v352 = vld [vmem:[%s299 + $0xd0] sm:$0xf]
      %v353 = vld [vmem:[%s299 + $0xd4] sm:$0xf]
      %v354 = vld [vmem:[%s299 + $0xd8] sm:$0xf]
      %v355 = vld [vmem:[%s299 + $0xdc] sm:$0xf]
      %v356 = vld [vmem:[%s299 + $0xe0] sm:$0xf]
      %v357 = vld [vmem:[%s299 + $0xe4] sm:$0xf]
      %v358 = vld [vmem:[%s299 + $0xe8] sm:$0xf]
      %v359 = vld [vmem:[%s299 + $0xec] sm:$0xf]
      %v360 = vld [vmem:[%s299 + $0xf0] sm:$0xf]
      %v361 = vld [vmem:[%s299 + $0xf4] sm:$0xf]
      %v362 = vld [vmem:[%s299 + $0xf8] sm:$0xf]
      %v363 = vld [vmem:[%s299 + $0xfc] sm:$0xf]
      %v365 = vcombine.high %v296, %v296
      %v367 = vunpack.c.l.s4 1983009808
      %v368 = vunpack.c.0.s8 %v367
      %v369 = vlaneseq
      %v370 = vshrl.u32 %v369, 7
      %v371 = vsub.s32 %v368, %v370
      %v372 = vrot.slane %v296, %v371
      %v374 = vunpack.c.l.s4 1983009808
      %v375 = vunpack.c.0.s8 %v374
      %v376 = vlaneseq
      %v377 = vshrl.u32 %v376, 7
      %v378 = vsub.s32 %v375, %v377
      %v379 = vrot.slane %v365, %v378
      %v380 = vcombine.high %v372, %v372
      %v381 = vcombine.high %v379, %v379
      %v383 = vshrl.u32 %v372, 16
      %v385 = vshll.u32 %v372, 16
      %v387 = vrot.slane %v385, 1
      %v388 = vor.u32 %v383, %v387
      %v390 = vshrl.u32 %v380, 16
      %v392 = vshll.u32 %v380, 16
      %v394 = vrot.slane %v392, 1
      %v395 = vor.u32 %v390, %v394
      %v397 = vshrl.u32 %v379, 16
      %v399 = vshll.u32 %v379, 16
      %v401 = vrot.slane %v399, 1
      %v402 = vor.u32 %v397, %v401
      %v404 = vshrl.u32 %v381, 16
      %v406 = vshll.u32 %v381, 16
      %v408 = vrot.slane %v406, 1
      %v409 = vor.u32 %v404, %v408
      %v478 = vunpack.c.l.b16 %v300
      %v479 = vunpack.c.l.b16 %v301
      %v480 = vunpack.c.l.b16 %v302
      %v481 = vunpack.c.l.b16 %v303
      %v482 = vunpack.c.l.b16 %v304
      %v483 = vunpack.c.l.b16 %v305
      %v484 = vunpack.c.l.b16 %v306
      %v485 = vunpack.c.l.b16 %v307
      %v486 = vunpack.c.l.b16 %v308
      %v487 = vunpack.c.l.b16 %v309
      %v488 = vunpack.c.l.b16 %v310
      %v489 = vunpack.c.l.b16 %v311
      %v490 = vunpack.c.l.b16 %v312
      %v491 = vunpack.c.l.b16 %v313
      %v492 = vunpack.c.l.b16 %v314
      %v493 = vunpack.c.l.b16 %v315
      %v494 = vunpack.c.l.b16 %v316
      %v495 = vunpack.c.l.b16 %v317
      %v496 = vunpack.c.l.b16 %v318
      %v497 = vunpack.c.l.b16 %v319
      %v498 = vunpack.c.l.b16 %v320
      %v499 = vunpack.c.l.b16 %v321
      %v500 = vunpack.c.l.b16 %v322
      %v501 = vunpack.c.l.b16 %v323
      %v502 = vunpack.c.l.b16 %v324
      %v503 = vunpack.c.l.b16 %v325
      %v504 = vunpack.c.l.b16 %v326
      %v505 = vunpack.c.l.b16 %v327
      %v506 = vunpack.c.l.b16 %v328
      %v507 = vunpack.c.l.b16 %v329
      %v508 = vunpack.c.l.b16 %v330
      %v509 = vunpack.c.l.b16 %v331
      %v510 = vunpack.c.l.b16 %v332
      %v511 = vunpack.c.l.b16 %v333
      %v512 = vunpack.c.l.b16 %v334
      %v513 = vunpack.c.l.b16 %v335
      %v514 = vunpack.c.l.b16 %v336
      %v515 = vunpack.c.l.b16 %v337
      %v516 = vunpack.c.l.b16 %v338
      %v517 = vunpack.c.l.b16 %v339
      %v518 = vunpack.c.l.b16 %v340
      %v519 = vunpack.c.l.b16 %v341
      %v520 = vunpack.c.l.b16 %v342
      %v521 = vunpack.c.l.b16 %v343
      %v522 = vunpack.c.l.b16 %v344
      %v523 = vunpack.c.l.b16 %v345
      %v524 = vunpack.c.l.b16 %v346
      %v525 = vunpack.c.l.b16 %v347
      %v526 = vunpack.c.l.b16 %v348
      %v527 = vunpack.c.l.b16 %v349
      %v528 = vunpack.c.l.b16 %v350
      %v529 = vunpack.c.l.b16 %v351
      %v530 = vunpack.c.l.b16 %v352
      %v531 = vunpack.c.l.b16 %v353
      %v532 = vunpack.c.l.b16 %v354
      %v533 = vunpack.c.l.b16 %v355
      %v534 = vunpack.c.l.b16 %v356
      %v535 = vunpack.c.l.b16 %v357
      %v536 = vunpack.c.l.b16 %v358
      %v537 = vunpack.c.l.b16 %v359
      %v538 = vunpack.c.l.b16 %v360
      %v539 = vunpack.c.l.b16 %v361
      %v540 = vunpack.c.l.b16 %v362
      %v541 = vunpack.c.l.b16 %v363
      %v542 = vpack.c.b16 %v479, %v478
      %v543 = vpack.c.b16 %v481, %v480
      %v544 = vpack.c.b16 %v483, %v482
      %v545 = vpack.c.b16 %v485, %v484
      %v546 = vpack.c.b16 %v487, %v486
      %v547 = vpack.c.b16 %v489, %v488
      %v548 = vpack.c.b16 %v491, %v490
      %v549 = vpack.c.b16 %v493, %v492
      %v550 = vpack.c.b16 %v495, %v494
      %v551 = vpack.c.b16 %v497, %v496
      %v552 = vpack.c.b16 %v499, %v498
      %v553 = vpack.c.b16 %v501, %v500
      %v554 = vpack.c.b16 %v503, %v502
      %v555 = vpack.c.b16 %v505, %v504
      %v556 = vpack.c.b16 %v507, %v506
      %v557 = vpack.c.b16 %v509, %v508
      %v558 = vpack.c.b16 %v511, %v510
      %v559 = vpack.c.b16 %v513, %v512
      %v560 = vpack.c.b16 %v515, %v514
      %v561 = vpack.c.b16 %v517, %v516
      %v562 = vpack.c.b16 %v519, %v518
      %v563 = vpack.c.b16 %v521, %v520
      %v564 = vpack.c.b16 %v523, %v522
      %v565 = vpack.c.b16 %v525, %v524
      %v566 = vpack.c.b16 %v527, %v526
      %v567 = vpack.c.b16 %v529, %v528
      %v568 = vpack.c.b16 %v531, %v530
      %v569 = vpack.c.b16 %v533, %v532
      %v570 = vpack.c.b16 %v535, %v534
      %v571 = vpack.c.b16 %v537, %v536
      %v572 = vpack.c.b16 %v539, %v538
      %v573 = vpack.c.b16 %v541, %v540
      %606 = vmatprep.subr.bf16.mxu0 0
      %607 = vmatpush1.bf16.msra.mxu0 %v549
      %608 = vmatprep.subr.bf16.mxu0 0
      %609 = vmatpush1.bf16.msra.mxu0 %v548
      %610 = vmatprep.subr.bf16.mxu0 0
      %611 = vmatpush1.bf16.msra.mxu0 %v547
      %612 = vmatprep.subr.bf16.mxu0 0
      %613 = vmatpush1.bf16.msra.mxu0 %v546
      %614 = vmatprep.subr.bf16.mxu0 0
      %615 = vmatpush1.bf16.msra.mxu0 %v545
      %616 = vmatprep.subr.bf16.mxu0 0
      %617 = vmatpush1.bf16.msra.mxu0 %v544
      %618 = vmatprep.subr.bf16.mxu0 0
      %619 = vmatpush1.bf16.msra.mxu0 %v543
      %620 = vmatprep.subr.bf16.mxu0 0
      %621 = vmatpush1.bf16.msra.mxu0 %v542
      %622 = vmatprep.subr.bf16.mxu0 0
      %623 = vmatpush2.bf16.msra.mxu0 %v557
      %624 = vmatprep.subr.bf16.mxu0 0
      %625 = vmatpush2.bf16.msra.mxu0 %v556
      %626 = vmatprep.subr.bf16.mxu0 0
      %627 = vmatpush2.bf16.msra.mxu0 %v555
      %628 = vmatprep.subr.bf16.mxu0 0
      %629 = vmatpush2.bf16.msra.mxu0 %v554
      %630 = vmatprep.subr.bf16.mxu0 0
      %631 = vmatpush2.bf16.msra.mxu0 %v553
      %632 = vmatprep.subr.bf16.mxu0 0
      %633 = vmatpush2.bf16.msra.mxu0 %v552
      %634 = vmatprep.subr.bf16.mxu0 0
      %635 = vmatpush2.bf16.msra.mxu0 %v551
      %636 = vmatprep.subr.bf16.mxu0 0
      %637 = vmatpush2.bf16.msra.mxu0 %v550
      %638 = vmatprep.mubr.bf16.mxu0 %v395
      %639 = vmatmul.mubr.bf16.gmra.mxu0 %v388
      %v640 = vpop.f32.mrf.mxu0
      %v641 = vadd.f32 0.0, %v640
      %v642 = vpop.f32.mrf.mxu0
      %v643 = vpop.f32.mrf.mxu0
      %v644 = vpop.f32.mrf.mxu0
      %645 = vdwg.mxu0
      %646 = vmatprep.subr.bf16.mxu0 0
      %647 = vmatpush1.bf16.msra.mxu0 %v565
      %648 = vmatprep.subr.bf16.mxu0 0
      %649 = vmatpush1.bf16.msra.mxu0 %v564
      %650 = vmatprep.subr.bf16.mxu0 0
      %651 = vmatpush1.bf16.msra.mxu0 %v563
      %652 = vmatprep.subr.bf16.mxu0 0
      %653 = vmatpush1.bf16.msra.mxu0 %v562
      %654 = vmatprep.subr.bf16.mxu0 0
      %655 = vmatpush1.bf16.msra.mxu0 %v561
      %656 = vmatprep.subr.bf16.mxu0 0
      %657 = vmatpush1.bf16.msra.mxu0 %v560
      %658 = vmatprep.subr.bf16.mxu0 0
      %659 = vmatpush1.bf16.msra.mxu0 %v559
      %660 = vmatprep.subr.bf16.mxu0 0
      %661 = vmatpush1.bf16.msra.mxu0 %v558
      %662 = vmatprep.subr.bf16.mxu0 0
      %663 = vmatpush2.bf16.msra.mxu0 %v573
      %664 = vmatprep.subr.bf16.mxu0 0
      %665 = vmatpush2.bf16.msra.mxu0 %v572
      %666 = vmatprep.subr.bf16.mxu0 0
      %667 = vmatpush2.bf16.msra.mxu0 %v571
      %668 = vmatprep.subr.bf16.mxu0 0
      %669 = vmatpush2.bf16.msra.mxu0 %v570
      %670 = vmatprep.subr.bf16.mxu0 0
      %671 = vmatpush2.bf16.msra.mxu0 %v569
      %672 = vmatprep.subr.bf16.mxu0 0
      %673 = vmatpush2.bf16.msra.mxu0 %v568
      %674 = vmatprep.subr.bf16.mxu0 0
      %675 = vmatpush2.bf16.msra.mxu0 %v567
      %676 = vmatprep.subr.bf16.mxu0 0
      %677 = vmatpush2.bf16.msra.mxu0 %v566
      %678 = vmatprep.mubr.bf16.mxu0 %v409
      %679 = vmatmul.mubr.bf16.gmra.mxu0 %v402
      %v680 = vpop.f32.mrf.mxu0
      %v681 = vadd.f32 %v641, %v680
      %v682 = vpop.f32.mrf.mxu0
      %v683 = vpop.f32.mrf.mxu0
      %v684 = vpop.f32.mrf.mxu0
      %685 = vdwg.mxu0
      %v687 = vcombine.high %v228, %v228
      %v689 = vunpack.c.l.s4 1983009808
      %v690 = vunpack.c.0.s8 %v689
      %v691 = vlaneseq
      %v692 = vshrl.u32 %v691, 7
      %v693 = vsub.s32 %v690, %v692
      %v694 = vrot.slane %v228, %v693
      %v696 = vunpack.c.l.s4 1983009808
      %v697 = vunpack.c.0.s8 %v696
      %v698 = vlaneseq
      %v699 = vshrl.u32 %v698, 7
      %v700 = vsub.s32 %v697, %v699
      %v701 = vrot.slane %v687, %v700
      %v702 = vcombine.high %v694, %v694
      %v703 = vcombine.high %v701, %v701
      %v772 = vunpack.c.l.b16 %v232
      %v773 = vunpack.c.l.b16 %v233
      %v774 = vunpack.c.l.b16 %v234
      %v775 = vunpack.c.l.b16 %v235
      %v776 = vunpack.c.l.b16 %v236
      %v777 = vunpack.c.l.b16 %v237
      %v778 = vunpack.c.l.b16 %v238
      %v779 = vunpack.c.l.b16 %v239
      %v780 = vunpack.c.l.b16 %v240
      %v781 = vunpack.c.l.b16 %v241
      %v782 = vunpack.c.l.b16 %v242
      %v783 = vunpack.c.l.b16 %v243
      %v784 = vunpack.c.l.b16 %v244
      %v785 = vunpack.c.l.b16 %v245
      %v786 = vunpack.c.l.b16 %v246
      %v787 = vunpack.c.l.b16 %v247
      %v788 = vunpack.c.l.b16 %v248
      %v789 = vunpack.c.l.b16 %v249
      %v790 = vunpack.c.l.b16 %v250
      %v791 = vunpack.c.l.b16 %v251
      %v792 = vunpack.c.l.b16 %v252
      %v793 = vunpack.c.l.b16 %v253
      %v794 = vunpack.c.l.b16 %v254
      %v795 = vunpack.c.l.b16 %v255
      %v796 = vunpack.c.l.b16 %v256
      %v797 = vunpack.c.l.b16 %v257
      %v798 = vunpack.c.l.b16 %v258
      %v799 = vunpack.c.l.b16 %v259
      %v800 = vunpack.c.l.b16 %v260
      %v801 = vunpack.c.l.b16 %v261
      %v802 = vunpack.c.l.b16 %v262
      %v803 = vunpack.c.l.b16 %v263
      %v804 = vunpack.c.l.b16 %v264
      %v805 = vunpack.c.l.b16 %v265
      %v806 = vunpack.c.l.b16 %v266
      %v807 = vunpack.c.l.b16 %v267
      %v808 = vunpack.c.l.b16 %v268
      %v809 = vunpack.c.l.b16 %v269
      %v810 = vunpack.c.l.b16 %v270
      %v811 = vunpack.c.l.b16 %v271
      %v812 = vunpack.c.l.b16 %v272
      %v813 = vunpack.c.l.b16 %v273
      %v814 = vunpack.c.l.b16 %v274
      %v815 = vunpack.c.l.b16 %v275
      %v816 = vunpack.c.l.b16 %v276
      %v817 = vunpack.c.l.b16 %v277
      %v818 = vunpack.c.l.b16 %v278
      %v819 = vunpack.c.l.b16 %v279
      %v820 = vunpack.c.l.b16 %v280
      %v821 = vunpack.c.l.b16 %v281
      %v822 = vunpack.c.l.b16 %v282
      %v823 = vunpack.c.l.b16 %v283
      %v824 = vunpack.c.l.b16 %v284
      %v825 = vunpack.c.l.b16 %v285
      %v826 = vunpack.c.l.b16 %v286
      %v827 = vunpack.c.l.b16 %v287
      %v828 = vunpack.c.l.b16 %v288
      %v829 = vunpack.c.l.b16 %v289
      %v830 = vunpack.c.l.b16 %v290
      %v831 = vunpack.c.l.b16 %v291
      %v832 = vunpack.c.l.b16 %v292
      %v833 = vunpack.c.l.b16 %v293
      %v834 = vunpack.c.l.b16 %v294
      %v835 = vunpack.c.l.b16 %v295
      %v836 = vpack.c.b16 %v773, %v772
      %v837 = vpack.c.b16 %v775, %v774
      %v838 = vpack.c.b16 %v777, %v776
      %v839 = vpack.c.b16 %v779, %v778
      %v840 = vpack.c.b16 %v781, %v780
      %v841 = vpack.c.b16 %v783, %v782
      %v842 = vpack.c.b16 %v785, %v784
      %v843 = vpack.c.b16 %v787, %v786
      %v844 = vpack.c.b16 %v789, %v788
      %v845 = vpack.c.b16 %v791, %v790
      %v846 = vpack.c.b16 %v793, %v792
      %v847 = vpack.c.b16 %v795, %v794
      %v848 = vpack.c.b16 %v797, %v796
      %v849 = vpack.c.b16 %v799, %v798
      %v850 = vpack.c.b16 %v801, %v800
      %v851 = vpack.c.b16 %v803, %v802
      %v852 = vpack.c.b16 %v805, %v804
      %v853 = vpack.c.b16 %v807, %v806
      %v854 = vpack.c.b16 %v809, %v808
      %v855 = vpack.c.b16 %v811, %v810
      %v856 = vpack.c.b16 %v813, %v812
      %v857 = vpack.c.b16 %v815, %v814
      %v858 = vpack.c.b16 %v817, %v816
      %v859 = vpack.c.b16 %v819, %v818
      %v860 = vpack.c.b16 %v821, %v820
      %v861 = vpack.c.b16 %v823, %v822
      %v862 = vpack.c.b16 %v825, %v824
      %v863 = vpack.c.b16 %v827, %v826
      %v864 = vpack.c.b16 %v829, %v828
      %v865 = vpack.c.b16 %v831, %v830
      %v866 = vpack.c.b16 %v833, %v832
      %v867 = vpack.c.b16 %v835, %v834
      %900 = vmatprep.subr.bf16.mxu0 0
      %901 = vmatpush1.bf16.msra.mxu0 %v843
      %902 = vmatprep.subr.bf16.mxu0 0
      %903 = vmatpush1.bf16.msra.mxu0 %v842
      %904 = vmatprep.subr.bf16.mxu0 0
      %905 = vmatpush1.bf16.msra.mxu0 %v841
      %906 = vmatprep.subr.bf16.mxu0 0
      %907 = vmatpush1.bf16.msra.mxu0 %v840
      %908 = vmatprep.subr.bf16.mxu0 0
      %909 = vmatpush1.bf16.msra.mxu0 %v839
      %910 = vmatprep.subr.bf16.mxu0 0
      %911 = vmatpush1.bf16.msra.mxu0 %v838
      %912 = vmatprep.subr.bf16.mxu0 0
      %913 = vmatpush1.bf16.msra.mxu0 %v837
      %914 = vmatprep.subr.bf16.mxu0 0
      %915 = vmatpush1.bf16.msra.mxu0 %v836
      %916 = vmatprep.subr.bf16.mxu0 0
      %917 = vmatpush2.bf16.msra.mxu0 %v851
      %918 = vmatprep.subr.bf16.mxu0 0
      %919 = vmatpush2.bf16.msra.mxu0 %v850
      %920 = vmatprep.subr.bf16.mxu0 0
      %921 = vmatpush2.bf16.msra.mxu0 %v849
      %922 = vmatprep.subr.bf16.mxu0 0
      %923 = vmatpush2.bf16.msra.mxu0 %v848
      %924 = vmatprep.subr.bf16.mxu0 0
      %925 = vmatpush2.bf16.msra.mxu0 %v847
      %926 = vmatprep.subr.bf16.mxu0 0
      %927 = vmatpush2.bf16.msra.mxu0 %v846
      %928 = vmatprep.subr.bf16.mxu0 0
      %929 = vmatpush2.bf16.msra.mxu0 %v845
      %930 = vmatprep.subr.bf16.mxu0 0
      %931 = vmatpush2.bf16.msra.mxu0 %v844
      %932 = vmatprep.mubr.bf16.mxu0 %v702
      %933 = vmatmul.mubr.bf16.gmra.mxu0 %v694
      %v934 = vpop.f32.mrf.mxu0
      %v935 = vadd.f32 %v681, %v934
      %v936 = vpop.f32.mrf.mxu0
      %v937 = vpop.f32.mrf.mxu0
      %v938 = vpop.f32.mrf.mxu0
      %939 = vdwg.mxu0
      %940 = vmatprep.subr.bf16.mxu0 0
      %941 = vmatpush1.bf16.msra.mxu0 %v859
      %942 = vmatprep.subr.bf16.mxu0 0
      %943 = vmatpush1.bf16.msra.mxu0 %v858
      %944 = vmatprep.subr.bf16.mxu0 0
      %945 = vmatpush1.bf16.msra.mxu0 %v857
      %946 = vmatprep.subr.bf16.mxu0 0
      %947 = vmatpush1.bf16.msra.mxu0 %v856
      %948 = vmatprep.subr.bf16.mxu0 0
      %949 = vmatpush1.bf16.msra.mxu0 %v855
      %950 = vmatprep.subr.bf16.mxu0 0
      %951 = vmatpush1.bf16.msra.mxu0 %v854
      %952 = vmatprep.subr.bf16.mxu0 0
      %953 = vmatpush1.bf16.msra.mxu0 %v853
      %954 = vmatprep.subr.bf16.mxu0 0
      %955 = vmatpush1.bf16.msra.mxu0 %v852
      %956 = vmatprep.subr.bf16.mxu0 0
      %957 = vmatpush2.bf16.msra.mxu0 %v867
      %958 = vmatprep.subr.bf16.mxu0 0
      %959 = vmatpush2.bf16.msra.mxu0 %v866
      %960 = vmatprep.subr.bf16.mxu0 0
      %961 = vmatpush2.bf16.msra.mxu0 %v865
      %962 = vmatprep.subr.bf16.mxu0 0
      %963 = vmatpush2.bf16.msra.mxu0 %v864
      %964 = vmatprep.subr.bf16.mxu0 0
      %965 = vmatpush2.bf16.msra.mxu0 %v863
      %966 = vmatprep.subr.bf16.mxu0 0
      %967 = vmatpush2.bf16.msra.mxu0 %v862
      %968 = vmatprep.subr.bf16.mxu0 0
      %969 = vmatpush2.bf16.msra.mxu0 %v861
      %970 = vmatprep.subr.bf16.mxu0 0
      %971 = vmatpush2.bf16.msra.mxu0 %v860
      %972 = vmatprep.mubr.bf16.mxu0 %v703
      %973 = vmatmul.mubr.bf16.gmra.mxu0 %v701
      %v974 = vpop.f32.mrf.mxu0
      %v975 = vadd.f32 %v935, %v974
      %v976 = vpop.f32.mrf.mxu0
      %v977 = vpop.f32.mrf.mxu0
      %v978 = vpop.f32.mrf.mxu0
      %979 = vdwg.mxu0
      %v980 = vld [vmem:[%s211] sm:$0xaa]
      %s981 = sadd.s32 128, %s229
      %s982 = smul.addr %s981, 4
      %s983 = scalar_lea.vmem %s1, %s982
      %v984 = vld [vmem:[%s983] sm:$0xf]
      %v985 = vld [vmem:[%s983 + $0x4] sm:$0xf]
      %v986 = vld [vmem:[%s983 + $0x8] sm:$0xf]
      %v987 = vld [vmem:[%s983 + $0xc] sm:$0xf]
      %v988 = vld [vmem:[%s983 + $0x10] sm:$0xf]
      %v989 = vld [vmem:[%s983 + $0x14] sm:$0xf]
      %v990 = vld [vmem:[%s983 + $0x18] sm:$0xf]
      %v991 = vld [vmem:[%s983 + $0x1c] sm:$0xf]
      %v992 = vld [vmem:[%s983 + $0x20] sm:$0xf]
      %v993 = vld [vmem:[%s983 + $0x24] sm:$0xf]
      %v994 = vld [vmem:[%s983 + $0x28] sm:$0xf]
      %v995 = vld [vmem:[%s983 + $0x2c] sm:$0xf]
      %v996 = vld [vmem:[%s983 + $0x30] sm:$0xf]
      %v997 = vld [vmem:[%s983 + $0x34] sm:$0xf]
      %v998 = vld [vmem:[%s983 + $0x38] sm:$0xf]
      %v999 = vld [vmem:[%s983 + $0x3c] sm:$0xf]
      %v1000 = vld [vmem:[%s983 + $0x40] sm:$0xf]
      %v1001 = vld [vmem:[%s983 + $0x44] sm:$0xf]
      %v1002 = vld [vmem:[%s983 + $0x48] sm:$0xf]
      %v1003 = vld [vmem:[%s983 + $0x4c] sm:$0xf]
      %v1004 = vld [vmem:[%s983 + $0x50] sm:$0xf]
      %v1005 = vld [vmem:[%s983 + $0x54] sm:$0xf]
      %v1006 = vld [vmem:[%s983 + $0x58] sm:$0xf]
      %v1007 = vld [vmem:[%s983 + $0x5c] sm:$0xf]
      %v1008 = vld [vmem:[%s983 + $0x60] sm:$0xf]
      %v1009 = vld [vmem:[%s983 + $0x64] sm:$0xf]
      %v1010 = vld [vmem:[%s983 + $0x68] sm:$0xf]
      %v1011 = vld [vmem:[%s983 + $0x6c] sm:$0xf]
      %v1012 = vld [vmem:[%s983 + $0x70] sm:$0xf]
      %v1013 = vld [vmem:[%s983 + $0x74] sm:$0xf]
      %v1014 = vld [vmem:[%s983 + $0x78] sm:$0xf]
      %v1015 = vld [vmem:[%s983 + $0x7c] sm:$0xf]
      %v1016 = vld [vmem:[%s983 + $0x80] sm:$0xf]
      %v1017 = vld [vmem:[%s983 + $0x84] sm:$0xf]
      %v1018 = vld [vmem:[%s983 + $0x88] sm:$0xf]
      %v1019 = vld [vmem:[%s983 + $0x8c] sm:$0xf]
      %v1020 = vld [vmem:[%s983 + $0x90] sm:$0xf]
      %v1021 = vld [vmem:[%s983 + $0x94] sm:$0xf]
      %v1022 = vld [vmem:[%s983 + $0x98] sm:$0xf]
      %v1023 = vld [vmem:[%s983 + $0x9c] sm:$0xf]
      %v1024 = vld [vmem:[%s983 + $0xa0] sm:$0xf]
      %v1025 = vld [vmem:[%s983 + $0xa4] sm:$0xf]
      %v1026 = vld [vmem:[%s983 + $0xa8] sm:$0xf]
      %v1027 = vld [vmem:[%s983 + $0xac] sm:$0xf]
      %v1028 = vld [vmem:[%s983 + $0xb0] sm:$0xf]
      %v1029 = vld [vmem:[%s983 + $0xb4] sm:$0xf]
      %v1030 = vld [vmem:[%s983 + $0xb8] sm:$0xf]
      %v1031 = vld [vmem:[%s983 + $0xbc] sm:$0xf]
      %v1032 = vld [vmem:[%s983 + $0xc0] sm:$0xf]
      %v1033 = vld [vmem:[%s983 + $0xc4] sm:$0xf]
      %v1034 = vld [vmem:[%s983 + $0xc8] sm:$0xf]
      %v1035 = vld [vmem:[%s983 + $0xcc] sm:$0xf]
      %v1036 = vld [vmem:[%s983 + $0xd0] sm:$0xf]
      %v1037 = vld [vmem:[%s983 + $0xd4] sm:$0xf]
      %v1038 = vld [vmem:[%s983 + $0xd8] sm:$0xf]
      %v1039 = vld [vmem:[%s983 + $0xdc] sm:$0xf]
      %v1040 = vld [vmem:[%s983 + $0xe0] sm:$0xf]
      %v1041 = vld [vmem:[%s983 + $0xe4] sm:$0xf]
      %v1042 = vld [vmem:[%s983 + $0xe8] sm:$0xf]
      %v1043 = vld [vmem:[%s983 + $0xec] sm:$0xf]
      %v1044 = vld [vmem:[%s983 + $0xf0] sm:$0xf]
      %v1045 = vld [vmem:[%s983 + $0xf4] sm:$0xf]
      %v1046 = vld [vmem:[%s983 + $0xf8] sm:$0xf]
      %v1047 = vld [vmem:[%s983 + $0xfc] sm:$0xf]
      %v1049 = vcombine.high %v980, %v980
      %v1051 = vunpack.c.l.s4 1983009808
      %v1052 = vunpack.c.0.s8 %v1051
      %v1053 = vlaneseq
      %v1054 = vshrl.u32 %v1053, 7
      %v1055 = vsub.s32 %v1052, %v1054
      %v1056 = vrot.slane %v980, %v1055
      %v1058 = vunpack.c.l.s4 1983009808
      %v1059 = vunpack.c.0.s8 %v1058
      %v1060 = vlaneseq
      %v1061 = vshrl.u32 %v1060, 7
      %v1062 = vsub.s32 %v1059, %v1061
      %v1063 = vrot.slane %v1049, %v1062
      %v1064 = vcombine.high %v1056, %v1056
      %v1065 = vcombine.high %v1063, %v1063
      %v1066 = vrot.slane %v1056, 1
      %v1067 = vrot.slane %v1064, 1
      %v1068 = vrot.slane %v1063, 1
      %v1069 = vrot.slane %v1065, 1
      %v1138 = vunpack.c.l.b16 %v984
      %v1139 = vunpack.c.l.b16 %v985
      %v1140 = vunpack.c.l.b16 %v986
      %v1141 = vunpack.c.l.b16 %v987
      %v1142 = vunpack.c.l.b16 %v988
      %v1143 = vunpack.c.l.b16 %v989
      %v1144 = vunpack.c.l.b16 %v990
      %v1145 = vunpack.c.l.b16 %v991
      %v1146 = vunpack.c.l.b16 %v992
      %v1147 = vunpack.c.l.b16 %v993
      %v1148 = vunpack.c.l.b16 %v994
      %v1149 = vunpack.c.l.b16 %v995
      %v1150 = vunpack.c.l.b16 %v996
      %v1151 = vunpack.c.l.b16 %v997
      %v1152 = vunpack.c.l.b16 %v998
      %v1153 = vunpack.c.l.b16 %v999
      %v1154 = vunpack.c.l.b16 %v1000
      %v1155 = vunpack.c.l.b16 %v1001
      %v1156 = vunpack.c.l.b16 %v1002
      %v1157 = vunpack.c.l.b16 %v1003
      %v1158 = vunpack.c.l.b16 %v1004
      %v1159 = vunpack.c.l.b16 %v1005
      %v1160 = vunpack.c.l.b16 %v1006
      %v1161 = vunpack.c.l.b16 %v1007
      %v1162 = vunpack.c.l.b16 %v1008
      %v1163 = vunpack.c.l.b16 %v1009
      %v1164 = vunpack.c.l.b16 %v1010
      %v1165 = vunpack.c.l.b16 %v1011
      %v1166 = vunpack.c.l.b16 %v1012
      %v1167 = vunpack.c.l.b16 %v1013
      %v1168 = vunpack.c.l.b16 %v1014
      %v1169 = vunpack.c.l.b16 %v1015
      %v1170 = vunpack.c.l.b16 %v1016
      %v1171 = vunpack.c.l.b16 %v1017
      %v1172 = vunpack.c.l.b16 %v1018
      %v1173 = vunpack.c.l.b16 %v1019
      %v1174 = vunpack.c.l.b16 %v1020
      %v1175 = vunpack.c.l.b16 %v1021
      %v1176 = vunpack.c.l.b16 %v1022
      %v1177 = vunpack.c.l.b16 %v1023
      %v1178 = vunpack.c.l.b16 %v1024
      %v1179 = vunpack.c.l.b16 %v1025
      %v1180 = vunpack.c.l.b16 %v1026
      %v1181 = vunpack.c.l.b16 %v1027
      %v1182 = vunpack.c.l.b16 %v1028
      %v1183 = vunpack.c.l.b16 %v1029
      %v1184 = vunpack.c.l.b16 %v1030
      %v1185 = vunpack.c.l.b16 %v1031
      %v1186 = vunpack.c.l.b16 %v1032
      %v1187 = vunpack.c.l.b16 %v1033
      %v1188 = vunpack.c.l.b16 %v1034
      %v1189 = vunpack.c.l.b16 %v1035
      %v1190 = vunpack.c.l.b16 %v1036
      %v1191 = vunpack.c.l.b16 %v1037
      %v1192 = vunpack.c.l.b16 %v1038
      %v1193 = vunpack.c.l.b16 %v1039
      %v1194 = vunpack.c.l.b16 %v1040
      %v1195 = vunpack.c.l.b16 %v1041
      %v1196 = vunpack.c.l.b16 %v1042
      %v1197 = vunpack.c.l.b16 %v1043
      %v1198 = vunpack.c.l.b16 %v1044
      %v1199 = vunpack.c.l.b16 %v1045
      %v1200 = vunpack.c.l.b16 %v1046
      %v1201 = vunpack.c.l.b16 %v1047
      %v1202 = vpack.c.b16 %v1139, %v1138
      %v1203 = vpack.c.b16 %v1141, %v1140
      %v1204 = vpack.c.b16 %v1143, %v1142
      %v1205 = vpack.c.b16 %v1145, %v1144
      %v1206 = vpack.c.b16 %v1147, %v1146
      %v1207 = vpack.c.b16 %v1149, %v1148
      %v1208 = vpack.c.b16 %v1151, %v1150
      %v1209 = vpack.c.b16 %v1153, %v1152
      %v1210 = vpack.c.b16 %v1155, %v1154
      %v1211 = vpack.c.b16 %v1157, %v1156
      %v1212 = vpack.c.b16 %v1159, %v1158
      %v1213 = vpack.c.b16 %v1161, %v1160
      %v1214 = vpack.c.b16 %v1163, %v1162
      %v1215 = vpack.c.b16 %v1165, %v1164
      %v1216 = vpack.c.b16 %v1167, %v1166
      %v1217 = vpack.c.b16 %v1169, %v1168
      %v1218 = vpack.c.b16 %v1171, %v1170
      %v1219 = vpack.c.b16 %v1173, %v1172
      %v1220 = vpack.c.b16 %v1175, %v1174
      %v1221 = vpack.c.b16 %v1177, %v1176
      %v1222 = vpack.c.b16 %v1179, %v1178
      %v1223 = vpack.c.b16 %v1181, %v1180
      %v1224 = vpack.c.b16 %v1183, %v1182
      %v1225 = vpack.c.b16 %v1185, %v1184
      %v1226 = vpack.c.b16 %v1187, %v1186
      %v1227 = vpack.c.b16 %v1189, %v1188
      %v1228 = vpack.c.b16 %v1191, %v1190
      %v1229 = vpack.c.b16 %v1193, %v1192
      %v1230 = vpack.c.b16 %v1195, %v1194
      %v1231 = vpack.c.b16 %v1197, %v1196
      %v1232 = vpack.c.b16 %v1199, %v1198
      %v1233 = vpack.c.b16 %v1201, %v1200
      %1266 = vmatprep.subr.bf16.mxu0 0
      %1267 = vmatpush1.bf16.msra.mxu0 %v1209
      %1268 = vmatprep.subr.bf16.mxu0 0
      %1269 = vmatpush1.bf16.msra.mxu0 %v1208
      %1270 = vmatprep.subr.bf16.mxu0 0
      %1271 = vmatpush1.bf16.msra.mxu0 %v1207
      %1272 = vmatprep.subr.bf16.mxu0 0
      %1273 = vmatpush1.bf16.msra.mxu0 %v1206
      %1274 = vmatprep.subr.bf16.mxu0 0
      %1275 = vmatpush1.bf16.msra.mxu0 %v1205
      %1276 = vmatprep.subr.bf16.mxu0 0
      %1277 = vmatpush1.bf16.msra.mxu0 %v1204
      %1278 = vmatprep.subr.bf16.mxu0 0
      %1279 = vmatpush1.bf16.msra.mxu0 %v1203
      %1280 = vmatprep.subr.bf16.mxu0 0
      %1281 = vmatpush1.bf16.msra.mxu0 %v1202
      %1282 = vmatprep.subr.bf16.mxu0 0
      %1283 = vmatpush2.bf16.msra.mxu0 %v1217
      %1284 = vmatprep.subr.bf16.mxu0 0
      %1285 = vmatpush2.bf16.msra.mxu0 %v1216
      %1286 = vmatprep.subr.bf16.mxu0 0
      %1287 = vmatpush2.bf16.msra.mxu0 %v1215
      %1288 = vmatprep.subr.bf16.mxu0 0
      %1289 = vmatpush2.bf16.msra.mxu0 %v1214
      %1290 = vmatprep.subr.bf16.mxu0 0
      %1291 = vmatpush2.bf16.msra.mxu0 %v1213
      %1292 = vmatprep.subr.bf16.mxu0 0
      %1293 = vmatpush2.bf16.msra.mxu0 %v1212
      %1294 = vmatprep.subr.bf16.mxu0 0
      %1295 = vmatpush2.bf16.msra.mxu0 %v1211
      %1296 = vmatprep.subr.bf16.mxu0 0
      %1297 = vmatpush2.bf16.msra.mxu0 %v1210
      %1298 = vmatprep.mubr.bf16.mxu0 %v1067
      %1299 = vmatmul.mubr.bf16.gmra.mxu0 %v1066
      %v1300 = vpop.f32.mrf.mxu0
      %v1301 = vadd.f32 0.0, %v1300
      %v1302 = vpop.f32.mrf.mxu0
      %v1303 = vpop.f32.mrf.mxu0
      %v1304 = vpop.f32.mrf.mxu0
      %1305 = vdwg.mxu0
      %1306 = vmatprep.subr.bf16.mxu0 0
      %1307 = vmatpush1.bf16.msra.mxu0 %v1225
      %1308 = vmatprep.subr.bf16.mxu0 0
      %1309 = vmatpush1.bf16.msra.mxu0 %v1224
      %1310 = vmatprep.subr.bf16.mxu0 0
      %1311 = vmatpush1.bf16.msra.mxu0 %v1223
      %1312 = vmatprep.subr.bf16.mxu0 0
      %1313 = vmatpush1.bf16.msra.mxu0 %v1222
      %1314 = vmatprep.subr.bf16.mxu0 0
      %1315 = vmatpush1.bf16.msra.mxu0 %v1221
      %1316 = vmatprep.subr.bf16.mxu0 0
      %1317 = vmatpush1.bf16.msra.mxu0 %v1220
      %1318 = vmatprep.subr.bf16.mxu0 0
      %1319 = vmatpush1.bf16.msra.mxu0 %v1219
      %1320 = vmatprep.subr.bf16.mxu0 0
      %1321 = vmatpush1.bf16.msra.mxu0 %v1218
      %1322 = vmatprep.subr.bf16.mxu0 0
      %1323 = vmatpush2.bf16.msra.mxu0 %v1233
      %1324 = vmatprep.subr.bf16.mxu0 0
      %1325 = vmatpush2.bf16.msra.mxu0 %v1232
      %1326 = vmatprep.subr.bf16.mxu0 0
      %1327 = vmatpush2.bf16.msra.mxu0 %v1231
      %1328 = vmatprep.subr.bf16.mxu0 0
      %1329 = vmatpush2.bf16.msra.mxu0 %v1230
      %1330 = vmatprep.subr.bf16.mxu0 0
      %1331 = vmatpush2.bf16.msra.mxu0 %v1229
      %1332 = vmatprep.subr.bf16.mxu0 0
      %1333 = vmatpush2.bf16.msra.mxu0 %v1228
      %1334 = vmatprep.subr.bf16.mxu0 0
      %1335 = vmatpush2.bf16.msra.mxu0 %v1227
      %1336 = vmatprep.subr.bf16.mxu0 0
      %1337 = vmatpush2.bf16.msra.mxu0 %v1226
      %1338 = vmatprep.mubr.bf16.mxu0 %v1069
      %1339 = vmatmul.mubr.bf16.gmra.mxu0 %v1068
      %v1340 = vpop.f32.mrf.mxu0
      %v1341 = vadd.f32 %v1301, %v1340
      %v1342 = vpop.f32.mrf.mxu0
      %v1343 = vpop.f32.mrf.mxu0
      %v1344 = vpop.f32.mrf.mxu0
      %1345 = vdwg.mxu0
      %v1346 = vadd.f32 %v975, %v1341
      %v1347 = vld [vmem:[%s220] sm:$0x3]
      %v1348 = vadd.f32 %v1347, %v1346
      %vm1349 = vcmask 1024
      %1350 = vst.msk [vmem:[%s220] sm:$0x3] %vm1349, %v1348
      %p1351 = scmp.eq.s32.totalorder %s23, 2
      // Predicated region
      $region37: #{discriminator_forward.19} parent=31 // pred_check
        %p1352 = pneg %p1351
      $region38: #{discriminator_forward.19} parent=31 // pred_check_branch
        %1354 = sbr.rel (%p1352) target = $region40
      $region39: #{discriminator_forward.19} parent=31 // pred_region
        %v1355 = vld [vmem:[%s220] sm:$0x3]
        %v1356 = vld [vmem:[#allocation2] sm:$0x1]
        %v1358 = vlaneseq
        %v1359 = vshrl.u32 %v1358, 7
        %v1360 = vsub.s32 0, %v1359
        %v1361 = vrot.slane %v1356, %v1360
        %v1363 = vadd.f32 %v1355, %v1361
        %v1364 = vxor.u32 %v1363, 2147483648
        %v1365 = vmul.f32 %v1364, 1.442695
        %v1366 = vpow.pop %v1365
        %v1367 = vadd.f32 %v1366, 1.0
        %v1368 = vrcp.pop %v1367
        %v1369 = vmul.f32 1.0, %v1368
        %1370 = vst.msk [vmem:[%s220] sm:$0x3] %vm1349, %v1369
      $region40: #{discriminator_forward.19} parent=31 // pred_fallthru
        _
      %p1371 = scmp.lt.s32.totalorder %s21, 1
      %s1372 = scalar_select %p1371, %s21, 1
      %p1373 = scmp.lt.s32.totalorder %s22, 1
      %s1374 = scalar_select %p1373, %s22, 1
      %s1375 = smul.addr %s1372, 2
      %s1376 = sadd.s32 %s1374, %s1375
      %s1377 = smul.addr %s1376, 2
      %s1378 = scalar_lea.vmem %s3, %s1377
      // Predicated region
      $region41: #{discriminator_forward.19} parent=31 // pred_check
        %p1379 = pneg %p127
      $region42: #{discriminator_forward.19} parent=31 // pred_check_branch
        %1381 = sbr.rel (%p1379) target = $region44
      $region43: #{discriminator_forward.19} parent=31 // pred_region
        _
      $region44: #{discriminator_forward.19} parent=31 // pred_fallthru
        _
    $region32: #{discriminator_forward.19} parent=5 // pred_fallthru
      _
    %p1382 = scmp.le.s32.totalorder 2, %s11
    // Predicated region
    $region45: #{discriminator_forward.19} parent=5 // pred_check
      %p1383 = pneg %p1382
    $region46: #{discriminator_forward.19} parent=5 // pred_check_branch
      %1385 = sbr.rel (%p1383) target = $region48
    $region47: #{discriminator_forward.19} parent=5 // pred_region
      %s1386 = ssub.s32 %s11, 2
      // Predicated region
      $region49: #{discriminator_forward.19} parent=47 // pred_check
        %p1387 = pneg %p133
      $region50: #{discriminator_forward.19} parent=47 // pred_check_branch
        %1389 = sbr.rel (%p1387) target = $region52
      $region51: #{discriminator_forward.19} parent=47 // pred_region
        %p1390 = scmp.lt.s32.totalorder %s24, 1
        %s1391 = scalar_select %p1390, %s24, 1
        %p1392 = scmp.lt.s32.totalorder %s25, 1
        %s1393 = scalar_select %p1392, %s25, 1
        %s1394 = smul.addr %s1391, 2
        %s1395 = sadd.s32 %s1393, %s1394
        %s1396 = smul.addr %s1395, 2
        %s1397 = scalar_lea.vmem %s3, %s1396
      $region52: #{discriminator_forward.19} parent=47 // pred_fallthru
        _
    $region48: #{discriminator_forward.19} parent=5 // pred_fallthru
      _
  $region6: #{discriminator_forward.19} parent=0 // loop_footer
    %s15 = sadd.s32 1, %s11
  $region7: #{discriminator_forward.19} parent=0 // loop_footer_branch
    %10 = sbr.rel target = $region3
  $region8: #{discriminator_forward.19} parent=0 // loop_exit
    _

// kernel: discriminator_forward.17
$region0: #{discriminator_forward.17}
  #allocation0 [shape = 'u32[]', space=smem, size = 0x4, offset = 0x4, fixed_abs, tag = 'smem constant byte address 0x4 - core index']
  #allocation1 [shape = 'u32[144,128]{1,0:T(1,128)}', space=vmem, size = 0x12000, scoped, tag = 'internal scratch']
  %s0 = inlined_call_operand.vmem [shape: bf16[2,4,4,512], index: 0, kind: input, shape index: {}]
  %s1 = inlined_call_operand.vmem [shape: bf16[3,3,512,512], index: 1, kind: input, shape index: {}]
  %s2 = inlined_call_operand.vmem [shape: f32[1,512], index: 2, kind: input, shape index: {}]
  %s3 = inlined_call_operand.vmem [shape: f32[2,2,2,512], index: 3, kind: output, shape index: {0}]
  %s4 = inlined_call_operand.vmem [shape: f32[2,2,2,512], index: 4, kind: output, shape index: {1}]
  %5 = xla_tuple %s3, %s4
  %s6 = sld [smem:[#allocation0]]
  $region61: #{discriminator_forward.17} parent=0
    _
  %s8 = ssub.s32 1, %s6
  %s9 = scalar_select 0, %s8, %s6
  loop: start=0, step=1, limit=14
  $region2: #{discriminator_forward.17} parent=0 // loop_pre_header
    _
  $region3: #{discriminator_forward.17} parent=0 // loop_header
    %s11 = sphi 0, %s15
    %p12 = scmp.ge.s32.totalorder %s11, 14
    %s18 = sphi 0, %s37
    %s19 = sphi 0, %s33
    %s20 = sphi 0, %s29
    %s21 = sphi 0, %s18
    %s22 = sphi 0, %s19
    %s23 = sphi 0, %s20
    %s24 = sphi 0, %s21
    %s25 = sphi 0, %s22
    %s26 = sphi 0, %s23
    %s44 = sphi 0, %s46
    %s47 = sphi 0, %s44
    %s48 = sphi 0, %s47
    %s64 = sphi 0, %s48
    %s68 = sphi 0, %s68
    %s70 = sphi 0, %s68
    %s71 = sphi 0, %s70
    %s85 = sphi 0, %s71
    %s89 = sphi 0, %s89
    %s91 = sphi 0, %s89
    %s92 = sphi 0, %s91
    %s106 = sphi 0, %s92
    %s114 = sphi 0, %s116
    %s117 = sphi 0, %s114
    %s118 = sphi 0, %s117
    %s134 = sphi 0, %s118
    %s142 = sphi 0, %s144
    %s145 = sphi 0, %s142
    %s146 = sphi 0, %s145
    %s162 = sphi 0, %s146
  $region4: #{discriminator_forward.17} parent=0 // loop_header_branch
    %14 = sbr.rel (%p12) target = $region8
  $region5: #{discriminator_forward.17} parent=0 // loop_body
    %s16 = ssub.s32 %s11, 1
    %s17 = ssub.s32 %s11, 2
    %s27 = sadd.s32 1, %s20
    %p28 = scmp.ge.s32.totalorder %s27, 3
    %s29 = scalar_select %p28, 0, %s27
    %s30 = sadd.s32 1, %s19
    %s31 = scalar_select %p28, %s30, %s19
    %p32 = scmp.ge.s32.totalorder %s31, 2
    %s33 = scalar_select %p32, 0, %s31
    %s34 = sadd.s32 1, %s18
    %s35 = scalar_select %p32, %s34, %s18
    %p36 = scmp.ge.s32.totalorder %s35, 2
    %s37 = scalar_select %p36, 0, %s35
    %s38 = sadd.s32 %s19, %s20
    %s39 = sadd.s32 %s33, %s29
    %s40 = ssub.s32 %s18, %s37
    %s41 = ssub.s32 %s38, %s39
    %s42 = sor.u32 %s40, %s41
    %p43 = scmp.eq.s32.totalorder %s42, 0
    %s45 = sadd.s32 %s44, 1
    %s46 = scalar_select %p43, %s44, %s45
    %p49 = pneg %p43
    %p50 = scmp.eq.s32.totalorder %s11, 11
    %p51 = por %p49, %p50
    %p52 = scmp.ne.s32.totalorder %s44, %s47
    %p53 = scmp.eq.s32.totalorder %s11, 0
    %p54 = por %p52, %p53
    %p55 = scmp.ne.s32.totalorder %s44, %s47
    %p56 = scmp.eq.s32.totalorder %s16, 11
    %p57 = por %p55, %p56
    %p58 = scmp.ne.s32.totalorder %s47, %s48
    %p59 = scmp.eq.s32.totalorder %s16, 0
    %p60 = por %p58, %p59
    %p61 = scmp.ne.s32.totalorder %s47, %s48
    %p62 = scmp.eq.s32.totalorder %s17, 11
    %p63 = por %p61, %p62
    %p65 = scmp.ne.s32.totalorder %s48, %s64
    %p66 = scmp.eq.s32.totalorder %s17, 0
    %p67 = por %p65, %p66
    %s69 = sadd.s32 %s68, 1
    %p72 = scmp.eq.s32.totalorder %s11, 11
    %p73 = scmp.ne.s32.totalorder %s68, %s70
    %p74 = scmp.eq.s32.totalorder %s11, 0
    %p75 = por %p73, %p74
    %p76 = scmp.ne.s32.totalorder %s68, %s70
    %p77 = scmp.eq.s32.totalorder %s16, 11
    %p78 = por %p76, %p77
    %p79 = scmp.ne.s32.totalorder %s70, %s71
    %p80 = scmp.eq.s32.totalorder %s16, 0
    %p81 = por %p79, %p80
    %p82 = scmp.ne.s32.totalorder %s70, %s71
    %p83 = scmp.eq.s32.totalorder %s17, 11
    %p84 = por %p82, %p83
    %p86 = scmp.ne.s32.totalorder %s71, %s85
    %p87 = scmp.eq.s32.totalorder %s17, 0
    %p88 = por %p86, %p87
    %s90 = sadd.s32 %s89, 1
    %p93 = scmp.eq.s32.totalorder %s11, 11
    %p94 = scmp.ne.s32.totalorder %s89, %s91
    %p95 = scmp.eq.s32.totalorder %s11, 0
    %p96 = por %p94, %p95
    %p97 = scmp.ne.s32.totalorder %s89, %s91
    %p98 = scmp.eq.s32.totalorder %s16, 11
    %p99 = por %p97, %p98
    %p100 = scmp.ne.s32.totalorder %s91, %s92
    %p101 = scmp.eq.s32.totalorder %s16, 0
    %p102 = por %p100, %p101
    %p103 = scmp.ne.s32.totalorder %s91, %s92
    %p104 = scmp.eq.s32.totalorder %s17, 11
    %p105 = por %p103, %p104
    %p107 = scmp.ne.s32.totalorder %s92, %s106
    %p108 = scmp.eq.s32.totalorder %s17, 0
    %p109 = por %p107, %p108
    %s110 = ssub.s32 %s18, %s37
    %s111 = ssub.s32 %s19, %s33
    %s112 = sor.u32 %s110, %s111
    %p113 = scmp.eq.s32.totalorder %s112, 0
    %s115 = sadd.s32 %s114, 1
    %s116 = scalar_select %p113, %s114, %s115
    %p119 = pneg %p113
    %p120 = scmp.eq.s32.totalorder %s11, 11
    %p121 = por %p119, %p120
    %p122 = scmp.ne.s32.totalorder %s114, %s117
    %p123 = scmp.eq.s32.totalorder %s11, 0
    %p124 = por %p122, %p123
    %p125 = scmp.ne.s32.totalorder %s114, %s117
    %p126 = scmp.eq.s32.totalorder %s16, 11
    %p127 = por %p125, %p126
    %p128 = scmp.ne.s32.totalorder %s117, %s118
    %p129 = scmp.eq.s32.totalorder %s16, 0
    %p130 = por %p128, %p129
    %p131 = scmp.ne.s32.totalorder %s117, %s118
    %p132 = scmp.eq.s32.totalorder %s17, 11
    %p133 = por %p131, %p132
    %p135 = scmp.ne.s32.totalorder %s118, %s134
    %p136 = scmp.eq.s32.totalorder %s17, 0
    %p137 = por %p135, %p136
    %s138 = ssub.s32 %s18, %s37
    %s139 = ssub.s32 %s19, %s33
    %s140 = sor.u32 %s138, %s139
    %p141 = scmp.eq.s32.totalorder %s140, 0
    %s143 = sadd.s32 %s142, 1
    %s144 = scalar_select %p141, %s142, %s143
    %p147 = pneg %p141
    %p148 = scmp.eq.s32.totalorder %s11, 11
    %p149 = por %p147, %p148
    %p150 = scmp.ne.s32.totalorder %s142, %s145
    %p151 = scmp.eq.s32.totalorder %s11, 0
    %p152 = por %p150, %p151
    %p153 = scmp.ne.s32.totalorder %s142, %s145
    %p154 = scmp.eq.s32.totalorder %s16, 11
    %p155 = por %p153, %p154
    %p156 = scmp.ne.s32.totalorder %s145, %s146
    %p157 = scmp.eq.s32.totalorder %s16, 0
    %p158 = por %p156, %p157
    %p159 = scmp.ne.s32.totalorder %s145, %s146
    %p160 = scmp.eq.s32.totalorder %s17, 11
    %p161 = por %p159, %p160
    %p163 = scmp.ne.s32.totalorder %s146, %s162
    %p164 = scmp.eq.s32.totalorder %s17, 0
    %p165 = por %p163, %p164
    %p166 = scmp.le.s32.totalorder 1, %s11
    %p167 = scmp.lt.s32.totalorder %s11, 13
    %p168 = pnand %p166, %p167
    %p169 = pneg %p168
    // Predicated region
    $region9: #{discriminator_forward.17} parent=5 // pred_check
      _
    $region10: #{discriminator_forward.17} parent=5 // pred_check_branch
      %171 = sbr.rel (%p168) target = $region12
    $region11: #{discriminator_forward.17} parent=5 // pred_region
      %s172 = ssub.s32 %s11, 1
      // Predicated region
      $region13: #{discriminator_forward.17} parent=11 // pred_check
        %p173 = pneg %p81
      $region14: #{discriminator_forward.17} parent=11 // pred_check_branch
        %175 = sbr.rel (%p173) target = $region16
      $region15: #{discriminator_forward.17} parent=11 // pred_region
        _
      $region16: #{discriminator_forward.17} parent=11 // pred_fallthru
        _
      // Predicated region
      $region17: #{discriminator_forward.17} parent=11 // pred_check
        %p176 = pneg %p102
      $region18: #{discriminator_forward.17} parent=11 // pred_check_branch
        %178 = sbr.rel (%p176) target = $region20
      $region19: #{discriminator_forward.17} parent=11 // pred_region
        _
      $region20: #{discriminator_forward.17} parent=11 // pred_fallthru
        _
    $region12: #{discriminator_forward.17} parent=5 // pred_fallthru
      _
    %p179 = scmp.lt.s32.totalorder %s11, 12
    // Predicated region
    $region21: #{discriminator_forward.17} parent=5 // pred_check
      %p180 = pneg %p179
    $region22: #{discriminator_forward.17} parent=5 // pred_check_branch
      %182 = sbr.rel (%p180) target = $region24
    $region23: #{discriminator_forward.17} parent=5 // pred_region
      // Predicated region
      $region25: #{discriminator_forward.17} parent=23 // pred_check
        %p183 = pneg %p54
      $region26: #{discriminator_forward.17} parent=23 // pred_check_branch
        %185 = sbr.rel (%p183) target = $region28
      $region27: #{discriminator_forward.17} parent=23 // pred_region
        %s186 = sadd.s32 %s19, %s20
        %p187 = scmp.lt.s32.totalorder %s18, 1
        %s188 = scalar_select %p187, %s18, 1
        %p189 = scmp.lt.s32.totalorder %s186, 3
        %s190 = scalar_select %p189, %s186, 3
        %s191 = smul.addr %s190, 4
        %s192 = smul.addr %s188, 16
        %s193 = sadd.s32 %s191, %s192
        %s194 = smul.addr %s193, 2
        %s195 = scalar_lea.vmem %s0, %s194
        %s196 = sadd.s32 %s19, %s20
      $region28: #{discriminator_forward.17} parent=23 // pred_fallthru
        _
    $region24: #{discriminator_forward.17} parent=5 // pred_fallthru
      _
    %p197 = scmp.le.s32.totalorder 1, %s11
    %p198 = scmp.lt.s32.totalorder %s11, 13
    %p199 = pnand %p197, %p198
    %p200 = pneg %p199
    // Predicated region
    $region29: #{discriminator_forward.17} parent=5 // pred_check
      _
    $region30: #{discriminator_forward.17} parent=5 // pred_check_branch
      %202 = sbr.rel (%p199) target = $region32
    $region31: #{discriminator_forward.17} parent=5 // pred_region
      %s203 = ssub.s32 %s11, 1
      %s204 = sadd.s32 %s22, %s23
      %p205 = scmp.lt.s32.totalorder %s21, 1
      %s206 = scalar_select %p205, %s21, 1
      %p207 = scmp.lt.s32.totalorder %s204, 3
      %s208 = scalar_select %p207, %s204, 3
      %s209 = smul.addr %s208, 4
      %s210 = smul.addr %s206, 16
      %s211 = sadd.s32 %s209, %s210
      %s212 = smul.addr %s211, 2
      %s213 = scalar_lea.vmem %s0, %s212
      %p214 = pneg %p60
      %p215 = pneg %p57
      %p216 = pneg %p81
      %p217 = pneg %p78
      %p218 = pneg %p102
      %p219 = pneg %p99
      %p220 = pneg %p130
      %p221 = pneg %p127
      %p222 = scmp.lt.s32.totalorder %s21, 1
      %s223 = scalar_select %p222, %s21, 1
      %p224 = scmp.lt.s32.totalorder %s22, 1
      %s225 = scalar_select %p224, %s22, 1
      %s226 = smul.addr %s225, 4
      %s227 = smul.addr %s223, 8
      %s228 = sadd.s32 %s226, %s227
      %s229 = smul.addr %s228, 2
      %s230 = scalar_lea.vmem %s3, %s229
      %p231 = pneg %p158
      %p232 = pneg %p155
      %p233 = scmp.lt.s32.totalorder %s21, 1
      %s234 = scalar_select %p233, %s21, 1
      %p235 = scmp.lt.s32.totalorder %s22, 1
      %s236 = scalar_select %p235, %s22, 1
      %s237 = smul.addr %s236, 4
      %s238 = smul.addr %s234, 8
      %s239 = sadd.s32 %s237, %s238
      %s240 = smul.addr %s239, 2
      %s241 = scalar_lea.vmem %s4, %s240
      %s242 = sadd.s32 %s22, %s23
      %p243 = scmp.lt.s32.totalorder %s21, 1
      %s244 = scalar_select %p243, %s21, 1
      %p245 = scmp.lt.s32.totalorder %s242, 3
      %s246 = scalar_select %p245, %s242, 3
      %s247 = smul.addr %s246, 4
      %s248 = smul.addr %s244, 16
      %s249 = sadd.s32 %s247, %s248
      %s250 = smul.addr %s249, 2
      %s251 = scalar_lea.vmem %s0, %s250
      %s252 = sadd.s32 %s22, %s23
      %p253 = scmp.lt.s32.totalorder %s21, 1
      %s254 = scalar_select %p253, %s21, 1
      %p255 = scmp.lt.s32.totalorder %s22, 1
      %s256 = scalar_select %p255, %s22, 1
      %s257 = smul.addr %s256, 4
      %s258 = smul.addr %s254, 8
      %s259 = sadd.s32 %s257, %s258
      %s260 = smul.addr %s259, 2
      %s261 = scalar_lea.vmem %s3, %s260
      %p262 = scmp.lt.s32.totalorder %s21, 1
      %s263 = scalar_select %p262, %s21, 1
      %p264 = scmp.lt.s32.totalorder %s22, 1
      %s265 = scalar_select %p264, %s22, 1
      %s266 = smul.addr %s265, 4
      %s267 = smul.addr %s263, 8
      %s268 = sadd.s32 %s266, %s267
      %s269 = smul.addr %s268, 2
      %s270 = scalar_lea.vmem %s4, %s269
      %p271 = scmp.eq.s32.totalorder %s23, 0
      // Predicated region
      $region33: #{discriminator_forward.17} parent=31 // pred_check
        %p272 = pneg %p271
      $region34: #{discriminator_forward.17} parent=31 // pred_check_branch
        %274 = sbr.rel (%p272) target = $region36
      $region35: #{discriminator_forward.17} parent=31 // pred_region
        %275 = vst [vmem:[%s261] sm:$0xff] 0.0
      $region36: #{discriminator_forward.17} parent=31 // pred_fallthru
        _
      %v276 = vld [vmem:[%s251] sm:$0x55]
      %s277 = smul.u32 %s23, 768
      %s278 = smul.addr %s277, 4
      %s279 = scalar_lea.vmem %s1, %s278
      %v280 = vld [vmem:[%s279] sm:$0xff]
      %v281 = vld [vmem:[%s279 + $0x8] sm:$0xff]
      %v282 = vld [vmem:[%s279 + $0x10] sm:$0xff]
      %v283 = vld [vmem:[%s279 + $0x18] sm:$0xff]
      %v284 = vld [vmem:[%s279 + $0x20] sm:$0xff]
      %v285 = vld [vmem:[%s279 + $0x28] sm:$0xff]
      %v286 = vld [vmem:[%s279 + $0x30] sm:$0xff]
      %v287 = vld [vmem:[%s279 + $0x38] sm:$0xff]
      %v288 = vld [vmem:[%s279 + $0x40] sm:$0xff]
      %v289 = vld [vmem:[%s279 + $0x48] sm:$0xff]
      %v290 = vld [vmem:[%s279 + $0x50] sm:$0xff]
      %v291 = vld [vmem:[%s279 + $0x58] sm:$0xff]
      %v292 = vld [vmem:[%s279 + $0x60] sm:$0xff]
      %v293 = vld [vmem:[%s279 + $0x68] sm:$0xff]
      %v294 = vld [vmem:[%s279 + $0x70] sm:$0xff]
      %v295 = vld [vmem:[%s279 + $0x78] sm:$0xff]
      %v296 = vld [vmem:[%s279 + $0x80] sm:$0xff]
      %v297 = vld [vmem:[%s279 + $0x88] sm:$0xff]
      %v298 = vld [vmem:[%s279 + $0x90] sm:$0xff]
      %v299 = vld [vmem:[%s279 + $0x98] sm:$0xff]
      %v300 = vld [vmem:[%s279 + $0xa0] sm:$0xff]
      %v301 = vld [vmem:[%s279 + $0xa8] sm:$0xff]
      %v302 = vld [vmem:[%s279 + $0xb0] sm:$0xff]
      %v303 = vld [vmem:[%s279 + $0xb8] sm:$0xff]
      %v304 = vld [vmem:[%s279 + $0xc0] sm:$0xff]
      %v305 = vld [vmem:[%s279 + $0xc8] sm:$0xff]
      %v306 = vld [vmem:[%s279 + $0xd0] sm:$0xff]
      %v307 = vld [vmem:[%s279 + $0xd8] sm:$0xff]
      %v308 = vld [vmem:[%s279 + $0xe0] sm:$0xff]
      %v309 = vld [vmem:[%s279 + $0xe8] sm:$0xff]
      %v310 = vld [vmem:[%s279 + $0xf0] sm:$0xff]
      %v311 = vld [vmem:[%s279 + $0xf8] sm:$0xff]
      %v312 = vld [vmem:[%s279 + $0x100] sm:$0xff]
      %v313 = vld [vmem:[%s279 + $0x108] sm:$0xff]
      %v314 = vld [vmem:[%s279 + $0x110] sm:$0xff]
      %v315 = vld [vmem:[%s279 + $0x118] sm:$0xff]
      %v316 = vld [vmem:[%s279 + $0x120] sm:$0xff]
      %v317 = vld [vmem:[%s279 + $0x128] sm:$0xff]
      %v318 = vld [vmem:[%s279 + $0x130] sm:$0xff]
      %v319 = vld [vmem:[%s279 + $0x138] sm:$0xff]
      %v320 = vld [vmem:[%s279 + $0x140] sm:$0xff]
      %v321 = vld [vmem:[%s279 + $0x148] sm:$0xff]
      %v322 = vld [vmem:[%s279 + $0x150] sm:$0xff]
      %v323 = vld [vmem:[%s279 + $0x158] sm:$0xff]
      %v324 = vld [vmem:[%s279 + $0x160] sm:$0xff]
      %v325 = vld [vmem:[%s279 + $0x168] sm:$0xff]
      %v326 = vld [vmem:[%s279 + $0x170] sm:$0xff]
      %v327 = vld [vmem:[%s279 + $0x178] sm:$0xff]
      %v328 = vld [vmem:[%s279 + $0x180] sm:$0xff]
      %v329 = vld [vmem:[%s279 + $0x188] sm:$0xff]
      %v330 = vld [vmem:[%s279 + $0x190] sm:$0xff]
      %v331 = vld [vmem:[%s279 + $0x198] sm:$0xff]
      %v332 = vld [vmem:[%s279 + $0x1a0] sm:$0xff]
      %v333 = vld [vmem:[%s279 + $0x1a8] sm:$0xff]
      %v334 = vld [vmem:[%s279 + $0x1b0] sm:$0xff]
      %v335 = vld [vmem:[%s279 + $0x1b8] sm:$0xff]
      %v336 = vld [vmem:[%s279 + $0x1c0] sm:$0xff]
      %v337 = vld [vmem:[%s279 + $0x1c8] sm:$0xff]
      %v338 = vld [vmem:[%s279 + $0x1d0] sm:$0xff]
      %v339 = vld [vmem:[%s279 + $0x1d8] sm:$0xff]
      %v340 = vld [vmem:[%s279 + $0x1e0] sm:$0xff]
      %v341 = vld [vmem:[%s279 + $0x1e8] sm:$0xff]
      %v342 = vld [vmem:[%s279 + $0x1f0] sm:$0xff]
      %v343 = vld [vmem:[%s279 + $0x1f8] sm:$0xff]
      %v344 = vld [vmem:[%s279 + $0x200] sm:$0xff]
      %v345 = vld [vmem:[%s279 + $0x208] sm:$0xff]
      %v346 = vld [vmem:[%s279 + $0x210] sm:$0xff]
      %v347 = vld [vmem:[%s279 + $0x218] sm:$0xff]
      %v348 = vld [vmem:[%s279 + $0x220] sm:$0xff]
      %v349 = vld [vmem:[%s279 + $0x228] sm:$0xff]
      %v350 = vld [vmem:[%s279 + $0x230] sm:$0xff]
      %v351 = vld [vmem:[%s279 + $0x238] sm:$0xff]
      %v352 = vld [vmem:[%s279 + $0x240] sm:$0xff]
      %v353 = vld [vmem:[%s279 + $0x248] sm:$0xff]
      %v354 = vld [vmem:[%s279 + $0x250] sm:$0xff]
      %v355 = vld [vmem:[%s279 + $0x258] sm:$0xff]
      %v356 = vld [vmem:[%s279 + $0x260] sm:$0xff]
      %v357 = vld [vmem:[%s279 + $0x268] sm:$0xff]
      %v358 = vld [vmem:[%s279 + $0x270] sm:$0xff]
      %v359 = vld [vmem:[%s279 + $0x278] sm:$0xff]
      %v360 = vld [vmem:[%s279 + $0x280] sm:$0xff]
      %v361 = vld [vmem:[%s279 + $0x288] sm:$0xff]
      %v362 = vld [vmem:[%s279 + $0x290] sm:$0xff]
      %v363 = vld [vmem:[%s279 + $0x298] sm:$0xff]
      %v364 = vld [vmem:[%s279 + $0x2a0] sm:$0xff]
      %v365 = vld [vmem:[%s279 + $0x2a8] sm:$0xff]
      %v366 = vld [vmem:[%s279 + $0x2b0] sm:$0xff]
      %v367 = vld [vmem:[%s279 + $0x2b8] sm:$0xff]
      %v368 = vld [vmem:[%s279 + $0x2c0] sm:$0xff]
      %v369 = vld [vmem:[%s279 + $0x2c8] sm:$0xff]
      %v370 = vld [vmem:[%s279 + $0x2d0] sm:$0xff]
      %v371 = vld [vmem:[%s279 + $0x2d8] sm:$0xff]
      %v372 = vld [vmem:[%s279 + $0x2e0] sm:$0xff]
      %v373 = vld [vmem:[%s279 + $0x2e8] sm:$0xff]
      %v374 = vld [vmem:[%s279 + $0x2f0] sm:$0xff]
      %v375 = vld [vmem:[%s279 + $0x2f8] sm:$0xff]
      %v376 = vld [vmem:[%s279 + $0x300] sm:$0xff]
      %v377 = vld [vmem:[%s279 + $0x308] sm:$0xff]
      %v378 = vld [vmem:[%s279 + $0x310] sm:$0xff]
      %v379 = vld [vmem:[%s279 + $0x318] sm:$0xff]
      %v380 = vld [vmem:[%s279 + $0x320] sm:$0xff]
      %v381 = vld [vmem:[%s279 + $0x328] sm:$0xff]
      %v382 = vld [vmem:[%s279 + $0x330] sm:$0xff]
      %v383 = vld [vmem:[%s279 + $0x338] sm:$0xff]
      %v384 = vld [vmem:[%s279 + $0x340] sm:$0xff]
      %v385 = vld [vmem:[%s279 + $0x348] sm:$0xff]
      %v386 = vld [vmem:[%s279 + $0x350] sm:$0xff]
      %v387 = vld [vmem:[%s279 + $0x358] sm:$0xff]
      %v388 = vld [vmem:[%s279 + $0x360] sm:$0xff]
      %v389 = vld [vmem:[%s279 + $0x368] sm:$0xff]
      %v390 = vld [vmem:[%s279 + $0x370] sm:$0xff]
      %v391 = vld [vmem:[%s279 + $0x378] sm:$0xff]
      %v392 = vld [vmem:[%s279 + $0x380] sm:$0xff]
      %v393 = vld [vmem:[%s279 + $0x388] sm:$0xff]
      %v394 = vld [vmem:[%s279 + $0x390] sm:$0xff]
      %v395 = vld [vmem:[%s279 + $0x398] sm:$0xff]
      %v396 = vld [vmem:[%s279 + $0x3a0] sm:$0xff]
      %v397 = vld [vmem:[%s279 + $0x3a8] sm:$0xff]
      %v398 = vld [vmem:[%s279 + $0x3b0] sm:$0xff]
      %v399 = vld [vmem:[%s279 + $0x3b8] sm:$0xff]
      %v400 = vld [vmem:[%s279 + $0x3c0] sm:$0xff]
      %v401 = vld [vmem:[%s279 + $0x3c8] sm:$0xff]
      %v402 = vld [vmem:[%s279 + $0x3d0] sm:$0xff]
      %v403 = vld [vmem:[%s279 + $0x3d8] sm:$0xff]
      %v404 = vld [vmem:[%s279 + $0x3e0] sm:$0xff]
      %v405 = vld [vmem:[%s279 + $0x3e8] sm:$0xff]
      %v406 = vld [vmem:[%s279 + $0x3f0] sm:$0xff]
      %v407 = vld [vmem:[%s279 + $0x3f8] sm:$0xff]
      %v408 = vld [vmem:[%s251] sm:$0xff]
      %s409 = sadd.s32 256, %s277
      %s410 = smul.addr %s409, 4
      %s411 = scalar_lea.vmem %s1, %s410
      %v412 = vld [vmem:[%s411] sm:$0xff]
      %v413 = vld [vmem:[%s411 + $0x8] sm:$0xff]
      %v414 = vld [vmem:[%s411 + $0x10] sm:$0xff]
      %v415 = vld [vmem:[%s411 + $0x18] sm:$0xff]
      %v416 = vld [vmem:[%s411 + $0x20] sm:$0xff]
      %v417 = vld [vmem:[%s411 + $0x28] sm:$0xff]
      %v418 = vld [vmem:[%s411 + $0x30] sm:$0xff]
      %v419 = vld [vmem:[%s411 + $0x38] sm:$0xff]
      %v420 = vld [vmem:[%s411 + $0x40] sm:$0xff]
      %v421 = vld [vmem:[%s411 + $0x48] sm:$0xff]
      %v422 = vld [vmem:[%s411 + $0x50] sm:$0xff]
      %v423 = vld [vmem:[%s411 + $0x58] sm:$0xff]
      %v424 = vld [vmem:[%s411 + $0x60] sm:$0xff]
      %v425 = vld [vmem:[%s411 + $0x68] sm:$0xff]
      %v426 = vld [vmem:[%s411 + $0x70] sm:$0xff]
      %v427 = vld [vmem:[%s411 + $0x78] sm:$0xff]
      %v428 = vld [vmem:[%s411 + $0x80] sm:$0xff]
      %v429 = vld [vmem:[%s411 + $0x88] sm:$0xff]
      %v430 = vld [vmem:[%s411 + $0x90] sm:$0xff]
      %v431 = vld [vmem:[%s411 + $0x98] sm:$0xff]
      %v432 = vld [vmem:[%s411 + $0xa0] sm:$0xff]
      %v433 = vld [vmem:[%s411 + $0xa8] sm:$0xff]
      %v434 = vld [vmem:[%s411 + $0xb0] sm:$0xff]
      %v435 = vld [vmem:[%s411 + $0xb8] sm:$0xff]
      %v436 = vld [vmem:[%s411 + $0xc0] sm:$0xff]
      %v437 = vld [vmem:[%s411 + $0xc8] sm:$0xff]
      %v438 = vld [vmem:[%s411 + $0xd0] sm:$0xff]
      %v439 = vld [vmem:[%s411 + $0xd8] sm:$0xff]
      %v440 = vld [vmem:[%s411 + $0xe0] sm:$0xff]
      %v441 = vld [vmem:[%s411 + $0xe8] sm:$0xff]
      %v442 = vld [vmem:[%s411 + $0xf0] sm:$0xff]
      %v443 = vld [vmem:[%s411 + $0xf8] sm:$0xff]
      %v444 = vld [vmem:[%s411 + $0x100] sm:$0xff]
      %v445 = vld [vmem:[%s411 + $0x108] sm:$0xff]
      %v446 = vld [vmem:[%s411 + $0x110] sm:$0xff]
      %v447 = vld [vmem:[%s411 + $0x118] sm:$0xff]
      %v448 = vld [vmem:[%s411 + $0x120] sm:$0xff]
      %v449 = vld [vmem:[%s411 + $0x128] sm:$0xff]
      %v450 = vld [vmem:[%s411 + $0x130] sm:$0xff]
      %v451 = vld [vmem:[%s411 + $0x138] sm:$0xff]
      %v452 = vld [vmem:[%s411 + $0x140] sm:$0xff]
      %v453 = vld [vmem:[%s411 + $0x148] sm:$0xff]
      %v454 = vld [vmem:[%s411 + $0x150] sm:$0xff]
      %v455 = vld [vmem:[%s411 + $0x158] sm:$0xff]
      %v456 = vld [vmem:[%s411 + $0x160] sm:$0xff]
      %v457 = vld [vmem:[%s411 + $0x168] sm:$0xff]
      %v458 = vld [vmem:[%s411 + $0x170] sm:$0xff]
      %v459 = vld [vmem:[%s411 + $0x178] sm:$0xff]
      %v460 = vld [vmem:[%s411 + $0x180] sm:$0xff]
      %v461 = vld [vmem:[%s411 + $0x188] sm:$0xff]
      %v462 = vld [vmem:[%s411 + $0x190] sm:$0xff]
      %v463 = vld [vmem:[%s411 + $0x198] sm:$0xff]
      %v464 = vld [vmem:[%s411 + $0x1a0] sm:$0xff]
      %v465 = vld [vmem:[%s411 + $0x1a8] sm:$0xff]
      %v466 = vld [vmem:[%s411 + $0x1b0] sm:$0xff]
      %v467 = vld [vmem:[%s411 + $0x1b8] sm:$0xff]
      %v468 = vld [vmem:[%s411 + $0x1c0] sm:$0xff]
      %v469 = vld [vmem:[%s411 + $0x1c8] sm:$0xff]
      %v470 = vld [vmem:[%s411 + $0x1d0] sm:$0xff]
      %v471 = vld [vmem:[%s411 + $0x1d8] sm:$0xff]
      %v472 = vld [vmem:[%s411 + $0x1e0] sm:$0xff]
      %v473 = vld [vmem:[%s411 + $0x1e8] sm:$0xff]
      %v474 = vld [vmem:[%s411 + $0x1f0] sm:$0xff]
      %v475 = vld [vmem:[%s411 + $0x1f8] sm:$0xff]
      %v476 = vld [vmem:[%s411 + $0x200] sm:$0xff]
      %v477 = vld [vmem:[%s411 + $0x208] sm:$0xff]
      %v478 = vld [vmem:[%s411 + $0x210] sm:$0xff]
      %v479 = vld [vmem:[%s411 + $0x218] sm:$0xff]
      %v480 = vld [vmem:[%s411 + $0x220] sm:$0xff]
      %v481 = vld [vmem:[%s411 + $0x228] sm:$0xff]
      %v482 = vld [vmem:[%s411 + $0x230] sm:$0xff]
      %v483 = vld [vmem:[%s411 + $0x238] sm:$0xff]
      %v484 = vld [vmem:[%s411 + $0x240] sm:$0xff]
      %v485 = vld [vmem:[%s411 + $0x248] sm:$0xff]
      %v486 = vld [vmem:[%s411 + $0x250] sm:$0xff]
      %v487 = vld [vmem:[%s411 + $0x258] sm:$0xff]
      %v488 = vld [vmem:[%s411 + $0x260] sm:$0xff]
      %v489 = vld [vmem:[%s411 + $0x268] sm:$0xff]
      %v490 = vld [vmem:[%s411 + $0x270] sm:$0xff]
      %v491 = vld [vmem:[%s411 + $0x278] sm:$0xff]
      %v492 = vld [vmem:[%s411 + $0x280] sm:$0xff]
      %v493 = vld [vmem:[%s411 + $0x288] sm:$0xff]
      %v494 = vld [vmem:[%s411 + $0x290] sm:$0xff]
      %v495 = vld [vmem:[%s411 + $0x298] sm:$0xff]
      %v496 = vld [vmem:[%s411 + $0x2a0] sm:$0xff]
      %v497 = vld [vmem:[%s411 + $0x2a8] sm:$0xff]
      %v498 = vld [vmem:[%s411 + $0x2b0] sm:$0xff]
      %v499 = vld [vmem:[%s411 + $0x2b8] sm:$0xff]
      %v500 = vld [vmem:[%s411 + $0x2c0] sm:$0xff]
      %v501 = vld [vmem:[%s411 + $0x2c8] sm:$0xff]
      %v502 = vld [vmem:[%s411 + $0x2d0] sm:$0xff]
      %v503 = vld [vmem:[%s411 + $0x2d8] sm:$0xff]
      %v504 = vld [vmem:[%s411 + $0x2e0] sm:$0xff]
      %v505 = vld [vmem:[%s411 + $0x2e8] sm:$0xff]
      %v506 = vld [vmem:[%s411 + $0x2f0] sm:$0xff]
      %v507 = vld [vmem:[%s411 + $0x2f8] sm:$0xff]
      %v508 = vld [vmem:[%s411 + $0x300] sm:$0xff]
      %v509 = vld [vmem:[%s411 + $0x308] sm:$0xff]
      %v510 = vld [vmem:[%s411 + $0x310] sm:$0xff]
      %v511 = vld [vmem:[%s411 + $0x318] sm:$0xff]
      %v512 = vld [vmem:[%s411 + $0x320] sm:$0xff]
      %v513 = vld [vmem:[%s411 + $0x328] sm:$0xff]
      %v514 = vld [vmem:[%s411 + $0x330] sm:$0xff]
      %v515 = vld [vmem:[%s411 + $0x338] sm:$0xff]
      %v516 = vld [vmem:[%s411 + $0x340] sm:$0xff]
      %v517 = vld [vmem:[%s411 + $0x348] sm:$0xff]
      %v518 = vld [vmem:[%s411 + $0x350] sm:$0xff]
      %v519 = vld [vmem:[%s411 + $0x358] sm:$0xff]
      %v520 = vld [vmem:[%s411 + $0x360] sm:$0xff]
      %v521 = vld [vmem:[%s411 + $0x368] sm:$0xff]
      %v522 = vld [vmem:[%s411 + $0x370] sm:$0xff]
      %v523 = vld [vmem:[%s411 + $0x378] sm:$0xff]
      %v524 = vld [vmem:[%s411 + $0x380] sm:$0xff]
      %v525 = vld [vmem:[%s411 + $0x388] sm:$0xff]
      %v526 = vld [vmem:[%s411 + $0x390] sm:$0xff]
      %v527 = vld [vmem:[%s411 + $0x398] sm:$0xff]
      %v528 = vld [vmem:[%s411 + $0x3a0] sm:$0xff]
      %v529 = vld [vmem:[%s411 + $0x3a8] sm:$0xff]
      %v530 = vld [vmem:[%s411 + $0x3b0] sm:$0xff]
      %v531 = vld [vmem:[%s411 + $0x3b8] sm:$0xff]
      %v532 = vld [vmem:[%s411 + $0x3c0] sm:$0xff]
      %v533 = vld [vmem:[%s411 + $0x3c8] sm:$0xff]
      %v534 = vld [vmem:[%s411 + $0x3d0] sm:$0xff]
      %v535 = vld [vmem:[%s411 + $0x3d8] sm:$0xff]
      %v536 = vld [vmem:[%s411 + $0x3e0] sm:$0xff]
      %v537 = vld [vmem:[%s411 + $0x3e8] sm:$0xff]
      %v538 = vld [vmem:[%s411 + $0x3f0] sm:$0xff]
      %v539 = vld [vmem:[%s411 + $0x3f8] sm:$0xff]
      %v541 = vcombine.high %v408, %v408
      %v543 = vunpack.c.l.s4 1983009808
      %v544 = vunpack.c.0.s8 %v543
      %v545 = vlaneseq
      %v546 = vshrl.u32 %v545, 7
      %v547 = vsub.s32 %v544, %v546
      %v548 = vrot.slane %v408, %v547
      %v550 = vunpack.c.l.s4 1983009808
      %v551 = vunpack.c.0.s8 %v550
      %v552 = vlaneseq
      %v553 = vshrl.u32 %v552, 7
      %v554 = vsub.s32 %v551, %v553
      %v555 = vrot.slane %v541, %v554
      %v556 = vcombine.high %v548, %v548
      %v557 = vcombine.high %v555, %v555
      %v559 = vshrl.u32 %v548, 16
      %v561 = vshll.u32 %v548, 16
      %v563 = vrot.slane %v561, 1
      %v564 = vor.u32 %v559, %v563
      %v566 = vshrl.u32 %v556, 16
      %v568 = vshll.u32 %v556, 16
      %v570 = vrot.slane %v568, 1
      %v571 = vor.u32 %v566, %v570
      %v573 = vshrl.u32 %v555, 16
      %v575 = vshll.u32 %v555, 16
      %v577 = vrot.slane %v575, 1
      %v578 = vor.u32 %v573, %v577
      %v580 = vshrl.u32 %v557, 16
      %v582 = vshll.u32 %v557, 16
      %v584 = vrot.slane %v582, 1
      %v585 = vor.u32 %v580, %v584
      %v718 = vunpack.c.l.b16 %v412
      %v719 = vunpack.c.h.b16 %v412
      %v720 = vunpack.c.l.b16 %v413
      %v721 = vunpack.c.h.b16 %v413
      %v722 = vunpack.c.l.b16 %v414
      %v723 = vunpack.c.h.b16 %v414
      %v724 = vunpack.c.l.b16 %v415
      %v725 = vunpack.c.h.b16 %v415
      %v726 = vunpack.c.l.b16 %v416
      %v727 = vunpack.c.h.b16 %v416
      %v728 = vunpack.c.l.b16 %v417
      %v729 = vunpack.c.h.b16 %v417
      %v730 = vunpack.c.l.b16 %v418
      %v731 = vunpack.c.h.b16 %v418
      %v732 = vunpack.c.l.b16 %v419
      %v733 = vunpack.c.h.b16 %v419
      %v734 = vunpack.c.l.b16 %v420
      %v735 = vunpack.c.h.b16 %v420
      %v736 = vunpack.c.l.b16 %v421
      %v737 = vunpack.c.h.b16 %v421
      %v738 = vunpack.c.l.b16 %v422
      %v739 = vunpack.c.h.b16 %v422
      %v740 = vunpack.c.l.b16 %v423
      %v741 = vunpack.c.h.b16 %v423
      %v742 = vunpack.c.l.b16 %v424
      %v743 = vunpack.c.h.b16 %v424
      %v744 = vunpack.c.l.b16 %v425
      %v745 = vunpack.c.h.b16 %v425
      %v746 = vunpack.c.l.b16 %v426
      %v747 = vunpack.c.h.b16 %v426
      %v748 = vunpack.c.l.b16 %v427
      %v749 = vunpack.c.h.b16 %v427
      %v750 = vunpack.c.l.b16 %v428
      %v751 = vunpack.c.h.b16 %v428
      %v752 = vunpack.c.l.b16 %v429
      %v753 = vunpack.c.h.b16 %v429
      %v754 = vunpack.c.l.b16 %v430
      %v755 = vunpack.c.h.b16 %v430
      %v756 = vunpack.c.l.b16 %v431
      %v757 = vunpack.c.h.b16 %v431
      %v758 = vunpack.c.l.b16 %v432
      %v759 = vunpack.c.h.b16 %v432
      %v760 = vunpack.c.l.b16 %v433
      %v761 = vunpack.c.h.b16 %v433
      %v762 = vunpack.c.l.b16 %v434
      %v763 = vunpack.c.h.b16 %v434
      %v764 = vunpack.c.l.b16 %v435
      %v765 = vunpack.c.h.b16 %v435
      %v766 = vunpack.c.l.b16 %v436
      %v767 = vunpack.c.h.b16 %v436
      %v768 = vunpack.c.l.b16 %v437
      %v769 = vunpack.c.h.b16 %v437
      %v770 = vunpack.c.l.b16 %v438
      %v771 = vunpack.c.h.b16 %v438
      %v772 = vunpack.c.l.b16 %v439
      %v773 = vunpack.c.h.b16 %v439
      %v774 = vunpack.c.l.b16 %v440
      %v775 = vunpack.c.h.b16 %v440
      %v776 = vunpack.c.l.b16 %v441
      %v777 = vunpack.c.h.b16 %v441
      %v778 = vunpack.c.l.b16 %v442
      %v779 = vunpack.c.h.b16 %v442
      %v780 = vunpack.c.l.b16 %v443
      %v781 = vunpack.c.h.b16 %v443
      %v782 = vunpack.c.l.b16 %v444
      %v783 = vunpack.c.h.b16 %v444
      %v784 = vunpack.c.l.b16 %v445
      %v785 = vunpack.c.h.b16 %v445
      %v786 = vunpack.c.l.b16 %v446
      %v787 = vunpack.c.h.b16 %v446
      %v788 = vunpack.c.l.b16 %v447
      %v789 = vunpack.c.h.b16 %v447
      %v790 = vunpack.c.l.b16 %v448
      %v791 = vunpack.c.h.b16 %v448
      %v792 = vunpack.c.l.b16 %v449
      %v793 = vunpack.c.h.b16 %v449
      %v794 = vunpack.c.l.b16 %v450
      %v795 = vunpack.c.h.b16 %v450
      %v796 = vunpack.c.l.b16 %v451
      %v797 = vunpack.c.h.b16 %v451
      %v798 = vunpack.c.l.b16 %v452
      %v799 = vunpack.c.h.b16 %v452
      %v800 = vunpack.c.l.b16 %v453
      %v801 = vunpack.c.h.b16 %v453
      %v802 = vunpack.c.l.b16 %v454
      %v803 = vunpack.c.h.b16 %v454
      %v804 = vunpack.c.l.b16 %v455
      %v805 = vunpack.c.h.b16 %v455
      %v806 = vunpack.c.l.b16 %v456
      %v807 = vunpack.c.h.b16 %v456
      %v808 = vunpack.c.l.b16 %v457
      %v809 = vunpack.c.h.b16 %v457
      %v810 = vunpack.c.l.b16 %v458
      %v811 = vunpack.c.h.b16 %v458
      %v812 = vunpack.c.l.b16 %v459
      %v813 = vunpack.c.h.b16 %v459
      %v814 = vunpack.c.l.b16 %v460
      %v815 = vunpack.c.h.b16 %v460
      %v816 = vunpack.c.l.b16 %v461
      %v817 = vunpack.c.h.b16 %v461
      %v818 = vunpack.c.l.b16 %v462
      %v819 = vunpack.c.h.b16 %v462
      %v820 = vunpack.c.l.b16 %v463
      %v821 = vunpack.c.h.b16 %v463
      %v822 = vunpack.c.l.b16 %v464
      %v823 = vunpack.c.h.b16 %v464
      %v824 = vunpack.c.l.b16 %v465
      %v825 = vunpack.c.h.b16 %v465
      %v826 = vunpack.c.l.b16 %v466
      %v827 = vunpack.c.h.b16 %v466
      %v828 = vunpack.c.l.b16 %v467
      %v829 = vunpack.c.h.b16 %v467
      %v830 = vunpack.c.l.b16 %v468
      %v831 = vunpack.c.h.b16 %v468
      %v832 = vunpack.c.l.b16 %v469
      %v833 = vunpack.c.h.b16 %v469
      %v834 = vunpack.c.l.b16 %v470
      %v835 = vunpack.c.h.b16 %v470
      %v836 = vunpack.c.l.b16 %v471
      %v837 = vunpack.c.h.b16 %v471
      %v838 = vunpack.c.l.b16 %v472
      %v839 = vunpack.c.h.b16 %v472
      %v840 = vunpack.c.l.b16 %v473
      %v841 = vunpack.c.h.b16 %v473
      %v842 = vunpack.c.l.b16 %v474
      %v843 = vunpack.c.h.b16 %v474
      %v844 = vunpack.c.l.b16 %v475
      %v845 = vunpack.c.h.b16 %v475
      %v846 = vunpack.c.l.b16 %v476
      %v847 = vunpack.c.h.b16 %v476
      %v848 = vunpack.c.l.b16 %v477
      %v849 = vunpack.c.h.b16 %v477
      %v850 = vunpack.c.l.b16 %v478
      %v851 = vunpack.c.h.b16 %v478
      %v852 = vunpack.c.l.b16 %v479
      %v853 = vunpack.c.h.b16 %v479
      %v854 = vunpack.c.l.b16 %v480
      %v855 = vunpack.c.h.b16 %v480
      %v856 = vunpack.c.l.b16 %v481
      %v857 = vunpack.c.h.b16 %v481
      %v858 = vunpack.c.l.b16 %v482
      %v859 = vunpack.c.h.b16 %v482
      %v860 = vunpack.c.l.b16 %v483
      %v861 = vunpack.c.h.b16 %v483
      %v862 = vunpack.c.l.b16 %v484
      %v863 = vunpack.c.h.b16 %v484
      %v864 = vunpack.c.l.b16 %v485
      %v865 = vunpack.c.h.b16 %v485
      %v866 = vunpack.c.l.b16 %v486
      %v867 = vunpack.c.h.b16 %v486
      %v868 = vunpack.c.l.b16 %v487
      %v869 = vunpack.c.h.b16 %v487
      %v870 = vunpack.c.l.b16 %v488
      %v871 = vunpack.c.h.b16 %v488
      %v872 = vunpack.c.l.b16 %v489
      %v873 = vunpack.c.h.b16 %v489
      %v874 = vunpack.c.l.b16 %v490
      %v875 = vunpack.c.h.b16 %v490
      %v876 = vunpack.c.l.b16 %v491
      %v877 = vunpack.c.h.b16 %v491
      %v878 = vunpack.c.l.b16 %v492
      %v879 = vunpack.c.h.b16 %v492
      %v880 = vunpack.c.l.b16 %v493
      %v881 = vunpack.c.h.b16 %v493
      %v882 = vunpack.c.l.b16 %v494
      %v883 = vunpack.c.h.b16 %v494
      %v884 = vunpack.c.l.b16 %v495
      %v885 = vunpack.c.h.b16 %v495
      %v886 = vunpack.c.l.b16 %v496
      %v887 = vunpack.c.h.b16 %v496
      %v888 = vunpack.c.l.b16 %v497
      %v889 = vunpack.c.h.b16 %v497
      %v890 = vunpack.c.l.b16 %v498
      %v891 = vunpack.c.h.b16 %v498
      %v892 = vunpack.c.l.b16 %v499
      %v893 = vunpack.c.h.b16 %v499
      %v894 = vunpack.c.l.b16 %v500
      %v895 = vunpack.c.h.b16 %v500
      %v896 = vunpack.c.l.b16 %v501
      %v897 = vunpack.c.h.b16 %v501
      %v898 = vunpack.c.l.b16 %v502
      %v899 = vunpack.c.h.b16 %v502
      %v900 = vunpack.c.l.b16 %v503
      %v901 = vunpack.c.h.b16 %v503
      %v902 = vunpack.c.l.b16 %v504
      %v903 = vunpack.c.h.b16 %v504
      %v904 = vunpack.c.l.b16 %v505
      %v905 = vunpack.c.h.b16 %v505
      %v906 = vunpack.c.l.b16 %v506
      %v907 = vunpack.c.h.b16 %v506
      %v908 = vunpack.c.l.b16 %v507
      %v909 = vunpack.c.h.b16 %v507
      %v910 = vunpack.c.l.b16 %v508
      %v911 = vunpack.c.h.b16 %v508
      %v912 = vunpack.c.l.b16 %v509
      %v913 = vunpack.c.h.b16 %v509
      %v914 = vunpack.c.l.b16 %v510
      %v915 = vunpack.c.h.b16 %v510
      %v916 = vunpack.c.l.b16 %v511
      %v917 = vunpack.c.h.b16 %v511
      %v918 = vunpack.c.l.b16 %v512
      %v919 = vunpack.c.h.b16 %v512
      %v920 = vunpack.c.l.b16 %v513
      %v921 = vunpack.c.h.b16 %v513
      %v922 = vunpack.c.l.b16 %v514
      %v923 = vunpack.c.h.b16 %v514
      %v924 = vunpack.c.l.b16 %v515
      %v925 = vunpack.c.h.b16 %v515
      %v926 = vunpack.c.l.b16 %v516
      %v927 = vunpack.c.h.b16 %v516
      %v928 = vunpack.c.l.b16 %v517
      %v929 = vunpack.c.h.b16 %v517
      %v930 = vunpack.c.l.b16 %v518
      %v931 = vunpack.c.h.b16 %v518
      %v932 = vunpack.c.l.b16 %v519
      %v933 = vunpack.c.h.b16 %v519
      %v934 = vunpack.c.l.b16 %v520
      %v935 = vunpack.c.h.b16 %v520
      %v936 = vunpack.c.l.b16 %v521
      %v937 = vunpack.c.h.b16 %v521
      %v938 = vunpack.c.l.b16 %v522
      %v939 = vunpack.c.h.b16 %v522
      %v940 = vunpack.c.l.b16 %v523
      %v941 = vunpack.c.h.b16 %v523
      %v942 = vunpack.c.l.b16 %v524
      %v943 = vunpack.c.h.b16 %v524
      %v944 = vunpack.c.l.b16 %v525
      %v945 = vunpack.c.h.b16 %v525
      %v946 = vunpack.c.l.b16 %v526
      %v947 = vunpack.c.h.b16 %v526
      %v948 = vunpack.c.l.b16 %v527
      %v949 = vunpack.c.h.b16 %v527
      %v950 = vunpack.c.l.b16 %v528
      %v951 = vunpack.c.h.b16 %v528
      %v952 = vunpack.c.l.b16 %v529
      %v953 = vunpack.c.h.b16 %v529
      %v954 = vunpack.c.l.b16 %v530
      %v955 = vunpack.c.h.b16 %v530
      %v956 = vunpack.c.l.b16 %v531
      %v957 = vunpack.c.h.b16 %v531
      %v958 = vunpack.c.l.b16 %v532
      %v959 = vunpack.c.h.b16 %v532
      %v960 = vunpack.c.l.b16 %v533
      %v961 = vunpack.c.h.b16 %v533
      %v962 = vunpack.c.l.b16 %v534
      %v963 = vunpack.c.h.b16 %v534
      %v964 = vunpack.c.l.b16 %v535
      %v965 = vunpack.c.h.b16 %v535
      %v966 = vunpack.c.l.b16 %v536
      %v967 = vunpack.c.h.b16 %v536
      %v968 = vunpack.c.l.b16 %v537
      %v969 = vunpack.c.h.b16 %v537
      %v970 = vunpack.c.l.b16 %v538
      %v971 = vunpack.c.h.b16 %v538
      %v972 = vunpack.c.l.b16 %v539
      %v973 = vunpack.c.h.b16 %v539
      %v974 = vpack.c.b16 %v722, %v718
      %v975 = vpack.c.b16 %v723, %v719
      %v976 = vpack.c.b16 %v724, %v720
      %v977 = vpack.c.b16 %v725, %v721
      %v978 = vpack.c.b16 %v730, %v726
      %v979 = vpack.c.b16 %v731, %v727
      %v980 = vpack.c.b16 %v732, %v728
      %v981 = vpack.c.b16 %v733, %v729
      %v982 = vpack.c.b16 %v738, %v734
      %v983 = vpack.c.b16 %v739, %v735
      %v984 = vpack.c.b16 %v740, %v736
      %v985 = vpack.c.b16 %v741, %v737
      %v986 = vpack.c.b16 %v746, %v742
      %v987 = vpack.c.b16 %v747, %v743
      %v988 = vpack.c.b16 %v748, %v744
      %v989 = vpack.c.b16 %v749, %v745
      %v990 = vpack.c.b16 %v754, %v750
      %v991 = vpack.c.b16 %v755, %v751
      %v992 = vpack.c.b16 %v756, %v752
      %v993 = vpack.c.b16 %v757, %v753
      %v994 = vpack.c.b16 %v762, %v758
      %v995 = vpack.c.b16 %v763, %v759
      %v996 = vpack.c.b16 %v764, %v760
      %v997 = vpack.c.b16 %v765, %v761
      %v998 = vpack.c.b16 %v770, %v766
      %v999 = vpack.c.b16 %v771, %v767
      %v1000 = vpack.c.b16 %v772, %v768
      %v1001 = vpack.c.b16 %v773, %v769
      %v1002 = vpack.c.b16 %v778, %v774
      %v1003 = vpack.c.b16 %v779, %v775
      %v1004 = vpack.c.b16 %v780, %v776
      %v1005 = vpack.c.b16 %v781, %v777
      %v1006 = vpack.c.b16 %v786, %v782
      %v1007 = vpack.c.b16 %v787, %v783
      %v1008 = vpack.c.b16 %v788, %v784
      %v1009 = vpack.c.b16 %v789, %v785
      %v1010 = vpack.c.b16 %v794, %v790
      %v1011 = vpack.c.b16 %v795, %v791
      %v1012 = vpack.c.b16 %v796, %v792
      %v1013 = vpack.c.b16 %v797, %v793
      %v1014 = vpack.c.b16 %v802, %v798
      %v1015 = vpack.c.b16 %v803, %v799
      %v1016 = vpack.c.b16 %v804, %v800
      %v1017 = vpack.c.b16 %v805, %v801
      %v1018 = vpack.c.b16 %v810, %v806
      %v1019 = vpack.c.b16 %v811, %v807
      %v1020 = vpack.c.b16 %v812, %v808
      %v1021 = vpack.c.b16 %v813, %v809
      %v1022 = vpack.c.b16 %v818, %v814
      %v1023 = vpack.c.b16 %v819, %v815
      %v1024 = vpack.c.b16 %v820, %v816
      %v1025 = vpack.c.b16 %v821, %v817
      %v1026 = vpack.c.b16 %v826, %v822
      %v1027 = vpack.c.b16 %v827, %v823
      %v1028 = vpack.c.b16 %v828, %v824
      %v1029 = vpack.c.b16 %v829, %v825
      %v1030 = vpack.c.b16 %v834, %v830
      %v1031 = vpack.c.b16 %v835, %v831
      %v1032 = vpack.c.b16 %v836, %v832
      %v1033 = vpack.c.b16 %v837, %v833
      %v1034 = vpack.c.b16 %v842, %v838
      %v1035 = vpack.c.b16 %v843, %v839
      %v1036 = vpack.c.b16 %v844, %v840
      %v1037 = vpack.c.b16 %v845, %v841
      %v1038 = vpack.c.b16 %v850, %v846
      %v1039 = vpack.c.b16 %v851, %v847
      %v1040 = vpack.c.b16 %v852, %v848
      %v1041 = vpack.c.b16 %v853, %v849
      %v1042 = vpack.c.b16 %v858, %v854
      %v1043 = vpack.c.b16 %v859, %v855
      %v1044 = vpack.c.b16 %v860, %v856
      %v1045 = vpack.c.b16 %v861, %v857
      %v1046 = vpack.c.b16 %v866, %v862
      %v1047 = vpack.c.b16 %v867, %v863
      %v1048 = vpack.c.b16 %v868, %v864
      %v1049 = vpack.c.b16 %v869, %v865
      %v1050 = vpack.c.b16 %v874, %v870
      %v1051 = vpack.c.b16 %v875, %v871
      %v1052 = vpack.c.b16 %v876, %v872
      %v1053 = vpack.c.b16 %v877, %v873
      %v1054 = vpack.c.b16 %v882, %v878
      %v1055 = vpack.c.b16 %v883, %v879
      %v1056 = vpack.c.b16 %v884, %v880
      %v1057 = vpack.c.b16 %v885, %v881
      %v1058 = vpack.c.b16 %v890, %v886
      %v1059 = vpack.c.b16 %v891, %v887
      %v1060 = vpack.c.b16 %v892, %v888
      %v1061 = vpack.c.b16 %v893, %v889
      %v1062 = vpack.c.b16 %v898, %v894
      %v1063 = vpack.c.b16 %v899, %v895
      %v1064 = vpack.c.b16 %v900, %v896
      %v1065 = vpack.c.b16 %v901, %v897
      %v1066 = vpack.c.b16 %v906, %v902
      %v1067 = vpack.c.b16 %v907, %v903
      %v1068 = vpack.c.b16 %v908, %v904
      %v1069 = vpack.c.b16 %v909, %v905
      %v1070 = vpack.c.b16 %v914, %v910
      %v1071 = vpack.c.b16 %v915, %v911
      %v1072 = vpack.c.b16 %v916, %v912
      %v1073 = vpack.c.b16 %v917, %v913
      %v1074 = vpack.c.b16 %v922, %v918
      %v1075 = vpack.c.b16 %v923, %v919
      %v1076 = vpack.c.b16 %v924, %v920
      %v1077 = vpack.c.b16 %v925, %v921
      %v1078 = vpack.c.b16 %v930, %v926
      %v1079 = vpack.c.b16 %v931, %v927
      %v1080 = vpack.c.b16 %v932, %v928
      %v1081 = vpack.c.b16 %v933, %v929
      %v1082 = vpack.c.b16 %v938, %v934
      %v1083 = vpack.c.b16 %v939, %v935
      %v1084 = vpack.c.b16 %v940, %v936
      %v1085 = vpack.c.b16 %v941, %v937
      %v1086 = vpack.c.b16 %v946, %v942
      %v1087 = vpack.c.b16 %v947, %v943
      %v1088 = vpack.c.b16 %v948, %v944
      %v1089 = vpack.c.b16 %v949, %v945
      %v1090 = vpack.c.b16 %v954, %v950
      %v1091 = vpack.c.b16 %v955, %v951
      %v1092 = vpack.c.b16 %v956, %v952
      %v1093 = vpack.c.b16 %v957, %v953
      %v1094 = vpack.c.b16 %v962, %v958
      %v1095 = vpack.c.b16 %v963, %v959
      %v1096 = vpack.c.b16 %v964, %v960
      %v1097 = vpack.c.b16 %v965, %v961
      %v1098 = vpack.c.b16 %v970, %v966
      %v1099 = vpack.c.b16 %v971, %v967
      %v1100 = vpack.c.b16 %v972, %v968
      %v1101 = vpack.c.b16 %v973, %v969
      %1230 = vmatprep.subr.bf16.mxu0 %v1003
      %1231 = vmatpush1.bf16.msra.mxu0 %v1002
      %1232 = vmatprep.subr.bf16.mxu0 %v999
      %1233 = vmatpush1.bf16.msra.mxu0 %v998
      %1234 = vmatprep.subr.bf16.mxu0 %v995
      %1235 = vmatpush1.bf16.msra.mxu0 %v994
      %1236 = vmatprep.subr.bf16.mxu0 %v991
      %1237 = vmatpush1.bf16.msra.mxu0 %v990
      %1238 = vmatprep.subr.bf16.mxu0 %v987
      %1239 = vmatpush1.bf16.msra.mxu0 %v986
      %1240 = vmatprep.subr.bf16.mxu0 %v983
      %1241 = vmatpush1.bf16.msra.mxu0 %v982
      %1242 = vmatprep.subr.bf16.mxu0 %v979
      %1243 = vmatpush1.bf16.msra.mxu0 %v978
      %1244 = vmatprep.subr.bf16.mxu0 %v975
      %1245 = vmatpush1.bf16.msra.mxu0 %v974
      %1246 = vmatprep.subr.bf16.mxu0 %v1035
      %1247 = vmatpush2.bf16.msra.mxu0 %v1034
      %1248 = vmatprep.subr.bf16.mxu0 %v1031
      %1249 = vmatpush2.bf16.msra.mxu0 %v1030
      %1250 = vmatprep.subr.bf16.mxu0 %v1027
      %1251 = vmatpush2.bf16.msra.mxu0 %v1026
      %1252 = vmatprep.subr.bf16.mxu0 %v1023
      %1253 = vmatpush2.bf16.msra.mxu0 %v1022
      %1254 = vmatprep.subr.bf16.mxu0 %v1019
      %1255 = vmatpush2.bf16.msra.mxu0 %v1018
      %1256 = vmatprep.subr.bf16.mxu0 %v1015
      %1257 = vmatpush2.bf16.msra.mxu0 %v1014
      %1258 = vmatprep.subr.bf16.mxu0 %v1011
      %1259 = vmatpush2.bf16.msra.mxu0 %v1010
      %1260 = vmatprep.subr.bf16.mxu0 %v1007
      %1261 = vmatpush2.bf16.msra.mxu0 %v1006
      %1262 = vmatprep.mubr.bf16.mxu0 %v571
      %1263 = vmatmul.mubr.bf16.gmra.mxu0 %v564
      %v1264 = vpop.f32.mrf.mxu0
      %v1265 = vadd.f32 0.0, %v1264
      %v1266 = vpop.f32.mrf.mxu0
      %v1267 = vadd.f32 0.0, %v1266
      %v1268 = vpop.f32.mrf.mxu0
      %v1269 = vpop.f32.mrf.mxu0
      %1270 = vdwg.mxu0
      %1271 = vmatprep.subr.bf16.mxu0 %v1067
      %1272 = vmatpush1.bf16.msra.mxu0 %v1066
      %1273 = vmatprep.subr.bf16.mxu0 %v1063
      %1274 = vmatpush1.bf16.msra.mxu0 %v1062
      %1275 = vmatprep.subr.bf16.mxu0 %v1059
      %1276 = vmatpush1.bf16.msra.mxu0 %v1058
      %1277 = vmatprep.subr.bf16.mxu0 %v1055
      %1278 = vmatpush1.bf16.msra.mxu0 %v1054
      %1279 = vmatprep.subr.bf16.mxu0 %v1051
      %1280 = vmatpush1.bf16.msra.mxu0 %v1050
      %1281 = vmatprep.subr.bf16.mxu0 %v1047
      %1282 = vmatpush1.bf16.msra.mxu0 %v1046
      %1283 = vmatprep.subr.bf16.mxu0 %v1043
      %1284 = vmatpush1.bf16.msra.mxu0 %v1042
      %1285 = vmatprep.subr.bf16.mxu0 %v1039
      %1286 = vmatpush1.bf16.msra.mxu0 %v1038
      %1287 = vmatprep.subr.bf16.mxu0 %v1099
      %1288 = vmatpush2.bf16.msra.mxu0 %v1098
      %1289 = vmatprep.subr.bf16.mxu0 %v1095
      %1290 = vmatpush2.bf16.msra.mxu0 %v1094
      %1291 = vmatprep.subr.bf16.mxu0 %v1091
      %1292 = vmatpush2.bf16.msra.mxu0 %v1090
      %1293 = vmatprep.subr.bf16.mxu0 %v1087
      %1294 = vmatpush2.bf16.msra.mxu0 %v1086
      %1295 = vmatprep.subr.bf16.mxu0 %v1083
      %1296 = vmatpush2.bf16.msra.mxu0 %v1082
      %1297 = vmatprep.subr.bf16.mxu0 %v1079
      %1298 = vmatpush2.bf16.msra.mxu0 %v1078
      %1299 = vmatprep.subr.bf16.mxu0 %v1075
      %1300 = vmatpush2.bf16.msra.mxu0 %v1074
      %1301 = vmatprep.subr.bf16.mxu0 %v1071
      %1302 = vmatpush2.bf16.msra.mxu0 %v1070
      %1303 = vmatprep.mubr.bf16.mxu0 %v585
      %1304 = vmatmul.mubr.bf16.gmra.mxu0 %v578
      %v1305 = vpop.f32.mrf.mxu0
      %v1306 = vadd.f32 %v1265, %v1305
      %v1307 = vpop.f32.mrf.mxu0
      %v1308 = vadd.f32 %v1267, %v1307
      %v1309 = vpop.f32.mrf.mxu0
      %v1310 = vpop.f32.mrf.mxu0
      %1311 = vdwg.mxu0
      %1312 = vmatprep.subr.bf16.mxu0 %v1005
      %1313 = vmatpush1.bf16.msra.mxu0 %v1004
      %1314 = vmatprep.subr.bf16.mxu0 %v1001
      %1315 = vmatpush1.bf16.msra.mxu0 %v1000
      %1316 = vmatprep.subr.bf16.mxu0 %v997
      %1317 = vmatpush1.bf16.msra.mxu0 %v996
      %1318 = vmatprep.subr.bf16.mxu0 %v993
      %1319 = vmatpush1.bf16.msra.mxu0 %v992
      %1320 = vmatprep.subr.bf16.mxu0 %v989
      %1321 = vmatpush1.bf16.msra.mxu0 %v988
      %1322 = vmatprep.subr.bf16.mxu0 %v985
      %1323 = vmatpush1.bf16.msra.mxu0 %v984
      %1324 = vmatprep.subr.bf16.mxu0 %v981
      %1325 = vmatpush1.bf16.msra.mxu0 %v980
      %1326 = vmatprep.subr.bf16.mxu0 %v977
      %1327 = vmatpush1.bf16.msra.mxu0 %v976
      %1328 = vmatprep.subr.bf16.mxu0 %v1037
      %1329 = vmatpush2.bf16.msra.mxu0 %v1036
      %1330 = vmatprep.subr.bf16.mxu0 %v1033
      %1331 = vmatpush2.bf16.msra.mxu0 %v1032
      %1332 = vmatprep.subr.bf16.mxu0 %v1029
      %1333 = vmatpush2.bf16.msra.mxu0 %v1028
      %1334 = vmatprep.subr.bf16.mxu0 %v1025
      %1335 = vmatpush2.bf16.msra.mxu0 %v1024
      %1336 = vmatprep.subr.bf16.mxu0 %v1021
      %1337 = vmatpush2.bf16.msra.mxu0 %v1020
      %1338 = vmatprep.subr.bf16.mxu0 %v1017
      %1339 = vmatpush2.bf16.msra.mxu0 %v1016
      %1340 = vmatprep.subr.bf16.mxu0 %v1013
      %1341 = vmatpush2.bf16.msra.mxu0 %v1012
      %1342 = vmatprep.subr.bf16.mxu0 %v1009
      %1343 = vmatpush2.bf16.msra.mxu0 %v1008
      %1344 = vmatprep.mubr.bf16.mxu0 %v571
      %1345 = vmatmul.mubr.bf16.gmra.mxu0 %v564
      %v1346 = vpop.f32.mrf.mxu0
      %v1347 = vadd.f32 0.0, %v1346
      %v1348 = vpop.f32.mrf.mxu0
      %v1349 = vadd.f32 0.0, %v1348
      %v1350 = vpop.f32.mrf.mxu0
      %v1351 = vpop.f32.mrf.mxu0
      %1352 = vdwg.mxu0
      %1353 = vmatprep.subr.bf16.mxu0 %v1069
      %1354 = vmatpush1.bf16.msra.mxu0 %v1068
      %1355 = vmatprep.subr.bf16.mxu0 %v1065
      %1356 = vmatpush1.bf16.msra.mxu0 %v1064
      %1357 = vmatprep.subr.bf16.mxu0 %v1061
      %1358 = vmatpush1.bf16.msra.mxu0 %v1060
      %1359 = vmatprep.subr.bf16.mxu0 %v1057
      %1360 = vmatpush1.bf16.msra.mxu0 %v1056
      %1361 = vmatprep.subr.bf16.mxu0 %v1053
      %1362 = vmatpush1.bf16.msra.mxu0 %v1052
      %1363 = vmatprep.subr.bf16.mxu0 %v1049
      %1364 = vmatpush1.bf16.msra.mxu0 %v1048
      %1365 = vmatprep.subr.bf16.mxu0 %v1045
      %1366 = vmatpush1.bf16.msra.mxu0 %v1044
      %1367 = vmatprep.subr.bf16.mxu0 %v1041
      %1368 = vmatpush1.bf16.msra.mxu0 %v1040
      %1369 = vmatprep.subr.bf16.mxu0 %v1101
      %1370 = vmatpush2.bf16.msra.mxu0 %v1100
      %1371 = vmatprep.subr.bf16.mxu0 %v1097
      %1372 = vmatpush2.bf16.msra.mxu0 %v1096
      %1373 = vmatprep.subr.bf16.mxu0 %v1093
      %1374 = vmatpush2.bf16.msra.mxu0 %v1092
      %1375 = vmatprep.subr.bf16.mxu0 %v1089
      %1376 = vmatpush2.bf16.msra.mxu0 %v1088
      %1377 = vmatprep.subr.bf16.mxu0 %v1085
      %1378 = vmatpush2.bf16.msra.mxu0 %v1084
      %1379 = vmatprep.subr.bf16.mxu0 %v1081
      %1380 = vmatpush2.bf16.msra.mxu0 %v1080
      %1381 = vmatprep.subr.bf16.mxu0 %v1077
      %1382 = vmatpush2.bf16.msra.mxu0 %v1076
      %1383 = vmatprep.subr.bf16.mxu0 %v1073
      %1384 = vmatpush2.bf16.msra.mxu0 %v1072
      %1385 = vmatprep.mubr.bf16.mxu0 %v585
      %1386 = vmatmul.mubr.bf16.gmra.mxu0 %v578
      %v1387 = vpop.f32.mrf.mxu0
      %v1388 = vadd.f32 %v1347, %v1387
      %v1389 = vpop.f32.mrf.mxu0
      %v1390 = vadd.f32 %v1349, %v1389
      %v1391 = vpop.f32.mrf.mxu0
      %v1392 = vpop.f32.mrf.mxu0
      %1393 = vdwg.mxu0
      %v1395 = vcombine.high %v276, %v276
      %v1397 = vunpack.c.l.s4 1983009808
      %v1398 = vunpack.c.0.s8 %v1397
      %v1399 = vlaneseq
      %v1400 = vshrl.u32 %v1399, 7
      %v1401 = vsub.s32 %v1398, %v1400
      %v1402 = vrot.slane %v276, %v1401
      %v1404 = vunpack.c.l.s4 1983009808
      %v1405 = vunpack.c.0.s8 %v1404
      %v1406 = vlaneseq
      %v1407 = vshrl.u32 %v1406, 7
      %v1408 = vsub.s32 %v1405, %v1407
      %v1409 = vrot.slane %v1395, %v1408
      %v1410 = vcombine.high %v1402, %v1402
      %v1411 = vcombine.high %v1409, %v1409
      %v1544 = vunpack.c.l.b16 %v280
      %v1545 = vunpack.c.h.b16 %v280
      %v1546 = vunpack.c.l.b16 %v281
      %v1547 = vunpack.c.h.b16 %v281
      %v1548 = vunpack.c.l.b16 %v282
      %v1549 = vunpack.c.h.b16 %v282
      %v1550 = vunpack.c.l.b16 %v283
      %v1551 = vunpack.c.h.b16 %v283
      %v1552 = vunpack.c.l.b16 %v284
      %v1553 = vunpack.c.h.b16 %v284
      %v1554 = vunpack.c.l.b16 %v285
      %v1555 = vunpack.c.h.b16 %v285
      %v1556 = vunpack.c.l.b16 %v286
      %v1557 = vunpack.c.h.b16 %v286
      %v1558 = vunpack.c.l.b16 %v287
      %v1559 = vunpack.c.h.b16 %v287
      %v1560 = vunpack.c.l.b16 %v288
      %v1561 = vunpack.c.h.b16 %v288
      %v1562 = vunpack.c.l.b16 %v289
      %v1563 = vunpack.c.h.b16 %v289
      %v1564 = vunpack.c.l.b16 %v290
      %v1565 = vunpack.c.h.b16 %v290
      %v1566 = vunpack.c.l.b16 %v291
      %v1567 = vunpack.c.h.b16 %v291
      %v1568 = vunpack.c.l.b16 %v292
      %v1569 = vunpack.c.h.b16 %v292
      %v1570 = vunpack.c.l.b16 %v293
      %v1571 = vunpack.c.h.b16 %v293
      %v1572 = vunpack.c.l.b16 %v294
      %v1573 = vunpack.c.h.b16 %v294
      %v1574 = vunpack.c.l.b16 %v295
      %v1575 = vunpack.c.h.b16 %v295
      %v1576 = vunpack.c.l.b16 %v296
      %v1577 = vunpack.c.h.b16 %v296
      %v1578 = vunpack.c.l.b16 %v297
      %v1579 = vunpack.c.h.b16 %v297
      %v1580 = vunpack.c.l.b16 %v298
      %v1581 = vunpack.c.h.b16 %v298
      %v1582 = vunpack.c.l.b16 %v299
      %v1583 = vunpack.c.h.b16 %v299
      %v1584 = vunpack.c.l.b16 %v300
      %v1585 = vunpack.c.h.b16 %v300
      %v1586 = vunpack.c.l.b16 %v301
      %v1587 = vunpack.c.h.b16 %v301
      %v1588 = vunpack.c.l.b16 %v302
      %v1589 = vunpack.c.h.b16 %v302
      %v1590 = vunpack.c.l.b16 %v303
      %v1591 = vunpack.c.h.b16 %v303
      %v1592 = vunpack.c.l.b16 %v304
      %v1593 = vunpack.c.h.b16 %v304
      %v1594 = vunpack.c.l.b16 %v305
      %v1595 = vunpack.c.h.b16 %v305
      %v1596 = vunpack.c.l.b16 %v306
      %v1597 = vunpack.c.h.b16 %v306
      %v1598 = vunpack.c.l.b16 %v307
      %v1599 = vunpack.c.h.b16 %v307
      %v1600 = vunpack.c.l.b16 %v308
      %v1601 = vunpack.c.h.b16 %v308
      %v1602 = vunpack.c.l.b16 %v309
      %v1603 = vunpack.c.h.b16 %v309
      %v1604 = vunpack.c.l.b16 %v310
      %v1605 = vunpack.c.h.b16 %v310
      %v1606 = vunpack.c.l.b16 %v311
      %v1607 = vunpack.c.h.b16 %v311
      %v1608 = vunpack.c.l.b16 %v312
      %v1609 = vunpack.c.h.b16 %v312
      %v1610 = vunpack.c.l.b16 %v313
      %v1611 = vunpack.c.h.b16 %v313
      %v1612 = vunpack.c.l.b16 %v314
      %v1613 = vunpack.c.h.b16 %v314
      %v1614 = vunpack.c.l.b16 %v315
      %v1615 = vunpack.c.h.b16 %v315
      %v1616 = vunpack.c.l.b16 %v316
      %v1617 = vunpack.c.h.b16 %v316
      %v1618 = vunpack.c.l.b16 %v317
      %v1619 = vunpack.c.h.b16 %v317
      %v1620 = vunpack.c.l.b16 %v318
      %v1621 = vunpack.c.h.b16 %v318
      %v1622 = vunpack.c.l.b16 %v319
      %v1623 = vunpack.c.h.b16 %v319
      %v1624 = vunpack.c.l.b16 %v320
      %v1625 = vunpack.c.h.b16 %v320
      %v1626 = vunpack.c.l.b16 %v321
      %v1627 = vunpack.c.h.b16 %v321
      %v1628 = vunpack.c.l.b16 %v322
      %v1629 = vunpack.c.h.b16 %v322
      %v1630 = vunpack.c.l.b16 %v323
      %v1631 = vunpack.c.h.b16 %v323
      %v1632 = vunpack.c.l.b16 %v324
      %v1633 = vunpack.c.h.b16 %v324
      %v1634 = vunpack.c.l.b16 %v325
      %v1635 = vunpack.c.h.b16 %v325
      %v1636 = vunpack.c.l.b16 %v326
      %v1637 = vunpack.c.h.b16 %v326
      %v1638 = vunpack.c.l.b16 %v327
      %v1639 = vunpack.c.h.b16 %v327
      %v1640 = vunpack.c.l.b16 %v328
      %v1641 = vunpack.c.h.b16 %v328
      %v1642 = vunpack.c.l.b16 %v329
      %v1643 = vunpack.c.h.b16 %v329
      %v1644 = vunpack.c.l.b16 %v330
      %v1645 = vunpack.c.h.b16 %v330
      %v1646 = vunpack.c.l.b16 %v331
      %v1647 = vunpack.c.h.b16 %v331
      %v1648 = vunpack.c.l.b16 %v332
      %v1649 = vunpack.c.h.b16 %v332
      %v1650 = vunpack.c.l.b16 %v333
      %v1651 = vunpack.c.h.b16 %v333
      %v1652 = vunpack.c.l.b16 %v334
      %v1653 = vunpack.c.h.b16 %v334
      %v1654 = vunpack.c.l.b16 %v335
      %v1655 = vunpack.c.h.b16 %v335
      %v1656 = vunpack.c.l.b16 %v336
      %v1657 = vunpack.c.h.b16 %v336
      %v1658 = vunpack.c.l.b16 %v337
      %v1659 = vunpack.c.h.b16 %v337
      %v1660 = vunpack.c.l.b16 %v338
      %v1661 = vunpack.c.h.b16 %v338
      %v1662 = vunpack.c.l.b16 %v339
      %v1663 = vunpack.c.h.b16 %v339
      %v1664 = vunpack.c.l.b16 %v340
      %v1665 = vunpack.c.h.b16 %v340
      %v1666 = vunpack.c.l.b16 %v341
      %v1667 = vunpack.c.h.b16 %v341
      %v1668 = vunpack.c.l.b16 %v342
      %v1669 = vunpack.c.h.b16 %v342
      %v1670 = vunpack.c.l.b16 %v343
      %v1671 = vunpack.c.h.b16 %v343
      %v1672 = vunpack.c.l.b16 %v344
      %v1673 = vunpack.c.h.b16 %v344
      %v1674 = vunpack.c.l.b16 %v345
      %v1675 = vunpack.c.h.b16 %v345
      %v1676 = vunpack.c.l.b16 %v346
      %v1677 = vunpack.c.h.b16 %v346
      %v1678 = vunpack.c.l.b16 %v347
      %v1679 = vunpack.c.h.b16 %v347
      %v1680 = vunpack.c.l.b16 %v348
      %v1681 = vunpack.c.h.b16 %v348
      %v1682 = vunpack.c.l.b16 %v349
      %v1683 = vunpack.c.h.b16 %v349
      %v1684 = vunpack.c.l.b16 %v350
      %v1685 = vunpack.c.h.b16 %v350
      %v1686 = vunpack.c.l.b16 %v351
      %v1687 = vunpack.c.h.b16 %v351
      %v1688 = vunpack.c.l.b16 %v352
      %v1689 = vunpack.c.h.b16 %v352
      %v1690 = vunpack.c.l.b16 %v353
      %v1691 = vunpack.c.h.b16 %v353
      %v1692 = vunpack.c.l.b16 %v354
      %v1693 = vunpack.c.h.b16 %v354
      %v1694 = vunpack.c.l.b16 %v355
      %v1695 = vunpack.c.h.b16 %v355
      %v1696 = vunpack.c.l.b16 %v356
      %v1697 = vunpack.c.h.b16 %v356
      %v1698 = vunpack.c.l.b16 %v357
      %v1699 = vunpack.c.h.b16 %v357
      %v1700 = vunpack.c.l.b16 %v358
      %v1701 = vunpack.c.h.b16 %v358
      %v1702 = vunpack.c.l.b16 %v359
      %v1703 = vunpack.c.h.b16 %v359
      %v1704 = vunpack.c.l.b16 %v360
      %v1705 = vunpack.c.h.b16 %v360
      %v1706 = vunpack.c.l.b16 %v361
      %v1707 = vunpack.c.h.b16 %v361
      %v1708 = vunpack.c.l.b16 %v362
      %v1709 = vunpack.c.h.b16 %v362
      %v1710 = vunpack.c.l.b16 %v363
      %v1711 = vunpack.c.h.b16 %v363
      %v1712 = vunpack.c.l.b16 %v364
      %v1713 = vunpack.c.h.b16 %v364
      %v1714 = vunpack.c.l.b16 %v365
      %v1715 = vunpack.c.h.b16 %v365
      %v1716 = vunpack.c.l.b16 %v366
      %v1717 = vunpack.c.h.b16 %v366
      %v1718 = vunpack.c.l.b16 %v367
      %v1719 = vunpack.c.h.b16 %v367
      %v1720 = vunpack.c.l.b16 %v368
      %v1721 = vunpack.c.h.b16 %v368
      %v1722 = vunpack.c.l.b16 %v369
      %v1723 = vunpack.c.h.b16 %v369
      %v1724 = vunpack.c.l.b16 %v370
      %v1725 = vunpack.c.h.b16 %v370
      %v1726 = vunpack.c.l.b16 %v371
      %v1727 = vunpack.c.h.b16 %v371
      %v1728 = vunpack.c.l.b16 %v372
      %v1729 = vunpack.c.h.b16 %v372
      %v1730 = vunpack.c.l.b16 %v373
      %v1731 = vunpack.c.h.b16 %v373
      %v1732 = vunpack.c.l.b16 %v374
      %v1733 = vunpack.c.h.b16 %v374
      %v1734 = vunpack.c.l.b16 %v375
      %v1735 = vunpack.c.h.b16 %v375
      %v1736 = vunpack.c.l.b16 %v376
      %v1737 = vunpack.c.h.b16 %v376
      %v1738 = vunpack.c.l.b16 %v377
      %v1739 = vunpack.c.h.b16 %v377
      %v1740 = vunpack.c.l.b16 %v378
      %v1741 = vunpack.c.h.b16 %v378
      %v1742 = vunpack.c.l.b16 %v379
      %v1743 = vunpack.c.h.b16 %v379
      %v1744 = vunpack.c.l.b16 %v380
      %v1745 = vunpack.c.h.b16 %v380
      %v1746 = vunpack.c.l.b16 %v381
      %v1747 = vunpack.c.h.b16 %v381
      %v1748 = vunpack.c.l.b16 %v382
      %v1749 = vunpack.c.h.b16 %v382
      %v1750 = vunpack.c.l.b16 %v383
      %v1751 = vunpack.c.h.b16 %v383
      %v1752 = vunpack.c.l.b16 %v384
      %v1753 = vunpack.c.h.b16 %v384
      %v1754 = vunpack.c.l.b16 %v385
      %v1755 = vunpack.c.h.b16 %v385
      %v1756 = vunpack.c.l.b16 %v386
      %v1757 = vunpack.c.h.b16 %v386
      %v1758 = vunpack.c.l.b16 %v387
      %v1759 = vunpack.c.h.b16 %v387
      %v1760 = vunpack.c.l.b16 %v388
      %v1761 = vunpack.c.h.b16 %v388
      %v1762 = vunpack.c.l.b16 %v389
      %v1763 = vunpack.c.h.b16 %v389
      %v1764 = vunpack.c.l.b16 %v390
      %v1765 = vunpack.c.h.b16 %v390
      %v1766 = vunpack.c.l.b16 %v391
      %v1767 = vunpack.c.h.b16 %v391
      %v1768 = vunpack.c.l.b16 %v392
      %v1769 = vunpack.c.h.b16 %v392
      %v1770 = vunpack.c.l.b16 %v393
      %v1771 = vunpack.c.h.b16 %v393
      %v1772 = vunpack.c.l.b16 %v394
      %v1773 = vunpack.c.h.b16 %v394
      %v1774 = vunpack.c.l.b16 %v395
      %v1775 = vunpack.c.h.b16 %v395
      %v1776 = vunpack.c.l.b16 %v396
      %v1777 = vunpack.c.h.b16 %v396
      %v1778 = vunpack.c.l.b16 %v397
      %v1779 = vunpack.c.h.b16 %v397
      %v1780 = vunpack.c.l.b16 %v398
      %v1781 = vunpack.c.h.b16 %v398
      %v1782 = vunpack.c.l.b16 %v399
      %v1783 = vunpack.c.h.b16 %v399
      %v1784 = vunpack.c.l.b16 %v400
      %v1785 = vunpack.c.h.b16 %v400
      %v1786 = vunpack.c.l.b16 %v401
      %v1787 = vunpack.c.h.b16 %v401
      %v1788 = vunpack.c.l.b16 %v402
      %v1789 = vunpack.c.h.b16 %v402
      %v1790 = vunpack.c.l.b16 %v403
      %v1791 = vunpack.c.h.b16 %v403
      %v1792 = vunpack.c.l.b16 %v404
      %v1793 = vunpack.c.h.b16 %v404
      %v1794 = vunpack.c.l.b16 %v405
      %v1795 = vunpack.c.h.b16 %v405
      %v1796 = vunpack.c.l.b16 %v406
      %v1797 = vunpack.c.h.b16 %v406
      %v1798 = vunpack.c.l.b16 %v407
      %v1799 = vunpack.c.h.b16 %v407
      %v1800 = vpack.c.b16 %v1548, %v1544
      %v1801 = vpack.c.b16 %v1549, %v1545
      %v1802 = vpack.c.b16 %v1550, %v1546
      %v1803 = vpack.c.b16 %v1551, %v1547
      %v1804 = vpack.c.b16 %v1556, %v1552
      %v1805 = vpack.c.b16 %v1557, %v1553
      %v1806 = vpack.c.b16 %v1558, %v1554
      %v1807 = vpack.c.b16 %v1559, %v1555
      %v1808 = vpack.c.b16 %v1564, %v1560
      %v1809 = vpack.c.b16 %v1565, %v1561
      %v1810 = vpack.c.b16 %v1566, %v1562
      %v1811 = vpack.c.b16 %v1567, %v1563
      %v1812 = vpack.c.b16 %v1572, %v1568
      %v1813 = vpack.c.b16 %v1573, %v1569
      %v1814 = vpack.c.b16 %v1574, %v1570
      %v1815 = vpack.c.b16 %v1575, %v1571
      %v1816 = vpack.c.b16 %v1580, %v1576
      %v1817 = vpack.c.b16 %v1581, %v1577
      %v1818 = vpack.c.b16 %v1582, %v1578
      %v1819 = vpack.c.b16 %v1583, %v1579
      %v1820 = vpack.c.b16 %v1588, %v1584
      %v1821 = vpack.c.b16 %v1589, %v1585
      %v1822 = vpack.c.b16 %v1590, %v1586
      %v1823 = vpack.c.b16 %v1591, %v1587
      %v1824 = vpack.c.b16 %v1596, %v1592
      %v1825 = vpack.c.b16 %v1597, %v1593
      %v1826 = vpack.c.b16 %v1598, %v1594
      %v1827 = vpack.c.b16 %v1599, %v1595
      %v1828 = vpack.c.b16 %v1604, %v1600
      %v1829 = vpack.c.b16 %v1605, %v1601
      %v1830 = vpack.c.b16 %v1606, %v1602
      %v1831 = vpack.c.b16 %v1607, %v1603
      %v1832 = vpack.c.b16 %v1612, %v1608
      %v1833 = vpack.c.b16 %v1613, %v1609
      %v1834 = vpack.c.b16 %v1614, %v1610
      %v1835 = vpack.c.b16 %v1615, %v1611
      %v1836 = vpack.c.b16 %v1620, %v1616
      %v1837 = vpack.c.b16 %v1621, %v1617
      %v1838 = vpack.c.b16 %v1622, %v1618
      %v1839 = vpack.c.b16 %v1623, %v1619
      %v1840 = vpack.c.b16 %v1628, %v1624
      %v1841 = vpack.c.b16 %v1629, %v1625
      %v1842 = vpack.c.b16 %v1630, %v1626
      %v1843 = vpack.c.b16 %v1631, %v1627
      %v1844 = vpack.c.b16 %v1636, %v1632
      %v1845 = vpack.c.b16 %v1637, %v1633
      %v1846 = vpack.c.b16 %v1638, %v1634
      %v1847 = vpack.c.b16 %v1639, %v1635
      %v1848 = vpack.c.b16 %v1644, %v1640
      %v1849 = vpack.c.b16 %v1645, %v1641
      %v1850 = vpack.c.b16 %v1646, %v1642
      %v1851 = vpack.c.b16 %v1647, %v1643
      %v1852 = vpack.c.b16 %v1652, %v1648
      %v1853 = vpack.c.b16 %v1653, %v1649
      %v1854 = vpack.c.b16 %v1654, %v1650
      %v1855 = vpack.c.b16 %v1655, %v1651
      %v1856 = vpack.c.b16 %v1660, %v1656
      %v1857 = vpack.c.b16 %v1661, %v1657
      %v1858 = vpack.c.b16 %v1662, %v1658
      %v1859 = vpack.c.b16 %v1663, %v1659
      %v1860 = vpack.c.b16 %v1668, %v1664
      %v1861 = vpack.c.b16 %v1669, %v1665
      %v1862 = vpack.c.b16 %v1670, %v1666
      %v1863 = vpack.c.b16 %v1671, %v1667
      %v1864 = vpack.c.b16 %v1676, %v1672
      %v1865 = vpack.c.b16 %v1677, %v1673
      %v1866 = vpack.c.b16 %v1678, %v1674
      %v1867 = vpack.c.b16 %v1679, %v1675
      %v1868 = vpack.c.b16 %v1684, %v1680
      %v1869 = vpack.c.b16 %v1685, %v1681
      %v1870 = vpack.c.b16 %v1686, %v1682
      %v1871 = vpack.c.b16 %v1687, %v1683
      %v1872 = vpack.c.b16 %v1692, %v1688
      %v1873 = vpack.c.b16 %v1693, %v1689
      %v1874 = vpack.c.b16 %v1694, %v1690
      %v1875 = vpack.c.b16 %v1695, %v1691
      %v1876 = vpack.c.b16 %v1700, %v1696
      %v1877 = vpack.c.b16 %v1701, %v1697
      %v1878 = vpack.c.b16 %v1702, %v1698
      %v1879 = vpack.c.b16 %v1703, %v1699
      %v1880 = vpack.c.b16 %v1708, %v1704
      %v1881 = vpack.c.b16 %v1709, %v1705
      %v1882 = vpack.c.b16 %v1710, %v1706
      %v1883 = vpack.c.b16 %v1711, %v1707
      %v1884 = vpack.c.b16 %v1716, %v1712
      %v1885 = vpack.c.b16 %v1717, %v1713
      %v1886 = vpack.c.b16 %v1718, %v1714
      %v1887 = vpack.c.b16 %v1719, %v1715
      %v1888 = vpack.c.b16 %v1724, %v1720
      %v1889 = vpack.c.b16 %v1725, %v1721
      %v1890 = vpack.c.b16 %v1726, %v1722
      %v1891 = vpack.c.b16 %v1727, %v1723
      %v1892 = vpack.c.b16 %v1732, %v1728
      %v1893 = vpack.c.b16 %v1733, %v1729
      %v1894 = vpack.c.b16 %v1734, %v1730
      %v1895 = vpack.c.b16 %v1735, %v1731
      %v1896 = vpack.c.b16 %v1740, %v1736
      %v1897 = vpack.c.b16 %v1741, %v1737
      %v1898 = vpack.c.b16 %v1742, %v1738
      %v1899 = vpack.c.b16 %v1743, %v1739
      %v1900 = vpack.c.b16 %v1748, %v1744
      %v1901 = vpack.c.b16 %v1749, %v1745
      %v1902 = vpack.c.b16 %v1750, %v1746
      %v1903 = vpack.c.b16 %v1751, %v1747
      %v1904 = vpack.c.b16 %v1756, %v1752
      %v1905 = vpack.c.b16 %v1757, %v1753
      %v1906 = vpack.c.b16 %v1758, %v1754
      %v1907 = vpack.c.b16 %v1759, %v1755
      %v1908 = vpack.c.b16 %v1764, %v1760
      %v1909 = vpack.c.b16 %v1765, %v1761
      %v1910 = vpack.c.b16 %v1766, %v1762
      %v1911 = vpack.c.b16 %v1767, %v1763
      %v1912 = vpack.c.b16 %v1772, %v1768
      %v1913 = vpack.c.b16 %v1773, %v1769
      %v1914 = vpack.c.b16 %v1774, %v1770
      %v1915 = vpack.c.b16 %v1775, %v1771
      %v1916 = vpack.c.b16 %v1780, %v1776
      %v1917 = vpack.c.b16 %v1781, %v1777
      %v1918 = vpack.c.b16 %v1782, %v1778
      %v1919 = vpack.c.b16 %v1783, %v1779
      %v1920 = vpack.c.b16 %v1788, %v1784
      %v1921 = vpack.c.b16 %v1789, %v1785
      %v1922 = vpack.c.b16 %v1790, %v1786
      %v1923 = vpack.c.b16 %v1791, %v1787
      %v1924 = vpack.c.b16 %v1796, %v1792
      %v1925 = vpack.c.b16 %v1797, %v1793
      %v1926 = vpack.c.b16 %v1798, %v1794
      %v1927 = vpack.c.b16 %v1799, %v1795
      %2056 = vmatprep.subr.bf16.mxu0 %v1829
      %2057 = vmatpush1.bf16.msra.mxu0 %v1828
      %2058 = vmatprep.subr.bf16.mxu0 %v1825
      %2059 = vmatpush1.bf16.msra.mxu0 %v1824
      %2060 = vmatprep.subr.bf16.mxu0 %v1821
      %2061 = vmatpush1.bf16.msra.mxu0 %v1820
      %2062 = vmatprep.subr.bf16.mxu0 %v1817
      %2063 = vmatpush1.bf16.msra.mxu0 %v1816
      %2064 = vmatprep.subr.bf16.mxu0 %v1813
      %2065 = vmatpush1.bf16.msra.mxu0 %v1812
      %2066 = vmatprep.subr.bf16.mxu0 %v1809
      %2067 = vmatpush1.bf16.msra.mxu0 %v1808
      %2068 = vmatprep.subr.bf16.mxu0 %v1805
      %2069 = vmatpush1.bf16.msra.mxu0 %v1804
      %2070 = vmatprep.subr.bf16.mxu0 %v1801
      %2071 = vmatpush1.bf16.msra.mxu0 %v1800
      %2072 = vmatprep.subr.bf16.mxu0 %v1861
      %2073 = vmatpush2.bf16.msra.mxu0 %v1860
      %2074 = vmatprep.subr.bf16.mxu0 %v1857
      %2075 = vmatpush2.bf16.msra.mxu0 %v1856
      %2076 = vmatprep.subr.bf16.mxu0 %v1853
      %2077 = vmatpush2.bf16.msra.mxu0 %v1852
      %2078 = vmatprep.subr.bf16.mxu0 %v1849
      %2079 = vmatpush2.bf16.msra.mxu0 %v1848
      %2080 = vmatprep.subr.bf16.mxu0 %v1845
      %2081 = vmatpush2.bf16.msra.mxu0 %v1844
      %2082 = vmatprep.subr.bf16.mxu0 %v1841
      %2083 = vmatpush2.bf16.msra.mxu0 %v1840
      %2084 = vmatprep.subr.bf16.mxu0 %v1837
      %2085 = vmatpush2.bf16.msra.mxu0 %v1836
      %2086 = vmatprep.subr.bf16.mxu0 %v1833
      %2087 = vmatpush2.bf16.msra.mxu0 %v1832
      %2088 = vmatprep.mubr.bf16.mxu0 %v1410
      %2089 = vmatmul.mubr.bf16.gmra.mxu0 %v1402
      %v2090 = vpop.f32.mrf.mxu0
      %v2091 = vadd.f32 %v1306, %v2090
      %v2092 = vpop.f32.mrf.mxu0
      %v2093 = vadd.f32 %v1308, %v2092
      %v2094 = vpop.f32.mrf.mxu0
      %v2095 = vpop.f32.mrf.mxu0
      %2096 = vdwg.mxu0
      %2097 = vmatprep.subr.bf16.mxu0 %v1893
      %2098 = vmatpush1.bf16.msra.mxu0 %v1892
      %2099 = vmatprep.subr.bf16.mxu0 %v1889
      %2100 = vmatpush1.bf16.msra.mxu0 %v1888
      %2101 = vmatprep.subr.bf16.mxu0 %v1885
      %2102 = vmatpush1.bf16.msra.mxu0 %v1884
      %2103 = vmatprep.subr.bf16.mxu0 %v1881
      %2104 = vmatpush1.bf16.msra.mxu0 %v1880
      %2105 = vmatprep.subr.bf16.mxu0 %v1877
      %2106 = vmatpush1.bf16.msra.mxu0 %v1876
      %2107 = vmatprep.subr.bf16.mxu0 %v1873
      %2108 = vmatpush1.bf16.msra.mxu0 %v1872
      %2109 = vmatprep.subr.bf16.mxu0 %v1869
      %2110 = vmatpush1.bf16.msra.mxu0 %v1868
      %2111 = vmatprep.subr.bf16.mxu0 %v1865
      %2112 = vmatpush1.bf16.msra.mxu0 %v1864
      %2113 = vmatprep.subr.bf16.mxu0 %v1925
      %2114 = vmatpush2.bf16.msra.mxu0 %v1924
      %2115 = vmatprep.subr.bf16.mxu0 %v1921
      %2116 = vmatpush2.bf16.msra.mxu0 %v1920
      %2117 = vmatprep.subr.bf16.mxu0 %v1917
      %2118 = vmatpush2.bf16.msra.mxu0 %v1916
      %2119 = vmatprep.subr.bf16.mxu0 %v1913
      %2120 = vmatpush2.bf16.msra.mxu0 %v1912
      %2121 = vmatprep.subr.bf16.mxu0 %v1909
      %2122 = vmatpush2.bf16.msra.mxu0 %v1908
      %2123 = vmatprep.subr.bf16.mxu0 %v1905
      %2124 = vmatpush2.bf16.msra.mxu0 %v1904
      %2125 = vmatprep.subr.bf16.mxu0 %v1901
      %2126 = vmatpush2.bf16.msra.mxu0 %v1900
      %2127 = vmatprep.subr.bf16.mxu0 %v1897
      %2128 = vmatpush2.bf16.msra.mxu0 %v1896
      %2129 = vmatprep.mubr.bf16.mxu0 %v1411
      %2130 = vmatmul.mubr.bf16.gmra.mxu0 %v1409
      %v2131 = vpop.f32.mrf.mxu0
      %v2132 = vadd.f32 %v2091, %v2131
      %v2133 = vpop.f32.mrf.mxu0
      %v2134 = vadd.f32 %v2093, %v2133
      %v2135 = vpop.f32.mrf.mxu0
      %v2136 = vpop.f32.mrf.mxu0
      %2137 = vdwg.mxu0
      %2138 = vmatprep.subr.bf16.mxu0 %v1831
      %2139 = vmatpush1.bf16.msra.mxu0 %v1830
      %2140 = vmatprep.subr.bf16.mxu0 %v1827
      %2141 = vmatpush1.bf16.msra.mxu0 %v1826
      %2142 = vmatprep.subr.bf16.mxu0 %v1823
      %2143 = vmatpush1.bf16.msra.mxu0 %v1822
      %2144 = vmatprep.subr.bf16.mxu0 %v1819
      %2145 = vmatpush1.bf16.msra.mxu0 %v1818
      %2146 = vmatprep.subr.bf16.mxu0 %v1815
      %2147 = vmatpush1.bf16.msra.mxu0 %v1814
      %2148 = vmatprep.subr.bf16.mxu0 %v1811
      %2149 = vmatpush1.bf16.msra.mxu0 %v1810
      %2150 = vmatprep.subr.bf16.mxu0 %v1807
      %2151 = vmatpush1.bf16.msra.mxu0 %v1806
      %2152 = vmatprep.subr.bf16.mxu0 %v1803
      %2153 = vmatpush1.bf16.msra.mxu0 %v1802
      %2154 = vmatprep.subr.bf16.mxu0 %v1863
      %2155 = vmatpush2.bf16.msra.mxu0 %v1862
      %2156 = vmatprep.subr.bf16.mxu0 %v1859
      %2157 = vmatpush2.bf16.msra.mxu0 %v1858
      %2158 = vmatprep.subr.bf16.mxu0 %v1855
      %2159 = vmatpush2.bf16.msra.mxu0 %v1854
      %2160 = vmatprep.subr.bf16.mxu0 %v1851
      %2161 = vmatpush2.bf16.msra.mxu0 %v1850
      %2162 = vmatprep.subr.bf16.mxu0 %v1847
      %2163 = vmatpush2.bf16.msra.mxu0 %v1846
      %2164 = vmatprep.subr.bf16.mxu0 %v1843
      %2165 = vmatpush2.bf16.msra.mxu0 %v1842
      %2166 = vmatprep.subr.bf16.mxu0 %v1839
      %2167 = vmatpush2.bf16.msra.mxu0 %v1838
      %2168 = vmatprep.subr.bf16.mxu0 %v1835
      %2169 = vmatpush2.bf16.msra.mxu0 %v1834
      %2170 = vmatprep.mubr.bf16.mxu0 %v1410
      %2171 = vmatmul.mubr.bf16.gmra.mxu0 %v1402
      %v2172 = vpop.f32.mrf.mxu0
      %v2173 = vadd.f32 %v1388, %v2172
      %v2174 = vpop.f32.mrf.mxu0
      %v2175 = vadd.f32 %v1390, %v2174
      %v2176 = vpop.f32.mrf.mxu0
      %v2177 = vpop.f32.mrf.mxu0
      %2178 = vdwg.mxu0
      %2179 = vmatprep.subr.bf16.mxu0 %v1895
      %2180 = vmatpush1.bf16.msra.mxu0 %v1894
      %2181 = vmatprep.subr.bf16.mxu0 %v1891
      %2182 = vmatpush1.bf16.msra.mxu0 %v1890
      %2183 = vmatprep.subr.bf16.mxu0 %v1887
      %2184 = vmatpush1.bf16.msra.mxu0 %v1886
      %2185 = vmatprep.subr.bf16.mxu0 %v1883
      %2186 = vmatpush1.bf16.msra.mxu0 %v1882
      %2187 = vmatprep.subr.bf16.mxu0 %v1879
      %2188 = vmatpush1.bf16.msra.mxu0 %v1878
      %2189 = vmatprep.subr.bf16.mxu0 %v1875
      %2190 = vmatpush1.bf16.msra.mxu0 %v1874
      %2191 = vmatprep.subr.bf16.mxu0 %v1871
      %2192 = vmatpush1.bf16.msra.mxu0 %v1870
      %2193 = vmatprep.subr.bf16.mxu0 %v1867
      %2194 = vmatpush1.bf16.msra.mxu0 %v1866
      %2195 = vmatprep.subr.bf16.mxu0 %v1927
      %2196 = vmatpush2.bf16.msra.mxu0 %v1926
      %2197 = vmatprep.subr.bf16.mxu0 %v1923
      %2198 = vmatpush2.bf16.msra.mxu0 %v1922
      %2199 = vmatprep.subr.bf16.mxu0 %v1919
      %2200 = vmatpush2.bf16.msra.mxu0 %v1918
      %2201 = vmatprep.subr.bf16.mxu0 %v1915
      %2202 = vmatpush2.bf16.msra.mxu0 %v1914
      %2203 = vmatprep.subr.bf16.mxu0 %v1911
      %2204 = vmatpush2.bf16.msra.mxu0 %v1910
      %2205 = vmatprep.subr.bf16.mxu0 %v1907
      %2206 = vmatpush2.bf16.msra.mxu0 %v1906
      %2207 = vmatprep.subr.bf16.mxu0 %v1903
      %2208 = vmatpush2.bf16.msra.mxu0 %v1902
      %2209 = vmatprep.subr.bf16.mxu0 %v1899
      %2210 = vmatpush2.bf16.msra.mxu0 %v1898
      %2211 = vmatprep.mubr.bf16.mxu0 %v1411
      %2212 = vmatmul.mubr.bf16.gmra.mxu0 %v1409
      %v2213 = vpop.f32.mrf.mxu0
      %v2214 = vadd.f32 %v2173, %v2213
      %v2215 = vpop.f32.mrf.mxu0
      %v2216 = vadd.f32 %v2175, %v2215
      %v2217 = vpop.f32.mrf.mxu0
      %v2218 = vpop.f32.mrf.mxu0
      %2219 = vdwg.mxu0
      %v2220 = vld [vmem:[%s251] sm:$0xaa]
      %s2221 = sadd.s32 512, %s277
      %s2222 = smul.addr %s2221, 4
      %s2223 = scalar_lea.vmem %s1, %s2222
      %v2224 = vld [vmem:[%s2223] sm:$0xff]
      %v2225 = vld [vmem:[%s2223 + $0x8] sm:$0xff]
      %v2226 = vld [vmem:[%s2223 + $0x10] sm:$0xff]
      %v2227 = vld [vmem:[%s2223 + $0x18] sm:$0xff]
      %v2228 = vld [vmem:[%s2223 + $0x20] sm:$0xff]
      %v2229 = vld [vmem:[%s2223 + $0x28] sm:$0xff]
      %v2230 = vld [vmem:[%s2223 + $0x30] sm:$0xff]
      %v2231 = vld [vmem:[%s2223 + $0x38] sm:$0xff]
      %v2232 = vld [vmem:[%s2223 + $0x40] sm:$0xff]
      %v2233 = vld [vmem:[%s2223 + $0x48] sm:$0xff]
      %v2234 = vld [vmem:[%s2223 + $0x50] sm:$0xff]
      %v2235 = vld [vmem:[%s2223 + $0x58] sm:$0xff]
      %v2236 = vld [vmem:[%s2223 + $0x60] sm:$0xff]
      %v2237 = vld [vmem:[%s2223 + $0x68] sm:$0xff]
      %v2238 = vld [vmem:[%s2223 + $0x70] sm:$0xff]
      %v2239 = vld [vmem:[%s2223 + $0x78] sm:$0xff]
      %v2240 = vld [vmem:[%s2223 + $0x80] sm:$0xff]
      %v2241 = vld [vmem:[%s2223 + $0x88] sm:$0xff]
      %v2242 = vld [vmem:[%s2223 + $0x90] sm:$0xff]
      %v2243 = vld [vmem:[%s2223 + $0x98] sm:$0xff]
      %v2244 = vld [vmem:[%s2223 + $0xa0] sm:$0xff]
      %v2245 = vld [vmem:[%s2223 + $0xa8] sm:$0xff]
      %v2246 = vld [vmem:[%s2223 + $0xb0] sm:$0xff]
      %v2247 = vld [vmem:[%s2223 + $0xb8] sm:$0xff]
      %v2248 = vld [vmem:[%s2223 + $0xc0] sm:$0xff]
      %v2249 = vld [vmem:[%s2223 + $0xc8] sm:$0xff]
      %v2250 = vld [vmem:[%s2223 + $0xd0] sm:$0xff]
      %v2251 = vld [vmem:[%s2223 + $0xd8] sm:$0xff]
      %v2252 = vld [vmem:[%s2223 + $0xe0] sm:$0xff]
      %v2253 = vld [vmem:[%s2223 + $0xe8] sm:$0xff]
      %v2254 = vld [vmem:[%s2223 + $0xf0] sm:$0xff]
      %v2255 = vld [vmem:[%s2223 + $0xf8] sm:$0xff]
      %v2256 = vld [vmem:[%s2223 + $0x100] sm:$0xff]
      %v2257 = vld [vmem:[%s2223 + $0x108] sm:$0xff]
      %v2258 = vld [vmem:[%s2223 + $0x110] sm:$0xff]
      %v2259 = vld [vmem:[%s2223 + $0x118] sm:$0xff]
      %v2260 = vld [vmem:[%s2223 + $0x120] sm:$0xff]
      %v2261 = vld [vmem:[%s2223 + $0x128] sm:$0xff]
      %v2262 = vld [vmem:[%s2223 + $0x130] sm:$0xff]
      %v2263 = vld [vmem:[%s2223 + $0x138] sm:$0xff]
      %v2264 = vld [vmem:[%s2223 + $0x140] sm:$0xff]
      %v2265 = vld [vmem:[%s2223 + $0x148] sm:$0xff]
      %v2266 = vld [vmem:[%s2223 + $0x150] sm:$0xff]
      %v2267 = vld [vmem:[%s2223 + $0x158] sm:$0xff]
      %v2268 = vld [vmem:[%s2223 + $0x160] sm:$0xff]
      %v2269 = vld [vmem:[%s2223 + $0x168] sm:$0xff]
      %v2270 = vld [vmem:[%s2223 + $0x170] sm:$0xff]
      %v2271 = vld [vmem:[%s2223 + $0x178] sm:$0xff]
      %v2272 = vld [vmem:[%s2223 + $0x180] sm:$0xff]
      %v2273 = vld [vmem:[%s2223 + $0x188] sm:$0xff]
      %v2274 = vld [vmem:[%s2223 + $0x190] sm:$0xff]
      %v2275 = vld [vmem:[%s2223 + $0x198] sm:$0xff]
      %v2276 = vld [vmem:[%s2223 + $0x1a0] sm:$0xff]
      %v2277 = vld [vmem:[%s2223 + $0x1a8] sm:$0xff]
      %v2278 = vld [vmem:[%s2223 + $0x1b0] sm:$0xff]
      %v2279 = vld [vmem:[%s2223 + $0x1b8] sm:$0xff]
      %v2280 = vld [vmem:[%s2223 + $0x1c0] sm:$0xff]
      %v2281 = vld [vmem:[%s2223 + $0x1c8] sm:$0xff]
      %v2282 = vld [vmem:[%s2223 + $0x1d0] sm:$0xff]
      %v2283 = vld [vmem:[%s2223 + $0x1d8] sm:$0xff]
      %v2284 = vld [vmem:[%s2223 + $0x1e0] sm:$0xff]
      %v2285 = vld [vmem:[%s2223 + $0x1e8] sm:$0xff]
      %v2286 = vld [vmem:[%s2223 + $0x1f0] sm:$0xff]
      %v2287 = vld [vmem:[%s2223 + $0x1f8] sm:$0xff]
      %v2288 = vld [vmem:[%s2223 + $0x200] sm:$0xff]
      %v2289 = vld [vmem:[%s2223 + $0x208] sm:$0xff]
      %v2290 = vld [vmem:[%s2223 + $0x210] sm:$0xff]
      %v2291 = vld [vmem:[%s2223 + $0x218] sm:$0xff]
      %v2292 = vld [vmem:[%s2223 + $0x220] sm:$0xff]
      %v2293 = vld [vmem:[%s2223 + $0x228] sm:$0xff]
      %v2294 = vld [vmem:[%s2223 + $0x230] sm:$0xff]
      %v2295 = vld [vmem:[%s2223 + $0x238] sm:$0xff]
      %v2296 = vld [vmem:[%s2223 + $0x240] sm:$0xff]
      %v2297 = vld [vmem:[%s2223 + $0x248] sm:$0xff]
      %v2298 = vld [vmem:[%s2223 + $0x250] sm:$0xff]
      %v2299 = vld [vmem:[%s2223 + $0x258] sm:$0xff]
      %v2300 = vld [vmem:[%s2223 + $0x260] sm:$0xff]
      %v2301 = vld [vmem:[%s2223 + $0x268] sm:$0xff]
      %v2302 = vld [vmem:[%s2223 + $0x270] sm:$0xff]
      %v2303 = vld [vmem:[%s2223 + $0x278] sm:$0xff]
      %v2304 = vld [vmem:[%s2223 + $0x280] sm:$0xff]
      %v2305 = vld [vmem:[%s2223 + $0x288] sm:$0xff]
      %v2306 = vld [vmem:[%s2223 + $0x290] sm:$0xff]
      %v2307 = vld [vmem:[%s2223 + $0x298] sm:$0xff]
      %v2308 = vld [vmem:[%s2223 + $0x2a0] sm:$0xff]
      %v2309 = vld [vmem:[%s2223 + $0x2a8] sm:$0xff]
      %v2310 = vld [vmem:[%s2223 + $0x2b0] sm:$0xff]
      %v2311 = vld [vmem:[%s2223 + $0x2b8] sm:$0xff]
      %v2312 = vld [vmem:[%s2223 + $0x2c0] sm:$0xff]
      %v2313 = vld [vmem:[%s2223 + $0x2c8] sm:$0xff]
      %v2314 = vld [vmem:[%s2223 + $0x2d0] sm:$0xff]
      %v2315 = vld [vmem:[%s2223 + $0x2d8] sm:$0xff]
      %v2316 = vld [vmem:[%s2223 + $0x2e0] sm:$0xff]
      %v2317 = vld [vmem:[%s2223 + $0x2e8] sm:$0xff]
      %v2318 = vld [vmem:[%s2223 + $0x2f0] sm:$0xff]
      %v2319 = vld [vmem:[%s2223 + $0x2f8] sm:$0xff]
      %v2320 = vld [vmem:[%s2223 + $0x300] sm:$0xff]
      %v2321 = vld [vmem:[%s2223 + $0x308] sm:$0xff]
      %v2322 = vld [vmem:[%s2223 + $0x310] sm:$0xff]
      %v2323 = vld [vmem:[%s2223 + $0x318] sm:$0xff]
      %v2324 = vld [vmem:[%s2223 + $0x320] sm:$0xff]
      %v2325 = vld [vmem:[%s2223 + $0x328] sm:$0xff]
      %v2326 = vld [vmem:[%s2223 + $0x330] sm:$0xff]
      %v2327 = vld [vmem:[%s2223 + $0x338] sm:$0xff]
      %v2328 = vld [vmem:[%s2223 + $0x340] sm:$0xff]
      %v2329 = vld [vmem:[%s2223 + $0x348] sm:$0xff]
      %v2330 = vld [vmem:[%s2223 + $0x350] sm:$0xff]
      %v2331 = vld [vmem:[%s2223 + $0x358] sm:$0xff]
      %v2332 = vld [vmem:[%s2223 + $0x360] sm:$0xff]
      %v2333 = vld [vmem:[%s2223 + $0x368] sm:$0xff]
      %v2334 = vld [vmem:[%s2223 + $0x370] sm:$0xff]
      %v2335 = vld [vmem:[%s2223 + $0x378] sm:$0xff]
      %v2336 = vld [vmem:[%s2223 + $0x380] sm:$0xff]
      %v2337 = vld [vmem:[%s2223 + $0x388] sm:$0xff]
      %v2338 = vld [vmem:[%s2223 + $0x390] sm:$0xff]
      %v2339 = vld [vmem:[%s2223 + $0x398] sm:$0xff]
      %v2340 = vld [vmem:[%s2223 + $0x3a0] sm:$0xff]
      %v2341 = vld [vmem:[%s2223 + $0x3a8] sm:$0xff]
      %v2342 = vld [vmem:[%s2223 + $0x3b0] sm:$0xff]
      %v2343 = vld [vmem:[%s2223 + $0x3b8] sm:$0xff]
      %v2344 = vld [vmem:[%s2223 + $0x3c0] sm:$0xff]
      %v2345 = vld [vmem:[%s2223 + $0x3c8] sm:$0xff]
      %v2346 = vld [vmem:[%s2223 + $0x3d0] sm:$0xff]
      %v2347 = vld [vmem:[%s2223 + $0x3d8] sm:$0xff]
      %v2348 = vld [vmem:[%s2223 + $0x3e0] sm:$0xff]
      %v2349 = vld [vmem:[%s2223 + $0x3e8] sm:$0xff]
      %v2350 = vld [vmem:[%s2223 + $0x3f0] sm:$0xff]
      %v2351 = vld [vmem:[%s2223 + $0x3f8] sm:$0xff]
      %v2353 = vcombine.high %v2220, %v2220
      %v2355 = vunpack.c.l.s4 1983009808
      %v2356 = vunpack.c.0.s8 %v2355
      %v2357 = vlaneseq
      %v2358 = vshrl.u32 %v2357, 7
      %v2359 = vsub.s32 %v2356, %v2358
      %v2360 = vrot.slane %v2220, %v2359
      %v2362 = vunpack.c.l.s4 1983009808
      %v2363 = vunpack.c.0.s8 %v2362
      %v2364 = vlaneseq
      %v2365 = vshrl.u32 %v2364, 7
      %v2366 = vsub.s32 %v2363, %v2365
      %v2367 = vrot.slane %v2353, %v2366
      %v2368 = vcombine.high %v2360, %v2360
      %v2369 = vcombine.high %v2367, %v2367
      %v2370 = vrot.slane %v2360, 1
      %v2371 = vrot.slane %v2368, 1
      %v2372 = vrot.slane %v2367, 1
      %v2373 = vrot.slane %v2369, 1
      %v2506 = vunpack.c.l.b16 %v2224
      %v2507 = vunpack.c.h.b16 %v2224
      %v2508 = vunpack.c.l.b16 %v2225
      %v2509 = vunpack.c.h.b16 %v2225
      %v2510 = vunpack.c.l.b16 %v2226
      %v2511 = vunpack.c.h.b16 %v2226
      %v2512 = vunpack.c.l.b16 %v2227
      %v2513 = vunpack.c.h.b16 %v2227
      %v2514 = vunpack.c.l.b16 %v2228
      %v2515 = vunpack.c.h.b16 %v2228
      %v2516 = vunpack.c.l.b16 %v2229
      %v2517 = vunpack.c.h.b16 %v2229
      %v2518 = vunpack.c.l.b16 %v2230
      %v2519 = vunpack.c.h.b16 %v2230
      %v2520 = vunpack.c.l.b16 %v2231
      %v2521 = vunpack.c.h.b16 %v2231
      %v2522 = vunpack.c.l.b16 %v2232
      %v2523 = vunpack.c.h.b16 %v2232
      %v2524 = vunpack.c.l.b16 %v2233
      %v2525 = vunpack.c.h.b16 %v2233
      %v2526 = vunpack.c.l.b16 %v2234
      %v2527 = vunpack.c.h.b16 %v2234
      %v2528 = vunpack.c.l.b16 %v2235
      %v2529 = vunpack.c.h.b16 %v2235
      %v2530 = vunpack.c.l.b16 %v2236
      %v2531 = vunpack.c.h.b16 %v2236
      %v2532 = vunpack.c.l.b16 %v2237
      %v2533 = vunpack.c.h.b16 %v2237
      %v2534 = vunpack.c.l.b16 %v2238
      %v2535 = vunpack.c.h.b16 %v2238
      %v2536 = vunpack.c.l.b16 %v2239
      %v2537 = vunpack.c.h.b16 %v2239
      %v2538 = vunpack.c.l.b16 %v2240
      %v2539 = vunpack.c.h.b16 %v2240
      %v2540 = vunpack.c.l.b16 %v2241
      %v2541 = vunpack.c.h.b16 %v2241
      %v2542 = vunpack.c.l.b16 %v2242
      %v2543 = vunpack.c.h.b16 %v2242
      %v2544 = vunpack.c.l.b16 %v2243
      %v2545 = vunpack.c.h.b16 %v2243
      %v2546 = vunpack.c.l.b16 %v2244
      %v2547 = vunpack.c.h.b16 %v2244
      %v2548 = vunpack.c.l.b16 %v2245
      %v2549 = vunpack.c.h.b16 %v2245
      %v2550 = vunpack.c.l.b16 %v2246
      %v2551 = vunpack.c.h.b16 %v2246
      %v2552 = vunpack.c.l.b16 %v2247
      %v2553 = vunpack.c.h.b16 %v2247
      %v2554 = vunpack.c.l.b16 %v2248
      %v2555 = vunpack.c.h.b16 %v2248
      %v2556 = vunpack.c.l.b16 %v2249
      %v2557 = vunpack.c.h.b16 %v2249
      %v2558 = vunpack.c.l.b16 %v2250
      %v2559 = vunpack.c.h.b16 %v2250
      %v2560 = vunpack.c.l.b16 %v2251
      %v2561 = vunpack.c.h.b16 %v2251
      %v2562 = vunpack.c.l.b16 %v2252
      %v2563 = vunpack.c.h.b16 %v2252
      %v2564 = vunpack.c.l.b16 %v2253
      %v2565 = vunpack.c.h.b16 %v2253
      %v2566 = vunpack.c.l.b16 %v2254
      %v2567 = vunpack.c.h.b16 %v2254
      %v2568 = vunpack.c.l.b16 %v2255
      %v2569 = vunpack.c.h.b16 %v2255
      %v2570 = vunpack.c.l.b16 %v2256
      %v2571 = vunpack.c.h.b16 %v2256
      %v2572 = vunpack.c.l.b16 %v2257
      %v2573 = vunpack.c.h.b16 %v2257
      %v2574 = vunpack.c.l.b16 %v2258
      %v2575 = vunpack.c.h.b16 %v2258
      %v2576 = vunpack.c.l.b16 %v2259
      %v2577 = vunpack.c.h.b16 %v2259
      %v2578 = vunpack.c.l.b16 %v2260
      %v2579 = vunpack.c.h.b16 %v2260
      %v2580 = vunpack.c.l.b16 %v2261
      %v2581 = vunpack.c.h.b16 %v2261
      %v2582 = vunpack.c.l.b16 %v2262
      %v2583 = vunpack.c.h.b16 %v2262
      %v2584 = vunpack.c.l.b16 %v2263
      %v2585 = vunpack.c.h.b16 %v2263
      %v2586 = vunpack.c.l.b16 %v2264
      %v2587 = vunpack.c.h.b16 %v2264
      %v2588 = vunpack.c.l.b16 %v2265
      %v2589 = vunpack.c.h.b16 %v2265
      %v2590 = vunpack.c.l.b16 %v2266
      %v2591 = vunpack.c.h.b16 %v2266
      %v2592 = vunpack.c.l.b16 %v2267
      %v2593 = vunpack.c.h.b16 %v2267
      %v2594 = vunpack.c.l.b16 %v2268
      %v2595 = vunpack.c.h.b16 %v2268
      %v2596 = vunpack.c.l.b16 %v2269
      %v2597 = vunpack.c.h.b16 %v2269
      %v2598 = vunpack.c.l.b16 %v2270
      %v2599 = vunpack.c.h.b16 %v2270
      %v2600 = vunpack.c.l.b16 %v2271
      %v2601 = vunpack.c.h.b16 %v2271
      %v2602 = vunpack.c.l.b16 %v2272
      %v2603 = vunpack.c.h.b16 %v2272
      %v2604 = vunpack.c.l.b16 %v2273
      %v2605 = vunpack.c.h.b16 %v2273
      %v2606 = vunpack.c.l.b16 %v2274
      %v2607 = vunpack.c.h.b16 %v2274
      %v2608 = vunpack.c.l.b16 %v2275
      %v2609 = vunpack.c.h.b16 %v2275
      %v2610 = vunpack.c.l.b16 %v2276
      %v2611 = vunpack.c.h.b16 %v2276
      %v2612 = vunpack.c.l.b16 %v2277
      %v2613 = vunpack.c.h.b16 %v2277
      %v2614 = vunpack.c.l.b16 %v2278
      %v2615 = vunpack.c.h.b16 %v2278
      %v2616 = vunpack.c.l.b16 %v2279
      %v2617 = vunpack.c.h.b16 %v2279
      %v2618 = vunpack.c.l.b16 %v2280
      %v2619 = vunpack.c.h.b16 %v2280
      %v2620 = vunpack.c.l.b16 %v2281
      %v2621 = vunpack.c.h.b16 %v2281
      %v2622 = vunpack.c.l.b16 %v2282
      %v2623 = vunpack.c.h.b16 %v2282
      %v2624 = vunpack.c.l.b16 %v2283
      %v2625 = vunpack.c.h.b16 %v2283
      %v2626 = vunpack.c.l.b16 %v2284
      %v2627 = vunpack.c.h.b16 %v2284
      %v2628 = vunpack.c.l.b16 %v2285
      %v2629 = vunpack.c.h.b16 %v2285
      %v2630 = vunpack.c.l.b16 %v2286
      %v2631 = vunpack.c.h.b16 %v2286
      %v2632 = vunpack.c.l.b16 %v2287
      %v2633 = vunpack.c.h.b16 %v2287
      %v2634 = vunpack.c.l.b16 %v2288
      %v2635 = vunpack.c.h.b16 %v2288
      %v2636 = vunpack.c.l.b16 %v2289
      %v2637 = vunpack.c.h.b16 %v2289
      %v2638 = vunpack.c.l.b16 %v2290
      %v2639 = vunpack.c.h.b16 %v2290
      %v2640 = vunpack.c.l.b16 %v2291
      %v2641 = vunpack.c.h.b16 %v2291
      %v2642 = vunpack.c.l.b16 %v2292
      %v2643 = vunpack.c.h.b16 %v2292
      %v2644 = vunpack.c.l.b16 %v2293
      %v2645 = vunpack.c.h.b16 %v2293
      %v2646 = vunpack.c.l.b16 %v2294
      %v2647 = vunpack.c.h.b16 %v2294
      %v2648 = vunpack.c.l.b16 %v2295
      %v2649 = vunpack.c.h.b16 %v2295
      %v2650 = vunpack.c.l.b16 %v2296
      %v2651 = vunpack.c.h.b16 %v2296
      %v2652 = vunpack.c.l.b16 %v2297
      %v2653 = vunpack.c.h.b16 %v2297
      %v2654 = vunpack.c.l.b16 %v2298
      %v2655 = vunpack.c.h.b16 %v2298
      %v2656 = vunpack.c.l.b16 %v2299
      %v2657 = vunpack.c.h.b16 %v2299
      %v2658 = vunpack.c.l.b16 %v2300
      %v2659 = vunpack.c.h.b16 %v2300
      %v2660 = vunpack.c.l.b16 %v2301
      %v2661 = vunpack.c.h.b16 %v2301
      %v2662 = vunpack.c.l.b16 %v2302
      %v2663 = vunpack.c.h.b16 %v2302
      %v2664 = vunpack.c.l.b16 %v2303
      %v2665 = vunpack.c.h.b16 %v2303
      %v2666 = vunpack.c.l.b16 %v2304
      %v2667 = vunpack.c.h.b16 %v2304
      %v2668 = vunpack.c.l.b16 %v2305
      %v2669 = vunpack.c.h.b16 %v2305
      %v2670 = vunpack.c.l.b16 %v2306
      %v2671 = vunpack.c.h.b16 %v2306
      %v2672 = vunpack.c.l.b16 %v2307
      %v2673 = vunpack.c.h.b16 %v2307
      %v2674 = vunpack.c.l.b16 %v2308
      %v2675 = vunpack.c.h.b16 %v2308
      %v2676 = vunpack.c.l.b16 %v2309
      %v2677 = vunpack.c.h.b16 %v2309
      %v2678 = vunpack.c.l.b16 %v2310
      %v2679 = vunpack.c.h.b16 %v2310
      %v2680 = vunpack.c.l.b16 %v2311
      %v2681 = vunpack.c.h.b16 %v2311
      %v2682 = vunpack.c.l.b16 %v2312
      %v2683 = vunpack.c.h.b16 %v2312
      %v2684 = vunpack.c.l.b16 %v2313
      %v2685 = vunpack.c.h.b16 %v2313
      %v2686 = vunpack.c.l.b16 %v2314
      %v2687 = vunpack.c.h.b16 %v2314
      %v2688 = vunpack.c.l.b16 %v2315
      %v2689 = vunpack.c.h.b16 %v2315
      %v2690 = vunpack.c.l.b16 %v2316
      %v2691 = vunpack.c.h.b16 %v2316
      %v2692 = vunpack.c.l.b16 %v2317
      %v2693 = vunpack.c.h.b16 %v2317
      %v2694 = vunpack.c.l.b16 %v2318
      %v2695 = vunpack.c.h.b16 %v2318
      %v2696 = vunpack.c.l.b16 %v2319
      %v2697 = vunpack.c.h.b16 %v2319
      %v2698 = vunpack.c.l.b16 %v2320
      %v2699 = vunpack.c.h.b16 %v2320
      %v2700 = vunpack.c.l.b16 %v2321
      %v2701 = vunpack.c.h.b16 %v2321
      %v2702 = vunpack.c.l.b16 %v2322
      %v2703 = vunpack.c.h.b16 %v2322
      %v2704 = vunpack.c.l.b16 %v2323
      %v2705 = vunpack.c.h.b16 %v2323
      %v2706 = vunpack.c.l.b16 %v2324
      %v2707 = vunpack.c.h.b16 %v2324
      %v2708 = vunpack.c.l.b16 %v2325
      %v2709 = vunpack.c.h.b16 %v2325
      %v2710 = vunpack.c.l.b16 %v2326
      %v2711 = vunpack.c.h.b16 %v2326
      %v2712 = vunpack.c.l.b16 %v2327
      %v2713 = vunpack.c.h.b16 %v2327
      %v2714 = vunpack.c.l.b16 %v2328
      %v2715 = vunpack.c.h.b16 %v2328
      %v2716 = vunpack.c.l.b16 %v2329
      %v2717 = vunpack.c.h.b16 %v2329
      %v2718 = vunpack.c.l.b16 %v2330
      %v2719 = vunpack.c.h.b16 %v2330
      %v2720 = vunpack.c.l.b16 %v2331
      %v2721 = vunpack.c.h.b16 %v2331
      %v2722 = vunpack.c.l.b16 %v2332
      %v2723 = vunpack.c.h.b16 %v2332
      %v2724 = vunpack.c.l.b16 %v2333
      %v2725 = vunpack.c.h.b16 %v2333
      %v2726 = vunpack.c.l.b16 %v2334
      %v2727 = vunpack.c.h.b16 %v2334
      %v2728 = vunpack.c.l.b16 %v2335
      %v2729 = vunpack.c.h.b16 %v2335
      %v2730 = vunpack.c.l.b16 %v2336
      %v2731 = vunpack.c.h.b16 %v2336
      %v2732 = vunpack.c.l.b16 %v2337
      %v2733 = vunpack.c.h.b16 %v2337
      %v2734 = vunpack.c.l.b16 %v2338
      %v2735 = vunpack.c.h.b16 %v2338
      %v2736 = vunpack.c.l.b16 %v2339
      %v2737 = vunpack.c.h.b16 %v2339
      %v2738 = vunpack.c.l.b16 %v2340
      %v2739 = vunpack.c.h.b16 %v2340
      %v2740 = vunpack.c.l.b16 %v2341
      %v2741 = vunpack.c.h.b16 %v2341
      %v2742 = vunpack.c.l.b16 %v2342
      %v2743 = vunpack.c.h.b16 %v2342
      %v2744 = vunpack.c.l.b16 %v2343
      %v2745 = vunpack.c.h.b16 %v2343
      %v2746 = vunpack.c.l.b16 %v2344
      %v2747 = vunpack.c.h.b16 %v2344
      %v2748 = vunpack.c.l.b16 %v2345
      %v2749 = vunpack.c.h.b16 %v2345
      %v2750 = vunpack.c.l.b16 %v2346
      %v2751 = vunpack.c.h.b16 %v2346
      %v2752 = vunpack.c.l.b16 %v2347
      %v2753 = vunpack.c.h.b16 %v2347
      %v2754 = vunpack.c.l.b16 %v2348
      %v2755 = vunpack.c.h.b16 %v2348
      %v2756 = vunpack.c.l.b16 %v2349
      %v2757 = vunpack.c.h.b16 %v2349
      %v2758 = vunpack.c.l.b16 %v2350
      %v2759 = vunpack.c.h.b16 %v2350
      %v2760 = vunpack.c.l.b16 %v2351
      %v2761 = vunpack.c.h.b16 %v2351
      %v2762 = vpack.c.b16 %v2510, %v2506
      %v2763 = vpack.c.b16 %v2511, %v2507
      %v2764 = vpack.c.b16 %v2512, %v2508
      %v2765 = vpack.c.b16 %v2513, %v2509
      %v2766 = vpack.c.b16 %v2518, %v2514
      %v2767 = vpack.c.b16 %v2519, %v2515
      %v2768 = vpack.c.b16 %v2520, %v2516
      %v2769 = vpack.c.b16 %v2521, %v2517
      %v2770 = vpack.c.b16 %v2526, %v2522
      %v2771 = vpack.c.b16 %v2527, %v2523
      %v2772 = vpack.c.b16 %v2528, %v2524
      %v2773 = vpack.c.b16 %v2529, %v2525
      %v2774 = vpack.c.b16 %v2534, %v2530
      %v2775 = vpack.c.b16 %v2535, %v2531
      %v2776 = vpack.c.b16 %v2536, %v2532
      %v2777 = vpack.c.b16 %v2537, %v2533
      %v2778 = vpack.c.b16 %v2542, %v2538
      %v2779 = vpack.c.b16 %v2543, %v2539
      %v2780 = vpack.c.b16 %v2544, %v2540
      %v2781 = vpack.c.b16 %v2545, %v2541
      %v2782 = vpack.c.b16 %v2550, %v2546
      %v2783 = vpack.c.b16 %v2551, %v2547
      %v2784 = vpack.c.b16 %v2552, %v2548
      %v2785 = vpack.c.b16 %v2553, %v2549
      %v2786 = vpack.c.b16 %v2558, %v2554
      %v2787 = vpack.c.b16 %v2559, %v2555
      %v2788 = vpack.c.b16 %v2560, %v2556
      %v2789 = vpack.c.b16 %v2561, %v2557
      %v2790 = vpack.c.b16 %v2566, %v2562
      %v2791 = vpack.c.b16 %v2567, %v2563
      %v2792 = vpack.c.b16 %v2568, %v2564
      %v2793 = vpack.c.b16 %v2569, %v2565
      %v2794 = vpack.c.b16 %v2574, %v2570
      %v2795 = vpack.c.b16 %v2575, %v2571
      %v2796 = vpack.c.b16 %v2576, %v2572
      %v2797 = vpack.c.b16 %v2577, %v2573
      %v2798 = vpack.c.b16 %v2582, %v2578
      %v2799 = vpack.c.b16 %v2583, %v2579
      %v2800 = vpack.c.b16 %v2584, %v2580
      %v2801 = vpack.c.b16 %v2585, %v2581
      %v2802 = vpack.c.b16 %v2590, %v2586
      %v2803 = vpack.c.b16 %v2591, %v2587
      %v2804 = vpack.c.b16 %v2592, %v2588
      %v2805 = vpack.c.b16 %v2593, %v2589
      %v2806 = vpack.c.b16 %v2598, %v2594
      %v2807 = vpack.c.b16 %v2599, %v2595
      %v2808 = vpack.c.b16 %v2600, %v2596
      %v2809 = vpack.c.b16 %v2601, %v2597
      %v2810 = vpack.c.b16 %v2606, %v2602
      %v2811 = vpack.c.b16 %v2607, %v2603
      %v2812 = vpack.c.b16 %v2608, %v2604
      %v2813 = vpack.c.b16 %v2609, %v2605
      %v2814 = vpack.c.b16 %v2614, %v2610
      %v2815 = vpack.c.b16 %v2615, %v2611
      %v2816 = vpack.c.b16 %v2616, %v2612
      %v2817 = vpack.c.b16 %v2617, %v2613
      %v2818 = vpack.c.b16 %v2622, %v2618
      %v2819 = vpack.c.b16 %v2623, %v2619
      %v2820 = vpack.c.b16 %v2624, %v2620
      %v2821 = vpack.c.b16 %v2625, %v2621
      %v2822 = vpack.c.b16 %v2630, %v2626
      %v2823 = vpack.c.b16 %v2631, %v2627
      %v2824 = vpack.c.b16 %v2632, %v2628
      %v2825 = vpack.c.b16 %v2633, %v2629
      %v2826 = vpack.c.b16 %v2638, %v2634
      %v2827 = vpack.c.b16 %v2639, %v2635
      %v2828 = vpack.c.b16 %v2640, %v2636
      %v2829 = vpack.c.b16 %v2641, %v2637
      %v2830 = vpack.c.b16 %v2646, %v2642
      %v2831 = vpack.c.b16 %v2647, %v2643
      %v2832 = vpack.c.b16 %v2648, %v2644
      %v2833 = vpack.c.b16 %v2649, %v2645
      %v2834 = vpack.c.b16 %v2654, %v2650
      %v2835 = vpack.c.b16 %v2655, %v2651
      %v2836 = vpack.c.b16 %v2656, %v2652
      %v2837 = vpack.c.b16 %v2657, %v2653
      %v2838 = vpack.c.b16 %v2662, %v2658
      %v2839 = vpack.c.b16 %v2663, %v2659
      %v2840 = vpack.c.b16 %v2664, %v2660
      %v2841 = vpack.c.b16 %v2665, %v2661
      %v2842 = vpack.c.b16 %v2670, %v2666
      %v2843 = vpack.c.b16 %v2671, %v2667
      %v2844 = vpack.c.b16 %v2672, %v2668
      %v2845 = vpack.c.b16 %v2673, %v2669
      %v2846 = vpack.c.b16 %v2678, %v2674
      %v2847 = vpack.c.b16 %v2679, %v2675
      %v2848 = vpack.c.b16 %v2680, %v2676
      %v2849 = vpack.c.b16 %v2681, %v2677
      %v2850 = vpack.c.b16 %v2686, %v2682
      %v2851 = vpack.c.b16 %v2687, %v2683
      %v2852 = vpack.c.b16 %v2688, %v2684
      %v2853 = vpack.c.b16 %v2689, %v2685
      %v2854 = vpack.c.b16 %v2694, %v2690
      %v2855 = vpack.c.b16 %v2695, %v2691
      %v2856 = vpack.c.b16 %v2696, %v2692
      %v2857 = vpack.c.b16 %v2697, %v2693
      %v2858 = vpack.c.b16 %v2702, %v2698
      %v2859 = vpack.c.b16 %v2703, %v2699
      %v2860 = vpack.c.b16 %v2704, %v2700
      %v2861 = vpack.c.b16 %v2705, %v2701
      %v2862 = vpack.c.b16 %v2710, %v2706
      %v2863 = vpack.c.b16 %v2711, %v2707
      %v2864 = vpack.c.b16 %v2712, %v2708
      %v2865 = vpack.c.b16 %v2713, %v2709
      %v2866 = vpack.c.b16 %v2718, %v2714
      %v2867 = vpack.c.b16 %v2719, %v2715
      %v2868 = vpack.c.b16 %v2720, %v2716
      %v2869 = vpack.c.b16 %v2721, %v2717
      %v2870 = vpack.c.b16 %v2726, %v2722
      %v2871 = vpack.c.b16 %v2727, %v2723
      %v2872 = vpack.c.b16 %v2728, %v2724
      %v2873 = vpack.c.b16 %v2729, %v2725
      %v2874 = vpack.c.b16 %v2734, %v2730
      %v2875 = vpack.c.b16 %v2735, %v2731
      %v2876 = vpack.c.b16 %v2736, %v2732
      %v2877 = vpack.c.b16 %v2737, %v2733
      %v2878 = vpack.c.b16 %v2742, %v2738
      %v2879 = vpack.c.b16 %v2743, %v2739
      %v2880 = vpack.c.b16 %v2744, %v2740
      %v2881 = vpack.c.b16 %v2745, %v2741
      %v2882 = vpack.c.b16 %v2750, %v2746
      %v2883 = vpack.c.b16 %v2751, %v2747
      %v2884 = vpack.c.b16 %v2752, %v2748
      %v2885 = vpack.c.b16 %v2753, %v2749
      %v2886 = vpack.c.b16 %v2758, %v2754
      %v2887 = vpack.c.b16 %v2759, %v2755
      %v2888 = vpack.c.b16 %v2760, %v2756
      %v2889 = vpack.c.b16 %v2761, %v2757
      %3018 = vmatprep.subr.bf16.mxu0 %v2791
      %3019 = vmatpush1.bf16.msra.mxu0 %v2790
      %3020 = vmatprep.subr.bf16.mxu0 %v2787
      %3021 = vmatpush1.bf16.msra.mxu0 %v2786
      %3022 = vmatprep.subr.bf16.mxu0 %v2783
      %3023 = vmatpush1.bf16.msra.mxu0 %v2782
      %3024 = vmatprep.subr.bf16.mxu0 %v2779
      %3025 = vmatpush1.bf16.msra.mxu0 %v2778
      %3026 = vmatprep.subr.bf16.mxu0 %v2775
      %3027 = vmatpush1.bf16.msra.mxu0 %v2774
      %3028 = vmatprep.subr.bf16.mxu0 %v2771
      %3029 = vmatpush1.bf16.msra.mxu0 %v2770
      %3030 = vmatprep.subr.bf16.mxu0 %v2767
      %3031 = vmatpush1.bf16.msra.mxu0 %v2766
      %3032 = vmatprep.subr.bf16.mxu0 %v2763
      %3033 = vmatpush1.bf16.msra.mxu0 %v2762
      %3034 = vmatprep.subr.bf16.mxu0 %v2823
      %3035 = vmatpush2.bf16.msra.mxu0 %v2822
      %3036 = vmatprep.subr.bf16.mxu0 %v2819
      %3037 = vmatpush2.bf16.msra.mxu0 %v2818
      %3038 = vmatprep.subr.bf16.mxu0 %v2815
      %3039 = vmatpush2.bf16.msra.mxu0 %v2814
      %3040 = vmatprep.subr.bf16.mxu0 %v2811
      %3041 = vmatpush2.bf16.msra.mxu0 %v2810
      %3042 = vmatprep.subr.bf16.mxu0 %v2807
      %3043 = vmatpush2.bf16.msra.mxu0 %v2806
      %3044 = vmatprep.subr.bf16.mxu0 %v2803
      %3045 = vmatpush2.bf16.msra.mxu0 %v2802
      %3046 = vmatprep.subr.bf16.mxu0 %v2799
      %3047 = vmatpush2.bf16.msra.mxu0 %v2798
      %3048 = vmatprep.subr.bf16.mxu0 %v2795
      %3049 = vmatpush2.bf16.msra.mxu0 %v2794
      %3050 = vmatprep.mubr.bf16.mxu0 %v2371
      %3051 = vmatmul.mubr.bf16.gmra.mxu0 %v2370
      %v3052 = vpop.f32.mrf.mxu0
      %v3053 = vadd.f32 0.0, %v3052
      %v3054 = vpop.f32.mrf.mxu0
      %v3055 = vadd.f32 0.0, %v3054
      %v3056 = vpop.f32.mrf.mxu0
      %v3057 = vpop.f32.mrf.mxu0
      %3058 = vdwg.mxu0
      %3059 = vmatprep.subr.bf16.mxu0 %v2855
      %3060 = vmatpush1.bf16.msra.mxu0 %v2854
      %3061 = vmatprep.subr.bf16.mxu0 %v2851
      %3062 = vmatpush1.bf16.msra.mxu0 %v2850
      %3063 = vmatprep.subr.bf16.mxu0 %v2847
      %3064 = vmatpush1.bf16.msra.mxu0 %v2846
      %3065 = vmatprep.subr.bf16.mxu0 %v2843
      %3066 = vmatpush1.bf16.msra.mxu0 %v2842
      %3067 = vmatprep.subr.bf16.mxu0 %v2839
      %3068 = vmatpush1.bf16.msra.mxu0 %v2838
      %3069 = vmatprep.subr.bf16.mxu0 %v2835
      %3070 = vmatpush1.bf16.msra.mxu0 %v2834
      %3071 = vmatprep.subr.bf16.mxu0 %v2831
      %3072 = vmatpush1.bf16.msra.mxu0 %v2830
      %3073 = vmatprep.subr.bf16.mxu0 %v2827
      %3074 = vmatpush1.bf16.msra.mxu0 %v2826
      %3075 = vmatprep.subr.bf16.mxu0 %v2887
      %3076 = vmatpush2.bf16.msra.mxu0 %v2886
      %3077 = vmatprep.subr.bf16.mxu0 %v2883
      %3078 = vmatpush2.bf16.msra.mxu0 %v2882
      %3079 = vmatprep.subr.bf16.mxu0 %v2879
      %3080 = vmatpush2.bf16.msra.mxu0 %v2878
      %3081 = vmatprep.subr.bf16.mxu0 %v2875
      %3082 = vmatpush2.bf16.msra.mxu0 %v2874
      %3083 = vmatprep.subr.bf16.mxu0 %v2871
      %3084 = vmatpush2.bf16.msra.mxu0 %v2870
      %3085 = vmatprep.subr.bf16.mxu0 %v2867
      %3086 = vmatpush2.bf16.msra.mxu0 %v2866
      %3087 = vmatprep.subr.bf16.mxu0 %v2863
      %3088 = vmatpush2.bf16.msra.mxu0 %v2862
      %3089 = vmatprep.subr.bf16.mxu0 %v2859
      %3090 = vmatpush2.bf16.msra.mxu0 %v2858
      %3091 = vmatprep.mubr.bf16.mxu0 %v2373
      %3092 = vmatmul.mubr.bf16.gmra.mxu0 %v2372
      %v3093 = vpop.f32.mrf.mxu0
      %v3094 = vadd.f32 %v3053, %v3093
      %v3095 = vpop.f32.mrf.mxu0
      %v3096 = vadd.f32 %v3055, %v3095
      %v3097 = vpop.f32.mrf.mxu0
      %v3098 = vpop.f32.mrf.mxu0
      %3099 = vdwg.mxu0
      %3100 = vmatprep.subr.bf16.mxu0 %v2793
      %3101 = vmatpush1.bf16.msra.mxu0 %v2792
      %3102 = vmatprep.subr.bf16.mxu0 %v2789
      %3103 = vmatpush1.bf16.msra.mxu0 %v2788
      %3104 = vmatprep.subr.bf16.mxu0 %v2785
      %3105 = vmatpush1.bf16.msra.mxu0 %v2784
      %3106 = vmatprep.subr.bf16.mxu0 %v2781
      %3107 = vmatpush1.bf16.msra.mxu0 %v2780
      %3108 = vmatprep.subr.bf16.mxu0 %v2777
      %3109 = vmatpush1.bf16.msra.mxu0 %v2776
      %3110 = vmatprep.subr.bf16.mxu0 %v2773
      %3111 = vmatpush1.bf16.msra.mxu0 %v2772
      %3112 = vmatprep.subr.bf16.mxu0 %v2769
      %3113 = vmatpush1.bf16.msra.mxu0 %v2768
      %3114 = vmatprep.subr.bf16.mxu0 %v2765
      %3115 = vmatpush1.bf16.msra.mxu0 %v2764
      %3116 = vmatprep.subr.bf16.mxu0 %v2825
      %3117 = vmatpush2.bf16.msra.mxu0 %v2824
      %3118 = vmatprep.subr.bf16.mxu0 %v2821
      %3119 = vmatpush2.bf16.msra.mxu0 %v2820
      %3120 = vmatprep.subr.bf16.mxu0 %v2817
      %3121 = vmatpush2.bf16.msra.mxu0 %v2816
      %3122 = vmatprep.subr.bf16.mxu0 %v2813
      %3123 = vmatpush2.bf16.msra.mxu0 %v2812
      %3124 = vmatprep.subr.bf16.mxu0 %v2809
      %3125 = vmatpush2.bf16.msra.mxu0 %v2808
      %3126 = vmatprep.subr.bf16.mxu0 %v2805
      %3127 = vmatpush2.bf16.msra.mxu0 %v2804
      %3128 = vmatprep.subr.bf16.mxu0 %v2801
      %3129 = vmatpush2.bf16.msra.mxu0 %v2800
      %3130 = vmatprep.subr.bf16.mxu0 %v2797
      %3131 = vmatpush2.bf16.msra.mxu0 %v2796
      %3132 = vmatprep.mubr.bf16.mxu0 %v2371
      %3133 = vmatmul.mubr.bf16.gmra.mxu0 %v2370
      %v3134 = vpop.f32.mrf.mxu0
      %v3135 = vadd.f32 0.0, %v3134
      %v3136 = vpop.f32.mrf.mxu0
      %v3137 = vadd.f32 0.0, %v3136
      %v3138 = vpop.f32.mrf.mxu0
      %v3139 = vpop.f32.mrf.mxu0
      %3140 = vdwg.mxu0
      %3141 = vmatprep.subr.bf16.mxu0 %v2857
      %3142 = vmatpush1.bf16.msra.mxu0 %v2856
      %3143 = vmatprep.subr.bf16.mxu0 %v2853
      %3144 = vmatpush1.bf16.msra.mxu0 %v2852
      %3145 = vmatprep.subr.bf16.mxu0 %v2849
      %3146 = vmatpush1.bf16.msra.mxu0 %v2848
      %3147 = vmatprep.subr.bf16.mxu0 %v2845
      %3148 = vmatpush1.bf16.msra.mxu0 %v2844
      %3149 = vmatprep.subr.bf16.mxu0 %v2841
      %3150 = vmatpush1.bf16.msra.mxu0 %v2840
      %3151 = vmatprep.subr.bf16.mxu0 %v2837
      %3152 = vmatpush1.bf16.msra.mxu0 %v2836
      %3153 = vmatprep.subr.bf16.mxu0 %v2833
      %3154 = vmatpush1.bf16.msra.mxu0 %v2832
      %3155 = vmatprep.subr.bf16.mxu0 %v2829
      %3156 = vmatpush1.bf16.msra.mxu0 %v2828
      %3157 = vmatprep.subr.bf16.mxu0 %v2889
      %3158 = vmatpush2.bf16.msra.mxu0 %v2888
      %3159 = vmatprep.subr.bf16.mxu0 %v2885
      %3160 = vmatpush2.bf16.msra.mxu0 %v2884
      %3161 = vmatprep.subr.bf16.mxu0 %v2881
      %3162 = vmatpush2.bf16.msra.mxu0 %v2880
      %3163 = vmatprep.subr.bf16.mxu0 %v2877
      %3164 = vmatpush2.bf16.msra.mxu0 %v2876
      %3165 = vmatprep.subr.bf16.mxu0 %v2873
      %3166 = vmatpush2.bf16.msra.mxu0 %v2872
      %3167 = vmatprep.subr.bf16.mxu0 %v2869
      %3168 = vmatpush2.bf16.msra.mxu0 %v2868
      %3169 = vmatprep.subr.bf16.mxu0 %v2865
      %3170 = vmatpush2.bf16.msra.mxu0 %v2864
      %3171 = vmatprep.subr.bf16.mxu0 %v2861
      %3172 = vmatpush2.bf16.msra.mxu0 %v2860
      %3173 = vmatprep.mubr.bf16.mxu0 %v2373
      %3174 = vmatmul.mubr.bf16.gmra.mxu0 %v2372
      %v3175 = vpop.f32.mrf.mxu0
      %v3176 = vadd.f32 %v3135, %v3175
      %v3177 = vpop.f32.mrf.mxu0
      %v3178 = vadd.f32 %v3137, %v3177
      %v3179 = vpop.f32.mrf.mxu0
      %v3180 = vpop.f32.mrf.mxu0
      %3181 = vdwg.mxu0
      %v3182 = vadd.f32 %v2132, %v3094
      %v3183 = vadd.f32 %v2134, %v3096
      %v3184 = vadd.f32 %v2214, %v3176
      %v3185 = vadd.f32 %v2216, %v3178
      %v3186 = vld [vmem:[%s261] sm:$0xff]
      %v3191 = vcombine.low %v3182, %v3183
      %v3192 = vcombine.low %v3184, %v3185
      %v3194 = vunpack.c.l.s4 1983009808
      %v3195 = vunpack.c.0.s8 %v3194
      %v3196 = vlaneseq
      %v3197 = vshrl.u32 %v3196, 7
      %v3198 = vsub.s32 %v3195, %v3197
      %v3199 = vrot.slane %v3191, %v3198
      %v3201 = vunpack.c.l.s4 1983009808
      %v3202 = vunpack.c.0.s8 %v3201
      %v3203 = vlaneseq
      %v3204 = vshrl.u32 %v3203, 7
      %v3205 = vsub.s32 %v3202, %v3204
      %v3206 = vrot.slane %v3192, %v3205
      %v3207 = vcombine.low %v3199, %v3206
      %v3209 = vadd.f32 %v3186, %v3207
      %3210 = vst [vmem:[%s261] sm:$0xff] %v3209
      %p3211 = scmp.eq.s32.totalorder %s23, 2
      // Predicated region
      $region37: #{discriminator_forward.17} parent=31 // pred_check
        %p3212 = pneg %p3211
      $region38: #{discriminator_forward.17} parent=31 // pred_check_branch
        %3214 = sbr.rel (%p3212) target = $region40
      $region39: #{discriminator_forward.17} parent=31 // pred_region
        %v3215 = vld [vmem:[%s261] sm:$0xff]
        %v3216 = vld [vmem:[%s2] sm:$0xf]
        %v3218 = vlaneseq
        %v3219 = vshrl.u32 %v3218, 7
        %v3220 = vsub.s32 0, %v3219
        %v3221 = vrot.slane %v3216, %v3220
        %v3222 = vlaneseq
        %v3223 = vshrl.u32 %v3222, 7
        %v3224 = vsub.s32 1, %v3223
        %v3225 = vrot.slane %v3216, %v3224
        %v3226 = vlaneseq
        %v3227 = vshrl.u32 %v3226, 7
        %v3228 = vsub.s32 2, %v3227
        %v3229 = vrot.slane %v3216, %v3228
        %v3230 = vlaneseq
        %v3231 = vshrl.u32 %v3230, 7
        %v3232 = vsub.s32 3, %v3231
        %v3233 = vrot.slane %v3216, %v3232
        %v3234 = vcombine.low %v3221, %v3225
        %v3235 = vcombine.low %v3229, %v3233
        %v3237 = vunpack.c.l.s4 1983009808
        %v3238 = vunpack.c.0.s8 %v3237
        %v3239 = vlaneseq
        %v3240 = vshrl.u32 %v3239, 7
        %v3241 = vsub.s32 %v3238, %v3240
        %v3242 = vrot.slane %v3234, %v3241
        %v3244 = vunpack.c.l.s4 1983009808
        %v3245 = vunpack.c.0.s8 %v3244
        %v3246 = vlaneseq
        %v3247 = vshrl.u32 %v3246, 7
        %v3248 = vsub.s32 %v3245, %v3247
        %v3249 = vrot.slane %v3235, %v3248
        %v3250 = vcombine.low %v3242, %v3249
        %v3252 = vadd.f32 %v3215, %v3250
        %3253 = vst [vmem:[%s261] sm:$0xff] %v3252
        %v3255 = vcombine.high %v3252, %v3252
        %v3257 = vunpack.c.l.s4 1983009808
        %v3258 = vunpack.c.0.s8 %v3257
        %v3259 = vlaneseq
        %v3260 = vshrl.u32 %v3259, 7
        %v3261 = vsub.s32 %v3258, %v3260
        %v3262 = vrot.slane %v3252, %v3261
        %v3264 = vunpack.c.l.s4 1983009808
        %v3265 = vunpack.c.0.s8 %v3264
        %v3266 = vlaneseq
        %v3267 = vshrl.u32 %v3266, 7
        %v3268 = vsub.s32 %v3265, %v3267
        %v3269 = vrot.slane %v3255, %v3268
        %v3270 = vcombine.high %v3262, %v3262
        %v3271 = vcombine.high %v3269, %v3269
        %vm3276 = vcmask 1041408
        %v3277 = vsel %vm3276, %v3262, 0.0
        %v3278 = vrot.slane %v3277, 4
        %v3279 = vadd.f32 %v3277, %v3278
        %v3280 = vrot.slane %v3279, 2
        %v3281 = vadd.f32 %v3279, %v3280
        %v3282 = vrot.slane %v3281, 1
        %v3283 = vadd.f32 %v3281, %v3282
        %v3284 = vsel %vm3276, %v3270, 0.0
        %v3285 = vrot.slane %v3284, 4
        %v3286 = vadd.f32 %v3284, %v3285
        %v3287 = vrot.slane %v3286, 2
        %v3288 = vadd.f32 %v3286, %v3287
        %v3289 = vrot.slane %v3288, 1
        %v3290 = vadd.f32 %v3288, %v3289
        %v3291 = vsel %vm3276, %v3269, 0.0
        %v3292 = vrot.slane %v3291, 4
        %v3293 = vadd.f32 %v3291, %v3292
        %v3294 = vrot.slane %v3293, 2
        %v3295 = vadd.f32 %v3293, %v3294
        %v3296 = vrot.slane %v3295, 1
        %v3297 = vadd.f32 %v3295, %v3296
        %v3298 = vsel %vm3276, %v3271, 0.0
        %v3299 = vrot.slane %v3298, 4
        %v3300 = vadd.f32 %v3298, %v3299
        %v3301 = vrot.slane %v3300, 2
        %v3302 = vadd.f32 %v3300, %v3301
        %v3303 = vrot.slane %v3302, 1
        %v3304 = vadd.f32 %v3302, %v3303
        %v3309 = vcombine.low %v3283, %v3290
        %v3310 = vcombine.low %v3297, %v3304
        %v3312 = vunpack.c.l.s4 1966171168
        %v3313 = vunpack.c.0.s8 %v3312
        %v3314 = vlaneseq
        %v3315 = vshrl.u32 %v3314, 7
        %v3316 = vsub.s32 %v3313, %v3315
        %v3317 = vrot.slane %v3309, %v3316
        %v3319 = vunpack.c.l.s4 1966171168
        %v3320 = vunpack.c.0.s8 %v3319
        %v3321 = vlaneseq
        %v3322 = vshrl.u32 %v3321, 7
        %v3323 = vsub.s32 %v3320, %v3322
        %v3324 = vrot.slane %v3310, %v3323
        %v3325 = vcombine.low %v3317, %v3324
        %v3327 = vunpack.c.l.s4 1966171168
        %v3328 = vunpack.c.0.s8 %v3327
        %v3329 = vlaneseq
        %v3330 = vshrl.u32 %v3329, 7
        %v3331 = vsub.s32 %v3328, %v3330
        %v3332 = vrot.slane %v3325, %v3331
        %v3334 = vlaneseq
        %vm3335 = vcmp.ge.s32.totalorder %v3334, 0
        %vm3336 = vcmp.lt.s32.totalorder %v3334, 512
        %vm3337 = vmand %vm3335, %vm3336
        %3338 = vst.msk [vmem:[%s270] ss:$2 sm:$0xf] %vm3337, %v3332
        %v3339 = vmul.f32 %v3252, %v3252
        %v3341 = vcombine.high %v3339, %v3339
        %v3343 = vunpack.c.l.s4 1983009808
        %v3344 = vunpack.c.0.s8 %v3343
        %v3345 = vlaneseq
        %v3346 = vshrl.u32 %v3345, 7
        %v3347 = vsub.s32 %v3344, %v3346
        %v3348 = vrot.slane %v3339, %v3347
        %v3350 = vunpack.c.l.s4 1983009808
        %v3351 = vunpack.c.0.s8 %v3350
        %v3352 = vlaneseq
        %v3353 = vshrl.u32 %v3352, 7
        %v3354 = vsub.s32 %v3351, %v3353
        %v3355 = vrot.slane %v3341, %v3354
        %v3356 = vcombine.high %v3348, %v3348
        %v3357 = vcombine.high %v3355, %v3355
        %v3362 = vsel %vm3276, %v3348, 0.0
        %v3363 = vrot.slane %v3362, 4
        %v3364 = vadd.f32 %v3362, %v3363
        %v3365 = vrot.slane %v3364, 2
        %v3366 = vadd.f32 %v3364, %v3365
        %v3367 = vrot.slane %v3366, 1
        %v3368 = vadd.f32 %v3366, %v3367
        %v3369 = vsel %vm3276, %v3356, 0.0
        %v3370 = vrot.slane %v3369, 4
        %v3371 = vadd.f32 %v3369, %v3370
        %v3372 = vrot.slane %v3371, 2
        %v3373 = vadd.f32 %v3371, %v3372
        %v3374 = vrot.slane %v3373, 1
        %v3375 = vadd.f32 %v3373, %v3374
        %v3376 = vsel %vm3276, %v3355, 0.0
        %v3377 = vrot.slane %v3376, 4
        %v3378 = vadd.f32 %v3376, %v3377
        %v3379 = vrot.slane %v3378, 2
        %v3380 = vadd.f32 %v3378, %v3379
        %v3381 = vrot.slane %v3380, 1
        %v3382 = vadd.f32 %v3380, %v3381
        %v3383 = vsel %vm3276, %v3357, 0.0
        %v3384 = vrot.slane %v3383, 4
        %v3385 = vadd.f32 %v3383, %v3384
        %v3386 = vrot.slane %v3385, 2
        %v3387 = vadd.f32 %v3385, %v3386
        %v3388 = vrot.slane %v3387, 1
        %v3389 = vadd.f32 %v3387, %v3388
        %v3394 = vcombine.low %v3368, %v3375
        %v3395 = vcombine.low %v3382, %v3389
        %v3397 = vunpack.c.l.s4 1966171168
        %v3398 = vunpack.c.0.s8 %v3397
        %v3399 = vlaneseq
        %v3400 = vshrl.u32 %v3399, 7
        %v3401 = vsub.s32 %v3398, %v3400
        %v3402 = vrot.slane %v3394, %v3401
        %v3404 = vunpack.c.l.s4 1966171168
        %v3405 = vunpack.c.0.s8 %v3404
        %v3406 = vlaneseq
        %v3407 = vshrl.u32 %v3406, 7
        %v3408 = vsub.s32 %v3405, %v3407
        %v3409 = vrot.slane %v3395, %v3408
        %v3410 = vcombine.low %v3402, %v3409
        %v3412 = vunpack.c.l.s4 1966171168
        %v3413 = vunpack.c.0.s8 %v3412
        %v3414 = vlaneseq
        %v3415 = vshrl.u32 %v3414, 7
        %v3416 = vsub.s32 %v3413, %v3415
        %v3417 = vrot.slane %v3410, %v3416
        %s3419 = scalar_lea.vmem %s270, 1
        %3420 = vst.msk [vmem:[%s3419] ss:$2 sm:$0xf] %vm3337, %v3417
      $region40: #{discriminator_forward.17} parent=31 // pred_fallthru
        _
      %p3421 = scmp.lt.s32.totalorder %s21, 1
      %s3422 = scalar_select %p3421, %s21, 1
      %p3423 = scmp.lt.s32.totalorder %s22, 1
      %s3424 = scalar_select %p3423, %s22, 1
      %s3425 = smul.addr %s3424, 4
      %s3426 = smul.addr %s3422, 8
      %s3427 = sadd.s32 %s3425, %s3426
      %s3428 = smul.addr %s3427, 2
      %s3429 = scalar_lea.vmem %s3, %s3428
      %p3430 = scmp.lt.s32.totalorder %s21, 1
      %s3431 = scalar_select %p3430, %s21, 1
      %p3432 = scmp.lt.s32.totalorder %s22, 1
      %s3433 = scalar_select %p3432, %s22, 1
      %s3434 = smul.addr %s3433, 4
      %s3435 = smul.addr %s3431, 8
      %s3436 = sadd.s32 %s3434, %s3435
      %s3437 = smul.addr %s3436, 2
      %s3438 = scalar_lea.vmem %s4, %s3437
      // Predicated region
      $region41: #{discriminator_forward.17} parent=31 // pred_check
        %p3439 = pneg %p127
      $region42: #{discriminator_forward.17} parent=31 // pred_check_branch
        %3441 = sbr.rel (%p3439) target = $region44
      $region43: #{discriminator_forward.17} parent=31 // pred_region
        _
      $region44: #{discriminator_forward.17} parent=31 // pred_fallthru
        _
      // Predicated region
      $region45: #{discriminator_forward.17} parent=31 // pred_check
        %p3442 = pneg %p155
      $region46: #{discriminator_forward.17} parent=31 // pred_check_branch
        %3444 = sbr.rel (%p3442) target = $region48
      $region47: #{discriminator_forward.17} parent=31 // pred_region
        _
      $region48: #{discriminator_forward.17} parent=31 // pred_fallthru
        _
    $region32: #{discriminator_forward.17} parent=5 // pred_fallthru
      _
    %p3445 = scmp.le.s32.totalorder 2, %s11
    // Predicated region
    $region49: #{discriminator_forward.17} parent=5 // pred_check
      %p3446 = pneg %p3445
    $region50: #{discriminator_forward.17} parent=5 // pred_check_branch
      %3448 = sbr.rel (%p3446) target = $region52
    $region51: #{discriminator_forward.17} parent=5 // pred_region
      %s3449 = ssub.s32 %s11, 2
      // Predicated region
      $region53: #{discriminator_forward.17} parent=51 // pred_check
        %p3450 = pneg %p133
      $region54: #{discriminator_forward.17} parent=51 // pred_check_branch
        %3452 = sbr.rel (%p3450) target = $region56
      $region55: #{discriminator_forward.17} parent=51 // pred_region
        %p3453 = scmp.lt.s32.totalorder %s24, 1
        %s3454 = scalar_select %p3453, %s24, 1
        %p3455 = scmp.lt.s32.totalorder %s25, 1
        %s3456 = scalar_select %p3455, %s25, 1
        %s3457 = smul.addr %s3456, 4
        %s3458 = smul.addr %s3454, 8
        %s3459 = sadd.s32 %s3457, %s3458
        %s3460 = smul.addr %s3459, 2
        %s3461 = scalar_lea.vmem %s3, %s3460
      $region56: #{discriminator_forward.17} parent=51 // pred_fallthru
        _
      // Predicated region
      $region57: #{discriminator_forward.17} parent=51 // pred_check
        %p3462 = pneg %p161
      $region58: #{discriminator_forward.17} parent=51 // pred_check_branch
        %3464 = sbr.rel (%p3462) target = $region60
      $region59: #{discriminator_forward.17} parent=51 // pred_region
        %p3465 = scmp.lt.s32.totalorder %s24, 1
        %s3466 = scalar_select %p3465, %s24, 1
        %p3467 = scmp.lt.s32.totalorder %s25, 1
        %s3468 = scalar_select %p3467, %s25, 1
        %s3469 = smul.addr %s3468, 4
        %s3470 = smul.addr %s3466, 8
        %s3471 = sadd.s32 %s3469, %s3470
        %s3472 = smul.addr %s3471, 2
        %s3473 = scalar_lea.vmem %s4, %s3472
      $region60: #{discriminator_forward.17} parent=51 // pred_fallthru
        _
    $region52: #{discriminator_forward.17} parent=5 // pred_fallthru
      _
  $region6: #{discriminator_forward.17} parent=0 // loop_footer
    %s15 = sadd.s32 1, %s11
  $region7: #{discriminator_forward.17} parent=0 // loop_footer_branch
    %10 = sbr.rel target = $region3
  $region8: #{discriminator_forward.17} parent=0 // loop_exit
    _

</llo_original>
